<compile_context>
chip_gen: v7x
topology: tpu7x:2x2x1
jax: 0.10.0
libtpu: 0.0.40
codegen_flags: <defaults>
</compile_context>

<pallas_src>
import functools

import jax
import jax.numpy as jnp
from jax.experimental import pallas as pl
from jax.experimental.pallas import tpu as pltpu


# --------------------------------------------------------------------------- #
# Kernel 1: fused token head + GRU input->gate pre-GEMM, tiled over N = B*S.
# --------------------------------------------------------------------------- #
def token_and_gates_kernel(x_ref, wd_ref, bd_ref, wo_ref, bo_ref,
                           wig_ref, big_ref, logit_ref, gates_ref):
    # x_ref: (TILE_N, H) f32; weights may be f32 or bf16 (f32 accumulation).
    x = x_ref[...]
    xc = x.astype(wd_ref.dtype)

    # Token head: out_proj(tanh(dense(x)))
    h = jnp.tanh(
        jnp.dot(xc, wd_ref[...], preferred_element_type=jnp.float32)
        + bd_ref[...])
    logit_ref[...] = (
        jnp.dot(h.astype(wo_ref.dtype), wo_ref[...],
                preferred_element_type=jnp.float32) + bo_ref[...]
    ).astype(logit_ref.dtype)

    # GRU input->gate pre-activations: x @ [W_ir|W_iz|W_in] + folded biases.
    gates_ref[...] = (
        jnp.dot(xc, wig_ref[...], preferred_element_type=jnp.float32)
        + big_ref[...]
    ).astype(gates_ref.dtype)


# --------------------------------------------------------------------------- #
# Kernel 2: GRU recurrence over time chunks + func head at the last step.
# --------------------------------------------------------------------------- #
def gru_func_kernel(gates_ref,                     # (B, TILE_T, 3H) f32
                    whg_ref,                       # (H, 3H)  recurrent [r|z|n]
                    bhn_ref,                       # (1, H)   f32
                    wfd_ref, bfd_ref,              # (H, H), (1, H)
                    wfo_ref, bfo_ref,              # (H, 2), (1, 2)
                    func_ref,                      # (B, 2) output
                    h_ref,                         # (B, H) f32 scratch (carry)
                    *, seq_len):
    tblk = pl.program_id(0)

    @pl.when(tblk == 0)
    def _init():
        h_ref[...] = jnp.zeros_like(h_ref)

    B, TT, H3 = gates_ref.shape
    H = whg_ref.shape[0]

    whg = whg_ref[...]
    bhn = bhn_ref[...]
    g = gates_ref[...]                             # (B, TT, 3H) f32

    h = h_ref[...]                                 # f32 carry
    for j in range(TT):                            # static unroll within chunk
        gx = g[:, j, :]                            # (B, 3H) pre-activations
        gh = jnp.dot(h.astype(whg.dtype), whg,
                     preferred_element_type=jnp.float32)   # one MXU push/step
        r = jax.nn.sigmoid(gx[:, :H] + gh[:, :H])
        z = jax.nn.sigmoid(gx[:, H:2 * H] + gh[:, H:2 * H])
        n = jnp.tanh(gx[:, 2 * H:] + r * (gh[:, 2 * H:] + bhn))
        h_new = (1.0 - z) * n + z * h
        if seq_len % TT != 0:                      # mask padded tail timesteps
            h_new = jnp.where(tblk * TT + j < seq_len, h_new, h)
        h = h_new
    h_ref[...] = h

    @pl.when(tblk == pl.num_programs(0) - 1)
    def _finalize():
        f = jnp.tanh(
            jnp.dot(h.astype(wfd_ref.dtype), wfd_ref[...],
                    preferred_element_type=jnp.float32) + bfd_ref[...])
        func_ref[...] = (
            jnp.dot(f.astype(wfo_ref.dtype), wfo_ref[...],
                    preferred_element_type=jnp.float32) + bfo_ref[...]
        ).astype(func_ref.dtype)


# --------------------------------------------------------------------------- #
# Wrapper
# --------------------------------------------------------------------------- #
@functools.partial(jax.jit,
                   static_argnames=("tile_n", "tile_t", "compute_dtype"))
def classification_head(hidden, params, *, tile_n=None, tile_t=None,
                        compute_dtype=jnp.float32):
    """hidden: (B, S, H) float32.  Returns (logits (B,S), func (B,2))."""
    B, S, H = hidden.shape
    N = B * S
    H3 = 3 * H
    cd = compute_dtype

    if tile_n is None:
        tile_n = N if N <= 512 else 512            # 512 rows: MXU-shaped tiles
    if tile_t is None:
        tile_t = S if S <= 8 else 8                # unroll 8 steps per chunk
    assert tile_n == N or tile_n % 8 == 0
    assert tile_t == S or tile_t % 8 == 0

    x_flat = hidden.reshape(N, H)                  # free reshape

    # ---- parameter packing (host/XLA side, cheap) -------------------------
    wd = params["dense_wT"].astype(cd)
    bd = params["dense_b"]
    wo = params["out_wT"].astype(cd)
    bo = params["out_b"]
    wig = jnp.concatenate(
        [params["w_ir"], params["w_iz"], params["w_in"]], axis=1).astype(cd)
    big = jnp.concatenate(
        [params["b_ir"] + params["b_hr"],
         params["b_iz"] + params["b_hz"],
         params["b_in"]], axis=1)                  # f32, b_h{r,z} folded in
    whg = jnp.concatenate(
        [params["w_hr"], params["w_hz"], params["w_hn"]], axis=1).astype(cd)
    bhn = params["b_hn"]
    wfd = params["fdense_wT"].astype(cd)
    bfd = params["fdense_b"]
    wfo = params["fout_wT"].astype(cd)
    bfo = params["fout_b"]

    full = lambda i: (0, 0)
    cparams = lambda sem: pltpu.CompilerParams(
        dimension_semantics=sem,
        vmem_limit_bytes=32 * 1024 * 1024)         # raise v5e's 16 MiB default

    # ---- kernel 1: token head + input-gate pre-GEMM ------------------------
    grid_n = pl.cdiv(N, tile_n)
    fused_cost = pl.CostEstimate(
        flops=2 * N * H * (4 * H + 1),
        transcendentals=N * H,
        bytes_accessed=4 * (N * H + N * H3 + N + 4 * H * H + 5 * H + 2))

    logits_col, gates_flat = pl.pallas_call(
        token_and_gates_kernel,
        out_shape=(jax.ShapeDtypeStruct((N, 1), jnp.float32),
                   jax.ShapeDtypeStruct((N, H3), jnp.float32)),
        grid=(grid_n,),
        in_specs=[
            pl.BlockSpec((tile_n, H), lambda i: (i, 0)),
            pl.BlockSpec((H, H), full),
            pl.BlockSpec((1, H), full),
            pl.BlockSpec((H, 1), full),
            pl.BlockSpec((1, 1), full),
            pl.BlockSpec((H, H3), full),
            pl.BlockSpec((1, H3), full),
        ],
        out_specs=(pl.BlockSpec((tile_n, 1), lambda i: (i, 0)),
                   pl.BlockSpec((tile_n, H3), lambda i: (i, 0))),
        compiler_params=cparams(("parallel",)),
        cost_estimate=fused_cost,
    )(x_flat, wd, bd, wo, bo, wig, big)

    logits = logits_col.reshape(B, S)              # free reshapes
    gates = gates_flat.reshape(B, S, H3)

    # ---- kernel 2: streamed GRU recurrence + func head ---------------------
    grid_t = pl.cdiv(S, tile_t)
    gru_cost = pl.CostEstimate(
        flops=2 * S * B * H * H3 + 2 * B * H * (H + 2),
        transcendentals=S * B * H3 + B * H,
        bytes_accessed=4 * (B * S * H3 + H * H3 + H * H + 4 * H + 2 * B + 2))

    func = pl.pallas_call(
        functools.partial(gru_func_kernel, seq_len=S),
        out_shape=jax.ShapeDtypeStruct((B, 2), jnp.float32),
        grid=(grid_t,),
        in_specs=[
            pl.BlockSpec((B, tile_t, H3), lambda t: (0, t, 0)),
            pl.BlockSpec((H, H3), full),
            pl.BlockSpec((1, H), full),
            pl.BlockSpec((H, H), full),
            pl.BlockSpec((1, H), full),
            pl.BlockSpec((H, 2), full),
            pl.BlockSpec((1, 2), full),
        ],
        out_specs=pl.BlockSpec((B, 2), lambda t: (0, 0)),
        scratch_shapes=[pltpu.VMEM((B, H), jnp.float32)],
        compiler_params=cparams(("arbitrary",)),
        cost_estimate=gru_cost,
    )(gates, whg, bhn, wfd, bfd, wfo, bfo)

    return logits, func


# --------------------------------------------------------------------------- #
# Param init / pure-JAX reference
# --------------------------------------------------------------------------- #
def init_params(key, H):
    keys = jax.random.split(key, 20)
    u = lambda k, shape, scale: jax.random.uniform(k, shape, jnp.float32,
                                                   -scale, scale)
    s = 1.0 / jnp.sqrt(H)
    return {
        # nn.Linear(H, H): stored pre-transposed as (in, out)
        "dense_wT": u(keys[0], (H, H), s),
        "dense_b":  u(keys[1], (1, H), s),
        # nn.Linear(H, 1)
        "out_wT":   u(keys[2], (H, 1), s),
        "out_b":    u(keys[3], (1, 1), s),
        # GRU gates (r, z, n): input->gate and hidden->gate, pre-transposed
        "w_ir": u(keys[4], (H, H), s), "w_iz": u(keys[5], (H, H), s),
        "w_in": u(keys[6], (H, H), s),
        "w_hr": u(keys[7], (H, H), s), "w_hz": u(keys[8], (H, H), s),
        "w_hn": u(keys[9], (H, H), s),
        "b_ir": u(keys[10], (1, H), s), "b_iz": u(keys[11], (1, H), s),
        "b_in": u(keys[12], (1, H), s),
        "b_hr": u(keys[13], (1, H), s), "b_hz": u(keys[14], (1, H), s),
        "b_hn": u(keys[15], (1, H), s),
        # func_dense (H, H), func_out_proj (H, 2)
        "fdense_wT": u(keys[16], (H, H), s),
        "fdense_b":  u(keys[17], (1, H), s),
        "fout_wT":   u(keys[18], (H, 2), s),
        "fout_b":    u(keys[19], (1, 2), s),
    }


def reference(hidden, p):
    """Pure-JAX reference (per-gate, unpacked) for validation."""
    B, S, H = hidden.shape
    hp = lambda a, b: jnp.dot(a, b, precision=jax.lax.Precision.HIGHEST)

    x = jnp.tanh(hp(hidden, p["dense_wT"]) + p["dense_b"])
    logits = (hp(x, p["out_wT"]) + p["out_b"])[..., 0]

    h = jnp.zeros((B, H), jnp.float32)
    for t in range(S):
        x_t = hidden[:, t, :]
        r = jax.nn.sigmoid(hp(x_t, p["w_ir"]) + p["b_ir"]
                           + hp(h, p["w_hr"]) + p["b_hr"])
        z = jax.nn.sigmoid(hp(x_t, p["w_iz"]) + p["b_iz"]
                           + hp(h, p["w_hz"]) + p["b_hz"])
        n = jnp.tanh(hp(x_t, p["w_in"]) + p["b_in"]
                     + r * (hp(h, p["w_hn"]) + p["b_hn"]))
        h = (1.0 - z) * n + z * h
    f = jnp.tanh(hp(h, p["fdense_wT"]) + p["fdense_b"])
    func = hp(f, p["fout_wT"]) + p["fout_b"]
    return logits, func


# --------------------------------------------------------------------------- #
# Main
# --------------------------------------------------------------------------- #
if __name__ == "__main__":
    B, S, H = 16, 12, 128    # small synthetic shapes (hidden_dim = H = 128)
    key = jax.random.PRNGKey(0)
    k_x, k_p = jax.random.split(key)
    hidden = jax.random.normal(k_x, (B, S, H), jnp.float32)
    params = init_params(k_p, H)

    ref_logits, ref_func = reference(hidden, params)

    # f32 path with small tiles so both grids have >1 step and the GRU masks a
    # partial tail chunk (S=12, tile_t=8).
    logits, func = classification_head(hidden, params, tile_n=64, tile_t=8,
                                        compute_dtype=jnp.float32)
    logits = jax.block_until_ready(logits)
    func = jax.block_until_ready(func)
    assert logits.shape == (B, S) and func.shape == (B, 2)
    assert jnp.allclose(logits, ref_logits, atol=2e-4, rtol=2e-4)
    assert jnp.allclose(func, ref_func, atol=2e-4, rtol=2e-4)

    # bf16 matmul path (production config: bf16 weights, f32 accumulation /
    # f32 carry) -- loose tolerance smoke check.
    logits16, func16 = classification_head(hidden, params,
                                           compute_dtype=jnp.bfloat16)
    logits16 = jax.block_until_ready(logits16)
    func16 = jax.block_until_ready(func16)
    assert jnp.allclose(logits16, ref_logits, atol=1e-1, rtol=1e-1)
    assert jnp.allclose(func16, ref_func, atol=1e-1, rtol=1e-1)

    print("KERNEL_OK")
</pallas_src>

<mosaic_0001>
module attributes {stable_mosaic.version = 11 : i64} {
  func.func @token_and_gates_kernel(%arg0: i32, %arg1: memref<64x128xf32, #tpu.memory_space<vmem>>, %arg2: memref<128x128xf32, #tpu.memory_space<vmem>>, %arg3: memref<1x128xf32, #tpu.memory_space<vmem>>, %arg4: memref<128x1xf32, #tpu.memory_space<vmem>>, %arg5: memref<1x1xf32, #tpu.memory_space<vmem>>, %arg6: memref<128x384xf32, #tpu.memory_space<vmem>>, %arg7: memref<1x384xf32, #tpu.memory_space<vmem>>, %arg8: memref<64x1xf32, #tpu.memory_space<vmem>>, %arg9: memref<64x384xf32, #tpu.memory_space<vmem>>) attributes {dimension_semantics = [#tpu.dimension_semantics<parallel>], iteration_bounds = array<i64: 3>, scalar_prefetch = 0 : i64, scratch_operands = 0 : i64, tpu.core_type = #tpu.core_type<tc>, window_params = [{transform_indices = @transform_0, window_bounds = array<i64: 64, 128>}, {pipeline_mode = #tpu.pipeline_mode<synchronous>, transform_indices = @transform_1, window_bounds = array<i64: 128, 128>}, {pipeline_mode = #tpu.pipeline_mode<synchronous>, transform_indices = @transform_2, window_bounds = array<i64: 1, 128>}, {pipeline_mode = #tpu.pipeline_mode<synchronous>, transform_indices = @transform_3, window_bounds = array<i64: 128, 1>}, {pipeline_mode = #tpu.pipeline_mode<synchronous>, transform_indices = @transform_4, window_bounds = array<i64: 1, 1>}, {pipeline_mode = #tpu.pipeline_mode<synchronous>, transform_indices = @transform_5, window_bounds = array<i64: 128, 384>}, {pipeline_mode = #tpu.pipeline_mode<synchronous>, transform_indices = @transform_6, window_bounds = array<i64: 1, 384>}, {transform_indices = @transform_7, window_bounds = array<i64: 64, 1>}, {transform_indices = @transform_8, window_bounds = array<i64: 64, 384>}]} {
    %c0 = arith.constant 0 : index
    %c0_0 = arith.constant 0 : index
    %0 = vector.load %arg1[%c0, %c0_0] : memref<64x128xf32, #tpu.memory_space<vmem>>, vector<64x128xf32>
    %c0_1 = arith.constant 0 : index
    %c0_2 = arith.constant 0 : index
    %1 = vector.load %arg2[%c0_1, %c0_2] : memref<128x128xf32, #tpu.memory_space<vmem>>, vector<128x128xf32>
    %cst = arith.constant dense<0.000000e+00> : vector<64x128xf32>
    %2 = tpu.matmul %0, %1, %cst {dimension_numbers = #tpu.dot_dimension_numbers<[1], [0], [0], [1], [0, 0, 1, 1], [], []>} : vector<64x128xf32>, vector<128x128xf32>, vector<64x128xf32> -> vector<64x128xf32>
    %c0_3 = arith.constant 0 : index
    %c0_4 = arith.constant 0 : index
    %3 = vector.load %arg3[%c0_3, %c0_4] : memref<1x128xf32, #tpu.memory_space<vmem>>, vector<1x128xf32>
    %4 = vector.broadcast %3 : vector<1x128xf32> to vector<64x128xf32>
    %5 = arith.addf %2, %4 : vector<64x128xf32>
    %6 = math.tanh %5 : vector<64x128xf32>
    %c0_5 = arith.constant 0 : index
    %c0_6 = arith.constant 0 : index
    %7 = vector.load %arg4[%c0_5, %c0_6] : memref<128x1xf32, #tpu.memory_space<vmem>>, vector<128x1xf32>
    %cst_7 = arith.constant dense<0.000000e+00> : vector<64x1xf32>
    %8 = tpu.matmul %6, %7, %cst_7 {dimension_numbers = #tpu.dot_dimension_numbers<[1], [0], [0], [1], [0, 0, 1, 1], [], []>} : vector<64x128xf32>, vector<128x1xf32>, vector<64x1xf32> -> vector<64x1xf32>
    %c0_8 = arith.constant 0 : index
    %c0_9 = arith.constant 0 : index
    %9 = vector.load %arg5[%c0_8, %c0_9] : memref<1x1xf32, #tpu.memory_space<vmem>>, vector<1x1xf32>
    %10 = vector.broadcast %9 : vector<1x1xf32> to vector<64x1xf32>
    %11 = arith.addf %8, %10 : vector<64x1xf32>
    %c0_10 = arith.constant 0 : index
    %c0_11 = arith.constant 0 : index
    %12 = vector.load %arg8[%c0_10, %c0_11] : memref<64x1xf32, #tpu.memory_space<vmem>>, vector<64x1xf32>
    tpu.vector_store %arg8[%c0_10, %c0_11], %11 {strides = array<i32>} : memref<64x1xf32, #tpu.memory_space<vmem>>, vector<64x1xf32>,
    %c0_12 = arith.constant 0 : index
    %c0_13 = arith.constant 0 : index
    %13 = vector.load %arg6[%c0_12, %c0_13] : memref<128x384xf32, #tpu.memory_space<vmem>>, vector<128x384xf32>
    %cst_14 = arith.constant dense<0.000000e+00> : vector<64x384xf32>
    %14 = tpu.matmul %0, %13, %cst_14 {dimension_numbers = #tpu.dot_dimension_numbers<[1], [0], [0], [1], [0, 0, 1, 1], [], []>} : vector<64x128xf32>, vector<128x384xf32>, vector<64x384xf32> -> vector<64x384xf32>
    %c0_15 = arith.constant 0 : index
    %c0_16 = arith.constant 0 : index
    %15 = vector.load %arg7[%c0_15, %c0_16] : memref<1x384xf32, #tpu.memory_space<vmem>>, vector<1x384xf32>
    %16 = vector.broadcast %15 : vector<1x384xf32> to vector<64x384xf32>
    %17 = arith.addf %14, %16 : vector<64x384xf32>
    %c0_17 = arith.constant 0 : index
    %c0_18 = arith.constant 0 : index
    %18 = vector.load %arg9[%c0_17, %c0_18] : memref<64x384xf32, #tpu.memory_space<vmem>>, vector<64x384xf32>
    tpu.vector_store %arg9[%c0_17, %c0_18], %17 {strides = array<i32>} : memref<64x384xf32, #tpu.memory_space<vmem>>, vector<64x384xf32>,
    return
  }
  func.func @transform_0(%arg0: i32) -> (i32, i32) {
    %c0_i32 = arith.constant 0 : i32
    %c0_i32_0 = arith.constant 0 : i32
    return %arg0, %c0_i32 : i32, i32
  }
  func.func @transform_1(%arg0: i32) -> (i32, i32) {
    %c0_i32 = arith.constant 0 : i32
    %c0_i32_0 = arith.constant 0 : i32
    %c0_i32_1 = arith.constant 0 : i32
    return %c0_i32, %c0_i32_0 : i32, i32
  }
  func.func @transform_2(%arg0: i32) -> (i32, i32) {
    %c0_i32 = arith.constant 0 : i32
    %c0_i32_0 = arith.constant 0 : i32
    %c0_i32_1 = arith.constant 0 : i32
    return %c0_i32, %c0_i32_0 : i32, i32
  }
  func.func @transform_3(%arg0: i32) -> (i32, i32) {
    %c0_i32 = arith.constant 0 : i32
    %c0_i32_0 = arith.constant 0 : i32
    %c0_i32_1 = arith.constant 0 : i32
    return %c0_i32, %c0_i32_0 : i32, i32
  }
  func.func @transform_4(%arg0: i32) -> (i32, i32) {
    %c0_i32 = arith.constant 0 : i32
    %c0_i32_0 = arith.constant 0 : i32
    %c0_i32_1 = arith.constant 0 : i32
    return %c0_i32, %c0_i32_0 : i32, i32
  }
  func.func @transform_5(%arg0: i32) -> (i32, i32) {
    %c0_i32 = arith.constant 0 : i32
    %c0_i32_0 = arith.constant 0 : i32
    %c0_i32_1 = arith.constant 0 : i32
    return %c0_i32, %c0_i32_0 : i32, i32
  }
  func.func @transform_6(%arg0: i32) -> (i32, i32) {
    %c0_i32 = arith.constant 0 : i32
    %c0_i32_0 = arith.constant 0 : i32
    %c0_i32_1 = arith.constant 0 : i32
    return %c0_i32, %c0_i32_0 : i32, i32
  }
  func.func @transform_7(%arg0: i32) -> (i32, i32) {
    %c0_i32 = arith.constant 0 : i32
    %c0_i32_0 = arith.constant 0 : i32
    return %arg0, %c0_i32 : i32, i32
  }
  func.func @transform_8(%arg0: i32) -> (i32, i32) {
    %c0_i32 = arith.constant 0 : i32
    %c0_i32_0 = arith.constant 0 : i32
    return %arg0, %c0_i32 : i32, i32
  }
}

module attributes {stable_mosaic.version = 11 : i64} {
  func.func @gru_func_kernel(%arg0: i32, %arg1: memref<16x8x384xf32, #tpu.memory_space<vmem>>, %arg2: memref<128x384xf32, #tpu.memory_space<vmem>>, %arg3: memref<1x128xf32, #tpu.memory_space<vmem>>, %arg4: memref<128x128xf32, #tpu.memory_space<vmem>>, %arg5: memref<1x128xf32, #tpu.memory_space<vmem>>, %arg6: memref<128x2xf32, #tpu.memory_space<vmem>>, %arg7: memref<1x2xf32, #tpu.memory_space<vmem>>, %arg8: memref<16x2xf32, #tpu.memory_space<vmem>>, %arg9: memref<16x128xf32, #tpu.memory_space<vmem>>) attributes {dimension_semantics = [#tpu.dimension_semantics<arbitrary>], iteration_bounds = array<i64: 2>, scalar_prefetch = 0 : i64, scratch_operands = 1 : i64, tpu.core_type = #tpu.core_type<tc>, window_params = [{transform_indices = @transform_0, window_bounds = array<i64: 16, 8, 384>}, {pipeline_mode = #tpu.pipeline_mode<synchronous>, transform_indices = @transform_1, window_bounds = array<i64: 128, 384>}, {pipeline_mode = #tpu.pipeline_mode<synchronous>, transform_indices = @transform_2, window_bounds = array<i64: 1, 128>}, {pipeline_mode = #tpu.pipeline_mode<synchronous>, transform_indices = @transform_3, window_bounds = array<i64: 128, 128>}, {pipeline_mode = #tpu.pipeline_mode<synchronous>, transform_indices = @transform_4, window_bounds = array<i64: 1, 128>}, {pipeline_mode = #tpu.pipeline_mode<synchronous>, transform_indices = @transform_5, window_bounds = array<i64: 128, 2>}, {pipeline_mode = #tpu.pipeline_mode<synchronous>, transform_indices = @transform_6, window_bounds = array<i64: 1, 2>}, {pipeline_mode = #tpu.pipeline_mode<synchronous>, transform_indices = @transform_7, window_bounds = array<i64: 16, 2>}]} {
    %c0_i32 = arith.constant 0 : i32
    %0 = arith.cmpi eq, %arg0, %c0_i32 : i32
    %1 = arith.extui %0 : i1 to i32
    %c0_i32_0 = arith.constant 0 : i32
    %2 = arith.cmpi ne, %1, %c0_i32_0 : i32
    scf.if %2 {
      %cst_59 = arith.constant 0.000000e+00 : f32
      %291 = vector.broadcast %cst_59 : f32 to vector<16x128xf32>
      %c0_60 = arith.constant 0 : index
      %c0_61 = arith.constant 0 : index
      %292 = vector.load %arg9[%c0_60, %c0_61] : memref<16x128xf32, #tpu.memory_space<vmem>>, vector<16x128xf32>
      tpu.vector_store %arg9[%c0_60, %c0_61], %291 {strides = array<i32>} : memref<16x128xf32, #tpu.memory_space<vmem>>, vector<16x128xf32>,
    } else {
    }
    %c0 = arith.constant 0 : index
    %c0_1 = arith.constant 0 : index
    %3 = vector.load %arg2[%c0, %c0_1] : memref<128x384xf32, #tpu.memory_space<vmem>>, vector<128x384xf32>
    %c0_2 = arith.constant 0 : index
    %c0_3 = arith.constant 0 : index
    %4 = vector.load %arg3[%c0_2, %c0_3] : memref<1x128xf32, #tpu.memory_space<vmem>>, vector<1x128xf32>
    %c0_4 = arith.constant 0 : index
    %c0_5 = arith.constant 0 : index
    %c0_6 = arith.constant 0 : index
    %5 = vector.load %arg1[%c0_4, %c0_5, %c0_6] : memref<16x8x384xf32, #tpu.memory_space<vmem>>, vector<16x8x384xf32>
    %c0_7 = arith.constant 0 : index
    %c0_8 = arith.constant 0 : index
    %6 = vector.load %arg9[%c0_7, %c0_8] : memref<16x128xf32, #tpu.memory_space<vmem>>, vector<16x128xf32>
    %7 = vector.extract_strided_slice %5 {offsets = [0, 0, 0], sizes = [16, 1, 384], strides = [1, 1, 1]} : vector<16x8x384xf32> to vector<16x1x384xf32>
    %8 = vector.shape_cast %7 : vector<16x1x384xf32> to vector<16x384xf32>
    %cst = arith.constant dense<0.000000e+00> : vector<16x384xf32>
    %9 = tpu.matmul %6, %3, %cst {dimension_numbers = #tpu.dot_dimension_numbers<[1], [0], [0], [1], [0, 0, 1, 1], [], []>} : vector<16x128xf32>, vector<128x384xf32>, vector<16x384xf32> -> vector<16x384xf32>
    %10 = vector.extract_strided_slice %8 {offsets = [0, 0], sizes = [16, 128], strides = [1, 1]} : vector<16x384xf32> to vector<16x128xf32>
    %11 = vector.extract_strided_slice %9 {offsets = [0, 0], sizes = [16, 128], strides = [1, 1]} : vector<16x384xf32> to vector<16x128xf32>
    %12 = arith.addf %10, %11 : vector<16x128xf32>
    %13 = arith.negf %12 : vector<16x128xf32>
    %14 = math.exp %13 : vector<16x128xf32>
    %cst_9 = arith.constant 1.000000e+00 : f32
    %15 = vector.broadcast %cst_9 : f32 to vector<16x128xf32>
    %16 = arith.addf %15, %14 : vector<16x128xf32>
    %17 = arith.divf %15, %16 : vector<16x128xf32>
    %18 = vector.extract_strided_slice %8 {offsets = [0, 128], sizes = [16, 128], strides = [1, 1]} : vector<16x384xf32> to vector<16x128xf32>
    %19 = vector.extract_strided_slice %9 {offsets = [0, 128], sizes = [16, 128], strides = [1, 1]} : vector<16x384xf32> to vector<16x128xf32>
    %20 = arith.addf %18, %19 : vector<16x128xf32>
    %21 = arith.negf %20 : vector<16x128xf32>
    %22 = math.exp %21 : vector<16x128xf32>
    %cst_10 = arith.constant 1.000000e+00 : f32
    %23 = vector.broadcast %cst_10 : f32 to vector<16x128xf32>
    %24 = arith.addf %23, %22 : vector<16x128xf32>
    %25 = arith.divf %23, %24 : vector<16x128xf32>
    %26 = vector.extract_strided_slice %8 {offsets = [0, 256], sizes = [16, 128], strides = [1, 1]} : vector<16x384xf32> to vector<16x128xf32>
    %27 = vector.extract_strided_slice %9 {offsets = [0, 256], sizes = [16, 128], strides = [1, 1]} : vector<16x384xf32> to vector<16x128xf32>
    %28 = vector.broadcast %4 : vector<1x128xf32> to vector<16x128xf32>
    %29 = arith.addf %27, %28 : vector<16x128xf32>
    %30 = arith.mulf %17, %29 : vector<16x128xf32>
    %31 = arith.addf %26, %30 : vector<16x128xf32>
    %32 = math.tanh %31 : vector<16x128xf32>
    %cst_11 = arith.constant 1.000000e+00 : f32
    %33 = vector.broadcast %cst_11 : f32 to vector<16x128xf32>
    %34 = arith.subf %33, %25 : vector<16x128xf32>
    %35 = arith.mulf %34, %32 : vector<16x128xf32>
    %36 = arith.mulf %25, %6 : vector<16x128xf32>
    %37 = arith.addf %35, %36 : vector<16x128xf32>
    %c8_i32 = arith.constant 8 : i32
    %38 = arith.muli %arg0, %c8_i32 : i32
    %c0_i32_12 = arith.constant 0 : i32
    %39 = arith.addi %38, %c0_i32_12 : i32
    %c12_i32 = arith.constant 12 : i32
    %40 = arith.cmpi slt, %39, %c12_i32 : i32
    %41 = arith.select %40, %37, %6 : vector<16x128xf32>
    %42 = vector.extract_strided_slice %5 {offsets = [0, 1, 0], sizes = [16, 1, 384], strides = [1, 1, 1]} : vector<16x8x384xf32> to vector<16x1x384xf32>
    %43 = vector.shape_cast %42 : vector<16x1x384xf32> to vector<16x384xf32>
    %cst_13 = arith.constant dense<0.000000e+00> : vector<16x384xf32>
    %44 = tpu.matmul %41, %3, %cst_13 {dimension_numbers = #tpu.dot_dimension_numbers<[1], [0], [0], [1], [0, 0, 1, 1], [], []>} : vector<16x128xf32>, vector<128x384xf32>, vector<16x384xf32> -> vector<16x384xf32>
    %45 = vector.extract_strided_slice %43 {offsets = [0, 0], sizes = [16, 128], strides = [1, 1]} : vector<16x384xf32> to vector<16x128xf32>
    %46 = vector.extract_strided_slice %44 {offsets = [0, 0], sizes = [16, 128], strides = [1, 1]} : vector<16x384xf32> to vector<16x128xf32>
    %47 = arith.addf %45, %46 : vector<16x128xf32>
    %48 = arith.negf %47 : vector<16x128xf32>
    %49 = math.exp %48 : vector<16x128xf32>
    %cst_14 = arith.constant 1.000000e+00 : f32
    %50 = vector.broadcast %cst_14 : f32 to vector<16x128xf32>
    %51 = arith.addf %50, %49 : vector<16x128xf32>
    %52 = arith.divf %50, %51 : vector<16x128xf32>
    %53 = vector.extract_strided_slice %43 {offsets = [0, 128], sizes = [16, 128], strides = [1, 1]} : vector<16x384xf32> to vector<16x128xf32>
    %54 = vector.extract_strided_slice %44 {offsets = [0, 128], sizes = [16, 128], strides = [1, 1]} : vector<16x384xf32> to vector<16x128xf32>
    %55 = arith.addf %53, %54 : vector<16x128xf32>
    %56 = arith.negf %55 : vector<16x128xf32>
    %57 = math.exp %56 : vector<16x128xf32>
    %cst_15 = arith.constant 1.000000e+00 : f32
    %58 = vector.broadcast %cst_15 : f32 to vector<16x128xf32>
    %59 = arith.addf %58, %57 : vector<16x128xf32>
    %60 = arith.divf %58, %59 : vector<16x128xf32>
    %61 = vector.extract_strided_slice %43 {offsets = [0, 256], sizes = [16, 128], strides = [1, 1]} : vector<16x384xf32> to vector<16x128xf32>
    %62 = vector.extract_strided_slice %44 {offsets = [0, 256], sizes = [16, 128], strides = [1, 1]} : vector<16x384xf32> to vector<16x128xf32>
    %63 = vector.broadcast %4 : vector<1x128xf32> to vector<16x128xf32>
    %64 = arith.addf %62, %63 : vector<16x128xf32>
    %65 = arith.mulf %52, %64 : vector<16x128xf32>
    %66 = arith.addf %61, %65 : vector<16x128xf32>
    %67 = math.tanh %66 : vector<16x128xf32>
    %cst_16 = arith.constant 1.000000e+00 : f32
    %68 = vector.broadcast %cst_16 : f32 to vector<16x128xf32>
    %69 = arith.subf %68, %60 : vector<16x128xf32>
    %70 = arith.mulf %69, %67 : vector<16x128xf32>
    %71 = arith.mulf %60, %41 : vector<16x128xf32>
    %72 = arith.addf %70, %71 : vector<16x128xf32>
    %c8_i32_17 = arith.constant 8 : i32
    %73 = arith.muli %arg0, %c8_i32_17 : i32
    %c1_i32 = arith.constant 1 : i32
    %74 = arith.addi %73, %c1_i32 : i32
    %c12_i32_18 = arith.constant 12 : i32
    %75 = arith.cmpi slt, %74, %c12_i32_18 : i32
    %76 = arith.select %75, %72, %41 : vector<16x128xf32>
    %77 = vector.extract_strided_slice %5 {offsets = [0, 2, 0], sizes = [16, 1, 384], strides = [1, 1, 1]} : vector<16x8x384xf32> to vector<16x1x384xf32>
    %78 = vector.shape_cast %77 : vector<16x1x384xf32> to vector<16x384xf32>
    %cst_19 = arith.constant dense<0.000000e+00> : vector<16x384xf32>
    %79 = tpu.matmul %76, %3, %cst_19 {dimension_numbers = #tpu.dot_dimension_numbers<[1], [0], [0], [1], [0, 0, 1, 1], [], []>} : vector<16x128xf32>, vector<128x384xf32>, vector<16x384xf32> -> vector<16x384xf32>
    %80 = vector.extract_strided_slice %78 {offsets = [0, 0], sizes = [16, 128], strides = [1, 1]} : vector<16x384xf32> to vector<16x128xf32>
    %81 = vector.extract_strided_slice %79 {offsets = [0, 0], sizes = [16, 128], strides = [1, 1]} : vector<16x384xf32> to vector<16x128xf32>
    %82 = arith.addf %80, %81 : vector<16x128xf32>
    %83 = arith.negf %82 : vector<16x128xf32>
    %84 = math.exp %83 : vector<16x128xf32>
    %cst_20 = arith.constant 1.000000e+00 : f32
    %85 = vector.broadcast %cst_20 : f32 to vector<16x128xf32>
    %86 = arith.addf %85, %84 : vector<16x128xf32>
    %87 = arith.divf %85, %86 : vector<16x128xf32>
    %88 = vector.extract_strided_slice %78 {offsets = [0, 128], sizes = [16, 128], strides = [1, 1]} : vector<16x384xf32> to vector<16x128xf32>
    %89 = vector.extract_strided_slice %79 {offsets = [0, 128], sizes = [16, 128], strides = [1, 1]} : vector<16x384xf32> to vector<16x128xf32>
    %90 = arith.addf %88, %89 : vector<16x128xf32>
    %91 = arith.negf %90 : vector<16x128xf32>
    %92 = math.exp %91 : vector<16x128xf32>
    %cst_21 = arith.constant 1.000000e+00 : f32
    %93 = vector.broadcast %cst_21 : f32 to vector<16x128xf32>
    %94 = arith.addf %93, %92 : vector<16x128xf32>
    %95 = arith.divf %93, %94 : vector<16x128xf32>
    %96 = vector.extract_strided_slice %78 {offsets = [0, 256], sizes = [16, 128], strides = [1, 1]} : vector<16x384xf32> to vector<16x128xf32>
    %97 = vector.extract_strided_slice %79 {offsets = [0, 256], sizes = [16, 128], strides = [1, 1]} : vector<16x384xf32> to vector<16x128xf32>
    %98 = vector.broadcast %4 : vector<1x128xf32> to vector<16x128xf32>
    %99 = arith.addf %97, %98 : vector<16x128xf32>
    %100 = arith.mulf %87, %99 : vector<16x128xf32>
    %101 = arith.addf %96, %100 : vector<16x128xf32>
    %102 = math.tanh %101 : vector<16x128xf32>
    %cst_22 = arith.constant 1.000000e+00 : f32
    %103 = vector.broadcast %cst_22 : f32 to vector<16x128xf32>
    %104 = arith.subf %103, %95 : vector<16x128xf32>
    %105 = arith.mulf %104, %102 : vector<16x128xf32>
    %106 = arith.mulf %95, %76 : vector<16x128xf32>
    %107 = arith.addf %105, %106 : vector<16x128xf32>
    %c8_i32_23 = arith.constant 8 : i32
    %108 = arith.muli %arg0, %c8_i32_23 : i32
    %c2_i32 = arith.constant 2 : i32
    %109 = arith.addi %108, %c2_i32 : i32
    %c12_i32_24 = arith.constant 12 : i32
    %110 = arith.cmpi slt, %109, %c12_i32_24 : i32
    %111 = arith.select %110, %107, %76 : vector<16x128xf32>
    %112 = vector.extract_strided_slice %5 {offsets = [0, 3, 0], sizes = [16, 1, 384], strides = [1, 1, 1]} : vector<16x8x384xf32> to vector<16x1x384xf32>
    %113 = vector.shape_cast %112 : vector<16x1x384xf32> to vector<16x384xf32>
    %cst_25 = arith.constant dense<0.000000e+00> : vector<16x384xf32>
    %114 = tpu.matmul %111, %3, %cst_25 {dimension_numbers = #tpu.dot_dimension_numbers<[1], [0], [0], [1], [0, 0, 1, 1], [], []>} : vector<16x128xf32>, vector<128x384xf32>, vector<16x384xf32> -> vector<16x384xf32>
    %115 = vector.extract_strided_slice %113 {offsets = [0, 0], sizes = [16, 128], strides = [1, 1]} : vector<16x384xf32> to vector<16x128xf32>
    %116 = vector.extract_strided_slice %114 {offsets = [0, 0], sizes = [16, 128], strides = [1, 1]} : vector<16x384xf32> to vector<16x128xf32>
    %117 = arith.addf %115, %116 : vector<16x128xf32>
    %118 = arith.negf %117 : vector<16x128xf32>
    %119 = math.exp %118 : vector<16x128xf32>
    %cst_26 = arith.constant 1.000000e+00 : f32
    %120 = vector.broadcast %cst_26 : f32 to vector<16x128xf32>
    %121 = arith.addf %120, %119 : vector<16x128xf32>
    %122 = arith.divf %120, %121 : vector<16x128xf32>
    %123 = vector.extract_strided_slice %113 {offsets = [0, 128], sizes = [16, 128], strides = [1, 1]} : vector<16x384xf32> to vector<16x128xf32>
    %124 = vector.extract_strided_slice %114 {offsets = [0, 128], sizes = [16, 128], strides = [1, 1]} : vector<16x384xf32> to vector<16x128xf32>
    %125 = arith.addf %123, %124 : vector<16x128xf32>
    %126 = arith.negf %125 : vector<16x128xf32>
    %127 = math.exp %126 : vector<16x128xf32>
    %cst_27 = arith.constant 1.000000e+00 : f32
    %128 = vector.broadcast %cst_27 : f32 to vector<16x128xf32>
    %129 = arith.addf %128, %127 : vector<16x128xf32>
    %130 = arith.divf %128, %129 : vector<16x128xf32>
    %131 = vector.extract_strided_slice %113 {offsets = [0, 256], sizes = [16, 128], strides = [1, 1]} : vector<16x384xf32> to vector<16x128xf32>
    %132 = vector.extract_strided_slice %114 {offsets = [0, 256], sizes = [16, 128], strides = [1, 1]} : vector<16x384xf32> to vector<16x128xf32>
    %133 = vector.broadcast %4 : vector<1x128xf32> to vector<16x128xf32>
    %134 = arith.addf %132, %133 : vector<16x128xf32>
    %135 = arith.mulf %122, %134 : vector<16x128xf32>
    %136 = arith.addf %131, %135 : vector<16x128xf32>
    %137 = math.tanh %136 : vector<16x128xf32>
    %cst_28 = arith.constant 1.000000e+00 : f32
    %138 = vector.broadcast %cst_28 : f32 to vector<16x128xf32>
    %139 = arith.subf %138, %130 : vector<16x128xf32>
    %140 = arith.mulf %139, %137 : vector<16x128xf32>
    %141 = arith.mulf %130, %111 : vector<16x128xf32>
    %142 = arith.addf %140, %141 : vector<16x128xf32>
    %c8_i32_29 = arith.constant 8 : i32
    %143 = arith.muli %arg0, %c8_i32_29 : i32
    %c3_i32 = arith.constant 3 : i32
    %144 = arith.addi %143, %c3_i32 : i32
    %c12_i32_30 = arith.constant 12 : i32
    %145 = arith.cmpi slt, %144, %c12_i32_30 : i32
    %146 = arith.select %145, %142, %111 : vector<16x128xf32>
    %147 = vector.extract_strided_slice %5 {offsets = [0, 4, 0], sizes = [16, 1, 384], strides = [1, 1, 1]} : vector<16x8x384xf32> to vector<16x1x384xf32>
    %148 = vector.shape_cast %147 : vector<16x1x384xf32> to vector<16x384xf32>
    %cst_31 = arith.constant dense<0.000000e+00> : vector<16x384xf32>
    %149 = tpu.matmul %146, %3, %cst_31 {dimension_numbers = #tpu.dot_dimension_numbers<[1], [0], [0], [1], [0, 0, 1, 1], [], []>} : vector<16x128xf32>, vector<128x384xf32>, vector<16x384xf32> -> vector<16x384xf32>
    %150 = vector.extract_strided_slice %148 {offsets = [0, 0], sizes = [16, 128], strides = [1, 1]} : vector<16x384xf32> to vector<16x128xf32>
    %151 = vector.extract_strided_slice %149 {offsets = [0, 0], sizes = [16, 128], strides = [1, 1]} : vector<16x384xf32> to vector<16x128xf32>
    %152 = arith.addf %150, %151 : vector<16x128xf32>
    %153 = arith.negf %152 : vector<16x128xf32>
    %154 = math.exp %153 : vector<16x128xf32>
    %cst_32 = arith.constant 1.000000e+00 : f32
    %155 = vector.broadcast %cst_32 : f32 to vector<16x128xf32>
    %156 = arith.addf %155, %154 : vector<16x128xf32>
    %157 = arith.divf %155, %156 : vector<16x128xf32>
    %158 = vector.extract_strided_slice %148 {offsets = [0, 128], sizes = [16, 128], strides = [1, 1]} : vector<16x384xf32> to vector<16x128xf32>
    %159 = vector.extract_strided_slice %149 {offsets = [0, 128], sizes = [16, 128], strides = [1, 1]} : vector<16x384xf32> to vector<16x128xf32>
    %160 = arith.addf %158, %159 : vector<16x128xf32>
    %161 = arith.negf %160 : vector<16x128xf32>
    %162 = math.exp %161 : vector<16x128xf32>
    %cst_33 = arith.constant 1.000000e+00 : f32
    %163 = vector.broadcast %cst_33 : f32 to vector<16x128xf32>
    %164 = arith.addf %163, %162 : vector<16x128xf32>
    %165 = arith.divf %163, %164 : vector<16x128xf32>
    %166 = vector.extract_strided_slice %148 {offsets = [0, 256], sizes = [16, 128], strides = [1, 1]} : vector<16x384xf32> to vector<16x128xf32>
    %167 = vector.extract_strided_slice %149 {offsets = [0, 256], sizes = [16, 128], strides = [1, 1]} : vector<16x384xf32> to vector<16x128xf32>
    %168 = vector.broadcast %4 : vector<1x128xf32> to vector<16x128xf32>
    %169 = arith.addf %167, %168 : vector<16x128xf32>
    %170 = arith.mulf %157, %169 : vector<16x128xf32>
    %171 = arith.addf %166, %170 : vector<16x128xf32>
    %172 = math.tanh %171 : vector<16x128xf32>
    %cst_34 = arith.constant 1.000000e+00 : f32
    %173 = vector.broadcast %cst_34 : f32 to vector<16x128xf32>
    %174 = arith.subf %173, %165 : vector<16x128xf32>
    %175 = arith.mulf %174, %172 : vector<16x128xf32>
    %176 = arith.mulf %165, %146 : vector<16x128xf32>
    %177 = arith.addf %175, %176 : vector<16x128xf32>
    %c8_i32_35 = arith.constant 8 : i32
    %178 = arith.muli %arg0, %c8_i32_35 : i32
    %c4_i32 = arith.constant 4 : i32
    %179 = arith.addi %178, %c4_i32 : i32
    %c12_i32_36 = arith.constant 12 : i32
    %180 = arith.cmpi slt, %179, %c12_i32_36 : i32
    %181 = arith.select %180, %177, %146 : vector<16x128xf32>
    %182 = vector.extract_strided_slice %5 {offsets = [0, 5, 0], sizes = [16, 1, 384], strides = [1, 1, 1]} : vector<16x8x384xf32> to vector<16x1x384xf32>
    %183 = vector.shape_cast %182 : vector<16x1x384xf32> to vector<16x384xf32>
    %cst_37 = arith.constant dense<0.000000e+00> : vector<16x384xf32>
    %184 = tpu.matmul %181, %3, %cst_37 {dimension_numbers = #tpu.dot_dimension_numbers<[1], [0], [0], [1], [0, 0, 1, 1], [], []>} : vector<16x128xf32>, vector<128x384xf32>, vector<16x384xf32> -> vector<16x384xf32>
    %185 = vector.extract_strided_slice %183 {offsets = [0, 0], sizes = [16, 128], strides = [1, 1]} : vector<16x384xf32> to vector<16x128xf32>
    %186 = vector.extract_strided_slice %184 {offsets = [0, 0], sizes = [16, 128], strides = [1, 1]} : vector<16x384xf32> to vector<16x128xf32>
    %187 = arith.addf %185, %186 : vector<16x128xf32>
    %188 = arith.negf %187 : vector<16x128xf32>
    %189 = math.exp %188 : vector<16x128xf32>
    %cst_38 = arith.constant 1.000000e+00 : f32
    %190 = vector.broadcast %cst_38 : f32 to vector<16x128xf32>
    %191 = arith.addf %190, %189 : vector<16x128xf32>
    %192 = arith.divf %190, %191 : vector<16x128xf32>
    %193 = vector.extract_strided_slice %183 {offsets = [0, 128], sizes = [16, 128], strides = [1, 1]} : vector<16x384xf32> to vector<16x128xf32>
    %194 = vector.extract_strided_slice %184 {offsets = [0, 128], sizes = [16, 128], strides = [1, 1]} : vector<16x384xf32> to vector<16x128xf32>
    %195 = arith.addf %193, %194 : vector<16x128xf32>
    %196 = arith.negf %195 : vector<16x128xf32>
    %197 = math.exp %196 : vector<16x128xf32>
    %cst_39 = arith.constant 1.000000e+00 : f32
    %198 = vector.broadcast %cst_39 : f32 to vector<16x128xf32>
    %199 = arith.addf %198, %197 : vector<16x128xf32>
    %200 = arith.divf %198, %199 : vector<16x128xf32>
    %201 = vector.extract_strided_slice %183 {offsets = [0, 256], sizes = [16, 128], strides = [1, 1]} : vector<16x384xf32> to vector<16x128xf32>
    %202 = vector.extract_strided_slice %184 {offsets = [0, 256], sizes = [16, 128], strides = [1, 1]} : vector<16x384xf32> to vector<16x128xf32>
    %203 = vector.broadcast %4 : vector<1x128xf32> to vector<16x128xf32>
    %204 = arith.addf %202, %203 : vector<16x128xf32>
    %205 = arith.mulf %192, %204 : vector<16x128xf32>
    %206 = arith.addf %201, %205 : vector<16x128xf32>
    %207 = math.tanh %206 : vector<16x128xf32>
    %cst_40 = arith.constant 1.000000e+00 : f32
    %208 = vector.broadcast %cst_40 : f32 to vector<16x128xf32>
    %209 = arith.subf %208, %200 : vector<16x128xf32>
    %210 = arith.mulf %209, %207 : vector<16x128xf32>
    %211 = arith.mulf %200, %181 : vector<16x128xf32>
    %212 = arith.addf %210, %211 : vector<16x128xf32>
    %c8_i32_41 = arith.constant 8 : i32
    %213 = arith.muli %arg0, %c8_i32_41 : i32
    %c5_i32 = arith.constant 5 : i32
    %214 = arith.addi %213, %c5_i32 : i32
    %c12_i32_42 = arith.constant 12 : i32
    %215 = arith.cmpi slt, %214, %c12_i32_42 : i32
    %216 = arith.select %215, %212, %181 : vector<16x128xf32>
    %217 = vector.extract_strided_slice %5 {offsets = [0, 6, 0], sizes = [16, 1, 384], strides = [1, 1, 1]} : vector<16x8x384xf32> to vector<16x1x384xf32>
    %218 = vector.shape_cast %217 : vector<16x1x384xf32> to vector<16x384xf32>
    %cst_43 = arith.constant dense<0.000000e+00> : vector<16x384xf32>
    %219 = tpu.matmul %216, %3, %cst_43 {dimension_numbers = #tpu.dot_dimension_numbers<[1], [0], [0], [1], [0, 0, 1, 1], [], []>} : vector<16x128xf32>, vector<128x384xf32>, vector<16x384xf32> -> vector<16x384xf32>
    %220 = vector.extract_strided_slice %218 {offsets = [0, 0], sizes = [16, 128], strides = [1, 1]} : vector<16x384xf32> to vector<16x128xf32>
    %221 = vector.extract_strided_slice %219 {offsets = [0, 0], sizes = [16, 128], strides = [1, 1]} : vector<16x384xf32> to vector<16x128xf32>
    %222 = arith.addf %220, %221 : vector<16x128xf32>
    %223 = arith.negf %222 : vector<16x128xf32>
    %224 = math.exp %223 : vector<16x128xf32>
    %cst_44 = arith.constant 1.000000e+00 : f32
    %225 = vector.broadcast %cst_44 : f32 to vector<16x128xf32>
    %226 = arith.addf %225, %224 : vector<16x128xf32>
    %227 = arith.divf %225, %226 : vector<16x128xf32>
    %228 = vector.extract_strided_slice %218 {offsets = [0, 128], sizes = [16, 128], strides = [1, 1]} : vector<16x384xf32> to vector<16x128xf32>
    %229 = vector.extract_strided_slice %219 {offsets = [0, 128], sizes = [16, 128], strides = [1, 1]} : vector<16x384xf32> to vector<16x128xf32>
    %230 = arith.addf %228, %229 : vector<16x128xf32>
    %231 = arith.negf %230 : vector<16x128xf32>
    %232 = math.exp %231 : vector<16x128xf32>
    %cst_45 = arith.constant 1.000000e+00 : f32
    %233 = vector.broadcast %cst_45 : f32 to vector<16x128xf32>
    %234 = arith.addf %233, %232 : vector<16x128xf32>
    %235 = arith.divf %233, %234 : vector<16x128xf32>
    %236 = vector.extract_strided_slice %218 {offsets = [0, 256], sizes = [16, 128], strides = [1, 1]} : vector<16x384xf32> to vector<16x128xf32>
    %237 = vector.extract_strided_slice %219 {offsets = [0, 256], sizes = [16, 128], strides = [1, 1]} : vector<16x384xf32> to vector<16x128xf32>
    %238 = vector.broadcast %4 : vector<1x128xf32> to vector<16x128xf32>
    %239 = arith.addf %237, %238 : vector<16x128xf32>
    %240 = arith.mulf %227, %239 : vector<16x128xf32>
    %241 = arith.addf %236, %240 : vector<16x128xf32>
    %242 = math.tanh %241 : vector<16x128xf32>
    %cst_46 = arith.constant 1.000000e+00 : f32
    %243 = vector.broadcast %cst_46 : f32 to vector<16x128xf32>
    %244 = arith.subf %243, %235 : vector<16x128xf32>
    %245 = arith.mulf %244, %242 : vector<16x128xf32>
    %246 = arith.mulf %235, %216 : vector<16x128xf32>
    %247 = arith.addf %245, %246 : vector<16x128xf32>
    %c8_i32_47 = arith.constant 8 : i32
    %248 = arith.muli %arg0, %c8_i32_47 : i32
    %c6_i32 = arith.constant 6 : i32
    %249 = arith.addi %248, %c6_i32 : i32
    %c12_i32_48 = arith.constant 12 : i32
    %250 = arith.cmpi slt, %249, %c12_i32_48 : i32
    %251 = arith.select %250, %247, %216 : vector<16x128xf32>
    %252 = vector.extract_strided_slice %5 {offsets = [0, 7, 0], sizes = [16, 1, 384], strides = [1, 1, 1]} : vector<16x8x384xf32> to vector<16x1x384xf32>
    %253 = vector.shape_cast %252 : vector<16x1x384xf32> to vector<16x384xf32>
    %cst_49 = arith.constant dense<0.000000e+00> : vector<16x384xf32>
    %254 = tpu.matmul %251, %3, %cst_49 {dimension_numbers = #tpu.dot_dimension_numbers<[1], [0], [0], [1], [0, 0, 1, 1], [], []>} : vector<16x128xf32>, vector<128x384xf32>, vector<16x384xf32> -> vector<16x384xf32>
    %255 = vector.extract_strided_slice %253 {offsets = [0, 0], sizes = [16, 128], strides = [1, 1]} : vector<16x384xf32> to vector<16x128xf32>
    %256 = vector.extract_strided_slice %254 {offsets = [0, 0], sizes = [16, 128], strides = [1, 1]} : vector<16x384xf32> to vector<16x128xf32>
    %257 = arith.addf %255, %256 : vector<16x128xf32>
    %258 = arith.negf %257 : vector<16x128xf32>
    %259 = math.exp %258 : vector<16x128xf32>
    %cst_50 = arith.constant 1.000000e+00 : f32
    %260 = vector.broadcast %cst_50 : f32 to vector<16x128xf32>
    %261 = arith.addf %260, %259 : vector<16x128xf32>
    %262 = arith.divf %260, %261 : vector<16x128xf32>
    %263 = vector.extract_strided_slice %253 {offsets = [0, 128], sizes = [16, 128], strides = [1, 1]} : vector<16x384xf32> to vector<16x128xf32>
    %264 = vector.extract_strided_slice %254 {offsets = [0, 128], sizes = [16, 128], strides = [1, 1]} : vector<16x384xf32> to vector<16x128xf32>
    %265 = arith.addf %263, %264 : vector<16x128xf32>
    %266 = arith.negf %265 : vector<16x128xf32>
    %267 = math.exp %266 : vector<16x128xf32>
    %cst_51 = arith.constant 1.000000e+00 : f32
    %268 = vector.broadcast %cst_51 : f32 to vector<16x128xf32>
    %269 = arith.addf %268, %267 : vector<16x128xf32>
    %270 = arith.divf %268, %269 : vector<16x128xf32>
    %271 = vector.extract_strided_slice %253 {offsets = [0, 256], sizes = [16, 128], strides = [1, 1]} : vector<16x384xf32> to vector<16x128xf32>
    %272 = vector.extract_strided_slice %254 {offsets = [0, 256], sizes = [16, 128], strides = [1, 1]} : vector<16x384xf32> to vector<16x128xf32>
    %273 = vector.broadcast %4 : vector<1x128xf32> to vector<16x128xf32>
    %274 = arith.addf %272, %273 : vector<16x128xf32>
    %275 = arith.mulf %262, %274 : vector<16x128xf32>
    %276 = arith.addf %271, %275 : vector<16x128xf32>
    %277 = math.tanh %276 : vector<16x128xf32>
    %cst_52 = arith.constant 1.000000e+00 : f32
    %278 = vector.broadcast %cst_52 : f32 to vector<16x128xf32>
    %279 = arith.subf %278, %270 : vector<16x128xf32>
    %280 = arith.mulf %279, %277 : vector<16x128xf32>
    %281 = arith.mulf %270, %251 : vector<16x128xf32>
    %282 = arith.addf %280, %281 : vector<16x128xf32>
    %c8_i32_53 = arith.constant 8 : i32
    %283 = arith.muli %arg0, %c8_i32_53 : i32
    %c7_i32 = arith.constant 7 : i32
    %284 = arith.addi %283, %c7_i32 : i32
    %c12_i32_54 = arith.constant 12 : i32
    %285 = arith.cmpi slt, %284, %c12_i32_54 : i32
    %286 = arith.select %285, %282, %251 : vector<16x128xf32>
    %c0_55 = arith.constant 0 : index
    %c0_56 = arith.constant 0 : index
    %287 = vector.load %arg9[%c0_55, %c0_56] : memref<16x128xf32, #tpu.memory_space<vmem>>, vector<16x128xf32>
    tpu.vector_store %arg9[%c0_55, %c0_56], %286 {strides = array<i32>} : memref<16x128xf32, #tpu.memory_space<vmem>>, vector<16x128xf32>,
    %c1_i32_57 = arith.constant 1 : i32
    %288 = arith.cmpi eq, %arg0, %c1_i32_57 : i32
    %289 = arith.extui %288 : i1 to i32
    %c0_i32_58 = arith.constant 0 : i32
    %290 = arith.cmpi ne, %289, %c0_i32_58 : i32
    scf.if %290 {
      %c0_59 = arith.constant 0 : index
      %c0_60 = arith.constant 0 : index
      %291 = vector.load %arg4[%c0_59, %c0_60] : memref<128x128xf32, #tpu.memory_space<vmem>>, vector<128x128xf32>
      %cst_61 = arith.constant dense<0.000000e+00> : vector<16x128xf32>
      %292 = tpu.matmul %286, %291, %cst_61 {dimension_numbers = #tpu.dot_dimension_numbers<[1], [0], [0], [1], [0, 0, 1, 1], [], []>} : vector<16x128xf32>, vector<128x128xf32>, vector<16x128xf32> -> vector<16x128xf32>
      %c0_62 = arith.constant 0 : index
      %c0_63 = arith.constant 0 : index
      %293 = vector.load %arg5[%c0_62, %c0_63] : memref<1x128xf32, #tpu.memory_space<vmem>>, vector<1x128xf32>
      %294 = vector.broadcast %293 : vector<1x128xf32> to vector<16x128xf32>
      %295 = arith.addf %292, %294 : vector<16x128xf32>
      %296 = math.tanh %295 : vector<16x128xf32>
      %c0_64 = arith.constant 0 : index
      %c0_65 = arith.constant 0 : index
      %297 = vector.load %arg6[%c0_64, %c0_65] : memref<128x2xf32, #tpu.memory_space<vmem>>, vector<128x2xf32>
      %cst_66 = arith.constant dense<0.000000e+00> : vector<16x2xf32>
      %298 = tpu.matmul %296, %297, %cst_66 {dimension_numbers = #tpu.dot_dimension_numbers<[1], [0], [0], [1], [0, 0, 1, 1], [], []>} : vector<16x128xf32>, vector<128x2xf32>, vector<16x2xf32> -> vector<16x2xf32>
      %c0_67 = arith.constant 0 : index
      %c0_68 = arith.constant 0 : index
      %299 = vector.load %arg7[%c0_67, %c0_68] : memref<1x2xf32, #tpu.memory_space<vmem>>, vector<1x2xf32>
      %300 = vector.broadcast %299 : vector<1x2xf32> to vector<16x2xf32>
      %301 = arith.addf %298, %300 : vector<16x2xf32>
      %c0_69 = arith.constant 0 : index
      %c0_70 = arith.constant 0 : index
      %302 = vector.load %arg8[%c0_69, %c0_70] : memref<16x2xf32, #tpu.memory_space<vmem>>, vector<16x2xf32>
      tpu.vector_store %arg8[%c0_69, %c0_70], %301 {strides = array<i32>} : memref<16x2xf32, #tpu.memory_space<vmem>>, vector<16x2xf32>,
    } else {
    }
    return
  }
  func.func @transform_0(%arg0: i32) -> (i32, i32, i32) {
    %c0_i32 = arith.constant 0 : i32
    %c0_i32_0 = arith.constant 0 : i32
    %c0_i32_1 = arith.constant 0 : i32
    return %c0_i32, %arg0, %c0_i32_0 : i32, i32, i32
  }
  func.func @transform_1(%arg0: i32) -> (i32, i32) {
    %c0_i32 = arith.constant 0 : i32
    %c0_i32_0 = arith.constant 0 : i32
    %c0_i32_1 = arith.constant 0 : i32
    return %c0_i32, %c0_i32_0 : i32, i32
  }
  func.func @transform_2(%arg0: i32) -> (i32, i32) {
    %c0_i32 = arith.constant 0 : i32
    %c0_i32_0 = arith.constant 0 : i32
    %c0_i32_1 = arith.constant 0 : i32
    return %c0_i32, %c0_i32_0 : i32, i32
  }
  func.func @transform_3(%arg0: i32) -> (i32, i32) {
    %c0_i32 = arith.constant 0 : i32
    %c0_i32_0 = arith.constant 0 : i32
    %c0_i32_1 = arith.constant 0 : i32
    return %c0_i32, %c0_i32_0 : i32, i32
  }
  func.func @transform_4(%arg0: i32) -> (i32, i32) {
    %c0_i32 = arith.constant 0 : i32
    %c0_i32_0 = arith.constant 0 : i32
    %c0_i32_1 = arith.constant 0 : i32
    return %c0_i32, %c0_i32_0 : i32, i32
  }
  func.func @transform_5(%arg0: i32) -> (i32, i32) {
    %c0_i32 = arith.constant 0 : i32
    %c0_i32_0 = arith.constant 0 : i32
    %c0_i32_1 = arith.constant 0 : i32
    return %c0_i32, %c0_i32_0 : i32, i32
  }
  func.func @transform_6(%arg0: i32) -> (i32, i32) {
    %c0_i32 = arith.constant 0 : i32
    %c0_i32_0 = arith.constant 0 : i32
    %c0_i32_1 = arith.constant 0 : i32
    return %c0_i32, %c0_i32_0 : i32, i32
  }
  func.func @transform_7(%arg0: i32) -> (i32, i32) {
    %c0_i32 = arith.constant 0 : i32
    %c0_i32_0 = arith.constant 0 : i32
    %c0_i32_1 = arith.constant 0 : i32
    return %c0_i32, %c0_i32_0 : i32, i32
  }
}

</mosaic_0001>

<llo_original>
// kernel: classification_head.2
$region0: #{classification_head.2}
  #allocation0 [shape = 'u32[]', space=smem, size = 0x4, offset = 0x4, fixed_abs, tag = 'smem constant byte address 0x4 - core index']
  #allocation1 [shape = 'u32[144,128]{1,0:T(1,128)}', space=vmem, size = 0x12000, scoped, tag = 'internal scratch']
  #allocation2 [shape = 'f32[1,1]{1,0:T(1,128)S(1)}', space=vmem, size = 0x200, scoped, tag = 'scoped memory for classification_head.2']
  %s0 = inlined_call_operand.vmem [shape: f32[192,128], index: 0, kind: input, shape index: {}]
  %s1 = inlined_call_operand.vmem [shape: f32[128,128], index: 1, kind: input, shape index: {}]
  %s2 = inlined_call_operand.vmem [shape: f32[1,128], index: 2, kind: input, shape index: {}]
  %s3 = inlined_call_operand.vmem [shape: f32[128,1], index: 3, kind: input, shape index: {}]
  %s4 = inlined_call_operand.<no memory space> [shape: f32[1,1], index: 4, kind: input, shape index: {}]
  %s5 = inlined_call_operand.vmem [shape: f32[128,384], index: 5, kind: input, shape index: {}]
  %s6 = inlined_call_operand.vmem [shape: f32[1,384], index: 6, kind: input, shape index: {}]
  %s7 = inlined_call_operand.vmem [shape: f32[192,1], index: 7, kind: output, shape index: {0}]
  %s8 = inlined_call_operand.vmem [shape: f32[192,384], index: 8, kind: output, shape index: {1}]
  %9 = xla_tuple %s7, %s8
  %s10 = sld [smem:[#allocation0]]
  $region69: #{classification_head.2} parent=0
    _
  %s12 = ssub.s32 1, %s10
  %s13 = scalar_select 0, %s12, %s10
  %v14 = vstv %s4
  %15 = vst [vmem:[#allocation2] sm:$0x1] %v14
  loop: start=0, step=1, limit=5
  $region2: #{classification_head.2} parent=0 // loop_pre_header
    _
  $region3: #{classification_head.2} parent=0 // loop_header
    %s17 = sphi 0, %s21
    %p18 = scmp.ge.s32.totalorder %s17, 5
    %s27 = sphi 0, %s29
    %s30 = sphi 0, %s27
    %s31 = sphi 0, %s30
    %s47 = sphi 0, %s31
    %s51 = sphi 0, %s51
    %s53 = sphi 0, %s51
    %s54 = sphi 0, %s53
    %s68 = sphi 0, %s54
    %s72 = sphi 0, %s72
    %s74 = sphi 0, %s72
    %s75 = sphi 0, %s74
    %s89 = sphi 0, %s75
    %s93 = sphi 0, %s93
    %s95 = sphi 0, %s93
    %s96 = sphi 0, %s95
    %s110 = sphi 0, %s96
    %s114 = sphi 0, %s114
    %s116 = sphi 0, %s114
    %s117 = sphi 0, %s116
    %s131 = sphi 0, %s117
    %s135 = sphi 0, %s135
    %s137 = sphi 0, %s135
    %s138 = sphi 0, %s137
    %s152 = sphi 0, %s138
    %s156 = sphi 0, %s156
    %s158 = sphi 0, %s156
    %s159 = sphi 0, %s158
    %s173 = sphi 0, %s159
    %s179 = sphi 0, %s181
    %s182 = sphi 0, %s179
    %s183 = sphi 0, %s182
    %s199 = sphi 0, %s183
    %s205 = sphi 0, %s207
    %s208 = sphi 0, %s205
    %s209 = sphi 0, %s208
    %s225 = sphi 0, %s209
  $region4: #{classification_head.2} parent=0 // loop_header_branch
    %20 = sbr.rel (%p18) target = $region8
  $region5: #{classification_head.2} parent=0 // loop_body
    %s22 = ssub.s32 %s17, 1
    %s23 = ssub.s32 %s17, 2
    %s24 = sadd.s32 %s17, 1
    %s25 = ssub.s32 %s17, %s24
    %p26 = scmp.eq.s32.totalorder %s25, 0
    %s28 = sadd.s32 %s27, 1
    %s29 = scalar_select %p26, %s27, %s28
    %p32 = pneg %p26
    %p33 = scmp.eq.s32.totalorder %s17, 2
    %p34 = por %p32, %p33
    %p35 = scmp.ne.s32.totalorder %s27, %s30
    %p36 = scmp.eq.s32.totalorder %s17, 0
    %p37 = por %p35, %p36
    %p38 = scmp.ne.s32.totalorder %s27, %s30
    %p39 = scmp.eq.s32.totalorder %s22, 2
    %p40 = por %p38, %p39
    %p41 = scmp.ne.s32.totalorder %s30, %s31
    %p42 = scmp.eq.s32.totalorder %s22, 0
    %p43 = por %p41, %p42
    %p44 = scmp.ne.s32.totalorder %s30, %s31
    %p45 = scmp.eq.s32.totalorder %s23, 2
    %p46 = por %p44, %p45
    %p48 = scmp.ne.s32.totalorder %s31, %s47
    %p49 = scmp.eq.s32.totalorder %s23, 0
    %p50 = por %p48, %p49
    %s52 = sadd.s32 %s51, 1
    %p55 = scmp.eq.s32.totalorder %s17, 2
    %p56 = scmp.ne.s32.totalorder %s51, %s53
    %p57 = scmp.eq.s32.totalorder %s17, 0
    %p58 = por %p56, %p57
    %p59 = scmp.ne.s32.totalorder %s51, %s53
    %p60 = scmp.eq.s32.totalorder %s22, 2
    %p61 = por %p59, %p60
    %p62 = scmp.ne.s32.totalorder %s53, %s54
    %p63 = scmp.eq.s32.totalorder %s22, 0
    %p64 = por %p62, %p63
    %p65 = scmp.ne.s32.totalorder %s53, %s54
    %p66 = scmp.eq.s32.totalorder %s23, 2
    %p67 = por %p65, %p66
    %p69 = scmp.ne.s32.totalorder %s54, %s68
    %p70 = scmp.eq.s32.totalorder %s23, 0
    %p71 = por %p69, %p70
    %s73 = sadd.s32 %s72, 1
    %p76 = scmp.eq.s32.totalorder %s17, 2
    %p77 = scmp.ne.s32.totalorder %s72, %s74
    %p78 = scmp.eq.s32.totalorder %s17, 0
    %p79 = por %p77, %p78
    %p80 = scmp.ne.s32.totalorder %s72, %s74
    %p81 = scmp.eq.s32.totalorder %s22, 2
    %p82 = por %p80, %p81
    %p83 = scmp.ne.s32.totalorder %s74, %s75
    %p84 = scmp.eq.s32.totalorder %s22, 0
    %p85 = por %p83, %p84
    %p86 = scmp.ne.s32.totalorder %s74, %s75
    %p87 = scmp.eq.s32.totalorder %s23, 2
    %p88 = por %p86, %p87
    %p90 = scmp.ne.s32.totalorder %s75, %s89
    %p91 = scmp.eq.s32.totalorder %s23, 0
    %p92 = por %p90, %p91
    %s94 = sadd.s32 %s93, 1
    %p97 = scmp.eq.s32.totalorder %s17, 2
    %p98 = scmp.ne.s32.totalorder %s93, %s95
    %p99 = scmp.eq.s32.totalorder %s17, 0
    %p100 = por %p98, %p99
    %p101 = scmp.ne.s32.totalorder %s93, %s95
    %p102 = scmp.eq.s32.totalorder %s22, 2
    %p103 = por %p101, %p102
    %p104 = scmp.ne.s32.totalorder %s95, %s96
    %p105 = scmp.eq.s32.totalorder %s22, 0
    %p106 = por %p104, %p105
    %p107 = scmp.ne.s32.totalorder %s95, %s96
    %p108 = scmp.eq.s32.totalorder %s23, 2
    %p109 = por %p107, %p108
    %p111 = scmp.ne.s32.totalorder %s96, %s110
    %p112 = scmp.eq.s32.totalorder %s23, 0
    %p113 = por %p111, %p112
    %s115 = sadd.s32 %s114, 1
    %p118 = scmp.eq.s32.totalorder %s17, 2
    %p119 = scmp.ne.s32.totalorder %s114, %s116
    %p120 = scmp.eq.s32.totalorder %s17, 0
    %p121 = por %p119, %p120
    %p122 = scmp.ne.s32.totalorder %s114, %s116
    %p123 = scmp.eq.s32.totalorder %s22, 2
    %p124 = por %p122, %p123
    %p125 = scmp.ne.s32.totalorder %s116, %s117
    %p126 = scmp.eq.s32.totalorder %s22, 0
    %p127 = por %p125, %p126
    %p128 = scmp.ne.s32.totalorder %s116, %s117
    %p129 = scmp.eq.s32.totalorder %s23, 2
    %p130 = por %p128, %p129
    %p132 = scmp.ne.s32.totalorder %s117, %s131
    %p133 = scmp.eq.s32.totalorder %s23, 0
    %p134 = por %p132, %p133
    %s136 = sadd.s32 %s135, 1
    %p139 = scmp.eq.s32.totalorder %s17, 2
    %p140 = scmp.ne.s32.totalorder %s135, %s137
    %p141 = scmp.eq.s32.totalorder %s17, 0
    %p142 = por %p140, %p141
    %p143 = scmp.ne.s32.totalorder %s135, %s137
    %p144 = scmp.eq.s32.totalorder %s22, 2
    %p145 = por %p143, %p144
    %p146 = scmp.ne.s32.totalorder %s137, %s138
    %p147 = scmp.eq.s32.totalorder %s22, 0
    %p148 = por %p146, %p147
    %p149 = scmp.ne.s32.totalorder %s137, %s138
    %p150 = scmp.eq.s32.totalorder %s23, 2
    %p151 = por %p149, %p150
    %p153 = scmp.ne.s32.totalorder %s138, %s152
    %p154 = scmp.eq.s32.totalorder %s23, 0
    %p155 = por %p153, %p154
    %s157 = sadd.s32 %s156, 1
    %p160 = scmp.eq.s32.totalorder %s17, 2
    %p161 = scmp.ne.s32.totalorder %s156, %s158
    %p162 = scmp.eq.s32.totalorder %s17, 0
    %p163 = por %p161, %p162
    %p164 = scmp.ne.s32.totalorder %s156, %s158
    %p165 = scmp.eq.s32.totalorder %s22, 2
    %p166 = por %p164, %p165
    %p167 = scmp.ne.s32.totalorder %s158, %s159
    %p168 = scmp.eq.s32.totalorder %s22, 0
    %p169 = por %p167, %p168
    %p170 = scmp.ne.s32.totalorder %s158, %s159
    %p171 = scmp.eq.s32.totalorder %s23, 2
    %p172 = por %p170, %p171
    %p174 = scmp.ne.s32.totalorder %s159, %s173
    %p175 = scmp.eq.s32.totalorder %s23, 0
    %p176 = por %p174, %p175
    %s177 = ssub.s32 %s17, %s24
    %p178 = scmp.eq.s32.totalorder %s177, 0
    %s180 = sadd.s32 %s179, 1
    %s181 = scalar_select %p178, %s179, %s180
    %p184 = pneg %p178
    %p185 = scmp.eq.s32.totalorder %s17, 2
    %p186 = por %p184, %p185
    %p187 = scmp.ne.s32.totalorder %s179, %s182
    %p188 = scmp.eq.s32.totalorder %s17, 0
    %p189 = por %p187, %p188
    %p190 = scmp.ne.s32.totalorder %s179, %s182
    %p191 = scmp.eq.s32.totalorder %s22, 2
    %p192 = por %p190, %p191
    %p193 = scmp.ne.s32.totalorder %s182, %s183
    %p194 = scmp.eq.s32.totalorder %s22, 0
    %p195 = por %p193, %p194
    %p196 = scmp.ne.s32.totalorder %s182, %s183
    %p197 = scmp.eq.s32.totalorder %s23, 2
    %p198 = por %p196, %p197
    %p200 = scmp.ne.s32.totalorder %s183, %s199
    %p201 = scmp.eq.s32.totalorder %s23, 0
    %p202 = por %p200, %p201
    %s203 = ssub.s32 %s17, %s24
    %p204 = scmp.eq.s32.totalorder %s203, 0
    %s206 = sadd.s32 %s205, 1
    %s207 = scalar_select %p204, %s205, %s206
    %p210 = pneg %p204
    %p211 = scmp.eq.s32.totalorder %s17, 2
    %p212 = por %p210, %p211
    %p213 = scmp.ne.s32.totalorder %s205, %s208
    %p214 = scmp.eq.s32.totalorder %s17, 0
    %p215 = por %p213, %p214
    %p216 = scmp.ne.s32.totalorder %s205, %s208
    %p217 = scmp.eq.s32.totalorder %s22, 2
    %p218 = por %p216, %p217
    %p219 = scmp.ne.s32.totalorder %s208, %s209
    %p220 = scmp.eq.s32.totalorder %s22, 0
    %p221 = por %p219, %p220
    %p222 = scmp.ne.s32.totalorder %s208, %s209
    %p223 = scmp.eq.s32.totalorder %s23, 2
    %p224 = por %p222, %p223
    %p226 = scmp.ne.s32.totalorder %s209, %s225
    %p227 = scmp.eq.s32.totalorder %s23, 0
    %p228 = por %p226, %p227
    %p229 = scmp.le.s32.totalorder 1, %s17
    %p230 = scmp.lt.s32.totalorder %s17, 4
    %p231 = pnand %p229, %p230
    %p232 = pneg %p231
    // Predicated region
    $region9: #{classification_head.2} parent=5 // pred_check
      _
    $region10: #{classification_head.2} parent=5 // pred_check_branch
      %234 = sbr.rel (%p231) target = $region12
    $region11: #{classification_head.2} parent=5 // pred_region
      %s235 = ssub.s32 %s17, 1
      // Predicated region
      $region13: #{classification_head.2} parent=11 // pred_check
        %p236 = pneg %p64
      $region14: #{classification_head.2} parent=11 // pred_check_branch
        %238 = sbr.rel (%p236) target = $region16
      $region15: #{classification_head.2} parent=11 // pred_region
        _
      $region16: #{classification_head.2} parent=11 // pred_fallthru
        _
      // Predicated region
      $region17: #{classification_head.2} parent=11 // pred_check
        %p239 = pneg %p85
      $region18: #{classification_head.2} parent=11 // pred_check_branch
        %241 = sbr.rel (%p239) target = $region20
      $region19: #{classification_head.2} parent=11 // pred_region
        _
      $region20: #{classification_head.2} parent=11 // pred_fallthru
        _
      // Predicated region
      $region21: #{classification_head.2} parent=11 // pred_check
        %p242 = pneg %p106
      $region22: #{classification_head.2} parent=11 // pred_check_branch
        %244 = sbr.rel (%p242) target = $region24
      $region23: #{classification_head.2} parent=11 // pred_region
        _
      $region24: #{classification_head.2} parent=11 // pred_fallthru
        _
      // Predicated region
      $region25: #{classification_head.2} parent=11 // pred_check
        %p245 = pneg %p127
      $region26: #{classification_head.2} parent=11 // pred_check_branch
        %247 = sbr.rel (%p245) target = $region28
      $region27: #{classification_head.2} parent=11 // pred_region
        _
      $region28: #{classification_head.2} parent=11 // pred_fallthru
        _
      // Predicated region
      $region29: #{classification_head.2} parent=11 // pred_check
        %p248 = pneg %p148
      $region30: #{classification_head.2} parent=11 // pred_check_branch
        %250 = sbr.rel (%p248) target = $region32
      $region31: #{classification_head.2} parent=11 // pred_region
        _
      $region32: #{classification_head.2} parent=11 // pred_fallthru
        _
      // Predicated region
      $region33: #{classification_head.2} parent=11 // pred_check
        %p251 = pneg %p169
      $region34: #{classification_head.2} parent=11 // pred_check_branch
        %253 = sbr.rel (%p251) target = $region36
      $region35: #{classification_head.2} parent=11 // pred_region
        _
      $region36: #{classification_head.2} parent=11 // pred_fallthru
        _
    $region12: #{classification_head.2} parent=5 // pred_fallthru
      _
    %p254 = scmp.lt.s32.totalorder %s17, 3
    // Predicated region
    $region37: #{classification_head.2} parent=5 // pred_check
      %p255 = pneg %p254
    $region38: #{classification_head.2} parent=5 // pred_check_branch
      %257 = sbr.rel (%p255) target = $region40
    $region39: #{classification_head.2} parent=5 // pred_region
      // Predicated region
      $region41: #{classification_head.2} parent=39 // pred_check
        %p258 = pneg %p37
      $region42: #{classification_head.2} parent=39 // pred_check_branch
        %260 = sbr.rel (%p258) target = $region44
      $region43: #{classification_head.2} parent=39 // pred_region
        %s261 = smul.u32 8, %s17
        %p262 = scmp.lt.s32.totalorder %s261, 23
        %s263 = scalar_select %p262, %s261, 23
        %s264 = smul.addr %s263, 8
        %s265 = scalar_lea.vmem %s0, %s264
        %s266 = smul.u32 8, %s17
      $region44: #{classification_head.2} parent=39 // pred_fallthru
        _
    $region40: #{classification_head.2} parent=5 // pred_fallthru
      _
    %p267 = scmp.le.s32.totalorder 1, %s17
    %p268 = scmp.lt.s32.totalorder %s17, 4
    %p269 = pnand %p267, %p268
    %p270 = pneg %p269
    // Predicated region
    $region45: #{classification_head.2} parent=5 // pred_check
      _
    $region46: #{classification_head.2} parent=5 // pred_check_branch
      %272 = sbr.rel (%p269) target = $region48
    $region47: #{classification_head.2} parent=5 // pred_region
      %s273 = ssub.s32 %s17, 1
      %s274 = smul.u32 8, %s22
      %p275 = scmp.lt.s32.totalorder %s274, 23
      %s276 = scalar_select %p275, %s274, 23
      %s277 = smul.addr %s276, 8
      %s278 = scalar_lea.vmem %s0, %s277
      %p279 = pneg %p43
      %p280 = pneg %p40
      %p281 = pneg %p64
      %p282 = pneg %p61
      %p283 = pneg %p85
      %p284 = pneg %p82
      %p285 = pneg %p106
      %p286 = pneg %p103
      %p287 = pneg %p127
      %p288 = pneg %p124
      %p289 = pneg %p148
      %p290 = pneg %p145
      %p291 = pneg %p169
      %p292 = pneg %p166
      %p293 = pneg %p195
      %p294 = pneg %p192
      %s295 = smul.u32 8, %s22
      %p296 = scmp.lt.s32.totalorder %s295, 23
      %s297 = scalar_select %p296, %s295, 23
      %s298 = smul.addr %s297, 8
      %s299 = scalar_lea.vmem %s7, %s298
      %p300 = pneg %p221
      %p301 = pneg %p218
      %s302 = smul.u32 8, %s22
      %p303 = scmp.lt.s32.totalorder %s302, 23
      %s304 = scalar_select %p303, %s302, 23
      %s305 = smul.addr %s304, 3
      %s306 = smul.addr %s305, 8
      %s307 = scalar_lea.vmem %s8, %s306
      %s308 = smul.u32 8, %s22
      %p309 = scmp.lt.s32.totalorder %s308, 23
      %s310 = scalar_select %p309, %s308, 23
      %s311 = smul.addr %s310, 8
      %s312 = scalar_lea.vmem %s0, %s311
      %s313 = smul.u32 8, %s22
      %s314 = smul.u32 8, %s22
      %p315 = scmp.lt.s32.totalorder %s314, 23
      %s316 = scalar_select %p315, %s314, 23
      %s317 = smul.addr %s316, 8
      %s318 = scalar_lea.vmem %s7, %s317
      %s319 = smul.u32 8, %s22
      %s320 = smul.u32 8, %s22
      %p321 = scmp.lt.s32.totalorder %s320, 23
      %s322 = scalar_select %p321, %s320, 23
      %s323 = smul.addr %s322, 3
      %s324 = smul.addr %s323, 8
      %s325 = scalar_lea.vmem %s8, %s324
      %s326 = smul.u32 8, %s22
      %v327 = vld [vmem:[%s312] sm:$0xff]
      %v328 = vld [vmem:[%s312 + $0x8] sm:$0xff]
      %v329 = vld [vmem:[%s312 + $0x10] sm:$0xff]
      %v330 = vld [vmem:[%s312 + $0x18] sm:$0xff]
      %v331 = vld [vmem:[%s312 + $0x20] sm:$0xff]
      %v332 = vld [vmem:[%s312 + $0x28] sm:$0xff]
      %v333 = vld [vmem:[%s312 + $0x30] sm:$0xff]
      %v334 = vld [vmem:[%s312 + $0x38] sm:$0xff]
      %v335 = vld [vmem:[%s1] sm:$0xff]
      %v336 = vld [vmem:[%s1 + $0x8] sm:$0xff]
      %v337 = vld [vmem:[%s1 + $0x10] sm:$0xff]
      %v338 = vld [vmem:[%s1 + $0x18] sm:$0xff]
      %v339 = vld [vmem:[%s1 + $0x20] sm:$0xff]
      %v340 = vld [vmem:[%s1 + $0x28] sm:$0xff]
      %v341 = vld [vmem:[%s1 + $0x30] sm:$0xff]
      %v342 = vld [vmem:[%s1 + $0x38] sm:$0xff]
      %v343 = vld [vmem:[%s1 + $0x40] sm:$0xff]
      %v344 = vld [vmem:[%s1 + $0x48] sm:$0xff]
      %v345 = vld [vmem:[%s1 + $0x50] sm:$0xff]
      %v346 = vld [vmem:[%s1 + $0x58] sm:$0xff]
      %v347 = vld [vmem:[%s1 + $0x60] sm:$0xff]
      %v348 = vld [vmem:[%s1 + $0x68] sm:$0xff]
      %v349 = vld [vmem:[%s1 + $0x70] sm:$0xff]
      %v350 = vld [vmem:[%s1 + $0x78] sm:$0xff]
      %v351 = vld [vmem:[%s2] sm:$0x1]
      %v353 = vlaneseq
      %v354 = vshrl.u32 %v353, 7
      %v355 = vsub.s32 0, %v354
      %v356 = vrot.slane %v351, %v355
      %358 = vmatprep.subr.mxu0 0.0
      %359 = vmatpush1.msra.mxu0 %v335
      %360 = vmatprep.subr.mxu0 0.0
      %361 = vmatpush1.msra.mxu0 %v336
      %362 = vmatprep.subr.mxu0 0.0
      %363 = vmatpush1.msra.mxu0 %v337
      %364 = vmatprep.subr.mxu0 0.0
      %365 = vmatpush1.msra.mxu0 %v338
      %366 = vmatprep.subr.mxu0 0.0
      %367 = vmatpush1.msra.mxu0 %v339
      %368 = vmatprep.subr.mxu0 0.0
      %369 = vmatpush1.msra.mxu0 %v340
      %370 = vmatprep.subr.mxu0 0.0
      %371 = vmatpush1.msra.mxu0 %v341
      %372 = vmatprep.subr.mxu0 0.0
      %373 = vmatpush1.msra.mxu0 %v342
      %374 = vmatprep.subr.mxu0 0.0
      %375 = vmatpush1.msra.mxu0 %v343
      %376 = vmatprep.subr.mxu0 0.0
      %377 = vmatpush1.msra.mxu0 %v344
      %378 = vmatprep.subr.mxu0 0.0
      %379 = vmatpush1.msra.mxu0 %v345
      %380 = vmatprep.subr.mxu0 0.0
      %381 = vmatpush1.msra.mxu0 %v346
      %382 = vmatprep.subr.mxu0 0.0
      %383 = vmatpush1.msra.mxu0 %v347
      %384 = vmatprep.subr.mxu0 0.0
      %385 = vmatpush1.msra.mxu0 %v348
      %386 = vmatprep.subr.mxu0 0.0
      %387 = vmatpush1.msra.mxu0 %v349
      %388 = vmatprep.subr.mxu0 0.0
      %389 = vmatpush1.msra.mxu0 %v350
      %390 = vmatprep.subr.mxu0 0.0
      %391 = vmatpush1.msra.mxu0 0.0
      %392 = vmatprep.subr.mxu0 0.0
      %393 = vmatpush1.msra.mxu0 0.0
      %394 = vmatprep.subr.mxu0 0.0
      %395 = vmatpush1.msra.mxu0 0.0
      %396 = vmatprep.subr.mxu0 0.0
      %397 = vmatpush1.msra.mxu0 0.0
      %398 = vmatprep.subr.mxu0 0.0
      %399 = vmatpush1.msra.mxu0 0.0
      %400 = vmatprep.subr.mxu0 0.0
      %401 = vmatpush1.msra.mxu0 0.0
      %402 = vmatprep.subr.mxu0 0.0
      %403 = vmatpush1.msra.mxu0 0.0
      %404 = vmatprep.subr.mxu0 0.0
      %405 = vmatpush1.msra.mxu0 0.0
      %406 = vmatprep.subr.mxu0 0.0
      %407 = vmatpush1.msra.mxu0 0.0
      %408 = vmatprep.subr.mxu0 0.0
      %409 = vmatpush1.msra.mxu0 0.0
      %410 = vmatprep.subr.mxu0 0.0
      %411 = vmatpush1.msra.mxu0 0.0
      %412 = vmatprep.subr.mxu0 0.0
      %413 = vmatpush1.msra.mxu0 0.0
      %414 = vmatprep.subr.mxu0 0.0
      %415 = vmatpush1.msra.mxu0 0.0
      %416 = vmatprep.subr.mxu0 0.0
      %417 = vmatpush1.msra.mxu0 0.0
      %418 = vmatprep.subr.mxu0 0.0
      %419 = vmatpush1.msra.mxu0 0.0
      %420 = vmatprep.subr.mxu0 0.0
      %421 = vmatpush1.msra.mxu0 0.0
      %422 = vmatprep.mubr.f32.mxu0 0.0
      %423 = vmatmul.mubr.f32.gmra.mrb[0].mxu0 %v327
      %v424 = vpop.f32.mrb[0].mxu0
      %v425 = vadd.f32 %v356, %v424
      %v426 = vpop.f32.mrb[0].mxu0
      %427 = vmatprep.mubr.f32.mxu0 0.0
      %428 = vmatmul.mubr.f32.gmra.mrb[0].mxu0 %v328
      %v429 = vpop.f32.mrb[0].mxu0
      %v430 = vadd.f32 %v356, %v429
      %v431 = vpop.f32.mrb[0].mxu0
      %432 = vmatprep.mubr.f32.mxu0 0.0
      %433 = vmatmul.mubr.f32.gmra.mrb[0].mxu0 %v329
      %v434 = vpop.f32.mrb[0].mxu0
      %v435 = vadd.f32 %v356, %v434
      %v436 = vpop.f32.mrb[0].mxu0
      %437 = vmatprep.mubr.f32.mxu0 0.0
      %438 = vmatmul.mubr.f32.gmra.mrb[0].mxu0 %v330
      %v439 = vpop.f32.mrb[0].mxu0
      %v440 = vadd.f32 %v356, %v439
      %v441 = vpop.f32.mrb[0].mxu0
      %442 = vmatprep.mubr.f32.mxu0 0.0
      %443 = vmatmul.mubr.f32.gmra.mrb[0].mxu0 %v331
      %v444 = vpop.f32.mrb[0].mxu0
      %v445 = vadd.f32 %v356, %v444
      %v446 = vpop.f32.mrb[0].mxu0
      %447 = vmatprep.mubr.f32.mxu0 0.0
      %448 = vmatmul.mubr.f32.gmra.mrb[0].mxu0 %v332
      %v449 = vpop.f32.mrb[0].mxu0
      %v450 = vadd.f32 %v356, %v449
      %v451 = vpop.f32.mrb[0].mxu0
      %452 = vmatprep.mubr.f32.mxu0 0.0
      %453 = vmatmul.mubr.f32.gmra.mrb[0].mxu0 %v333
      %v454 = vpop.f32.mrb[0].mxu0
      %v455 = vadd.f32 %v356, %v454
      %v456 = vpop.f32.mrb[0].mxu0
      %457 = vmatprep.mubr.f32.mxu0 0.0
      %458 = vmatmul.mubr.f32.gmra.mrb[0].mxu0 %v334
      %v459 = vpop.f32.mrb[0].mxu0
      %v460 = vadd.f32 %v356, %v459
      %v461 = vpop.f32.mrb[0].mxu0
      %462 = vdwg.mxu0
      %v463 = vtanh.pop %v425
      %v464 = vtanh.pop %v430
      %v465 = vtanh.pop %v435
      %v466 = vtanh.pop %v440
      %v467 = vtanh.pop %v445
      %v468 = vtanh.pop %v450
      %v469 = vtanh.pop %v455
      %v470 = vtanh.pop %v460
      %v471 = vld [vmem:[%s3] sm:$0xff]
      %v472 = vld [vmem:[%s3 + $0x8] sm:$0xff]
      %v473 = vld [vmem:[%s3 + $0x10] sm:$0xff]
      %v474 = vld [vmem:[%s3 + $0x18] sm:$0xff]
      %v475 = vld [vmem:[%s3 + $0x20] sm:$0xff]
      %v476 = vld [vmem:[%s3 + $0x28] sm:$0xff]
      %v477 = vld [vmem:[%s3 + $0x30] sm:$0xff]
      %v478 = vld [vmem:[%s3 + $0x38] sm:$0xff]
      %v479 = vld [vmem:[%s3 + $0x40] sm:$0xff]
      %v480 = vld [vmem:[%s3 + $0x48] sm:$0xff]
      %v481 = vld [vmem:[%s3 + $0x50] sm:$0xff]
      %v482 = vld [vmem:[%s3 + $0x58] sm:$0xff]
      %v483 = vld [vmem:[%s3 + $0x60] sm:$0xff]
      %v484 = vld [vmem:[%s3 + $0x68] sm:$0xff]
      %v485 = vld [vmem:[%s3 + $0x70] sm:$0xff]
      %v486 = vld [vmem:[%s3 + $0x78] sm:$0xff]
      %v487 = vld [vmem:[#allocation2] sm:$0x1]
      %v489 = vlaneseq
      %v490 = vshrl.u32 %v489, 7
      %v491 = vsub.s32 0, %v490
      %v492 = vrot.slane %v487, %v491
      %494 = vmatprep.subr.mxu0 0.0
      %495 = vmatpush1.msra.mxu0 %v471
      %496 = vmatprep.subr.mxu0 0.0
      %497 = vmatpush1.msra.mxu0 %v472
      %498 = vmatprep.subr.mxu0 0.0
      %499 = vmatpush1.msra.mxu0 %v473
      %500 = vmatprep.subr.mxu0 0.0
      %501 = vmatpush1.msra.mxu0 %v474
      %502 = vmatprep.subr.mxu0 0.0
      %503 = vmatpush1.msra.mxu0 %v475
      %504 = vmatprep.subr.mxu0 0.0
      %505 = vmatpush1.msra.mxu0 %v476
      %506 = vmatprep.subr.mxu0 0.0
      %507 = vmatpush1.msra.mxu0 %v477
      %508 = vmatprep.subr.mxu0 0.0
      %509 = vmatpush1.msra.mxu0 %v478
      %510 = vmatprep.subr.mxu0 0.0
      %511 = vmatpush1.msra.mxu0 %v479
      %512 = vmatprep.subr.mxu0 0.0
      %513 = vmatpush1.msra.mxu0 %v480
      %514 = vmatprep.subr.mxu0 0.0
      %515 = vmatpush1.msra.mxu0 %v481
      %516 = vmatprep.subr.mxu0 0.0
      %517 = vmatpush1.msra.mxu0 %v482
      %518 = vmatprep.subr.mxu0 0.0
      %519 = vmatpush1.msra.mxu0 %v483
      %520 = vmatprep.subr.mxu0 0.0
      %521 = vmatpush1.msra.mxu0 %v484
      %522 = vmatprep.subr.mxu0 0.0
      %523 = vmatpush1.msra.mxu0 %v485
      %524 = vmatprep.subr.mxu0 0.0
      %525 = vmatpush1.msra.mxu0 %v486
      %526 = vmatprep.subr.mxu0 0.0
      %527 = vmatpush1.msra.mxu0 0.0
      %528 = vmatprep.subr.mxu0 0.0
      %529 = vmatpush1.msra.mxu0 0.0
      %530 = vmatprep.subr.mxu0 0.0
      %531 = vmatpush1.msra.mxu0 0.0
      %532 = vmatprep.subr.mxu0 0.0
      %533 = vmatpush1.msra.mxu0 0.0
      %534 = vmatprep.subr.mxu0 0.0
      %535 = vmatpush1.msra.mxu0 0.0
      %536 = vmatprep.subr.mxu0 0.0
      %537 = vmatpush1.msra.mxu0 0.0
      %538 = vmatprep.subr.mxu0 0.0
      %539 = vmatpush1.msra.mxu0 0.0
      %540 = vmatprep.subr.mxu0 0.0
      %541 = vmatpush1.msra.mxu0 0.0
      %542 = vmatprep.subr.mxu0 0.0
      %543 = vmatpush1.msra.mxu0 0.0
      %544 = vmatprep.subr.mxu0 0.0
      %545 = vmatpush1.msra.mxu0 0.0
      %546 = vmatprep.subr.mxu0 0.0
      %547 = vmatpush1.msra.mxu0 0.0
      %548 = vmatprep.subr.mxu0 0.0
      %549 = vmatpush1.msra.mxu0 0.0
      %550 = vmatprep.subr.mxu0 0.0
      %551 = vmatpush1.msra.mxu0 0.0
      %552 = vmatprep.subr.mxu0 0.0
      %553 = vmatpush1.msra.mxu0 0.0
      %554 = vmatprep.subr.mxu0 0.0
      %555 = vmatpush1.msra.mxu0 0.0
      %556 = vmatprep.subr.mxu0 0.0
      %557 = vmatpush1.msra.mxu0 0.0
      %558 = vmatprep.mubr.f32.mxu0 0.0
      %559 = vmatmul.mubr.f32.gmra.mrb[0].mxu0 %v463
      %v560 = vpop.f32.mrb[0].mxu0
      %v561 = vadd.f32 %v492, %v560
      %v562 = vpop.f32.mrb[0].mxu0
      %563 = vmatprep.mubr.f32.mxu0 0.0
      %564 = vmatmul.mubr.f32.gmra.mrb[0].mxu0 %v464
      %v565 = vpop.f32.mrb[0].mxu0
      %v566 = vadd.f32 %v492, %v565
      %v567 = vpop.f32.mrb[0].mxu0
      %568 = vmatprep.mubr.f32.mxu0 0.0
      %569 = vmatmul.mubr.f32.gmra.mrb[0].mxu0 %v465
      %v570 = vpop.f32.mrb[0].mxu0
      %v571 = vadd.f32 %v492, %v570
      %v572 = vpop.f32.mrb[0].mxu0
      %573 = vmatprep.mubr.f32.mxu0 0.0
      %574 = vmatmul.mubr.f32.gmra.mrb[0].mxu0 %v466
      %v575 = vpop.f32.mrb[0].mxu0
      %v576 = vadd.f32 %v492, %v575
      %v577 = vpop.f32.mrb[0].mxu0
      %578 = vmatprep.mubr.f32.mxu0 0.0
      %579 = vmatmul.mubr.f32.gmra.mrb[0].mxu0 %v467
      %v580 = vpop.f32.mrb[0].mxu0
      %v581 = vadd.f32 %v492, %v580
      %v582 = vpop.f32.mrb[0].mxu0
      %583 = vmatprep.mubr.f32.mxu0 0.0
      %584 = vmatmul.mubr.f32.gmra.mrb[0].mxu0 %v468
      %v585 = vpop.f32.mrb[0].mxu0
      %v586 = vadd.f32 %v492, %v585
      %v587 = vpop.f32.mrb[0].mxu0
      %588 = vmatprep.mubr.f32.mxu0 0.0
      %589 = vmatmul.mubr.f32.gmra.mrb[0].mxu0 %v469
      %v590 = vpop.f32.mrb[0].mxu0
      %v591 = vadd.f32 %v492, %v590
      %v592 = vpop.f32.mrb[0].mxu0
      %593 = vmatprep.mubr.f32.mxu0 0.0
      %594 = vmatmul.mubr.f32.gmra.mrb[0].mxu0 %v470
      %v595 = vpop.f32.mrb[0].mxu0
      %v596 = vadd.f32 %v492, %v595
      %v597 = vpop.f32.mrb[0].mxu0
      %598 = vdwg.mxu0
      %vm599 = vcmask 7168
      %600 = vst.msk [vmem:[%s318] sm:$0xff] %vm599, %v561
      %601 = vst.msk [vmem:[%s318 + $0x8] sm:$0xff] %vm599, %v566
      %602 = vst.msk [vmem:[%s318 + $0x10] sm:$0xff] %vm599, %v571
      %603 = vst.msk [vmem:[%s318 + $0x18] sm:$0xff] %vm599, %v576
      %604 = vst.msk [vmem:[%s318 + $0x20] sm:$0xff] %vm599, %v581
      %605 = vst.msk [vmem:[%s318 + $0x28] sm:$0xff] %vm599, %v586
      %606 = vst.msk [vmem:[%s318 + $0x30] sm:$0xff] %vm599, %v591
      %607 = vst.msk [vmem:[%s318 + $0x38] sm:$0xff] %vm599, %v596
      %v608 = vld [vmem:[%s5] sm:$0xff]
      %v609 = vld [vmem:[%s5 + $0x8] sm:$0xff]
      %v610 = vld [vmem:[%s5 + $0x10] sm:$0xff]
      %v611 = vld [vmem:[%s5 + $0x18] sm:$0xff]
      %v612 = vld [vmem:[%s5 + $0x20] sm:$0xff]
      %v613 = vld [vmem:[%s5 + $0x28] sm:$0xff]
      %v614 = vld [vmem:[%s5 + $0x30] sm:$0xff]
      %v615 = vld [vmem:[%s5 + $0x38] sm:$0xff]
      %v616 = vld [vmem:[%s5 + $0x40] sm:$0xff]
      %v617 = vld [vmem:[%s5 + $0x48] sm:$0xff]
      %v618 = vld [vmem:[%s5 + $0x50] sm:$0xff]
      %v619 = vld [vmem:[%s5 + $0x58] sm:$0xff]
      %v620 = vld [vmem:[%s5 + $0x60] sm:$0xff]
      %v621 = vld [vmem:[%s5 + $0x68] sm:$0xff]
      %v622 = vld [vmem:[%s5 + $0x70] sm:$0xff]
      %v623 = vld [vmem:[%s5 + $0x78] sm:$0xff]
      %v624 = vld [vmem:[%s5 + $0x80] sm:$0xff]
      %v625 = vld [vmem:[%s5 + $0x88] sm:$0xff]
      %v626 = vld [vmem:[%s5 + $0x90] sm:$0xff]
      %v627 = vld [vmem:[%s5 + $0x98] sm:$0xff]
      %v628 = vld [vmem:[%s5 + $0xa0] sm:$0xff]
      %v629 = vld [vmem:[%s5 + $0xa8] sm:$0xff]
      %v630 = vld [vmem:[%s5 + $0xb0] sm:$0xff]
      %v631 = vld [vmem:[%s5 + $0xb8] sm:$0xff]
      %v632 = vld [vmem:[%s5 + $0xc0] sm:$0xff]
      %v633 = vld [vmem:[%s5 + $0xc8] sm:$0xff]
      %v634 = vld [vmem:[%s5 + $0xd0] sm:$0xff]
      %v635 = vld [vmem:[%s5 + $0xd8] sm:$0xff]
      %v636 = vld [vmem:[%s5 + $0xe0] sm:$0xff]
      %v637 = vld [vmem:[%s5 + $0xe8] sm:$0xff]
      %v638 = vld [vmem:[%s5 + $0xf0] sm:$0xff]
      %v639 = vld [vmem:[%s5 + $0xf8] sm:$0xff]
      %v640 = vld [vmem:[%s5 + $0x100] sm:$0xff]
      %v641 = vld [vmem:[%s5 + $0x108] sm:$0xff]
      %v642 = vld [vmem:[%s5 + $0x110] sm:$0xff]
      %v643 = vld [vmem:[%s5 + $0x118] sm:$0xff]
      %v644 = vld [vmem:[%s5 + $0x120] sm:$0xff]
      %v645 = vld [vmem:[%s5 + $0x128] sm:$0xff]
      %v646 = vld [vmem:[%s5 + $0x130] sm:$0xff]
      %v647 = vld [vmem:[%s5 + $0x138] sm:$0xff]
      %v648 = vld [vmem:[%s5 + $0x140] sm:$0xff]
      %v649 = vld [vmem:[%s5 + $0x148] sm:$0xff]
      %v650 = vld [vmem:[%s5 + $0x150] sm:$0xff]
      %v651 = vld [vmem:[%s5 + $0x158] sm:$0xff]
      %v652 = vld [vmem:[%s5 + $0x160] sm:$0xff]
      %v653 = vld [vmem:[%s5 + $0x168] sm:$0xff]
      %v654 = vld [vmem:[%s5 + $0x170] sm:$0xff]
      %v655 = vld [vmem:[%s5 + $0x178] sm:$0xff]
      %v656 = vld [vmem:[%s6] sm:$0x7]
      %v658 = vlaneseq
      %v659 = vshrl.u32 %v658, 7
      %v660 = vsub.s32 0, %v659
      %v661 = vrot.slane %v656, %v660
      %v662 = vlaneseq
      %v663 = vshrl.u32 %v662, 7
      %v664 = vsub.s32 1, %v663
      %v665 = vrot.slane %v656, %v664
      %v666 = vlaneseq
      %v667 = vshrl.u32 %v666, 7
      %v668 = vsub.s32 2, %v667
      %v669 = vrot.slane %v656, %v668
      %673 = vmatprep.subr.mxu0 %v609
      %674 = vmatpush1.msra.mxu0 %v608
      %675 = vmatprep.subr.mxu0 %v612
      %676 = vmatpush1.msra.mxu0 %v611
      %677 = vmatprep.subr.mxu0 %v615
      %678 = vmatpush1.msra.mxu0 %v614
      %679 = vmatprep.subr.mxu0 %v618
      %680 = vmatpush1.msra.mxu0 %v617
      %681 = vmatprep.subr.mxu0 %v621
      %682 = vmatpush1.msra.mxu0 %v620
      %683 = vmatprep.subr.mxu0 %v624
      %684 = vmatpush1.msra.mxu0 %v623
      %685 = vmatprep.subr.mxu0 %v627
      %686 = vmatpush1.msra.mxu0 %v626
      %687 = vmatprep.subr.mxu0 %v630
      %688 = vmatpush1.msra.mxu0 %v629
      %689 = vmatprep.subr.mxu0 %v633
      %690 = vmatpush1.msra.mxu0 %v632
      %691 = vmatprep.subr.mxu0 %v636
      %692 = vmatpush1.msra.mxu0 %v635
      %693 = vmatprep.subr.mxu0 %v639
      %694 = vmatpush1.msra.mxu0 %v638
      %695 = vmatprep.subr.mxu0 %v642
      %696 = vmatpush1.msra.mxu0 %v641
      %697 = vmatprep.subr.mxu0 %v645
      %698 = vmatpush1.msra.mxu0 %v644
      %699 = vmatprep.subr.mxu0 %v648
      %700 = vmatpush1.msra.mxu0 %v647
      %701 = vmatprep.subr.mxu0 %v651
      %702 = vmatpush1.msra.mxu0 %v650
      %703 = vmatprep.subr.mxu0 %v654
      %704 = vmatpush1.msra.mxu0 %v653
      %705 = vmatprep.subr.mxu0 0.0
      %706 = vmatpush1.msra.mxu0 0.0
      %707 = vmatprep.subr.mxu0 0.0
      %708 = vmatpush1.msra.mxu0 0.0
      %709 = vmatprep.subr.mxu0 0.0
      %710 = vmatpush1.msra.mxu0 0.0
      %711 = vmatprep.subr.mxu0 0.0
      %712 = vmatpush1.msra.mxu0 0.0
      %713 = vmatprep.subr.mxu0 0.0
      %714 = vmatpush1.msra.mxu0 0.0
      %715 = vmatprep.subr.mxu0 0.0
      %716 = vmatpush1.msra.mxu0 0.0
      %717 = vmatprep.subr.mxu0 0.0
      %718 = vmatpush1.msra.mxu0 0.0
      %719 = vmatprep.subr.mxu0 0.0
      %720 = vmatpush1.msra.mxu0 0.0
      %721 = vmatprep.subr.mxu0 0.0
      %722 = vmatpush1.msra.mxu0 0.0
      %723 = vmatprep.subr.mxu0 0.0
      %724 = vmatpush1.msra.mxu0 0.0
      %725 = vmatprep.subr.mxu0 0.0
      %726 = vmatpush1.msra.mxu0 0.0
      %727 = vmatprep.subr.mxu0 0.0
      %728 = vmatpush1.msra.mxu0 0.0
      %729 = vmatprep.subr.mxu0 0.0
      %730 = vmatpush1.msra.mxu0 0.0
      %731 = vmatprep.subr.mxu0 0.0
      %732 = vmatpush1.msra.mxu0 0.0
      %733 = vmatprep.subr.mxu0 0.0
      %734 = vmatpush1.msra.mxu0 0.0
      %735 = vmatprep.subr.mxu0 0.0
      %736 = vmatpush1.msra.mxu0 0.0
      %737 = vmatprep.mubr.f32.mxu0 0.0
      %738 = vmatmul.mubr.f32.gmra.mrb[0].mxu0 %v327
      %v739 = vpop.f32.mrb[0].mxu0
      %v740 = vadd.f32 %v661, %v739
      %v741 = vpop.f32.mrb[0].mxu0
      %v742 = vadd.f32 %v665, %v741
      %743 = vmatprep.mubr.f32.mxu0 0.0
      %744 = vmatmul.mubr.f32.gmra.mrb[0].mxu0 %v328
      %v745 = vpop.f32.mrb[0].mxu0
      %v746 = vadd.f32 %v661, %v745
      %v747 = vpop.f32.mrb[0].mxu0
      %v748 = vadd.f32 %v665, %v747
      %749 = vmatprep.mubr.f32.mxu0 0.0
      %750 = vmatmul.mubr.f32.gmra.mrb[0].mxu0 %v329
      %v751 = vpop.f32.mrb[0].mxu0
      %v752 = vadd.f32 %v661, %v751
      %v753 = vpop.f32.mrb[0].mxu0
      %v754 = vadd.f32 %v665, %v753
      %755 = vmatprep.mubr.f32.mxu0 0.0
      %756 = vmatmul.mubr.f32.gmra.mrb[0].mxu0 %v330
      %v757 = vpop.f32.mrb[0].mxu0
      %v758 = vadd.f32 %v661, %v757
      %v759 = vpop.f32.mrb[0].mxu0
      %v760 = vadd.f32 %v665, %v759
      %761 = vmatprep.mubr.f32.mxu0 0.0
      %762 = vmatmul.mubr.f32.gmra.mrb[0].mxu0 %v331
      %v763 = vpop.f32.mrb[0].mxu0
      %v764 = vadd.f32 %v661, %v763
      %v765 = vpop.f32.mrb[0].mxu0
      %v766 = vadd.f32 %v665, %v765
      %767 = vmatprep.mubr.f32.mxu0 0.0
      %768 = vmatmul.mubr.f32.gmra.mrb[0].mxu0 %v332
      %v769 = vpop.f32.mrb[0].mxu0
      %v770 = vadd.f32 %v661, %v769
      %v771 = vpop.f32.mrb[0].mxu0
      %v772 = vadd.f32 %v665, %v771
      %773 = vmatprep.mubr.f32.mxu0 0.0
      %774 = vmatmul.mubr.f32.gmra.mrb[0].mxu0 %v333
      %v775 = vpop.f32.mrb[0].mxu0
      %v776 = vadd.f32 %v661, %v775
      %v777 = vpop.f32.mrb[0].mxu0
      %v778 = vadd.f32 %v665, %v777
      %779 = vmatprep.mubr.f32.mxu0 0.0
      %780 = vmatmul.mubr.f32.gmra.mrb[0].mxu0 %v334
      %v781 = vpop.f32.mrb[0].mxu0
      %v782 = vadd.f32 %v661, %v781
      %v783 = vpop.f32.mrb[0].mxu0
      %v784 = vadd.f32 %v665, %v783
      %785 = vdwg.mxu0
      %786 = vmatprep.subr.mxu0 0.0
      %787 = vmatpush1.msra.mxu0 %v610
      %788 = vmatprep.subr.mxu0 0.0
      %789 = vmatpush1.msra.mxu0 %v613
      %790 = vmatprep.subr.mxu0 0.0
      %791 = vmatpush1.msra.mxu0 %v616
      %792 = vmatprep.subr.mxu0 0.0
      %793 = vmatpush1.msra.mxu0 %v619
      %794 = vmatprep.subr.mxu0 0.0
      %795 = vmatpush1.msra.mxu0 %v622
      %796 = vmatprep.subr.mxu0 0.0
      %797 = vmatpush1.msra.mxu0 %v625
      %798 = vmatprep.subr.mxu0 0.0
      %799 = vmatpush1.msra.mxu0 %v628
      %800 = vmatprep.subr.mxu0 0.0
      %801 = vmatpush1.msra.mxu0 %v631
      %802 = vmatprep.subr.mxu0 0.0
      %803 = vmatpush1.msra.mxu0 %v634
      %804 = vmatprep.subr.mxu0 0.0
      %805 = vmatpush1.msra.mxu0 %v637
      %806 = vmatprep.subr.mxu0 0.0
      %807 = vmatpush1.msra.mxu0 %v640
      %808 = vmatprep.subr.mxu0 0.0
      %809 = vmatpush1.msra.mxu0 %v643
      %810 = vmatprep.subr.mxu0 0.0
      %811 = vmatpush1.msra.mxu0 %v646
      %812 = vmatprep.subr.mxu0 0.0
      %813 = vmatpush1.msra.mxu0 %v649
      %814 = vmatprep.subr.mxu0 0.0
      %815 = vmatpush1.msra.mxu0 %v652
      %816 = vmatprep.subr.mxu0 0.0
      %817 = vmatpush1.msra.mxu0 %v655
      %818 = vmatprep.subr.mxu0 0.0
      %819 = vmatpush1.msra.mxu0 0.0
      %820 = vmatprep.subr.mxu0 0.0
      %821 = vmatpush1.msra.mxu0 0.0
      %822 = vmatprep.subr.mxu0 0.0
      %823 = vmatpush1.msra.mxu0 0.0
      %824 = vmatprep.subr.mxu0 0.0
      %825 = vmatpush1.msra.mxu0 0.0
      %826 = vmatprep.subr.mxu0 0.0
      %827 = vmatpush1.msra.mxu0 0.0
      %828 = vmatprep.subr.mxu0 0.0
      %829 = vmatpush1.msra.mxu0 0.0
      %830 = vmatprep.subr.mxu0 0.0
      %831 = vmatpush1.msra.mxu0 0.0
      %832 = vmatprep.subr.mxu0 0.0
      %833 = vmatpush1.msra.mxu0 0.0
      %834 = vmatprep.subr.mxu0 0.0
      %835 = vmatpush1.msra.mxu0 0.0
      %836 = vmatprep.subr.mxu0 0.0
      %837 = vmatpush1.msra.mxu0 0.0
      %838 = vmatprep.subr.mxu0 0.0
      %839 = vmatpush1.msra.mxu0 0.0
      %840 = vmatprep.subr.mxu0 0.0
      %841 = vmatpush1.msra.mxu0 0.0
      %842 = vmatprep.subr.mxu0 0.0
      %843 = vmatpush1.msra.mxu0 0.0
      %844 = vmatprep.subr.mxu0 0.0
      %845 = vmatpush1.msra.mxu0 0.0
      %846 = vmatprep.subr.mxu0 0.0
      %847 = vmatpush1.msra.mxu0 0.0
      %848 = vmatprep.subr.mxu0 0.0
      %849 = vmatpush1.msra.mxu0 0.0
      %850 = vmatprep.mubr.f32.mxu0 0.0
      %851 = vmatmul.mubr.f32.gmra.mrb[0].mxu0 %v327
      %v852 = vpop.f32.mrb[0].mxu0
      %v853 = vadd.f32 %v669, %v852
      %v854 = vpop.f32.mrb[0].mxu0
      %855 = vmatprep.mubr.f32.mxu0 0.0
      %856 = vmatmul.mubr.f32.gmra.mrb[0].mxu0 %v328
      %v857 = vpop.f32.mrb[0].mxu0
      %v858 = vadd.f32 %v669, %v857
      %v859 = vpop.f32.mrb[0].mxu0
      %860 = vmatprep.mubr.f32.mxu0 0.0
      %861 = vmatmul.mubr.f32.gmra.mrb[0].mxu0 %v329
      %v862 = vpop.f32.mrb[0].mxu0
      %v863 = vadd.f32 %v669, %v862
      %v864 = vpop.f32.mrb[0].mxu0
      %865 = vmatprep.mubr.f32.mxu0 0.0
      %866 = vmatmul.mubr.f32.gmra.mrb[0].mxu0 %v330
      %v867 = vpop.f32.mrb[0].mxu0
      %v868 = vadd.f32 %v669, %v867
      %v869 = vpop.f32.mrb[0].mxu0
      %870 = vmatprep.mubr.f32.mxu0 0.0
      %871 = vmatmul.mubr.f32.gmra.mrb[0].mxu0 %v331
      %v872 = vpop.f32.mrb[0].mxu0
      %v873 = vadd.f32 %v669, %v872
      %v874 = vpop.f32.mrb[0].mxu0
      %875 = vmatprep.mubr.f32.mxu0 0.0
      %876 = vmatmul.mubr.f32.gmra.mrb[0].mxu0 %v332
      %v877 = vpop.f32.mrb[0].mxu0
      %v878 = vadd.f32 %v669, %v877
      %v879 = vpop.f32.mrb[0].mxu0
      %880 = vmatprep.mubr.f32.mxu0 0.0
      %881 = vmatmul.mubr.f32.gmra.mrb[0].mxu0 %v333
      %v882 = vpop.f32.mrb[0].mxu0
      %v883 = vadd.f32 %v669, %v882
      %v884 = vpop.f32.mrb[0].mxu0
      %885 = vmatprep.mubr.f32.mxu0 0.0
      %886 = vmatmul.mubr.f32.gmra.mrb[0].mxu0 %v334
      %v887 = vpop.f32.mrb[0].mxu0
      %v888 = vadd.f32 %v669, %v887
      %v889 = vpop.f32.mrb[0].mxu0
      %890 = vdwg.mxu0
      %891 = vst [vmem:[%s325] sm:$0xff] %v740
      %892 = vst [vmem:[%s325 + $0x8] sm:$0xff] %v742
      %893 = vst [vmem:[%s325 + $0x10] sm:$0xff] %v853
      %894 = vst [vmem:[%s325 + $0x18] sm:$0xff] %v746
      %895 = vst [vmem:[%s325 + $0x20] sm:$0xff] %v748
      %896 = vst [vmem:[%s325 + $0x28] sm:$0xff] %v858
      %897 = vst [vmem:[%s325 + $0x30] sm:$0xff] %v752
      %898 = vst [vmem:[%s325 + $0x38] sm:$0xff] %v754
      %899 = vst [vmem:[%s325 + $0x40] sm:$0xff] %v863
      %900 = vst [vmem:[%s325 + $0x48] sm:$0xff] %v758
      %901 = vst [vmem:[%s325 + $0x50] sm:$0xff] %v760
      %902 = vst [vmem:[%s325 + $0x58] sm:$0xff] %v868
      %903 = vst [vmem:[%s325 + $0x60] sm:$0xff] %v764
      %904 = vst [vmem:[%s325 + $0x68] sm:$0xff] %v766
      %905 = vst [vmem:[%s325 + $0x70] sm:$0xff] %v873
      %906 = vst [vmem:[%s325 + $0x78] sm:$0xff] %v770
      %907 = vst [vmem:[%s325 + $0x80] sm:$0xff] %v772
      %908 = vst [vmem:[%s325 + $0x88] sm:$0xff] %v878
      %909 = vst [vmem:[%s325 + $0x90] sm:$0xff] %v776
      %910 = vst [vmem:[%s325 + $0x98] sm:$0xff] %v778
      %911 = vst [vmem:[%s325 + $0xa0] sm:$0xff] %v883
      %912 = vst [vmem:[%s325 + $0xa8] sm:$0xff] %v782
      %913 = vst [vmem:[%s325 + $0xb0] sm:$0xff] %v784
      %914 = vst [vmem:[%s325 + $0xb8] sm:$0xff] %v888
      %s915 = smul.u32 8, %s22
      %p916 = scmp.lt.s32.totalorder %s915, 23
      %s917 = scalar_select %p916, %s915, 23
      %s918 = smul.addr %s917, 8
      %s919 = scalar_lea.vmem %s7, %s918
      %s920 = smul.u32 8, %s22
      %p921 = scmp.lt.s32.totalorder %s920, 23
      %s922 = scalar_select %p921, %s920, 23
      %s923 = smul.addr %s922, 3
      %s924 = smul.addr %s923, 8
      %s925 = scalar_lea.vmem %s8, %s924
      // Predicated region
      $region49: #{classification_head.2} parent=47 // pred_check
        %p926 = pneg %p192
      $region50: #{classification_head.2} parent=47 // pred_check_branch
        %928 = sbr.rel (%p926) target = $region52
      $region51: #{classification_head.2} parent=47 // pred_region
        %s929 = smul.u32 8, %s22
      $region52: #{classification_head.2} parent=47 // pred_fallthru
        _
      // Predicated region
      $region53: #{classification_head.2} parent=47 // pred_check
        %p930 = pneg %p218
      $region54: #{classification_head.2} parent=47 // pred_check_branch
        %932 = sbr.rel (%p930) target = $region56
      $region55: #{classification_head.2} parent=47 // pred_region
        %s933 = smul.u32 8, %s22
      $region56: #{classification_head.2} parent=47 // pred_fallthru
        _
    $region48: #{classification_head.2} parent=5 // pred_fallthru
      _
    %p934 = scmp.le.s32.totalorder 2, %s17
    // Predicated region
    $region57: #{classification_head.2} parent=5 // pred_check
      %p935 = pneg %p934
    $region58: #{classification_head.2} parent=5 // pred_check_branch
      %937 = sbr.rel (%p935) target = $region60
    $region59: #{classification_head.2} parent=5 // pred_region
      %s938 = ssub.s32 %s17, 2
      // Predicated region
      $region61: #{classification_head.2} parent=59 // pred_check
        %p939 = pneg %p198
      $region62: #{classification_head.2} parent=59 // pred_check_branch
        %941 = sbr.rel (%p939) target = $region64
      $region63: #{classification_head.2} parent=59 // pred_region
        %s942 = smul.u32 8, %s23
        %p943 = scmp.lt.s32.totalorder %s942, 23
        %s944 = scalar_select %p943, %s942, 23
        %s945 = smul.addr %s944, 8
        %s946 = scalar_lea.vmem %s7, %s945
      $region64: #{classification_head.2} parent=59 // pred_fallthru
        _
      // Predicated region
      $region65: #{classification_head.2} parent=59 // pred_check
        %p947 = pneg %p224
      $region66: #{classification_head.2} parent=59 // pred_check_branch
        %949 = sbr.rel (%p947) target = $region68
      $region67: #{classification_head.2} parent=59 // pred_region
        %s950 = smul.u32 8, %s23
        %p951 = scmp.lt.s32.totalorder %s950, 23
        %s952 = scalar_select %p951, %s950, 23
        %s953 = smul.addr %s952, 3
        %s954 = smul.addr %s953, 8
        %s955 = scalar_lea.vmem %s8, %s954
      $region68: #{classification_head.2} parent=59 // pred_fallthru
        _
    $region60: #{classification_head.2} parent=5 // pred_fallthru
      _
  $region6: #{classification_head.2} parent=0 // loop_footer
    %s21 = sadd.s32 1, %s17
  $region7: #{classification_head.2} parent=0 // loop_footer_branch
    %16 = sbr.rel target = $region3
  $region8: #{classification_head.2} parent=0 // loop_exit
    _

// kernel: classification_head.3
$region0: #{classification_head.3}
  #allocation0 [shape = 'u32[]', space=smem, size = 0x4, offset = 0x4, fixed_abs, tag = 'smem constant byte address 0x4 - core index']
  #allocation1 [shape = 'u32[144,128]{1,0:T(1,128)}', space=vmem, size = 0x12000, scoped, tag = 'internal scratch']
  #allocation2 [shape = 'f32[16,128]{1,0:T(8,128)}', space=vmem, size = 0x2000, scoped, tag = 'scratch operand']
  %s0 = inlined_call_operand.vmem [shape: f32[16,12,384], index: 0, kind: input, shape index: {}]
  %s1 = inlined_call_operand.vmem [shape: f32[128,384], index: 1, kind: input, shape index: {}]
  %s2 = inlined_call_operand.vmem [shape: f32[1,128], index: 2, kind: input, shape index: {}]
  %s3 = inlined_call_operand.vmem [shape: f32[128,128], index: 3, kind: input, shape index: {}]
  %s4 = inlined_call_operand.vmem [shape: f32[1,128], index: 4, kind: input, shape index: {}]
  %s5 = inlined_call_operand.vmem [shape: f32[128,2], index: 5, kind: input, shape index: {}]
  %s6 = inlined_call_operand.vmem [shape: f32[1,2], index: 6, kind: input, shape index: {}]
  %s7 = inlined_call_operand.vmem [shape: f32[16,2], index: 7, kind: output, shape index: {}]
  %s8 = sld [smem:[#allocation0]]
  $region92: #{classification_head.3} parent=0
    _
  %s10 = ssub.s32 1, %s8
  %s11 = scalar_select 0, %s10, %s8
  $region1: #{classification_head.3} parent=0
    #allocation3 [shape = 'u8[393216]{0}', space=vmem, size = 0x60000, scoped, tag = 'input window, operand 0']
    loop: start=0, step=1, limit=4
    $region2: #{classification_head.3} parent=1 // loop_pre_header
      _
    $region3: #{classification_head.3} parent=1 // loop_header
      %s13 = sphi 0, %s17
      %p14 = scmp.ge.s32.totalorder %s13, 4
      %s23 = sphi 0, %s25
      %s26 = sphi 0, %s23
      %s27 = sphi 0, %s26
      %s43 = sphi 0, %s27
      %s47 = sphi 0, %s47
      %s49 = sphi 0, %s47
      %s50 = sphi 0, %s49
      %s64 = sphi 0, %s50
      %s68 = sphi 0, %s68
      %s70 = sphi 0, %s68
      %s71 = sphi 0, %s70
      %s85 = sphi 0, %s71
      %s89 = sphi 0, %s89
      %s91 = sphi 0, %s89
      %s92 = sphi 0, %s91
      %s106 = sphi 0, %s92
      %s110 = sphi 0, %s110
      %s112 = sphi 0, %s110
      %s113 = sphi 0, %s112
      %s127 = sphi 0, %s113
      %s131 = sphi 0, %s131
      %s133 = sphi 0, %s131
      %s134 = sphi 0, %s133
      %s148 = sphi 0, %s134
      %s152 = sphi 0, %s152
      %s154 = sphi 0, %s152
      %s155 = sphi 0, %s154
      %s169 = sphi 0, %s155
      %s173 = sphi 0, %s173
      %s175 = sphi 0, %s173
      %s176 = sphi 0, %s175
      %s190 = sphi 0, %s176
    $region4: #{classification_head.3} parent=1 // loop_header_branch
      %16 = sbr.rel (%p14) target = $region8
    $region5: #{classification_head.3} parent=1 // loop_body
      %s18 = ssub.s32 %s13, 1
      %s19 = ssub.s32 %s13, 2
      %s20 = sadd.s32 %s13, 1
      %s21 = ssub.s32 %s13, %s20
      %p22 = scmp.eq.s32.totalorder %s21, 0
      %s24 = sadd.s32 %s23, 1
      %s25 = scalar_select %p22, %s23, %s24
      %p28 = pneg %p22
      %p29 = scmp.eq.s32.totalorder %s13, 1
      %p30 = por %p28, %p29
      %p31 = scmp.ne.s32.totalorder %s23, %s26
      %p32 = scmp.eq.s32.totalorder %s13, 0
      %p33 = por %p31, %p32
      %p34 = scmp.ne.s32.totalorder %s23, %s26
      %p35 = scmp.eq.s32.totalorder %s18, 1
      %p36 = por %p34, %p35
      %p37 = scmp.ne.s32.totalorder %s26, %s27
      %p38 = scmp.eq.s32.totalorder %s18, 0
      %p39 = por %p37, %p38
      %p40 = scmp.ne.s32.totalorder %s26, %s27
      %p41 = scmp.eq.s32.totalorder %s19, 1
      %p42 = por %p40, %p41
      %p44 = scmp.ne.s32.totalorder %s27, %s43
      %p45 = scmp.eq.s32.totalorder %s19, 0
      %p46 = por %p44, %p45
      %s48 = sadd.s32 %s47, 1
      %p51 = scmp.eq.s32.totalorder %s13, 1
      %p52 = scmp.ne.s32.totalorder %s47, %s49
      %p53 = scmp.eq.s32.totalorder %s13, 0
      %p54 = por %p52, %p53
      %p55 = scmp.ne.s32.totalorder %s47, %s49
      %p56 = scmp.eq.s32.totalorder %s18, 1
      %p57 = por %p55, %p56
      %p58 = scmp.ne.s32.totalorder %s49, %s50
      %p59 = scmp.eq.s32.totalorder %s18, 0
      %p60 = por %p58, %p59
      %p61 = scmp.ne.s32.totalorder %s49, %s50
      %p62 = scmp.eq.s32.totalorder %s19, 1
      %p63 = por %p61, %p62
      %p65 = scmp.ne.s32.totalorder %s50, %s64
      %p66 = scmp.eq.s32.totalorder %s19, 0
      %p67 = por %p65, %p66
      %s69 = sadd.s32 %s68, 1
      %p72 = scmp.eq.s32.totalorder %s13, 1
      %p73 = scmp.ne.s32.totalorder %s68, %s70
      %p74 = scmp.eq.s32.totalorder %s13, 0
      %p75 = por %p73, %p74
      %p76 = scmp.ne.s32.totalorder %s68, %s70
      %p77 = scmp.eq.s32.totalorder %s18, 1
      %p78 = por %p76, %p77
      %p79 = scmp.ne.s32.totalorder %s70, %s71
      %p80 = scmp.eq.s32.totalorder %s18, 0
      %p81 = por %p79, %p80
      %p82 = scmp.ne.s32.totalorder %s70, %s71
      %p83 = scmp.eq.s32.totalorder %s19, 1
      %p84 = por %p82, %p83
      %p86 = scmp.ne.s32.totalorder %s71, %s85
      %p87 = scmp.eq.s32.totalorder %s19, 0
      %p88 = por %p86, %p87
      %s90 = sadd.s32 %s89, 1
      %p93 = scmp.eq.s32.totalorder %s13, 1
      %p94 = scmp.ne.s32.totalorder %s89, %s91
      %p95 = scmp.eq.s32.totalorder %s13, 0
      %p96 = por %p94, %p95
      %p97 = scmp.ne.s32.totalorder %s89, %s91
      %p98 = scmp.eq.s32.totalorder %s18, 1
      %p99 = por %p97, %p98
      %p100 = scmp.ne.s32.totalorder %s91, %s92
      %p101 = scmp.eq.s32.totalorder %s18, 0
      %p102 = por %p100, %p101
      %p103 = scmp.ne.s32.totalorder %s91, %s92
      %p104 = scmp.eq.s32.totalorder %s19, 1
      %p105 = por %p103, %p104
      %p107 = scmp.ne.s32.totalorder %s92, %s106
      %p108 = scmp.eq.s32.totalorder %s19, 0
      %p109 = por %p107, %p108
      %s111 = sadd.s32 %s110, 1
      %p114 = scmp.eq.s32.totalorder %s13, 1
      %p115 = scmp.ne.s32.totalorder %s110, %s112
      %p116 = scmp.eq.s32.totalorder %s13, 0
      %p117 = por %p115, %p116
      %p118 = scmp.ne.s32.totalorder %s110, %s112
      %p119 = scmp.eq.s32.totalorder %s18, 1
      %p120 = por %p118, %p119
      %p121 = scmp.ne.s32.totalorder %s112, %s113
      %p122 = scmp.eq.s32.totalorder %s18, 0
      %p123 = por %p121, %p122
      %p124 = scmp.ne.s32.totalorder %s112, %s113
      %p125 = scmp.eq.s32.totalorder %s19, 1
      %p126 = por %p124, %p125
      %p128 = scmp.ne.s32.totalorder %s113, %s127
      %p129 = scmp.eq.s32.totalorder %s19, 0
      %p130 = por %p128, %p129
      %s132 = sadd.s32 %s131, 1
      %p135 = scmp.eq.s32.totalorder %s13, 1
      %p136 = scmp.ne.s32.totalorder %s131, %s133
      %p137 = scmp.eq.s32.totalorder %s13, 0
      %p138 = por %p136, %p137
      %p139 = scmp.ne.s32.totalorder %s131, %s133
      %p140 = scmp.eq.s32.totalorder %s18, 1
      %p141 = por %p139, %p140
      %p142 = scmp.ne.s32.totalorder %s133, %s134
      %p143 = scmp.eq.s32.totalorder %s18, 0
      %p144 = por %p142, %p143
      %p145 = scmp.ne.s32.totalorder %s133, %s134
      %p146 = scmp.eq.s32.totalorder %s19, 1
      %p147 = por %p145, %p146
      %p149 = scmp.ne.s32.totalorder %s134, %s148
      %p150 = scmp.eq.s32.totalorder %s19, 0
      %p151 = por %p149, %p150
      %s153 = sadd.s32 %s152, 1
      %p156 = scmp.eq.s32.totalorder %s13, 1
      %p157 = scmp.ne.s32.totalorder %s152, %s154
      %p158 = scmp.eq.s32.totalorder %s13, 0
      %p159 = por %p157, %p158
      %p160 = scmp.ne.s32.totalorder %s152, %s154
      %p161 = scmp.eq.s32.totalorder %s18, 1
      %p162 = por %p160, %p161
      %p163 = scmp.ne.s32.totalorder %s154, %s155
      %p164 = scmp.eq.s32.totalorder %s18, 0
      %p165 = por %p163, %p164
      %p166 = scmp.ne.s32.totalorder %s154, %s155
      %p167 = scmp.eq.s32.totalorder %s19, 1
      %p168 = por %p166, %p167
      %p170 = scmp.ne.s32.totalorder %s155, %s169
      %p171 = scmp.eq.s32.totalorder %s19, 0
      %p172 = por %p170, %p171
      %s174 = sadd.s32 %s173, 1
      %p177 = scmp.eq.s32.totalorder %s13, 1
      %p178 = scmp.ne.s32.totalorder %s173, %s175
      %p179 = scmp.eq.s32.totalorder %s13, 0
      %p180 = por %p178, %p179
      %p181 = scmp.ne.s32.totalorder %s173, %s175
      %p182 = scmp.eq.s32.totalorder %s18, 1
      %p183 = por %p181, %p182
      %p184 = scmp.ne.s32.totalorder %s175, %s176
      %p185 = scmp.eq.s32.totalorder %s18, 0
      %p186 = por %p184, %p185
      %p187 = scmp.ne.s32.totalorder %s175, %s176
      %p188 = scmp.eq.s32.totalorder %s19, 1
      %p189 = por %p187, %p188
      %p191 = scmp.ne.s32.totalorder %s176, %s190
      %p192 = scmp.eq.s32.totalorder %s19, 0
      %p193 = por %p191, %p192
      %p194 = scmp.le.s32.totalorder 1, %s13
      %p195 = scmp.lt.s32.totalorder %s13, 3
      %p196 = pnand %p194, %p195
      %p197 = pneg %p196
      // Predicated region
      $region9: #{classification_head.3} parent=5 // pred_check
        _
      $region10: #{classification_head.3} parent=5 // pred_check_branch
        %199 = sbr.rel (%p196) target = $region12
      $region11: #{classification_head.3} parent=5 // pred_region
        %s200 = ssub.s32 %s13, 1
        // Predicated region
        $region13: #{classification_head.3} parent=11 // pred_check
          %p201 = pneg %p60
        $region14: #{classification_head.3} parent=11 // pred_check_branch
          %203 = sbr.rel (%p201) target = $region16
        $region15: #{classification_head.3} parent=11 // pred_region
          _
        $region16: #{classification_head.3} parent=11 // pred_fallthru
          _
        // Predicated region
        $region17: #{classification_head.3} parent=11 // pred_check
          %p204 = pneg %p81
        $region18: #{classification_head.3} parent=11 // pred_check_branch
          %206 = sbr.rel (%p204) target = $region20
        $region19: #{classification_head.3} parent=11 // pred_region
          _
        $region20: #{classification_head.3} parent=11 // pred_fallthru
          _
        // Predicated region
        $region21: #{classification_head.3} parent=11 // pred_check
          %p207 = pneg %p102
        $region22: #{classification_head.3} parent=11 // pred_check_branch
          %209 = sbr.rel (%p207) target = $region24
        $region23: #{classification_head.3} parent=11 // pred_region
          _
        $region24: #{classification_head.3} parent=11 // pred_fallthru
          _
        // Predicated region
        $region25: #{classification_head.3} parent=11 // pred_check
          %p210 = pneg %p123
        $region26: #{classification_head.3} parent=11 // pred_check_branch
          %212 = sbr.rel (%p210) target = $region28
        $region27: #{classification_head.3} parent=11 // pred_region
          _
        $region28: #{classification_head.3} parent=11 // pred_fallthru
          _
        // Predicated region
        $region29: #{classification_head.3} parent=11 // pred_check
          %p213 = pneg %p144
        $region30: #{classification_head.3} parent=11 // pred_check_branch
          %215 = sbr.rel (%p213) target = $region32
        $region31: #{classification_head.3} parent=11 // pred_region
          _
        $region32: #{classification_head.3} parent=11 // pred_fallthru
          _
        // Predicated region
        $region33: #{classification_head.3} parent=11 // pred_check
          %p216 = pneg %p165
        $region34: #{classification_head.3} parent=11 // pred_check_branch
          %218 = sbr.rel (%p216) target = $region36
        $region35: #{classification_head.3} parent=11 // pred_region
          _
        $region36: #{classification_head.3} parent=11 // pred_fallthru
          _
      $region12: #{classification_head.3} parent=5 // pred_fallthru
        _
      %p219 = scmp.lt.s32.totalorder %s13, 2
      // Predicated region
      $region37: #{classification_head.3} parent=5 // pred_check
        %p220 = pneg %p219
      $region38: #{classification_head.3} parent=5 // pred_check_branch
        %222 = sbr.rel (%p220) target = $region40
      $region39: #{classification_head.3} parent=5 // pred_region
        // Predicated region
        $region41: #{classification_head.3} parent=39 // pred_check
          %p223 = pneg %p33
        $region42: #{classification_head.3} parent=39 // pred_check_branch
          %225 = sbr.rel (%p223) target = $region44
        $region43: #{classification_head.3} parent=39 // pred_region
          %s226 = sand.u32 %s23, 1
          %s227 = sand.u32 %s23, 1
          %s228 = smul.addr %s227, 384
          %s229 = scalar_lea.vmem [#allocation3], %s228
          %s230 = smul.addr %s13, 3
          %s231 = smul.addr %s230, 8
          %s232 = scalar_lea.vmem %s0, %s231
          // Predicated region
          $region45: #{classification_head.3} parent=43 // pred_check
            _
          $region46: #{classification_head.3} parent=43 // pred_check_branch
            %234 = sbr.rel (0) target = $region48
          $region47: #{classification_head.3} parent=43 // pred_region
            // Predicated region
            $region49: #{classification_head.3} parent=47 // pred_check
              _
            $region50: #{classification_head.3} parent=47 // pred_check_branch
              %236 = sbr.rel (0) target = $region52
            $region51: #{classification_head.3} parent=47 // pred_region
              loop: start=0, step=1, limit=1
              $region53: #{classification_head.3} parent=51 // loop_pre_header
                _
              $region54: #{classification_head.3} parent=51 // loop_header
                %s238 = sphi 0, %s242
                %p239 = scmp.ge.s32.totalorder %s238, 1
                %s243 = sphi %s232, %s232
                %s244 = sphi %s229, %s229
              $region55: #{classification_head.3} parent=51 // loop_header_branch
                %241 = sbr.rel (%p239) target = $region59
              $region56: #{classification_head.3} parent=51 // loop_body
                %v245 = vld [vmem:[%s243] sm:$0xff]
                %246 = vst [vmem:[%s244] sm:$0xff] %v245
                %v247 = vld [vmem:[%s243 + $0x8] sm:$0xff]
                %248 = vst [vmem:[%s244 + $0x8] sm:$0xff] %v247
                %v249 = vld [vmem:[%s243 + $0x10] sm:$0xff]
                %250 = vst [vmem:[%s244 + $0x10] sm:$0xff] %v249
                %v251 = vld [vmem:[%s243 + $0x30] sm:$0xff]
                %252 = vst [vmem:[%s244 + $0x18] sm:$0xff] %v251
                %v253 = vld [vmem:[%s243 + $0x38] sm:$0xff]
                %254 = vst [vmem:[%s244 + $0x20] sm:$0xff] %v253
                %v255 = vld [vmem:[%s243 + $0x40] sm:$0xff]
                %256 = vst [vmem:[%s244 + $0x28] sm:$0xff] %v255
                %v257 = vld [vmem:[%s243 + $0x60] sm:$0xff]
                %258 = vst [vmem:[%s244 + $0x30] sm:$0xff] %v257
                %v259 = vld [vmem:[%s243 + $0x68] sm:$0xff]
                %260 = vst [vmem:[%s244 + $0x38] sm:$0xff] %v259
                %v261 = vld [vmem:[%s243 + $0x70] sm:$0xff]
                %262 = vst [vmem:[%s244 + $0x40] sm:$0xff] %v261
                %v263 = vld [vmem:[%s243 + $0x90] sm:$0xff]
                %264 = vst [vmem:[%s244 + $0x48] sm:$0xff] %v263
                %v265 = vld [vmem:[%s243 + $0x98] sm:$0xff]
                %266 = vst [vmem:[%s244 + $0x50] sm:$0xff] %v265
                %v267 = vld [vmem:[%s243 + $0xa0] sm:$0xff]
                %268 = vst [vmem:[%s244 + $0x58] sm:$0xff] %v267
                %v269 = vld [vmem:[%s243 + $0xc0] sm:$0xff]
                %270 = vst [vmem:[%s244 + $0x60] sm:$0xff] %v269
                %v271 = vld [vmem:[%s243 + $0xc8] sm:$0xff]
                %272 = vst [vmem:[%s244 + $0x68] sm:$0xff] %v271
                %v273 = vld [vmem:[%s243 + $0xd0] sm:$0xff]
                %274 = vst [vmem:[%s244 + $0x70] sm:$0xff] %v273
                %v275 = vld [vmem:[%s243 + $0xf0] sm:$0xff]
                %276 = vst [vmem:[%s244 + $0x78] sm:$0xff] %v275
                %v277 = vld [vmem:[%s243 + $0xf8] sm:$0xff]
                %278 = vst [vmem:[%s244 + $0x80] sm:$0xff] %v277
                %v279 = vld [vmem:[%s243 + $0x100] sm:$0xff]
                %280 = vst [vmem:[%s244 + $0x88] sm:$0xff] %v279
                %v281 = vld [vmem:[%s243 + $0x120] sm:$0xff]
                %282 = vst [vmem:[%s244 + $0x90] sm:$0xff] %v281
                %v283 = vld [vmem:[%s243 + $0x128] sm:$0xff]
                %284 = vst [vmem:[%s244 + $0x98] sm:$0xff] %v283
                %v285 = vld [vmem:[%s243 + $0x130] sm:$0xff]
                %286 = vst [vmem:[%s244 + $0xa0] sm:$0xff] %v285
                %v287 = vld [vmem:[%s243 + $0x150] sm:$0xff]
                %288 = vst [vmem:[%s244 + $0xa8] sm:$0xff] %v287
                %v289 = vld [vmem:[%s243 + $0x158] sm:$0xff]
                %290 = vst [vmem:[%s244 + $0xb0] sm:$0xff] %v289
                %v291 = vld [vmem:[%s243 + $0x160] sm:$0xff]
                %292 = vst [vmem:[%s244 + $0xb8] sm:$0xff] %v291
                %v293 = vld [vmem:[%s243 + $0x180] sm:$0xff]
                %294 = vst [vmem:[%s244 + $0xc0] sm:$0xff] %v293
                %v295 = vld [vmem:[%s243 + $0x188] sm:$0xff]
                %296 = vst [vmem:[%s244 + $0xc8] sm:$0xff] %v295
                %v297 = vld [vmem:[%s243 + $0x190] sm:$0xff]
                %298 = vst [vmem:[%s244 + $0xd0] sm:$0xff] %v297
                %v299 = vld [vmem:[%s243 + $0x1b0] sm:$0xff]
                %300 = vst [vmem:[%s244 + $0xd8] sm:$0xff] %v299
                %v301 = vld [vmem:[%s243 + $0x1b8] sm:$0xff]
                %302 = vst [vmem:[%s244 + $0xe0] sm:$0xff] %v301
                %v303 = vld [vmem:[%s243 + $0x1c0] sm:$0xff]
                %304 = vst [vmem:[%s244 + $0xe8] sm:$0xff] %v303
                %v305 = vld [vmem:[%s243 + $0x1e0] sm:$0xff]
                %306 = vst [vmem:[%s244 + $0xf0] sm:$0xff] %v305
                %v307 = vld [vmem:[%s243 + $0x1e8] sm:$0xff]
                %308 = vst [vmem:[%s244 + $0xf8] sm:$0xff] %v307
                %v309 = vld [vmem:[%s243 + $0x1f0] sm:$0xff]
                %310 = vst [vmem:[%s244 + $0x100] sm:$0xff] %v309
                %v311 = vld [vmem:[%s243 + $0x210] sm:$0xff]
                %312 = vst [vmem:[%s244 + $0x108] sm:$0xff] %v311
                %v313 = vld [vmem:[%s243 + $0x218] sm:$0xff]
                %314 = vst [vmem:[%s244 + $0x110] sm:$0xff] %v313
                %v315 = vld [vmem:[%s243 + $0x220] sm:$0xff]
                %316 = vst [vmem:[%s244 + $0x118] sm:$0xff] %v315
                %v317 = vld [vmem:[%s243 + $0x240] sm:$0xff]
                %318 = vst [vmem:[%s244 + $0x120] sm:$0xff] %v317
                %v319 = vld [vmem:[%s243 + $0x248] sm:$0xff]
                %320 = vst [vmem:[%s244 + $0x128] sm:$0xff] %v319
                %v321 = vld [vmem:[%s243 + $0x250] sm:$0xff]
                %322 = vst [vmem:[%s244 + $0x130] sm:$0xff] %v321
                %v323 = vld [vmem:[%s243 + $0x270] sm:$0xff]
                %324 = vst [vmem:[%s244 + $0x138] sm:$0xff] %v323
                %v325 = vld [vmem:[%s243 + $0x278] sm:$0xff]
                %326 = vst [vmem:[%s244 + $0x140] sm:$0xff] %v325
                %v327 = vld [vmem:[%s243 + $0x280] sm:$0xff]
                %328 = vst [vmem:[%s244 + $0x148] sm:$0xff] %v327
                %v329 = vld [vmem:[%s243 + $0x2a0] sm:$0xff]
                %330 = vst [vmem:[%s244 + $0x150] sm:$0xff] %v329
                %v331 = vld [vmem:[%s243 + $0x2a8] sm:$0xff]
                %332 = vst [vmem:[%s244 + $0x158] sm:$0xff] %v331
                %v333 = vld [vmem:[%s243 + $0x2b0] sm:$0xff]
                %334 = vst [vmem:[%s244 + $0x160] sm:$0xff] %v333
                %v335 = vld [vmem:[%s243 + $0x2d0] sm:$0xff]
                %336 = vst [vmem:[%s244 + $0x168] sm:$0xff] %v335
                %v337 = vld [vmem:[%s243 + $0x2d8] sm:$0xff]
                %338 = vst [vmem:[%s244 + $0x170] sm:$0xff] %v337
                %v339 = vld [vmem:[%s243 + $0x2e0] sm:$0xff]
                %340 = vst [vmem:[%s244 + $0x178] sm:$0xff] %v339
              $region57: #{classification_head.3} parent=51 // loop_footer
                %s242 = sadd.s32 1, %s238
              $region58: #{classification_head.3} parent=51 // loop_footer_branch
                %237 = sbr.rel target = $region54
              $region59: #{classification_head.3} parent=51 // loop_exit
                _
            $region52: #{classification_head.3} parent=47 // pred_fallthru
              _
            // Predicated region
            $region60: #{classification_head.3} parent=47 // pred_check
              _
            $region61: #{classification_head.3} parent=47 // pred_check_branch
              %342 = sbr.rel target = $region63
            $region62: #{classification_head.3} parent=47 // pred_region
              _
            $region63: #{classification_head.3} parent=47 // pred_fallthru
              _
          $region48: #{classification_head.3} parent=43 // pred_fallthru
            _
          %343 = vnop
        $region44: #{classification_head.3} parent=39 // pred_fallthru
          _
      $region40: #{classification_head.3} parent=5 // pred_fallthru
        _
      %p344 = scmp.le.s32.totalorder 1, %s13
      %p345 = scmp.lt.s32.totalorder %s13, 3
      %p346 = pnand %p344, %p345
      %p347 = pneg %p346
      // Predicated region
      $region64: #{classification_head.3} parent=5 // pred_check
        _
      $region65: #{classification_head.3} parent=5 // pred_check_branch
        %349 = sbr.rel (%p346) target = $region67
      $region66: #{classification_head.3} parent=5 // pred_region
        %s350 = ssub.s32 %s13, 1
        %s351 = sand.u32 %s26, 1
        %s352 = sand.u32 %s26, 1
        %s353 = smul.addr %s352, 384
        %s354 = scalar_lea.vmem [#allocation3], %s353
        // Predicated region
        $region68: #{classification_head.3} parent=66 // pred_check
          %p355 = pneg %p39
        $region69: #{classification_head.3} parent=66 // pred_check_branch
          %357 = sbr.rel (%p355) target = $region71
        $region70: #{classification_head.3} parent=66 // pred_region
          _
        $region71: #{classification_head.3} parent=66 // pred_fallthru
          _
        %s358 = sand.u32 %s26, 1
        %s359 = sand.u32 %s26, 1
        %s360 = smul.addr %s359, 384
        %s361 = scalar_lea.vmem [#allocation3], %s360
        %p362 = pneg %p39
        %p363 = pneg %p36
        %p364 = pneg %p60
        %p365 = pneg %p57
        %p366 = pneg %p81
        %p367 = pneg %p78
        %p368 = pneg %p102
        %p369 = pneg %p99
        %p370 = pneg %p123
        %p371 = pneg %p120
        %p372 = pneg %p144
        %p373 = pneg %p141
        %p374 = pneg %p165
        %p375 = pneg %p162
        %p376 = pneg %p186
        %p377 = pneg %p183
        %p378 = scmp.eq.s32.totalorder %s18, 0
        // Predicated region
        $region72: #{classification_head.3} parent=66 // pred_check
          %p379 = pneg %p378
        $region73: #{classification_head.3} parent=66 // pred_check_branch
          %381 = sbr.rel (%p379) target = $region75
        $region74: #{classification_head.3} parent=66 // pred_region
          %382 = vst [vmem:[#allocation2] sm:$0xff] 0.0
          %383 = vst [vmem:[#allocation2 + $0x8] sm:$0xff] 0.0
        $region75: #{classification_head.3} parent=66 // pred_fallthru
          _
        %v384 = vld [vmem:[%s1] sm:$0xff]
        %v385 = vld [vmem:[%s1 + $0x8] sm:$0xff]
        %v386 = vld [vmem:[%s1 + $0x10] sm:$0xff]
        %v387 = vld [vmem:[%s1 + $0x18] sm:$0xff]
        %v388 = vld [vmem:[%s1 + $0x20] sm:$0xff]
        %v389 = vld [vmem:[%s1 + $0x28] sm:$0xff]
        %v390 = vld [vmem:[%s1 + $0x30] sm:$0xff]
        %v391 = vld [vmem:[%s1 + $0x38] sm:$0xff]
        %v392 = vld [vmem:[%s1 + $0x40] sm:$0xff]
        %v393 = vld [vmem:[%s1 + $0x48] sm:$0xff]
        %v394 = vld [vmem:[%s1 + $0x50] sm:$0xff]
        %v395 = vld [vmem:[%s1 + $0x58] sm:$0xff]
        %v396 = vld [vmem:[%s1 + $0x60] sm:$0xff]
        %v397 = vld [vmem:[%s1 + $0x68] sm:$0xff]
        %v398 = vld [vmem:[%s1 + $0x70] sm:$0xff]
        %v399 = vld [vmem:[%s1 + $0x78] sm:$0xff]
        %v400 = vld [vmem:[%s1 + $0x80] sm:$0xff]
        %v401 = vld [vmem:[%s1 + $0x88] sm:$0xff]
        %v402 = vld [vmem:[%s1 + $0x90] sm:$0xff]
        %v403 = vld [vmem:[%s1 + $0x98] sm:$0xff]
        %v404 = vld [vmem:[%s1 + $0xa0] sm:$0xff]
        %v405 = vld [vmem:[%s1 + $0xa8] sm:$0xff]
        %v406 = vld [vmem:[%s1 + $0xb0] sm:$0xff]
        %v407 = vld [vmem:[%s1 + $0xb8] sm:$0xff]
        %v408 = vld [vmem:[%s1 + $0xc0] sm:$0xff]
        %v409 = vld [vmem:[%s1 + $0xc8] sm:$0xff]
        %v410 = vld [vmem:[%s1 + $0xd0] sm:$0xff]
        %v411 = vld [vmem:[%s1 + $0xd8] sm:$0xff]
        %v412 = vld [vmem:[%s1 + $0xe0] sm:$0xff]
        %v413 = vld [vmem:[%s1 + $0xe8] sm:$0xff]
        %v414 = vld [vmem:[%s1 + $0xf0] sm:$0xff]
        %v415 = vld [vmem:[%s1 + $0xf8] sm:$0xff]
        %v416 = vld [vmem:[%s1 + $0x100] sm:$0xff]
        %v417 = vld [vmem:[%s1 + $0x108] sm:$0xff]
        %v418 = vld [vmem:[%s1 + $0x110] sm:$0xff]
        %v419 = vld [vmem:[%s1 + $0x118] sm:$0xff]
        %v420 = vld [vmem:[%s1 + $0x120] sm:$0xff]
        %v421 = vld [vmem:[%s1 + $0x128] sm:$0xff]
        %v422 = vld [vmem:[%s1 + $0x130] sm:$0xff]
        %v423 = vld [vmem:[%s1 + $0x138] sm:$0xff]
        %v424 = vld [vmem:[%s1 + $0x140] sm:$0xff]
        %v425 = vld [vmem:[%s1 + $0x148] sm:$0xff]
        %v426 = vld [vmem:[%s1 + $0x150] sm:$0xff]
        %v427 = vld [vmem:[%s1 + $0x158] sm:$0xff]
        %v428 = vld [vmem:[%s1 + $0x160] sm:$0xff]
        %v429 = vld [vmem:[%s1 + $0x168] sm:$0xff]
        %v430 = vld [vmem:[%s1 + $0x170] sm:$0xff]
        %v431 = vld [vmem:[%s1 + $0x178] sm:$0xff]
        %v432 = vld [vmem:[%s2] sm:$0x1]
        %v433 = vld [vmem:[%s354] sm:$0xff]
        %v434 = vld [vmem:[%s354 + $0x8] sm:$0xff]
        %v435 = vld [vmem:[%s354 + $0x10] sm:$0xff]
        %v436 = vld [vmem:[%s354 + $0x18] sm:$0xff]
        %v437 = vld [vmem:[%s354 + $0x20] sm:$0xff]
        %v438 = vld [vmem:[%s354 + $0x28] sm:$0xff]
        %v439 = vld [vmem:[%s354 + $0x30] sm:$0xff]
        %v440 = vld [vmem:[%s354 + $0x38] sm:$0xff]
        %v441 = vld [vmem:[%s354 + $0x40] sm:$0xff]
        %v442 = vld [vmem:[%s354 + $0x48] sm:$0xff]
        %v443 = vld [vmem:[%s354 + $0x50] sm:$0xff]
        %v444 = vld [vmem:[%s354 + $0x58] sm:$0xff]
        %v445 = vld [vmem:[%s354 + $0x60] sm:$0xff]
        %v446 = vld [vmem:[%s354 + $0x68] sm:$0xff]
        %v447 = vld [vmem:[%s354 + $0x70] sm:$0xff]
        %v448 = vld [vmem:[%s354 + $0x78] sm:$0xff]
        %v449 = vld [vmem:[%s354 + $0x80] sm:$0xff]
        %v450 = vld [vmem:[%s354 + $0x88] sm:$0xff]
        %v451 = vld [vmem:[%s354 + $0x90] sm:$0xff]
        %v452 = vld [vmem:[%s354 + $0x98] sm:$0xff]
        %v453 = vld [vmem:[%s354 + $0xa0] sm:$0xff]
        %v454 = vld [vmem:[%s354 + $0xa8] sm:$0xff]
        %v455 = vld [vmem:[%s354 + $0xb0] sm:$0xff]
        %v456 = vld [vmem:[%s354 + $0xb8] sm:$0xff]
        %v457 = vld [vmem:[%s354 + $0xc0] sm:$0xff]
        %v458 = vld [vmem:[%s354 + $0xc8] sm:$0xff]
        %v459 = vld [vmem:[%s354 + $0xd0] sm:$0xff]
        %v460 = vld [vmem:[%s354 + $0xd8] sm:$0xff]
        %v461 = vld [vmem:[%s354 + $0xe0] sm:$0xff]
        %v462 = vld [vmem:[%s354 + $0xe8] sm:$0xff]
        %v463 = vld [vmem:[%s354 + $0xf0] sm:$0xff]
        %v464 = vld [vmem:[%s354 + $0xf8] sm:$0xff]
        %v465 = vld [vmem:[%s354 + $0x100] sm:$0xff]
        %v466 = vld [vmem:[%s354 + $0x108] sm:$0xff]
        %v467 = vld [vmem:[%s354 + $0x110] sm:$0xff]
        %v468 = vld [vmem:[%s354 + $0x118] sm:$0xff]
        %v469 = vld [vmem:[%s354 + $0x120] sm:$0xff]
        %v470 = vld [vmem:[%s354 + $0x128] sm:$0xff]
        %v471 = vld [vmem:[%s354 + $0x130] sm:$0xff]
        %v472 = vld [vmem:[%s354 + $0x138] sm:$0xff]
        %v473 = vld [vmem:[%s354 + $0x140] sm:$0xff]
        %v474 = vld [vmem:[%s354 + $0x148] sm:$0xff]
        %v475 = vld [vmem:[%s354 + $0x150] sm:$0xff]
        %v476 = vld [vmem:[%s354 + $0x158] sm:$0xff]
        %v477 = vld [vmem:[%s354 + $0x160] sm:$0xff]
        %v478 = vld [vmem:[%s354 + $0x168] sm:$0xff]
        %v479 = vld [vmem:[%s354 + $0x170] sm:$0xff]
        %v480 = vld [vmem:[%s354 + $0x178] sm:$0xff]
        %v481 = vld [vmem:[#allocation2] sm:$0xff]
        %v482 = vld [vmem:[#allocation2 + $0x8] sm:$0xff]
        %483 = vmatprep.subr.mxu0 %v385
        %484 = vmatpush1.msra.mxu0 %v384
        %485 = vmatprep.subr.mxu0 %v388
        %486 = vmatpush1.msra.mxu0 %v387
        %487 = vmatprep.subr.mxu0 %v391
        %488 = vmatpush1.msra.mxu0 %v390
        %489 = vmatprep.subr.mxu0 %v394
        %490 = vmatpush1.msra.mxu0 %v393
        %491 = vmatprep.subr.mxu0 %v397
        %492 = vmatpush1.msra.mxu0 %v396
        %493 = vmatprep.subr.mxu0 %v400
        %494 = vmatpush1.msra.mxu0 %v399
        %495 = vmatprep.subr.mxu0 %v403
        %496 = vmatpush1.msra.mxu0 %v402
        %497 = vmatprep.subr.mxu0 %v406
        %498 = vmatpush1.msra.mxu0 %v405
        %499 = vmatprep.subr.mxu0 %v409
        %500 = vmatpush1.msra.mxu0 %v408
        %501 = vmatprep.subr.mxu0 %v412
        %502 = vmatpush1.msra.mxu0 %v411
        %503 = vmatprep.subr.mxu0 %v415
        %504 = vmatpush1.msra.mxu0 %v414
        %505 = vmatprep.subr.mxu0 %v418
        %506 = vmatpush1.msra.mxu0 %v417
        %507 = vmatprep.subr.mxu0 %v421
        %508 = vmatpush1.msra.mxu0 %v420
        %509 = vmatprep.subr.mxu0 %v424
        %510 = vmatpush1.msra.mxu0 %v423
        %511 = vmatprep.subr.mxu0 %v427
        %512 = vmatpush1.msra.mxu0 %v426
        %513 = vmatprep.subr.mxu0 %v430
        %514 = vmatpush1.msra.mxu0 %v429
        %515 = vmatprep.subr.mxu0 0.0
        %516 = vmatpush1.msra.mxu0 0.0
        %517 = vmatprep.subr.mxu0 0.0
        %518 = vmatpush1.msra.mxu0 0.0
        %519 = vmatprep.subr.mxu0 0.0
        %520 = vmatpush1.msra.mxu0 0.0
        %521 = vmatprep.subr.mxu0 0.0
        %522 = vmatpush1.msra.mxu0 0.0
        %523 = vmatprep.subr.mxu0 0.0
        %524 = vmatpush1.msra.mxu0 0.0
        %525 = vmatprep.subr.mxu0 0.0
        %526 = vmatpush1.msra.mxu0 0.0
        %527 = vmatprep.subr.mxu0 0.0
        %528 = vmatpush1.msra.mxu0 0.0
        %529 = vmatprep.subr.mxu0 0.0
        %530 = vmatpush1.msra.mxu0 0.0
        %531 = vmatprep.subr.mxu0 0.0
        %532 = vmatpush1.msra.mxu0 0.0
        %533 = vmatprep.subr.mxu0 0.0
        %534 = vmatpush1.msra.mxu0 0.0
        %535 = vmatprep.subr.mxu0 0.0
        %536 = vmatpush1.msra.mxu0 0.0
        %537 = vmatprep.subr.mxu0 0.0
        %538 = vmatpush1.msra.mxu0 0.0
        %539 = vmatprep.subr.mxu0 0.0
        %540 = vmatpush1.msra.mxu0 0.0
        %541 = vmatprep.subr.mxu0 0.0
        %542 = vmatpush1.msra.mxu0 0.0
        %543 = vmatprep.subr.mxu0 0.0
        %544 = vmatpush1.msra.mxu0 0.0
        %545 = vmatprep.subr.mxu0 0.0
        %546 = vmatpush1.msra.mxu0 0.0
        %547 = vmatprep.mubr.f32.mxu0 0.0
        %548 = vmatmul.mubr.f32.gmra.mrb[0].mxu0 %v481
        %v549 = vpop.f32.mrb[0].mxu0
        %v550 = vadd.f32 0.0, %v549
        %v551 = vpop.f32.mrb[0].mxu0
        %v552 = vadd.f32 0.0, %v551
        %553 = vmatprep.mubr.f32.mxu0 0.0
        %554 = vmatmul.mubr.f32.gmra.mrb[0].mxu0 %v482
        %v555 = vpop.f32.mrb[0].mxu0
        %v556 = vadd.f32 0.0, %v555
        %v557 = vpop.f32.mrb[0].mxu0
        %v558 = vadd.f32 0.0, %v557
        %559 = vdwg.mxu0
        %560 = vmatprep.subr.mxu0 0.0
        %561 = vmatpush1.msra.mxu0 %v386
        %562 = vmatprep.subr.mxu0 0.0
        %563 = vmatpush1.msra.mxu0 %v389
        %564 = vmatprep.subr.mxu0 0.0
        %565 = vmatpush1.msra.mxu0 %v392
        %566 = vmatprep.subr.mxu0 0.0
        %567 = vmatpush1.msra.mxu0 %v395
        %568 = vmatprep.subr.mxu0 0.0
        %569 = vmatpush1.msra.mxu0 %v398
        %570 = vmatprep.subr.mxu0 0.0
        %571 = vmatpush1.msra.mxu0 %v401
        %572 = vmatprep.subr.mxu0 0.0
        %573 = vmatpush1.msra.mxu0 %v404
        %574 = vmatprep.subr.mxu0 0.0
        %575 = vmatpush1.msra.mxu0 %v407
        %576 = vmatprep.subr.mxu0 0.0
        %577 = vmatpush1.msra.mxu0 %v410
        %578 = vmatprep.subr.mxu0 0.0
        %579 = vmatpush1.msra.mxu0 %v413
        %580 = vmatprep.subr.mxu0 0.0
        %581 = vmatpush1.msra.mxu0 %v416
        %582 = vmatprep.subr.mxu0 0.0
        %583 = vmatpush1.msra.mxu0 %v419
        %584 = vmatprep.subr.mxu0 0.0
        %585 = vmatpush1.msra.mxu0 %v422
        %586 = vmatprep.subr.mxu0 0.0
        %587 = vmatpush1.msra.mxu0 %v425
        %588 = vmatprep.subr.mxu0 0.0
        %589 = vmatpush1.msra.mxu0 %v428
        %590 = vmatprep.subr.mxu0 0.0
        %591 = vmatpush1.msra.mxu0 %v431
        %592 = vmatprep.subr.mxu0 0.0
        %593 = vmatpush1.msra.mxu0 0.0
        %594 = vmatprep.subr.mxu0 0.0
        %595 = vmatpush1.msra.mxu0 0.0
        %596 = vmatprep.subr.mxu0 0.0
        %597 = vmatpush1.msra.mxu0 0.0
        %598 = vmatprep.subr.mxu0 0.0
        %599 = vmatpush1.msra.mxu0 0.0
        %600 = vmatprep.subr.mxu0 0.0
        %601 = vmatpush1.msra.mxu0 0.0
        %602 = vmatprep.subr.mxu0 0.0
        %603 = vmatpush1.msra.mxu0 0.0
        %604 = vmatprep.subr.mxu0 0.0
        %605 = vmatpush1.msra.mxu0 0.0
        %606 = vmatprep.subr.mxu0 0.0
        %607 = vmatpush1.msra.mxu0 0.0
        %608 = vmatprep.subr.mxu0 0.0
        %609 = vmatpush1.msra.mxu0 0.0
        %610 = vmatprep.subr.mxu0 0.0
        %611 = vmatpush1.msra.mxu0 0.0
        %612 = vmatprep.subr.mxu0 0.0
        %613 = vmatpush1.msra.mxu0 0.0
        %614 = vmatprep.subr.mxu0 0.0
        %615 = vmatpush1.msra.mxu0 0.0
        %616 = vmatprep.subr.mxu0 0.0
        %617 = vmatpush1.msra.mxu0 0.0
        %618 = vmatprep.subr.mxu0 0.0
        %619 = vmatpush1.msra.mxu0 0.0
        %620 = vmatprep.subr.mxu0 0.0
        %621 = vmatpush1.msra.mxu0 0.0
        %622 = vmatprep.subr.mxu0 0.0
        %623 = vmatpush1.msra.mxu0 0.0
        %624 = vmatprep.mubr.f32.mxu0 0.0
        %625 = vmatmul.mubr.f32.gmra.mrb[0].mxu0 %v481
        %v626 = vpop.f32.mrb[0].mxu0
        %v627 = vadd.f32 0.0, %v626
        %v628 = vpop.f32.mrb[0].mxu0
        %629 = vmatprep.mubr.f32.mxu0 0.0
        %630 = vmatmul.mubr.f32.gmra.mrb[0].mxu0 %v482
        %v631 = vpop.f32.mrb[0].mxu0
        %v632 = vadd.f32 0.0, %v631
        %v633 = vpop.f32.mrb[0].mxu0
        %634 = vdwg.mxu0
        %v637 = vrot.slane %v550, 1
        %v638 = vrot.slane %v550, 2
        %v639 = vrot.slane %v550, 3
        %v640 = vrot.slane %v550, 4
        %v641 = vrot.slane %v550, 5
        %v642 = vrot.slane %v550, 6
        %v643 = vrot.slane %v550, 7
        %v644 = vrot.slane %v556, 1
        %v645 = vrot.slane %v556, 2
        %v646 = vrot.slane %v556, 3
        %v647 = vrot.slane %v556, 4
        %v648 = vrot.slane %v556, 5
        %v649 = vrot.slane %v556, 6
        %v650 = vrot.slane %v556, 7
        %v667 = vadd.f32 %v433, %v550
        %v668 = vadd.f32 %v436, %v637
        %v669 = vadd.f32 %v439, %v638
        %v670 = vadd.f32 %v442, %v639
        %v671 = vadd.f32 %v445, %v640
        %v672 = vadd.f32 %v448, %v641
        %v673 = vadd.f32 %v451, %v642
        %v674 = vadd.f32 %v454, %v643
        %v675 = vadd.f32 %v457, %v556
        %v676 = vadd.f32 %v460, %v644
        %v677 = vadd.f32 %v463, %v645
        %v678 = vadd.f32 %v466, %v646
        %v679 = vadd.f32 %v469, %v647
        %v680 = vadd.f32 %v472, %v648
        %v681 = vadd.f32 %v475, %v649
        %v682 = vadd.f32 %v478, %v650
        %v683 = vxor.u32 %v667, 2147483648
        %v684 = vxor.u32 %v668, 2147483648
        %v685 = vxor.u32 %v669, 2147483648
        %v686 = vxor.u32 %v670, 2147483648
        %v687 = vxor.u32 %v671, 2147483648
        %v688 = vxor.u32 %v672, 2147483648
        %v689 = vxor.u32 %v673, 2147483648
        %v690 = vxor.u32 %v674, 2147483648
        %v691 = vxor.u32 %v675, 2147483648
        %v692 = vxor.u32 %v676, 2147483648
        %v693 = vxor.u32 %v677, 2147483648
        %v694 = vxor.u32 %v678, 2147483648
        %v695 = vxor.u32 %v679, 2147483648
        %v696 = vxor.u32 %v680, 2147483648
        %v697 = vxor.u32 %v681, 2147483648
        %v698 = vxor.u32 %v682, 2147483648
        %v699 = vmul.f32 %v683, 1.442695
        %v700 = vpow.pop %v699
        %v701 = vmul.f32 %v684, 1.442695
        %v702 = vpow.pop %v701
        %v703 = vmul.f32 %v685, 1.442695
        %v704 = vpow.pop %v703
        %v705 = vmul.f32 %v686, 1.442695
        %v706 = vpow.pop %v705
        %v707 = vmul.f32 %v687, 1.442695
        %v708 = vpow.pop %v707
        %v709 = vmul.f32 %v688, 1.442695
        %v710 = vpow.pop %v709
        %v711 = vmul.f32 %v689, 1.442695
        %v712 = vpow.pop %v711
        %v713 = vmul.f32 %v690, 1.442695
        %v714 = vpow.pop %v713
        %v715 = vmul.f32 %v691, 1.442695
        %v716 = vpow.pop %v715
        %v717 = vmul.f32 %v692, 1.442695
        %v718 = vpow.pop %v717
        %v719 = vmul.f32 %v693, 1.442695
        %v720 = vpow.pop %v719
        %v721 = vmul.f32 %v694, 1.442695
        %v722 = vpow.pop %v721
        %v723 = vmul.f32 %v695, 1.442695
        %v724 = vpow.pop %v723
        %v725 = vmul.f32 %v696, 1.442695
        %v726 = vpow.pop %v725
        %v727 = vmul.f32 %v697, 1.442695
        %v728 = vpow.pop %v727
        %v729 = vmul.f32 %v698, 1.442695
        %v730 = vpow.pop %v729
        %v731 = vadd.f32 %v700, 1.0
        %v732 = vadd.f32 %v702, 1.0
        %v733 = vadd.f32 %v704, 1.0
        %v734 = vadd.f32 %v706, 1.0
        %v735 = vadd.f32 %v708, 1.0
        %v736 = vadd.f32 %v710, 1.0
        %v737 = vadd.f32 %v712, 1.0
        %v738 = vadd.f32 %v714, 1.0
        %v739 = vadd.f32 %v716, 1.0
        %v740 = vadd.f32 %v718, 1.0
        %v741 = vadd.f32 %v720, 1.0
        %v742 = vadd.f32 %v722, 1.0
        %v743 = vadd.f32 %v724, 1.0
        %v744 = vadd.f32 %v726, 1.0
        %v745 = vadd.f32 %v728, 1.0
        %v746 = vadd.f32 %v730, 1.0
        %v747 = vrcp.pop %v731
        %v748 = vmul.f32 1.0, %v747
        %v749 = vrcp.pop %v732
        %v750 = vmul.f32 1.0, %v749
        %v751 = vrcp.pop %v733
        %v752 = vmul.f32 1.0, %v751
        %v753 = vrcp.pop %v734
        %v754 = vmul.f32 1.0, %v753
        %v755 = vrcp.pop %v735
        %v756 = vmul.f32 1.0, %v755
        %v757 = vrcp.pop %v736
        %v758 = vmul.f32 1.0, %v757
        %v759 = vrcp.pop %v737
        %v760 = vmul.f32 1.0, %v759
        %v761 = vrcp.pop %v738
        %v762 = vmul.f32 1.0, %v761
        %v763 = vrcp.pop %v739
        %v764 = vmul.f32 1.0, %v763
        %v765 = vrcp.pop %v740
        %v766 = vmul.f32 1.0, %v765
        %v767 = vrcp.pop %v741
        %v768 = vmul.f32 1.0, %v767
        %v769 = vrcp.pop %v742
        %v770 = vmul.f32 1.0, %v769
        %v771 = vrcp.pop %v743
        %v772 = vmul.f32 1.0, %v771
        %v773 = vrcp.pop %v744
        %v774 = vmul.f32 1.0, %v773
        %v775 = vrcp.pop %v745
        %v776 = vmul.f32 1.0, %v775
        %v777 = vrcp.pop %v746
        %v778 = vmul.f32 1.0, %v777
        %v781 = vrot.slane %v552, 1
        %v782 = vrot.slane %v552, 2
        %v783 = vrot.slane %v552, 3
        %v784 = vrot.slane %v552, 4
        %v785 = vrot.slane %v552, 5
        %v786 = vrot.slane %v552, 6
        %v787 = vrot.slane %v552, 7
        %v788 = vrot.slane %v558, 1
        %v789 = vrot.slane %v558, 2
        %v790 = vrot.slane %v558, 3
        %v791 = vrot.slane %v558, 4
        %v792 = vrot.slane %v558, 5
        %v793 = vrot.slane %v558, 6
        %v794 = vrot.slane %v558, 7
        %v811 = vadd.f32 %v434, %v552
        %v812 = vadd.f32 %v437, %v781
        %v813 = vadd.f32 %v440, %v782
        %v814 = vadd.f32 %v443, %v783
        %v815 = vadd.f32 %v446, %v784
        %v816 = vadd.f32 %v449, %v785
        %v817 = vadd.f32 %v452, %v786
        %v818 = vadd.f32 %v455, %v787
        %v819 = vadd.f32 %v458, %v558
        %v820 = vadd.f32 %v461, %v788
        %v821 = vadd.f32 %v464, %v789
        %v822 = vadd.f32 %v467, %v790
        %v823 = vadd.f32 %v470, %v791
        %v824 = vadd.f32 %v473, %v792
        %v825 = vadd.f32 %v476, %v793
        %v826 = vadd.f32 %v479, %v794
        %v827 = vxor.u32 %v811, 2147483648
        %v828 = vxor.u32 %v812, 2147483648
        %v829 = vxor.u32 %v813, 2147483648
        %v830 = vxor.u32 %v814, 2147483648
        %v831 = vxor.u32 %v815, 2147483648
        %v832 = vxor.u32 %v816, 2147483648
        %v833 = vxor.u32 %v817, 2147483648
        %v834 = vxor.u32 %v818, 2147483648
        %v835 = vxor.u32 %v819, 2147483648
        %v836 = vxor.u32 %v820, 2147483648
        %v837 = vxor.u32 %v821, 2147483648
        %v838 = vxor.u32 %v822, 2147483648
        %v839 = vxor.u32 %v823, 2147483648
        %v840 = vxor.u32 %v824, 2147483648
        %v841 = vxor.u32 %v825, 2147483648
        %v842 = vxor.u32 %v826, 2147483648
        %v843 = vmul.f32 %v827, 1.442695
        %v844 = vpow.pop %v843
        %v845 = vmul.f32 %v828, 1.442695
        %v846 = vpow.pop %v845
        %v847 = vmul.f32 %v829, 1.442695
        %v848 = vpow.pop %v847
        %v849 = vmul.f32 %v830, 1.442695
        %v850 = vpow.pop %v849
        %v851 = vmul.f32 %v831, 1.442695
        %v852 = vpow.pop %v851
        %v853 = vmul.f32 %v832, 1.442695
        %v854 = vpow.pop %v853
        %v855 = vmul.f32 %v833, 1.442695
        %v856 = vpow.pop %v855
        %v857 = vmul.f32 %v834, 1.442695
        %v858 = vpow.pop %v857
        %v859 = vmul.f32 %v835, 1.442695
        %v860 = vpow.pop %v859
        %v861 = vmul.f32 %v836, 1.442695
        %v862 = vpow.pop %v861
        %v863 = vmul.f32 %v837, 1.442695
        %v864 = vpow.pop %v863
        %v865 = vmul.f32 %v838, 1.442695
        %v866 = vpow.pop %v865
        %v867 = vmul.f32 %v839, 1.442695
        %v868 = vpow.pop %v867
        %v869 = vmul.f32 %v840, 1.442695
        %v870 = vpow.pop %v869
        %v871 = vmul.f32 %v841, 1.442695
        %v872 = vpow.pop %v871
        %v873 = vmul.f32 %v842, 1.442695
        %v874 = vpow.pop %v873
        %v875 = vadd.f32 %v844, 1.0
        %v876 = vadd.f32 %v846, 1.0
        %v877 = vadd.f32 %v848, 1.0
        %v878 = vadd.f32 %v850, 1.0
        %v879 = vadd.f32 %v852, 1.0
        %v880 = vadd.f32 %v854, 1.0
        %v881 = vadd.f32 %v856, 1.0
        %v882 = vadd.f32 %v858, 1.0
        %v883 = vadd.f32 %v860, 1.0
        %v884 = vadd.f32 %v862, 1.0
        %v885 = vadd.f32 %v864, 1.0
        %v886 = vadd.f32 %v866, 1.0
        %v887 = vadd.f32 %v868, 1.0
        %v888 = vadd.f32 %v870, 1.0
        %v889 = vadd.f32 %v872, 1.0
        %v890 = vadd.f32 %v874, 1.0
        %v891 = vrcp.pop %v875
        %v892 = vmul.f32 1.0, %v891
        %v893 = vrcp.pop %v876
        %v894 = vmul.f32 1.0, %v893
        %v895 = vrcp.pop %v877
        %v896 = vmul.f32 1.0, %v895
        %v897 = vrcp.pop %v878
        %v898 = vmul.f32 1.0, %v897
        %v899 = vrcp.pop %v879
        %v900 = vmul.f32 1.0, %v899
        %v901 = vrcp.pop %v880
        %v902 = vmul.f32 1.0, %v901
        %v903 = vrcp.pop %v881
        %v904 = vmul.f32 1.0, %v903
        %v905 = vrcp.pop %v882
        %v906 = vmul.f32 1.0, %v905
        %v907 = vrcp.pop %v883
        %v908 = vmul.f32 1.0, %v907
        %v909 = vrcp.pop %v884
        %v910 = vmul.f32 1.0, %v909
        %v911 = vrcp.pop %v885
        %v912 = vmul.f32 1.0, %v911
        %v913 = vrcp.pop %v886
        %v914 = vmul.f32 1.0, %v913
        %v915 = vrcp.pop %v887
        %v916 = vmul.f32 1.0, %v915
        %v917 = vrcp.pop %v888
        %v918 = vmul.f32 1.0, %v917
        %v919 = vrcp.pop %v889
        %v920 = vmul.f32 1.0, %v919
        %v921 = vrcp.pop %v890
        %v922 = vmul.f32 1.0, %v921
        %v924 = vlaneseq
        %v925 = vshrl.u32 %v924, 7
        %v926 = vsub.s32 0, %v925
        %v927 = vrot.slane %v432, %v926
        %v929 = vadd.f32 %v627, %v927
        %v930 = vadd.f32 %v632, %v927
        %v933 = vrot.slane %v929, 1
        %v934 = vrot.slane %v929, 2
        %v935 = vrot.slane %v929, 3
        %v936 = vrot.slane %v929, 4
        %v937 = vrot.slane %v929, 5
        %v938 = vrot.slane %v929, 6
        %v939 = vrot.slane %v929, 7
        %v940 = vrot.slane %v930, 1
        %v941 = vrot.slane %v930, 2
        %v942 = vrot.slane %v930, 3
        %v943 = vrot.slane %v930, 4
        %v944 = vrot.slane %v930, 5
        %v945 = vrot.slane %v930, 6
        %v946 = vrot.slane %v930, 7
        %v963 = vmul.f32 %v748, %v929
        %v964 = vmul.f32 %v750, %v933
        %v965 = vmul.f32 %v752, %v934
        %v966 = vmul.f32 %v754, %v935
        %v967 = vmul.f32 %v756, %v936
        %v968 = vmul.f32 %v758, %v937
        %v969 = vmul.f32 %v760, %v938
        %v970 = vmul.f32 %v762, %v939
        %v971 = vmul.f32 %v764, %v930
        %v972 = vmul.f32 %v766, %v940
        %v973 = vmul.f32 %v768, %v941
        %v974 = vmul.f32 %v770, %v942
        %v975 = vmul.f32 %v772, %v943
        %v976 = vmul.f32 %v774, %v944
        %v977 = vmul.f32 %v776, %v945
        %v978 = vmul.f32 %v778, %v946
        %v979 = vadd.f32 %v435, %v963
        %v980 = vadd.f32 %v438, %v964
        %v981 = vadd.f32 %v441, %v965
        %v982 = vadd.f32 %v444, %v966
        %v983 = vadd.f32 %v447, %v967
        %v984 = vadd.f32 %v450, %v968
        %v985 = vadd.f32 %v453, %v969
        %v986 = vadd.f32 %v456, %v970
        %v987 = vadd.f32 %v459, %v971
        %v988 = vadd.f32 %v462, %v972
        %v989 = vadd.f32 %v465, %v973
        %v990 = vadd.f32 %v468, %v974
        %v991 = vadd.f32 %v471, %v975
        %v992 = vadd.f32 %v474, %v976
        %v993 = vadd.f32 %v477, %v977
        %v994 = vadd.f32 %v480, %v978
        %v995 = vtanh.pop %v979
        %v996 = vtanh.pop %v980
        %v997 = vtanh.pop %v981
        %v998 = vtanh.pop %v982
        %v999 = vtanh.pop %v983
        %v1000 = vtanh.pop %v984
        %v1001 = vtanh.pop %v985
        %v1002 = vtanh.pop %v986
        %v1003 = vtanh.pop %v987
        %v1004 = vtanh.pop %v988
        %v1005 = vtanh.pop %v989
        %v1006 = vtanh.pop %v990
        %v1007 = vtanh.pop %v991
        %v1008 = vtanh.pop %v992
        %v1009 = vtanh.pop %v993
        %v1010 = vtanh.pop %v994
        %v1011 = vsub.f32 1.0, %v892
        %v1012 = vsub.f32 1.0, %v894
        %v1013 = vsub.f32 1.0, %v896
        %v1014 = vsub.f32 1.0, %v898
        %v1015 = vsub.f32 1.0, %v900
        %v1016 = vsub.f32 1.0, %v902
        %v1017 = vsub.f32 1.0, %v904
        %v1018 = vsub.f32 1.0, %v906
        %v1019 = vsub.f32 1.0, %v908
        %v1020 = vsub.f32 1.0, %v910
        %v1021 = vsub.f32 1.0, %v912
        %v1022 = vsub.f32 1.0, %v914
        %v1023 = vsub.f32 1.0, %v916
        %v1024 = vsub.f32 1.0, %v918
        %v1025 = vsub.f32 1.0, %v920
        %v1026 = vsub.f32 1.0, %v922
        %v1027 = vmul.f32 %v1011, %v995
        %v1028 = vmul.f32 %v1012, %v996
        %v1029 = vmul.f32 %v1013, %v997
        %v1030 = vmul.f32 %v1014, %v998
        %v1031 = vmul.f32 %v1015, %v999
        %v1032 = vmul.f32 %v1016, %v1000
        %v1033 = vmul.f32 %v1017, %v1001
        %v1034 = vmul.f32 %v1018, %v1002
        %v1035 = vmul.f32 %v1019, %v1003
        %v1036 = vmul.f32 %v1020, %v1004
        %v1037 = vmul.f32 %v1021, %v1005
        %v1038 = vmul.f32 %v1022, %v1006
        %v1039 = vmul.f32 %v1023, %v1007
        %v1040 = vmul.f32 %v1024, %v1008
        %v1041 = vmul.f32 %v1025, %v1009
        %v1042 = vmul.f32 %v1026, %v1010
        %v1045 = vrot.slane %v481, 1
        %v1046 = vrot.slane %v481, 2
        %v1047 = vrot.slane %v481, 3
        %v1048 = vrot.slane %v481, 4
        %v1049 = vrot.slane %v481, 5
        %v1050 = vrot.slane %v481, 6
        %v1051 = vrot.slane %v481, 7
        %v1052 = vrot.slane %v482, 1
        %v1053 = vrot.slane %v482, 2
        %v1054 = vrot.slane %v482, 3
        %v1055 = vrot.slane %v482, 4
        %v1056 = vrot.slane %v482, 5
        %v1057 = vrot.slane %v482, 6
        %v1058 = vrot.slane %v482, 7
        %v1075 = vmul.f32 %v892, %v481
        %v1076 = vmul.f32 %v894, %v1045
        %v1077 = vmul.f32 %v896, %v1046
        %v1078 = vmul.f32 %v898, %v1047
        %v1079 = vmul.f32 %v900, %v1048
        %v1080 = vmul.f32 %v902, %v1049
        %v1081 = vmul.f32 %v904, %v1050
        %v1082 = vmul.f32 %v906, %v1051
        %v1083 = vmul.f32 %v908, %v482
        %v1084 = vmul.f32 %v910, %v1052
        %v1085 = vmul.f32 %v912, %v1053
        %v1086 = vmul.f32 %v914, %v1054
        %v1087 = vmul.f32 %v916, %v1055
        %v1088 = vmul.f32 %v918, %v1056
        %v1089 = vmul.f32 %v920, %v1057
        %v1090 = vmul.f32 %v922, %v1058
        %v1091 = vadd.f32 %v1027, %v1075
        %v1092 = vadd.f32 %v1028, %v1076
        %v1093 = vadd.f32 %v1029, %v1077
        %v1094 = vadd.f32 %v1030, %v1078
        %v1095 = vadd.f32 %v1031, %v1079
        %v1096 = vadd.f32 %v1032, %v1080
        %v1097 = vadd.f32 %v1033, %v1081
        %v1098 = vadd.f32 %v1034, %v1082
        %v1099 = vadd.f32 %v1035, %v1083
        %v1100 = vadd.f32 %v1036, %v1084
        %v1101 = vadd.f32 %v1037, %v1085
        %v1102 = vadd.f32 %v1038, %v1086
        %v1103 = vadd.f32 %v1039, %v1087
        %v1104 = vadd.f32 %v1040, %v1088
        %v1105 = vadd.f32 %v1041, %v1089
        %v1106 = vadd.f32 %v1042, %v1090
        %s1107 = smul.u32 %s18, 8
        %p1108 = scmp.lt.s32.totalorder %s1107, 12
        %s1109 = scalar_select %p1108, 1, 0
        %v1110 = vstv %s1109
        %vm1111 = vcmp.eq.s32.totalorder %v1110, 1
        %v1112 = vsel %vm1111, %v1091, %v481
        %v1113 = vsel %vm1111, %v1092, %v1045
        %v1114 = vsel %vm1111, %v1093, %v1046
        %v1115 = vsel %vm1111, %v1094, %v1047
        %v1116 = vsel %vm1111, %v1095, %v1048
        %v1117 = vsel %vm1111, %v1096, %v1049
        %v1118 = vsel %vm1111, %v1097, %v1050
        %v1119 = vsel %vm1111, %v1098, %v1051
        %v1120 = vsel %vm1111, %v1099, %v482
        %v1121 = vsel %vm1111, %v1100, %v1052
        %v1122 = vsel %vm1111, %v1101, %v1053
        %v1123 = vsel %vm1111, %v1102, %v1054
        %v1124 = vsel %vm1111, %v1103, %v1055
        %v1125 = vsel %vm1111, %v1104, %v1056
        %v1126 = vsel %vm1111, %v1105, %v1057
        %v1127 = vsel %vm1111, %v1106, %v1058
        %v1144 = vrot.slane %v1113, 7
        %vm1145 = vcmask 1041409
        %v1146 = vsel %vm1145, %v1144, %v1112
        %v1147 = vrot.slane %v1114, 6
        %vm1148 = vcmask 1042434
        %v1149 = vsel %vm1148, %v1147, %v1146
        %v1150 = vrot.slane %v1115, 5
        %vm1151 = vcmask 1043459
        %v1152 = vsel %vm1151, %v1150, %v1149
        %v1153 = vrot.slane %v1116, 4
        %vm1154 = vcmask 1044484
        %v1155 = vsel %vm1154, %v1153, %v1152
        %v1156 = vrot.slane %v1117, 3
        %vm1157 = vcmask 1045509
        %v1158 = vsel %vm1157, %v1156, %v1155
        %v1159 = vrot.slane %v1118, 2
        %vm1160 = vcmask 1046534
        %v1161 = vsel %vm1160, %v1159, %v1158
        %v1162 = vrot.slane %v1119, 1
        %vm1163 = vcmask 1047559
        %v1164 = vsel %vm1163, %v1162, %v1161
        %v1165 = vrot.slane %v1121, 7
        %v1166 = vsel %vm1145, %v1165, %v1120
        %v1167 = vrot.slane %v1122, 6
        %v1168 = vsel %vm1148, %v1167, %v1166
        %v1169 = vrot.slane %v1123, 5
        %v1170 = vsel %vm1151, %v1169, %v1168
        %v1171 = vrot.slane %v1124, 4
        %v1172 = vsel %vm1154, %v1171, %v1170
        %v1173 = vrot.slane %v1125, 3
        %v1174 = vsel %vm1157, %v1173, %v1172
        %v1175 = vrot.slane %v1126, 2
        %v1176 = vsel %vm1160, %v1175, %v1174
        %v1177 = vrot.slane %v1127, 1
        %v1178 = vsel %vm1163, %v1177, %v1176
        %1181 = vmatprep.subr.mxu0 %v385
        %1182 = vmatpush1.msra.mxu0 %v384
        %1183 = vmatprep.subr.mxu0 %v388
        %1184 = vmatpush1.msra.mxu0 %v387
        %1185 = vmatprep.subr.mxu0 %v391
        %1186 = vmatpush1.msra.mxu0 %v390
        %1187 = vmatprep.subr.mxu0 %v394
        %1188 = vmatpush1.msra.mxu0 %v393
        %1189 = vmatprep.subr.mxu0 %v397
        %1190 = vmatpush1.msra.mxu0 %v396
        %1191 = vmatprep.subr.mxu0 %v400
        %1192 = vmatpush1.msra.mxu0 %v399
        %1193 = vmatprep.subr.mxu0 %v403
        %1194 = vmatpush1.msra.mxu0 %v402
        %1195 = vmatprep.subr.mxu0 %v406
        %1196 = vmatpush1.msra.mxu0 %v405
        %1197 = vmatprep.subr.mxu0 %v409
        %1198 = vmatpush1.msra.mxu0 %v408
        %1199 = vmatprep.subr.mxu0 %v412
        %1200 = vmatpush1.msra.mxu0 %v411
        %1201 = vmatprep.subr.mxu0 %v415
        %1202 = vmatpush1.msra.mxu0 %v414
        %1203 = vmatprep.subr.mxu0 %v418
        %1204 = vmatpush1.msra.mxu0 %v417
        %1205 = vmatprep.subr.mxu0 %v421
        %1206 = vmatpush1.msra.mxu0 %v420
        %1207 = vmatprep.subr.mxu0 %v424
        %1208 = vmatpush1.msra.mxu0 %v423
        %1209 = vmatprep.subr.mxu0 %v427
        %1210 = vmatpush1.msra.mxu0 %v426
        %1211 = vmatprep.subr.mxu0 %v430
        %1212 = vmatpush1.msra.mxu0 %v429
        %1213 = vmatprep.subr.mxu0 0.0
        %1214 = vmatpush1.msra.mxu0 0.0
        %1215 = vmatprep.subr.mxu0 0.0
        %1216 = vmatpush1.msra.mxu0 0.0
        %1217 = vmatprep.subr.mxu0 0.0
        %1218 = vmatpush1.msra.mxu0 0.0
        %1219 = vmatprep.subr.mxu0 0.0
        %1220 = vmatpush1.msra.mxu0 0.0
        %1221 = vmatprep.subr.mxu0 0.0
        %1222 = vmatpush1.msra.mxu0 0.0
        %1223 = vmatprep.subr.mxu0 0.0
        %1224 = vmatpush1.msra.mxu0 0.0
        %1225 = vmatprep.subr.mxu0 0.0
        %1226 = vmatpush1.msra.mxu0 0.0
        %1227 = vmatprep.subr.mxu0 0.0
        %1228 = vmatpush1.msra.mxu0 0.0
        %1229 = vmatprep.subr.mxu0 0.0
        %1230 = vmatpush1.msra.mxu0 0.0
        %1231 = vmatprep.subr.mxu0 0.0
        %1232 = vmatpush1.msra.mxu0 0.0
        %1233 = vmatprep.subr.mxu0 0.0
        %1234 = vmatpush1.msra.mxu0 0.0
        %1235 = vmatprep.subr.mxu0 0.0
        %1236 = vmatpush1.msra.mxu0 0.0
        %1237 = vmatprep.subr.mxu0 0.0
        %1238 = vmatpush1.msra.mxu0 0.0
        %1239 = vmatprep.subr.mxu0 0.0
        %1240 = vmatpush1.msra.mxu0 0.0
        %1241 = vmatprep.subr.mxu0 0.0
        %1242 = vmatpush1.msra.mxu0 0.0
        %1243 = vmatprep.subr.mxu0 0.0
        %1244 = vmatpush1.msra.mxu0 0.0
        %1245 = vmatprep.mubr.f32.mxu0 0.0
        %1246 = vmatmul.mubr.f32.gmra.mrb[0].mxu0 %v1164
        %v1247 = vpop.f32.mrb[0].mxu0
        %v1248 = vadd.f32 0.0, %v1247
        %v1249 = vpop.f32.mrb[0].mxu0
        %v1250 = vadd.f32 0.0, %v1249
        %1251 = vmatprep.mubr.f32.mxu0 0.0
        %1252 = vmatmul.mubr.f32.gmra.mrb[0].mxu0 %v1178
        %v1253 = vpop.f32.mrb[0].mxu0
        %v1254 = vadd.f32 0.0, %v1253
        %v1255 = vpop.f32.mrb[0].mxu0
        %v1256 = vadd.f32 0.0, %v1255
        %1257 = vdwg.mxu0
        %1258 = vmatprep.subr.mxu0 0.0
        %1259 = vmatpush1.msra.mxu0 %v386
        %1260 = vmatprep.subr.mxu0 0.0
        %1261 = vmatpush1.msra.mxu0 %v389
        %1262 = vmatprep.subr.mxu0 0.0
        %1263 = vmatpush1.msra.mxu0 %v392
        %1264 = vmatprep.subr.mxu0 0.0
        %1265 = vmatpush1.msra.mxu0 %v395
        %1266 = vmatprep.subr.mxu0 0.0
        %1267 = vmatpush1.msra.mxu0 %v398
        %1268 = vmatprep.subr.mxu0 0.0
        %1269 = vmatpush1.msra.mxu0 %v401
        %1270 = vmatprep.subr.mxu0 0.0
        %1271 = vmatpush1.msra.mxu0 %v404
        %1272 = vmatprep.subr.mxu0 0.0
        %1273 = vmatpush1.msra.mxu0 %v407
        %1274 = vmatprep.subr.mxu0 0.0
        %1275 = vmatpush1.msra.mxu0 %v410
        %1276 = vmatprep.subr.mxu0 0.0
        %1277 = vmatpush1.msra.mxu0 %v413
        %1278 = vmatprep.subr.mxu0 0.0
        %1279 = vmatpush1.msra.mxu0 %v416
        %1280 = vmatprep.subr.mxu0 0.0
        %1281 = vmatpush1.msra.mxu0 %v419
        %1282 = vmatprep.subr.mxu0 0.0
        %1283 = vmatpush1.msra.mxu0 %v422
        %1284 = vmatprep.subr.mxu0 0.0
        %1285 = vmatpush1.msra.mxu0 %v425
        %1286 = vmatprep.subr.mxu0 0.0
        %1287 = vmatpush1.msra.mxu0 %v428
        %1288 = vmatprep.subr.mxu0 0.0
        %1289 = vmatpush1.msra.mxu0 %v431
        %1290 = vmatprep.subr.mxu0 0.0
        %1291 = vmatpush1.msra.mxu0 0.0
        %1292 = vmatprep.subr.mxu0 0.0
        %1293 = vmatpush1.msra.mxu0 0.0
        %1294 = vmatprep.subr.mxu0 0.0
        %1295 = vmatpush1.msra.mxu0 0.0
        %1296 = vmatprep.subr.mxu0 0.0
        %1297 = vmatpush1.msra.mxu0 0.0
        %1298 = vmatprep.subr.mxu0 0.0
        %1299 = vmatpush1.msra.mxu0 0.0
        %1300 = vmatprep.subr.mxu0 0.0
        %1301 = vmatpush1.msra.mxu0 0.0
        %1302 = vmatprep.subr.mxu0 0.0
        %1303 = vmatpush1.msra.mxu0 0.0
        %1304 = vmatprep.subr.mxu0 0.0
        %1305 = vmatpush1.msra.mxu0 0.0
        %1306 = vmatprep.subr.mxu0 0.0
        %1307 = vmatpush1.msra.mxu0 0.0
        %1308 = vmatprep.subr.mxu0 0.0
        %1309 = vmatpush1.msra.mxu0 0.0
        %1310 = vmatprep.subr.mxu0 0.0
        %1311 = vmatpush1.msra.mxu0 0.0
        %1312 = vmatprep.subr.mxu0 0.0
        %1313 = vmatpush1.msra.mxu0 0.0
        %1314 = vmatprep.subr.mxu0 0.0
        %1315 = vmatpush1.msra.mxu0 0.0
        %1316 = vmatprep.subr.mxu0 0.0
        %1317 = vmatpush1.msra.mxu0 0.0
        %1318 = vmatprep.subr.mxu0 0.0
        %1319 = vmatpush1.msra.mxu0 0.0
        %1320 = vmatprep.subr.mxu0 0.0
        %1321 = vmatpush1.msra.mxu0 0.0
        %1322 = vmatprep.mubr.f32.mxu0 0.0
        %1323 = vmatmul.mubr.f32.gmra.mrb[0].mxu0 %v1164
        %v1324 = vpop.f32.mrb[0].mxu0
        %v1325 = vadd.f32 0.0, %v1324
        %v1326 = vpop.f32.mrb[0].mxu0
        %1327 = vmatprep.mubr.f32.mxu0 0.0
        %1328 = vmatmul.mubr.f32.gmra.mrb[0].mxu0 %v1178
        %v1329 = vpop.f32.mrb[0].mxu0
        %v1330 = vadd.f32 0.0, %v1329
        %v1331 = vpop.f32.mrb[0].mxu0
        %1332 = vdwg.mxu0
        %v1335 = vrot.slane %v1248, 7
        %v1336 = vrot.slane %v1248, 1
        %v1337 = vrot.slane %v1248, 2
        %v1338 = vrot.slane %v1248, 3
        %v1339 = vrot.slane %v1248, 4
        %v1340 = vrot.slane %v1248, 5
        %v1341 = vrot.slane %v1248, 6
        %v1342 = vrot.slane %v1254, 7
        %v1343 = vrot.slane %v1254, 1
        %v1344 = vrot.slane %v1254, 2
        %v1345 = vrot.slane %v1254, 3
        %v1346 = vrot.slane %v1254, 4
        %v1347 = vrot.slane %v1254, 5
        %v1348 = vrot.slane %v1254, 6
        %v1365 = vadd.f32 %v433, %v1335
        %v1366 = vadd.f32 %v436, %v1248
        %v1367 = vadd.f32 %v439, %v1336
        %v1368 = vadd.f32 %v442, %v1337
        %v1369 = vadd.f32 %v445, %v1338
        %v1370 = vadd.f32 %v448, %v1339
        %v1371 = vadd.f32 %v451, %v1340
        %v1372 = vadd.f32 %v454, %v1341
        %v1373 = vadd.f32 %v457, %v1342
        %v1374 = vadd.f32 %v460, %v1254
        %v1375 = vadd.f32 %v463, %v1343
        %v1376 = vadd.f32 %v466, %v1344
        %v1377 = vadd.f32 %v469, %v1345
        %v1378 = vadd.f32 %v472, %v1346
        %v1379 = vadd.f32 %v475, %v1347
        %v1380 = vadd.f32 %v478, %v1348
        %v1381 = vxor.u32 %v1365, 2147483648
        %v1382 = vxor.u32 %v1366, 2147483648
        %v1383 = vxor.u32 %v1367, 2147483648
        %v1384 = vxor.u32 %v1368, 2147483648
        %v1385 = vxor.u32 %v1369, 2147483648
        %v1386 = vxor.u32 %v1370, 2147483648
        %v1387 = vxor.u32 %v1371, 2147483648
        %v1388 = vxor.u32 %v1372, 2147483648
        %v1389 = vxor.u32 %v1373, 2147483648
        %v1390 = vxor.u32 %v1374, 2147483648
        %v1391 = vxor.u32 %v1375, 2147483648
        %v1392 = vxor.u32 %v1376, 2147483648
        %v1393 = vxor.u32 %v1377, 2147483648
        %v1394 = vxor.u32 %v1378, 2147483648
        %v1395 = vxor.u32 %v1379, 2147483648
        %v1396 = vxor.u32 %v1380, 2147483648
        %v1397 = vmul.f32 %v1381, 1.442695
        %v1398 = vpow.pop %v1397
        %v1399 = vmul.f32 %v1382, 1.442695
        %v1400 = vpow.pop %v1399
        %v1401 = vmul.f32 %v1383, 1.442695
        %v1402 = vpow.pop %v1401
        %v1403 = vmul.f32 %v1384, 1.442695
        %v1404 = vpow.pop %v1403
        %v1405 = vmul.f32 %v1385, 1.442695
        %v1406 = vpow.pop %v1405
        %v1407 = vmul.f32 %v1386, 1.442695
        %v1408 = vpow.pop %v1407
        %v1409 = vmul.f32 %v1387, 1.442695
        %v1410 = vpow.pop %v1409
        %v1411 = vmul.f32 %v1388, 1.442695
        %v1412 = vpow.pop %v1411
        %v1413 = vmul.f32 %v1389, 1.442695
        %v1414 = vpow.pop %v1413
        %v1415 = vmul.f32 %v1390, 1.442695
        %v1416 = vpow.pop %v1415
        %v1417 = vmul.f32 %v1391, 1.442695
        %v1418 = vpow.pop %v1417
        %v1419 = vmul.f32 %v1392, 1.442695
        %v1420 = vpow.pop %v1419
        %v1421 = vmul.f32 %v1393, 1.442695
        %v1422 = vpow.pop %v1421
        %v1423 = vmul.f32 %v1394, 1.442695
        %v1424 = vpow.pop %v1423
        %v1425 = vmul.f32 %v1395, 1.442695
        %v1426 = vpow.pop %v1425
        %v1427 = vmul.f32 %v1396, 1.442695
        %v1428 = vpow.pop %v1427
        %v1429 = vadd.f32 %v1398, 1.0
        %v1430 = vadd.f32 %v1400, 1.0
        %v1431 = vadd.f32 %v1402, 1.0
        %v1432 = vadd.f32 %v1404, 1.0
        %v1433 = vadd.f32 %v1406, 1.0
        %v1434 = vadd.f32 %v1408, 1.0
        %v1435 = vadd.f32 %v1410, 1.0
        %v1436 = vadd.f32 %v1412, 1.0
        %v1437 = vadd.f32 %v1414, 1.0
        %v1438 = vadd.f32 %v1416, 1.0
        %v1439 = vadd.f32 %v1418, 1.0
        %v1440 = vadd.f32 %v1420, 1.0
        %v1441 = vadd.f32 %v1422, 1.0
        %v1442 = vadd.f32 %v1424, 1.0
        %v1443 = vadd.f32 %v1426, 1.0
        %v1444 = vadd.f32 %v1428, 1.0
        %v1445 = vrcp.pop %v1429
        %v1446 = vmul.f32 1.0, %v1445
        %v1447 = vrcp.pop %v1430
        %v1448 = vmul.f32 1.0, %v1447
        %v1449 = vrcp.pop %v1431
        %v1450 = vmul.f32 1.0, %v1449
        %v1451 = vrcp.pop %v1432
        %v1452 = vmul.f32 1.0, %v1451
        %v1453 = vrcp.pop %v1433
        %v1454 = vmul.f32 1.0, %v1453
        %v1455 = vrcp.pop %v1434
        %v1456 = vmul.f32 1.0, %v1455
        %v1457 = vrcp.pop %v1435
        %v1458 = vmul.f32 1.0, %v1457
        %v1459 = vrcp.pop %v1436
        %v1460 = vmul.f32 1.0, %v1459
        %v1461 = vrcp.pop %v1437
        %v1462 = vmul.f32 1.0, %v1461
        %v1463 = vrcp.pop %v1438
        %v1464 = vmul.f32 1.0, %v1463
        %v1465 = vrcp.pop %v1439
        %v1466 = vmul.f32 1.0, %v1465
        %v1467 = vrcp.pop %v1440
        %v1468 = vmul.f32 1.0, %v1467
        %v1469 = vrcp.pop %v1441
        %v1470 = vmul.f32 1.0, %v1469
        %v1471 = vrcp.pop %v1442
        %v1472 = vmul.f32 1.0, %v1471
        %v1473 = vrcp.pop %v1443
        %v1474 = vmul.f32 1.0, %v1473
        %v1475 = vrcp.pop %v1444
        %v1476 = vmul.f32 1.0, %v1475
        %v1479 = vrot.slane %v1250, 7
        %v1480 = vrot.slane %v1250, 1
        %v1481 = vrot.slane %v1250, 2
        %v1482 = vrot.slane %v1250, 3
        %v1483 = vrot.slane %v1250, 4
        %v1484 = vrot.slane %v1250, 5
        %v1485 = vrot.slane %v1250, 6
        %v1486 = vrot.slane %v1256, 7
        %v1487 = vrot.slane %v1256, 1
        %v1488 = vrot.slane %v1256, 2
        %v1489 = vrot.slane %v1256, 3
        %v1490 = vrot.slane %v1256, 4
        %v1491 = vrot.slane %v1256, 5
        %v1492 = vrot.slane %v1256, 6
        %v1509 = vadd.f32 %v434, %v1479
        %v1510 = vadd.f32 %v437, %v1250
        %v1511 = vadd.f32 %v440, %v1480
        %v1512 = vadd.f32 %v443, %v1481
        %v1513 = vadd.f32 %v446, %v1482
        %v1514 = vadd.f32 %v449, %v1483
        %v1515 = vadd.f32 %v452, %v1484
        %v1516 = vadd.f32 %v455, %v1485
        %v1517 = vadd.f32 %v458, %v1486
        %v1518 = vadd.f32 %v461, %v1256
        %v1519 = vadd.f32 %v464, %v1487
        %v1520 = vadd.f32 %v467, %v1488
        %v1521 = vadd.f32 %v470, %v1489
        %v1522 = vadd.f32 %v473, %v1490
        %v1523 = vadd.f32 %v476, %v1491
        %v1524 = vadd.f32 %v479, %v1492
        %v1525 = vxor.u32 %v1509, 2147483648
        %v1526 = vxor.u32 %v1510, 2147483648
        %v1527 = vxor.u32 %v1511, 2147483648
        %v1528 = vxor.u32 %v1512, 2147483648
        %v1529 = vxor.u32 %v1513, 2147483648
        %v1530 = vxor.u32 %v1514, 2147483648
        %v1531 = vxor.u32 %v1515, 2147483648
        %v1532 = vxor.u32 %v1516, 2147483648
        %v1533 = vxor.u32 %v1517, 2147483648
        %v1534 = vxor.u32 %v1518, 2147483648
        %v1535 = vxor.u32 %v1519, 2147483648
        %v1536 = vxor.u32 %v1520, 2147483648
        %v1537 = vxor.u32 %v1521, 2147483648
        %v1538 = vxor.u32 %v1522, 2147483648
        %v1539 = vxor.u32 %v1523, 2147483648
        %v1540 = vxor.u32 %v1524, 2147483648
        %v1541 = vmul.f32 %v1525, 1.442695
        %v1542 = vpow.pop %v1541
        %v1543 = vmul.f32 %v1526, 1.442695
        %v1544 = vpow.pop %v1543
        %v1545 = vmul.f32 %v1527, 1.442695
        %v1546 = vpow.pop %v1545
        %v1547 = vmul.f32 %v1528, 1.442695
        %v1548 = vpow.pop %v1547
        %v1549 = vmul.f32 %v1529, 1.442695
        %v1550 = vpow.pop %v1549
        %v1551 = vmul.f32 %v1530, 1.442695
        %v1552 = vpow.pop %v1551
        %v1553 = vmul.f32 %v1531, 1.442695
        %v1554 = vpow.pop %v1553
        %v1555 = vmul.f32 %v1532, 1.442695
        %v1556 = vpow.pop %v1555
        %v1557 = vmul.f32 %v1533, 1.442695
        %v1558 = vpow.pop %v1557
        %v1559 = vmul.f32 %v1534, 1.442695
        %v1560 = vpow.pop %v1559
        %v1561 = vmul.f32 %v1535, 1.442695
        %v1562 = vpow.pop %v1561
        %v1563 = vmul.f32 %v1536, 1.442695
        %v1564 = vpow.pop %v1563
        %v1565 = vmul.f32 %v1537, 1.442695
        %v1566 = vpow.pop %v1565
        %v1567 = vmul.f32 %v1538, 1.442695
        %v1568 = vpow.pop %v1567
        %v1569 = vmul.f32 %v1539, 1.442695
        %v1570 = vpow.pop %v1569
        %v1571 = vmul.f32 %v1540, 1.442695
        %v1572 = vpow.pop %v1571
        %v1573 = vadd.f32 %v1542, 1.0
        %v1574 = vadd.f32 %v1544, 1.0
        %v1575 = vadd.f32 %v1546, 1.0
        %v1576 = vadd.f32 %v1548, 1.0
        %v1577 = vadd.f32 %v1550, 1.0
        %v1578 = vadd.f32 %v1552, 1.0
        %v1579 = vadd.f32 %v1554, 1.0
        %v1580 = vadd.f32 %v1556, 1.0
        %v1581 = vadd.f32 %v1558, 1.0
        %v1582 = vadd.f32 %v1560, 1.0
        %v1583 = vadd.f32 %v1562, 1.0
        %v1584 = vadd.f32 %v1564, 1.0
        %v1585 = vadd.f32 %v1566, 1.0
        %v1586 = vadd.f32 %v1568, 1.0
        %v1587 = vadd.f32 %v1570, 1.0
        %v1588 = vadd.f32 %v1572, 1.0
        %v1589 = vrcp.pop %v1573
        %v1590 = vmul.f32 1.0, %v1589
        %v1591 = vrcp.pop %v1574
        %v1592 = vmul.f32 1.0, %v1591
        %v1593 = vrcp.pop %v1575
        %v1594 = vmul.f32 1.0, %v1593
        %v1595 = vrcp.pop %v1576
        %v1596 = vmul.f32 1.0, %v1595
        %v1597 = vrcp.pop %v1577
        %v1598 = vmul.f32 1.0, %v1597
        %v1599 = vrcp.pop %v1578
        %v1600 = vmul.f32 1.0, %v1599
        %v1601 = vrcp.pop %v1579
        %v1602 = vmul.f32 1.0, %v1601
        %v1603 = vrcp.pop %v1580
        %v1604 = vmul.f32 1.0, %v1603
        %v1605 = vrcp.pop %v1581
        %v1606 = vmul.f32 1.0, %v1605
        %v1607 = vrcp.pop %v1582
        %v1608 = vmul.f32 1.0, %v1607
        %v1609 = vrcp.pop %v1583
        %v1610 = vmul.f32 1.0, %v1609
        %v1611 = vrcp.pop %v1584
        %v1612 = vmul.f32 1.0, %v1611
        %v1613 = vrcp.pop %v1585
        %v1614 = vmul.f32 1.0, %v1613
        %v1615 = vrcp.pop %v1586
        %v1616 = vmul.f32 1.0, %v1615
        %v1617 = vrcp.pop %v1587
        %v1618 = vmul.f32 1.0, %v1617
        %v1619 = vrcp.pop %v1588
        %v1620 = vmul.f32 1.0, %v1619
        %v1621 = vadd.f32 %v1325, %v927
        %v1622 = vadd.f32 %v1330, %v927
        %v1625 = vrot.slane %v1621, 7
        %v1626 = vrot.slane %v1621, 1
        %v1627 = vrot.slane %v1621, 2
        %v1628 = vrot.slane %v1621, 3
        %v1629 = vrot.slane %v1621, 4
        %v1630 = vrot.slane %v1621, 5
        %v1631 = vrot.slane %v1621, 6
        %v1632 = vrot.slane %v1622, 7
        %v1633 = vrot.slane %v1622, 1
        %v1634 = vrot.slane %v1622, 2
        %v1635 = vrot.slane %v1622, 3
        %v1636 = vrot.slane %v1622, 4
        %v1637 = vrot.slane %v1622, 5
        %v1638 = vrot.slane %v1622, 6
        %v1655 = vmul.f32 %v1446, %v1625
        %v1656 = vmul.f32 %v1448, %v1621
        %v1657 = vmul.f32 %v1450, %v1626
        %v1658 = vmul.f32 %v1452, %v1627
        %v1659 = vmul.f32 %v1454, %v1628
        %v1660 = vmul.f32 %v1456, %v1629
        %v1661 = vmul.f32 %v1458, %v1630
        %v1662 = vmul.f32 %v1460, %v1631
        %v1663 = vmul.f32 %v1462, %v1632
        %v1664 = vmul.f32 %v1464, %v1622
        %v1665 = vmul.f32 %v1466, %v1633
        %v1666 = vmul.f32 %v1468, %v1634
        %v1667 = vmul.f32 %v1470, %v1635
        %v1668 = vmul.f32 %v1472, %v1636
        %v1669 = vmul.f32 %v1474, %v1637
        %v1670 = vmul.f32 %v1476, %v1638
        %v1671 = vadd.f32 %v435, %v1655
        %v1672 = vadd.f32 %v438, %v1656
        %v1673 = vadd.f32 %v441, %v1657
        %v1674 = vadd.f32 %v444, %v1658
        %v1675 = vadd.f32 %v447, %v1659
        %v1676 = vadd.f32 %v450, %v1660
        %v1677 = vadd.f32 %v453, %v1661
        %v1678 = vadd.f32 %v456, %v1662
        %v1679 = vadd.f32 %v459, %v1663
        %v1680 = vadd.f32 %v462, %v1664
        %v1681 = vadd.f32 %v465, %v1665
        %v1682 = vadd.f32 %v468, %v1666
        %v1683 = vadd.f32 %v471, %v1667
        %v1684 = vadd.f32 %v474, %v1668
        %v1685 = vadd.f32 %v477, %v1669
        %v1686 = vadd.f32 %v480, %v1670
        %v1687 = vtanh.pop %v1671
        %v1688 = vtanh.pop %v1672
        %v1689 = vtanh.pop %v1673
        %v1690 = vtanh.pop %v1674
        %v1691 = vtanh.pop %v1675
        %v1692 = vtanh.pop %v1676
        %v1693 = vtanh.pop %v1677
        %v1694 = vtanh.pop %v1678
        %v1695 = vtanh.pop %v1679
        %v1696 = vtanh.pop %v1680
        %v1697 = vtanh.pop %v1681
        %v1698 = vtanh.pop %v1682
        %v1699 = vtanh.pop %v1683
        %v1700 = vtanh.pop %v1684
        %v1701 = vtanh.pop %v1685
        %v1702 = vtanh.pop %v1686
        %v1703 = vsub.f32 1.0, %v1590
        %v1704 = vsub.f32 1.0, %v1592
        %v1705 = vsub.f32 1.0, %v1594
        %v1706 = vsub.f32 1.0, %v1596
        %v1707 = vsub.f32 1.0, %v1598
        %v1708 = vsub.f32 1.0, %v1600
        %v1709 = vsub.f32 1.0, %v1602
        %v1710 = vsub.f32 1.0, %v1604
        %v1711 = vsub.f32 1.0, %v1606
        %v1712 = vsub.f32 1.0, %v1608
        %v1713 = vsub.f32 1.0, %v1610
        %v1714 = vsub.f32 1.0, %v1612
        %v1715 = vsub.f32 1.0, %v1614
        %v1716 = vsub.f32 1.0, %v1616
        %v1717 = vsub.f32 1.0, %v1618
        %v1718 = vsub.f32 1.0, %v1620
        %v1719 = vmul.f32 %v1703, %v1687
        %v1720 = vmul.f32 %v1704, %v1688
        %v1721 = vmul.f32 %v1705, %v1689
        %v1722 = vmul.f32 %v1706, %v1690
        %v1723 = vmul.f32 %v1707, %v1691
        %v1724 = vmul.f32 %v1708, %v1692
        %v1725 = vmul.f32 %v1709, %v1693
        %v1726 = vmul.f32 %v1710, %v1694
        %v1727 = vmul.f32 %v1711, %v1695
        %v1728 = vmul.f32 %v1712, %v1696
        %v1729 = vmul.f32 %v1713, %v1697
        %v1730 = vmul.f32 %v1714, %v1698
        %v1731 = vmul.f32 %v1715, %v1699
        %v1732 = vmul.f32 %v1716, %v1700
        %v1733 = vmul.f32 %v1717, %v1701
        %v1734 = vmul.f32 %v1718, %v1702
        %v1735 = vrot.slane %v1112, 7
        %v1736 = vrot.slane %v1114, 7
        %v1737 = vrot.slane %v1115, 7
        %v1738 = vrot.slane %v1116, 7
        %v1739 = vrot.slane %v1117, 7
        %v1740 = vrot.slane %v1118, 7
        %v1741 = vrot.slane %v1119, 7
        %v1742 = vrot.slane %v1120, 7
        %v1743 = vrot.slane %v1122, 7
        %v1744 = vrot.slane %v1123, 7
        %v1745 = vrot.slane %v1124, 7
        %v1746 = vrot.slane %v1125, 7
        %v1747 = vrot.slane %v1126, 7
        %v1748 = vrot.slane %v1127, 7
        %v1765 = vmul.f32 %v1590, %v1735
        %v1766 = vmul.f32 %v1592, %v1144
        %v1767 = vmul.f32 %v1594, %v1736
        %v1768 = vmul.f32 %v1596, %v1737
        %v1769 = vmul.f32 %v1598, %v1738
        %v1770 = vmul.f32 %v1600, %v1739
        %v1771 = vmul.f32 %v1602, %v1740
        %v1772 = vmul.f32 %v1604, %v1741
        %v1773 = vmul.f32 %v1606, %v1742
        %v1774 = vmul.f32 %v1608, %v1165
        %v1775 = vmul.f32 %v1610, %v1743
        %v1776 = vmul.f32 %v1612, %v1744
        %v1777 = vmul.f32 %v1614, %v1745
        %v1778 = vmul.f32 %v1616, %v1746
        %v1779 = vmul.f32 %v1618, %v1747
        %v1780 = vmul.f32 %v1620, %v1748
        %v1781 = vadd.f32 %v1719, %v1765
        %v1782 = vadd.f32 %v1720, %v1766
        %v1783 = vadd.f32 %v1721, %v1767
        %v1784 = vadd.f32 %v1722, %v1768
        %v1785 = vadd.f32 %v1723, %v1769
        %v1786 = vadd.f32 %v1724, %v1770
        %v1787 = vadd.f32 %v1725, %v1771
        %v1788 = vadd.f32 %v1726, %v1772
        %v1789 = vadd.f32 %v1727, %v1773
        %v1790 = vadd.f32 %v1728, %v1774
        %v1791 = vadd.f32 %v1729, %v1775
        %v1792 = vadd.f32 %v1730, %v1776
        %v1793 = vadd.f32 %v1731, %v1777
        %v1794 = vadd.f32 %v1732, %v1778
        %v1795 = vadd.f32 %v1733, %v1779
        %v1796 = vadd.f32 %v1734, %v1780
        %s1797 = sadd.s32 %s1107, 1
        %p1798 = scmp.lt.s32.totalorder %s1797, 12
        %s1799 = scalar_select %p1798, 1, 0
        %v1800 = vstv %s1799
        %vm1801 = vcmp.eq.s32.totalorder %v1800, 1
        %v1802 = vsel %vm1801, %v1781, %v1735
        %v1803 = vsel %vm1801, %v1782, %v1144
        %v1804 = vsel %vm1801, %v1783, %v1736
        %v1805 = vsel %vm1801, %v1784, %v1737
        %v1806 = vsel %vm1801, %v1785, %v1738
        %v1807 = vsel %vm1801, %v1786, %v1739
        %v1808 = vsel %vm1801, %v1787, %v1740
        %v1809 = vsel %vm1801, %v1788, %v1741
        %v1810 = vsel %vm1801, %v1789, %v1742
        %v1811 = vsel %vm1801, %v1790, %v1165
        %v1812 = vsel %vm1801, %v1791, %v1743
        %v1813 = vsel %vm1801, %v1792, %v1744
        %v1814 = vsel %vm1801, %v1793, %v1745
        %v1815 = vsel %vm1801, %v1794, %v1746
        %v1816 = vsel %vm1801, %v1795, %v1747
        %v1817 = vsel %vm1801, %v1796, %v1748
        %v1834 = vrot.slane %v1802, 1
        %v1835 = vsel %vm1145, %v1803, %v1834
        %v1836 = vrot.slane %v1804, 7
        %v1837 = vsel %vm1148, %v1836, %v1835
        %v1838 = vrot.slane %v1805, 6
        %v1839 = vsel %vm1151, %v1838, %v1837
        %v1840 = vrot.slane %v1806, 5
        %v1841 = vsel %vm1154, %v1840, %v1839
        %v1842 = vrot.slane %v1807, 4
        %v1843 = vsel %vm1157, %v1842, %v1841
        %v1844 = vrot.slane %v1808, 3
        %v1845 = vsel %vm1160, %v1844, %v1843
        %v1846 = vrot.slane %v1809, 2
        %v1847 = vsel %vm1163, %v1846, %v1845
        %v1848 = vrot.slane %v1810, 1
        %v1849 = vsel %vm1145, %v1811, %v1848
        %v1850 = vrot.slane %v1812, 7
        %v1851 = vsel %vm1148, %v1850, %v1849
        %v1852 = vrot.slane %v1813, 6
        %v1853 = vsel %vm1151, %v1852, %v1851
        %v1854 = vrot.slane %v1814, 5
        %v1855 = vsel %vm1154, %v1854, %v1853
        %v1856 = vrot.slane %v1815, 4
        %v1857 = vsel %vm1157, %v1856, %v1855
        %v1858 = vrot.slane %v1816, 3
        %v1859 = vsel %vm1160, %v1858, %v1857
        %v1860 = vrot.slane %v1817, 2
        %v1861 = vsel %vm1163, %v1860, %v1859
        %1864 = vmatprep.subr.mxu0 %v385
        %1865 = vmatpush1.msra.mxu0 %v384
        %1866 = vmatprep.subr.mxu0 %v388
        %1867 = vmatpush1.msra.mxu0 %v387
        %1868 = vmatprep.subr.mxu0 %v391
        %1869 = vmatpush1.msra.mxu0 %v390
        %1870 = vmatprep.subr.mxu0 %v394
        %1871 = vmatpush1.msra.mxu0 %v393
        %1872 = vmatprep.subr.mxu0 %v397
        %1873 = vmatpush1.msra.mxu0 %v396
        %1874 = vmatprep.subr.mxu0 %v400
        %1875 = vmatpush1.msra.mxu0 %v399
        %1876 = vmatprep.subr.mxu0 %v403
        %1877 = vmatpush1.msra.mxu0 %v402
        %1878 = vmatprep.subr.mxu0 %v406
        %1879 = vmatpush1.msra.mxu0 %v405
        %1880 = vmatprep.subr.mxu0 %v409
        %1881 = vmatpush1.msra.mxu0 %v408
        %1882 = vmatprep.subr.mxu0 %v412
        %1883 = vmatpush1.msra.mxu0 %v411
        %1884 = vmatprep.subr.mxu0 %v415
        %1885 = vmatpush1.msra.mxu0 %v414
        %1886 = vmatprep.subr.mxu0 %v418
        %1887 = vmatpush1.msra.mxu0 %v417
        %1888 = vmatprep.subr.mxu0 %v421
        %1889 = vmatpush1.msra.mxu0 %v420
        %1890 = vmatprep.subr.mxu0 %v424
        %1891 = vmatpush1.msra.mxu0 %v423
        %1892 = vmatprep.subr.mxu0 %v427
        %1893 = vmatpush1.msra.mxu0 %v426
        %1894 = vmatprep.subr.mxu0 %v430
        %1895 = vmatpush1.msra.mxu0 %v429
        %1896 = vmatprep.subr.mxu0 0.0
        %1897 = vmatpush1.msra.mxu0 0.0
        %1898 = vmatprep.subr.mxu0 0.0
        %1899 = vmatpush1.msra.mxu0 0.0
        %1900 = vmatprep.subr.mxu0 0.0
        %1901 = vmatpush1.msra.mxu0 0.0
        %1902 = vmatprep.subr.mxu0 0.0
        %1903 = vmatpush1.msra.mxu0 0.0
        %1904 = vmatprep.subr.mxu0 0.0
        %1905 = vmatpush1.msra.mxu0 0.0
        %1906 = vmatprep.subr.mxu0 0.0
        %1907 = vmatpush1.msra.mxu0 0.0
        %1908 = vmatprep.subr.mxu0 0.0
        %1909 = vmatpush1.msra.mxu0 0.0
        %1910 = vmatprep.subr.mxu0 0.0
        %1911 = vmatpush1.msra.mxu0 0.0
        %1912 = vmatprep.subr.mxu0 0.0
        %1913 = vmatpush1.msra.mxu0 0.0
        %1914 = vmatprep.subr.mxu0 0.0
        %1915 = vmatpush1.msra.mxu0 0.0
        %1916 = vmatprep.subr.mxu0 0.0
        %1917 = vmatpush1.msra.mxu0 0.0
        %1918 = vmatprep.subr.mxu0 0.0
        %1919 = vmatpush1.msra.mxu0 0.0
        %1920 = vmatprep.subr.mxu0 0.0
        %1921 = vmatpush1.msra.mxu0 0.0
        %1922 = vmatprep.subr.mxu0 0.0
        %1923 = vmatpush1.msra.mxu0 0.0
        %1924 = vmatprep.subr.mxu0 0.0
        %1925 = vmatpush1.msra.mxu0 0.0
        %1926 = vmatprep.subr.mxu0 0.0
        %1927 = vmatpush1.msra.mxu0 0.0
        %1928 = vmatprep.mubr.f32.mxu0 0.0
        %1929 = vmatmul.mubr.f32.gmra.mrb[0].mxu0 %v1847
        %v1930 = vpop.f32.mrb[0].mxu0
        %v1931 = vadd.f32 0.0, %v1930
        %v1932 = vpop.f32.mrb[0].mxu0
        %v1933 = vadd.f32 0.0, %v1932
        %1934 = vmatprep.mubr.f32.mxu0 0.0
        %1935 = vmatmul.mubr.f32.gmra.mrb[0].mxu0 %v1861
        %v1936 = vpop.f32.mrb[0].mxu0
        %v1937 = vadd.f32 0.0, %v1936
        %v1938 = vpop.f32.mrb[0].mxu0
        %v1939 = vadd.f32 0.0, %v1938
        %1940 = vdwg.mxu0
        %1941 = vmatprep.subr.mxu0 0.0
        %1942 = vmatpush1.msra.mxu0 %v386
        %1943 = vmatprep.subr.mxu0 0.0
        %1944 = vmatpush1.msra.mxu0 %v389
        %1945 = vmatprep.subr.mxu0 0.0
        %1946 = vmatpush1.msra.mxu0 %v392
        %1947 = vmatprep.subr.mxu0 0.0
        %1948 = vmatpush1.msra.mxu0 %v395
        %1949 = vmatprep.subr.mxu0 0.0
        %1950 = vmatpush1.msra.mxu0 %v398
        %1951 = vmatprep.subr.mxu0 0.0
        %1952 = vmatpush1.msra.mxu0 %v401
        %1953 = vmatprep.subr.mxu0 0.0
        %1954 = vmatpush1.msra.mxu0 %v404
        %1955 = vmatprep.subr.mxu0 0.0
        %1956 = vmatpush1.msra.mxu0 %v407
        %1957 = vmatprep.subr.mxu0 0.0
        %1958 = vmatpush1.msra.mxu0 %v410
        %1959 = vmatprep.subr.mxu0 0.0
        %1960 = vmatpush1.msra.mxu0 %v413
        %1961 = vmatprep.subr.mxu0 0.0
        %1962 = vmatpush1.msra.mxu0 %v416
        %1963 = vmatprep.subr.mxu0 0.0
        %1964 = vmatpush1.msra.mxu0 %v419
        %1965 = vmatprep.subr.mxu0 0.0
        %1966 = vmatpush1.msra.mxu0 %v422
        %1967 = vmatprep.subr.mxu0 0.0
        %1968 = vmatpush1.msra.mxu0 %v425
        %1969 = vmatprep.subr.mxu0 0.0
        %1970 = vmatpush1.msra.mxu0 %v428
        %1971 = vmatprep.subr.mxu0 0.0
        %1972 = vmatpush1.msra.mxu0 %v431
        %1973 = vmatprep.subr.mxu0 0.0
        %1974 = vmatpush1.msra.mxu0 0.0
        %1975 = vmatprep.subr.mxu0 0.0
        %1976 = vmatpush1.msra.mxu0 0.0
        %1977 = vmatprep.subr.mxu0 0.0
        %1978 = vmatpush1.msra.mxu0 0.0
        %1979 = vmatprep.subr.mxu0 0.0
        %1980 = vmatpush1.msra.mxu0 0.0
        %1981 = vmatprep.subr.mxu0 0.0
        %1982 = vmatpush1.msra.mxu0 0.0
        %1983 = vmatprep.subr.mxu0 0.0
        %1984 = vmatpush1.msra.mxu0 0.0
        %1985 = vmatprep.subr.mxu0 0.0
        %1986 = vmatpush1.msra.mxu0 0.0
        %1987 = vmatprep.subr.mxu0 0.0
        %1988 = vmatpush1.msra.mxu0 0.0
        %1989 = vmatprep.subr.mxu0 0.0
        %1990 = vmatpush1.msra.mxu0 0.0
        %1991 = vmatprep.subr.mxu0 0.0
        %1992 = vmatpush1.msra.mxu0 0.0
        %1993 = vmatprep.subr.mxu0 0.0
        %1994 = vmatpush1.msra.mxu0 0.0
        %1995 = vmatprep.subr.mxu0 0.0
        %1996 = vmatpush1.msra.mxu0 0.0
        %1997 = vmatprep.subr.mxu0 0.0
        %1998 = vmatpush1.msra.mxu0 0.0
        %1999 = vmatprep.subr.mxu0 0.0
        %2000 = vmatpush1.msra.mxu0 0.0
        %2001 = vmatprep.subr.mxu0 0.0
        %2002 = vmatpush1.msra.mxu0 0.0
        %2003 = vmatprep.subr.mxu0 0.0
        %2004 = vmatpush1.msra.mxu0 0.0
        %2005 = vmatprep.mubr.f32.mxu0 0.0
        %2006 = vmatmul.mubr.f32.gmra.mrb[0].mxu0 %v1847
        %v2007 = vpop.f32.mrb[0].mxu0
        %v2008 = vadd.f32 0.0, %v2007
        %v2009 = vpop.f32.mrb[0].mxu0
        %2010 = vmatprep.mubr.f32.mxu0 0.0
        %2011 = vmatmul.mubr.f32.gmra.mrb[0].mxu0 %v1861
        %v2012 = vpop.f32.mrb[0].mxu0
        %v2013 = vadd.f32 0.0, %v2012
        %v2014 = vpop.f32.mrb[0].mxu0
        %2015 = vdwg.mxu0
        %v2018 = vrot.slane %v1931, 6
        %v2019 = vrot.slane %v1931, 7
        %v2020 = vrot.slane %v1931, 1
        %v2021 = vrot.slane %v1931, 2
        %v2022 = vrot.slane %v1931, 3
        %v2023 = vrot.slane %v1931, 4
        %v2024 = vrot.slane %v1931, 5
        %v2025 = vrot.slane %v1937, 6
        %v2026 = vrot.slane %v1937, 7
        %v2027 = vrot.slane %v1937, 1
        %v2028 = vrot.slane %v1937, 2
        %v2029 = vrot.slane %v1937, 3
        %v2030 = vrot.slane %v1937, 4
        %v2031 = vrot.slane %v1937, 5
        %v2048 = vadd.f32 %v433, %v2018
        %v2049 = vadd.f32 %v436, %v2019
        %v2050 = vadd.f32 %v439, %v1931
        %v2051 = vadd.f32 %v442, %v2020
        %v2052 = vadd.f32 %v445, %v2021
        %v2053 = vadd.f32 %v448, %v2022
        %v2054 = vadd.f32 %v451, %v2023
        %v2055 = vadd.f32 %v454, %v2024
        %v2056 = vadd.f32 %v457, %v2025
        %v2057 = vadd.f32 %v460, %v2026
        %v2058 = vadd.f32 %v463, %v1937
        %v2059 = vadd.f32 %v466, %v2027
        %v2060 = vadd.f32 %v469, %v2028
        %v2061 = vadd.f32 %v472, %v2029
        %v2062 = vadd.f32 %v475, %v2030
        %v2063 = vadd.f32 %v478, %v2031
        %v2064 = vxor.u32 %v2048, 2147483648
        %v2065 = vxor.u32 %v2049, 2147483648
        %v2066 = vxor.u32 %v2050, 2147483648
        %v2067 = vxor.u32 %v2051, 2147483648
        %v2068 = vxor.u32 %v2052, 2147483648
        %v2069 = vxor.u32 %v2053, 2147483648
        %v2070 = vxor.u32 %v2054, 2147483648
        %v2071 = vxor.u32 %v2055, 2147483648
        %v2072 = vxor.u32 %v2056, 2147483648
        %v2073 = vxor.u32 %v2057, 2147483648
        %v2074 = vxor.u32 %v2058, 2147483648
        %v2075 = vxor.u32 %v2059, 2147483648
        %v2076 = vxor.u32 %v2060, 2147483648
        %v2077 = vxor.u32 %v2061, 2147483648
        %v2078 = vxor.u32 %v2062, 2147483648
        %v2079 = vxor.u32 %v2063, 2147483648
        %v2080 = vmul.f32 %v2064, 1.442695
        %v2081 = vpow.pop %v2080
        %v2082 = vmul.f32 %v2065, 1.442695
        %v2083 = vpow.pop %v2082
        %v2084 = vmul.f32 %v2066, 1.442695
        %v2085 = vpow.pop %v2084
        %v2086 = vmul.f32 %v2067, 1.442695
        %v2087 = vpow.pop %v2086
        %v2088 = vmul.f32 %v2068, 1.442695
        %v2089 = vpow.pop %v2088
        %v2090 = vmul.f32 %v2069, 1.442695
        %v2091 = vpow.pop %v2090
        %v2092 = vmul.f32 %v2070, 1.442695
        %v2093 = vpow.pop %v2092
        %v2094 = vmul.f32 %v2071, 1.442695
        %v2095 = vpow.pop %v2094
        %v2096 = vmul.f32 %v2072, 1.442695
        %v2097 = vpow.pop %v2096
        %v2098 = vmul.f32 %v2073, 1.442695
        %v2099 = vpow.pop %v2098
        %v2100 = vmul.f32 %v2074, 1.442695
        %v2101 = vpow.pop %v2100
        %v2102 = vmul.f32 %v2075, 1.442695
        %v2103 = vpow.pop %v2102
        %v2104 = vmul.f32 %v2076, 1.442695
        %v2105 = vpow.pop %v2104
        %v2106 = vmul.f32 %v2077, 1.442695
        %v2107 = vpow.pop %v2106
        %v2108 = vmul.f32 %v2078, 1.442695
        %v2109 = vpow.pop %v2108
        %v2110 = vmul.f32 %v2079, 1.442695
        %v2111 = vpow.pop %v2110
        %v2112 = vadd.f32 %v2081, 1.0
        %v2113 = vadd.f32 %v2083, 1.0
        %v2114 = vadd.f32 %v2085, 1.0
        %v2115 = vadd.f32 %v2087, 1.0
        %v2116 = vadd.f32 %v2089, 1.0
        %v2117 = vadd.f32 %v2091, 1.0
        %v2118 = vadd.f32 %v2093, 1.0
        %v2119 = vadd.f32 %v2095, 1.0
        %v2120 = vadd.f32 %v2097, 1.0
        %v2121 = vadd.f32 %v2099, 1.0
        %v2122 = vadd.f32 %v2101, 1.0
        %v2123 = vadd.f32 %v2103, 1.0
        %v2124 = vadd.f32 %v2105, 1.0
        %v2125 = vadd.f32 %v2107, 1.0
        %v2126 = vadd.f32 %v2109, 1.0
        %v2127 = vadd.f32 %v2111, 1.0
        %v2128 = vrcp.pop %v2112
        %v2129 = vmul.f32 1.0, %v2128
        %v2130 = vrcp.pop %v2113
        %v2131 = vmul.f32 1.0, %v2130
        %v2132 = vrcp.pop %v2114
        %v2133 = vmul.f32 1.0, %v2132
        %v2134 = vrcp.pop %v2115
        %v2135 = vmul.f32 1.0, %v2134
        %v2136 = vrcp.pop %v2116
        %v2137 = vmul.f32 1.0, %v2136
        %v2138 = vrcp.pop %v2117
        %v2139 = vmul.f32 1.0, %v2138
        %v2140 = vrcp.pop %v2118
        %v2141 = vmul.f32 1.0, %v2140
        %v2142 = vrcp.pop %v2119
        %v2143 = vmul.f32 1.0, %v2142
        %v2144 = vrcp.pop %v2120
        %v2145 = vmul.f32 1.0, %v2144
        %v2146 = vrcp.pop %v2121
        %v2147 = vmul.f32 1.0, %v2146
        %v2148 = vrcp.pop %v2122
        %v2149 = vmul.f32 1.0, %v2148
        %v2150 = vrcp.pop %v2123
        %v2151 = vmul.f32 1.0, %v2150
        %v2152 = vrcp.pop %v2124
        %v2153 = vmul.f32 1.0, %v2152
        %v2154 = vrcp.pop %v2125
        %v2155 = vmul.f32 1.0, %v2154
        %v2156 = vrcp.pop %v2126
        %v2157 = vmul.f32 1.0, %v2156
        %v2158 = vrcp.pop %v2127
        %v2159 = vmul.f32 1.0, %v2158
        %v2162 = vrot.slane %v1933, 6
        %v2163 = vrot.slane %v1933, 7
        %v2164 = vrot.slane %v1933, 1
        %v2165 = vrot.slane %v1933, 2
        %v2166 = vrot.slane %v1933, 3
        %v2167 = vrot.slane %v1933, 4
        %v2168 = vrot.slane %v1933, 5
        %v2169 = vrot.slane %v1939, 6
        %v2170 = vrot.slane %v1939, 7
        %v2171 = vrot.slane %v1939, 1
        %v2172 = vrot.slane %v1939, 2
        %v2173 = vrot.slane %v1939, 3
        %v2174 = vrot.slane %v1939, 4
        %v2175 = vrot.slane %v1939, 5
        %v2192 = vadd.f32 %v434, %v2162
        %v2193 = vadd.f32 %v437, %v2163
        %v2194 = vadd.f32 %v440, %v1933
        %v2195 = vadd.f32 %v443, %v2164
        %v2196 = vadd.f32 %v446, %v2165
        %v2197 = vadd.f32 %v449, %v2166
        %v2198 = vadd.f32 %v452, %v2167
        %v2199 = vadd.f32 %v455, %v2168
        %v2200 = vadd.f32 %v458, %v2169
        %v2201 = vadd.f32 %v461, %v2170
        %v2202 = vadd.f32 %v464, %v1939
        %v2203 = vadd.f32 %v467, %v2171
        %v2204 = vadd.f32 %v470, %v2172
        %v2205 = vadd.f32 %v473, %v2173
        %v2206 = vadd.f32 %v476, %v2174
        %v2207 = vadd.f32 %v479, %v2175
        %v2208 = vxor.u32 %v2192, 2147483648
        %v2209 = vxor.u32 %v2193, 2147483648
        %v2210 = vxor.u32 %v2194, 2147483648
        %v2211 = vxor.u32 %v2195, 2147483648
        %v2212 = vxor.u32 %v2196, 2147483648
        %v2213 = vxor.u32 %v2197, 2147483648
        %v2214 = vxor.u32 %v2198, 2147483648
        %v2215 = vxor.u32 %v2199, 2147483648
        %v2216 = vxor.u32 %v2200, 2147483648
        %v2217 = vxor.u32 %v2201, 2147483648
        %v2218 = vxor.u32 %v2202, 2147483648
        %v2219 = vxor.u32 %v2203, 2147483648
        %v2220 = vxor.u32 %v2204, 2147483648
        %v2221 = vxor.u32 %v2205, 2147483648
        %v2222 = vxor.u32 %v2206, 2147483648
        %v2223 = vxor.u32 %v2207, 2147483648
        %v2224 = vmul.f32 %v2208, 1.442695
        %v2225 = vpow.pop %v2224
        %v2226 = vmul.f32 %v2209, 1.442695
        %v2227 = vpow.pop %v2226
        %v2228 = vmul.f32 %v2210, 1.442695
        %v2229 = vpow.pop %v2228
        %v2230 = vmul.f32 %v2211, 1.442695
        %v2231 = vpow.pop %v2230
        %v2232 = vmul.f32 %v2212, 1.442695
        %v2233 = vpow.pop %v2232
        %v2234 = vmul.f32 %v2213, 1.442695
        %v2235 = vpow.pop %v2234
        %v2236 = vmul.f32 %v2214, 1.442695
        %v2237 = vpow.pop %v2236
        %v2238 = vmul.f32 %v2215, 1.442695
        %v2239 = vpow.pop %v2238
        %v2240 = vmul.f32 %v2216, 1.442695
        %v2241 = vpow.pop %v2240
        %v2242 = vmul.f32 %v2217, 1.442695
        %v2243 = vpow.pop %v2242
        %v2244 = vmul.f32 %v2218, 1.442695
        %v2245 = vpow.pop %v2244
        %v2246 = vmul.f32 %v2219, 1.442695
        %v2247 = vpow.pop %v2246
        %v2248 = vmul.f32 %v2220, 1.442695
        %v2249 = vpow.pop %v2248
        %v2250 = vmul.f32 %v2221, 1.442695
        %v2251 = vpow.pop %v2250
        %v2252 = vmul.f32 %v2222, 1.442695
        %v2253 = vpow.pop %v2252
        %v2254 = vmul.f32 %v2223, 1.442695
        %v2255 = vpow.pop %v2254
        %v2256 = vadd.f32 %v2225, 1.0
        %v2257 = vadd.f32 %v2227, 1.0
        %v2258 = vadd.f32 %v2229, 1.0
        %v2259 = vadd.f32 %v2231, 1.0
        %v2260 = vadd.f32 %v2233, 1.0
        %v2261 = vadd.f32 %v2235, 1.0
        %v2262 = vadd.f32 %v2237, 1.0
        %v2263 = vadd.f32 %v2239, 1.0
        %v2264 = vadd.f32 %v2241, 1.0
        %v2265 = vadd.f32 %v2243, 1.0
        %v2266 = vadd.f32 %v2245, 1.0
        %v2267 = vadd.f32 %v2247, 1.0
        %v2268 = vadd.f32 %v2249, 1.0
        %v2269 = vadd.f32 %v2251, 1.0
        %v2270 = vadd.f32 %v2253, 1.0
        %v2271 = vadd.f32 %v2255, 1.0
        %v2272 = vrcp.pop %v2256
        %v2273 = vmul.f32 1.0, %v2272
        %v2274 = vrcp.pop %v2257
        %v2275 = vmul.f32 1.0, %v2274
        %v2276 = vrcp.pop %v2258
        %v2277 = vmul.f32 1.0, %v2276
        %v2278 = vrcp.pop %v2259
        %v2279 = vmul.f32 1.0, %v2278
        %v2280 = vrcp.pop %v2260
        %v2281 = vmul.f32 1.0, %v2280
        %v2282 = vrcp.pop %v2261
        %v2283 = vmul.f32 1.0, %v2282
        %v2284 = vrcp.pop %v2262
        %v2285 = vmul.f32 1.0, %v2284
        %v2286 = vrcp.pop %v2263
        %v2287 = vmul.f32 1.0, %v2286
        %v2288 = vrcp.pop %v2264
        %v2289 = vmul.f32 1.0, %v2288
        %v2290 = vrcp.pop %v2265
        %v2291 = vmul.f32 1.0, %v2290
        %v2292 = vrcp.pop %v2266
        %v2293 = vmul.f32 1.0, %v2292
        %v2294 = vrcp.pop %v2267
        %v2295 = vmul.f32 1.0, %v2294
        %v2296 = vrcp.pop %v2268
        %v2297 = vmul.f32 1.0, %v2296
        %v2298 = vrcp.pop %v2269
        %v2299 = vmul.f32 1.0, %v2298
        %v2300 = vrcp.pop %v2270
        %v2301 = vmul.f32 1.0, %v2300
        %v2302 = vrcp.pop %v2271
        %v2303 = vmul.f32 1.0, %v2302
        %v2304 = vadd.f32 %v2008, %v927
        %v2305 = vadd.f32 %v2013, %v927
        %v2308 = vrot.slane %v2304, 6
        %v2309 = vrot.slane %v2304, 7
        %v2310 = vrot.slane %v2304, 1
        %v2311 = vrot.slane %v2304, 2
        %v2312 = vrot.slane %v2304, 3
        %v2313 = vrot.slane %v2304, 4
        %v2314 = vrot.slane %v2304, 5
        %v2315 = vrot.slane %v2305, 6
        %v2316 = vrot.slane %v2305, 7
        %v2317 = vrot.slane %v2305, 1
        %v2318 = vrot.slane %v2305, 2
        %v2319 = vrot.slane %v2305, 3
        %v2320 = vrot.slane %v2305, 4
        %v2321 = vrot.slane %v2305, 5
        %v2338 = vmul.f32 %v2129, %v2308
        %v2339 = vmul.f32 %v2131, %v2309
        %v2340 = vmul.f32 %v2133, %v2304
        %v2341 = vmul.f32 %v2135, %v2310
        %v2342 = vmul.f32 %v2137, %v2311
        %v2343 = vmul.f32 %v2139, %v2312
        %v2344 = vmul.f32 %v2141, %v2313
        %v2345 = vmul.f32 %v2143, %v2314
        %v2346 = vmul.f32 %v2145, %v2315
        %v2347 = vmul.f32 %v2147, %v2316
        %v2348 = vmul.f32 %v2149, %v2305
        %v2349 = vmul.f32 %v2151, %v2317
        %v2350 = vmul.f32 %v2153, %v2318
        %v2351 = vmul.f32 %v2155, %v2319
        %v2352 = vmul.f32 %v2157, %v2320
        %v2353 = vmul.f32 %v2159, %v2321
        %v2354 = vadd.f32 %v435, %v2338
        %v2355 = vadd.f32 %v438, %v2339
        %v2356 = vadd.f32 %v441, %v2340
        %v2357 = vadd.f32 %v444, %v2341
        %v2358 = vadd.f32 %v447, %v2342
        %v2359 = vadd.f32 %v450, %v2343
        %v2360 = vadd.f32 %v453, %v2344
        %v2361 = vadd.f32 %v456, %v2345
        %v2362 = vadd.f32 %v459, %v2346
        %v2363 = vadd.f32 %v462, %v2347
        %v2364 = vadd.f32 %v465, %v2348
        %v2365 = vadd.f32 %v468, %v2349
        %v2366 = vadd.f32 %v471, %v2350
        %v2367 = vadd.f32 %v474, %v2351
        %v2368 = vadd.f32 %v477, %v2352
        %v2369 = vadd.f32 %v480, %v2353
        %v2370 = vtanh.pop %v2354
        %v2371 = vtanh.pop %v2355
        %v2372 = vtanh.pop %v2356
        %v2373 = vtanh.pop %v2357
        %v2374 = vtanh.pop %v2358
        %v2375 = vtanh.pop %v2359
        %v2376 = vtanh.pop %v2360
        %v2377 = vtanh.pop %v2361
        %v2378 = vtanh.pop %v2362
        %v2379 = vtanh.pop %v2363
        %v2380 = vtanh.pop %v2364
        %v2381 = vtanh.pop %v2365
        %v2382 = vtanh.pop %v2366
        %v2383 = vtanh.pop %v2367
        %v2384 = vtanh.pop %v2368
        %v2385 = vtanh.pop %v2369
        %v2386 = vsub.f32 1.0, %v2273
        %v2387 = vsub.f32 1.0, %v2275
        %v2388 = vsub.f32 1.0, %v2277
        %v2389 = vsub.f32 1.0, %v2279
        %v2390 = vsub.f32 1.0, %v2281
        %v2391 = vsub.f32 1.0, %v2283
        %v2392 = vsub.f32 1.0, %v2285
        %v2393 = vsub.f32 1.0, %v2287
        %v2394 = vsub.f32 1.0, %v2289
        %v2395 = vsub.f32 1.0, %v2291
        %v2396 = vsub.f32 1.0, %v2293
        %v2397 = vsub.f32 1.0, %v2295
        %v2398 = vsub.f32 1.0, %v2297
        %v2399 = vsub.f32 1.0, %v2299
        %v2400 = vsub.f32 1.0, %v2301
        %v2401 = vsub.f32 1.0, %v2303
        %v2402 = vmul.f32 %v2386, %v2370
        %v2403 = vmul.f32 %v2387, %v2371
        %v2404 = vmul.f32 %v2388, %v2372
        %v2405 = vmul.f32 %v2389, %v2373
        %v2406 = vmul.f32 %v2390, %v2374
        %v2407 = vmul.f32 %v2391, %v2375
        %v2408 = vmul.f32 %v2392, %v2376
        %v2409 = vmul.f32 %v2393, %v2377
        %v2410 = vmul.f32 %v2394, %v2378
        %v2411 = vmul.f32 %v2395, %v2379
        %v2412 = vmul.f32 %v2396, %v2380
        %v2413 = vmul.f32 %v2397, %v2381
        %v2414 = vmul.f32 %v2398, %v2382
        %v2415 = vmul.f32 %v2399, %v2383
        %v2416 = vmul.f32 %v2400, %v2384
        %v2417 = vmul.f32 %v2401, %v2385
        %v2418 = vrot.slane %v1802, 7
        %v2419 = vrot.slane %v1803, 7
        %v2420 = vrot.slane %v1805, 7
        %v2421 = vrot.slane %v1806, 7
        %v2422 = vrot.slane %v1807, 7
        %v2423 = vrot.slane %v1808, 7
        %v2424 = vrot.slane %v1809, 7
        %v2425 = vrot.slane %v1810, 7
        %v2426 = vrot.slane %v1811, 7
        %v2427 = vrot.slane %v1813, 7
        %v2428 = vrot.slane %v1814, 7
        %v2429 = vrot.slane %v1815, 7
        %v2430 = vrot.slane %v1816, 7
        %v2431 = vrot.slane %v1817, 7
        %v2448 = vmul.f32 %v2273, %v2418
        %v2449 = vmul.f32 %v2275, %v2419
        %v2450 = vmul.f32 %v2277, %v1836
        %v2451 = vmul.f32 %v2279, %v2420
        %v2452 = vmul.f32 %v2281, %v2421
        %v2453 = vmul.f32 %v2283, %v2422
        %v2454 = vmul.f32 %v2285, %v2423
        %v2455 = vmul.f32 %v2287, %v2424
        %v2456 = vmul.f32 %v2289, %v2425
        %v2457 = vmul.f32 %v2291, %v2426
        %v2458 = vmul.f32 %v2293, %v1850
        %v2459 = vmul.f32 %v2295, %v2427
        %v2460 = vmul.f32 %v2297, %v2428
        %v2461 = vmul.f32 %v2299, %v2429
        %v2462 = vmul.f32 %v2301, %v2430
        %v2463 = vmul.f32 %v2303, %v2431
        %v2464 = vadd.f32 %v2402, %v2448
        %v2465 = vadd.f32 %v2403, %v2449
        %v2466 = vadd.f32 %v2404, %v2450
        %v2467 = vadd.f32 %v2405, %v2451
        %v2468 = vadd.f32 %v2406, %v2452
        %v2469 = vadd.f32 %v2407, %v2453
        %v2470 = vadd.f32 %v2408, %v2454
        %v2471 = vadd.f32 %v2409, %v2455
        %v2472 = vadd.f32 %v2410, %v2456
        %v2473 = vadd.f32 %v2411, %v2457
        %v2474 = vadd.f32 %v2412, %v2458
        %v2475 = vadd.f32 %v2413, %v2459
        %v2476 = vadd.f32 %v2414, %v2460
        %v2477 = vadd.f32 %v2415, %v2461
        %v2478 = vadd.f32 %v2416, %v2462
        %v2479 = vadd.f32 %v2417, %v2463
        %s2480 = sadd.s32 %s1107, 2
        %p2481 = scmp.lt.s32.totalorder %s2480, 12
        %s2482 = scalar_select %p2481, 1, 0
        %v2483 = vstv %s2482
        %vm2484 = vcmp.eq.s32.totalorder %v2483, 1
        %v2485 = vsel %vm2484, %v2464, %v2418
        %v2486 = vsel %vm2484, %v2465, %v2419
        %v2487 = vsel %vm2484, %v2466, %v1836
        %v2488 = vsel %vm2484, %v2467, %v2420
        %v2489 = vsel %vm2484, %v2468, %v2421
        %v2490 = vsel %vm2484, %v2469, %v2422
        %v2491 = vsel %vm2484, %v2470, %v2423
        %v2492 = vsel %vm2484, %v2471, %v2424
        %v2493 = vsel %vm2484, %v2472, %v2425
        %v2494 = vsel %vm2484, %v2473, %v2426
        %v2495 = vsel %vm2484, %v2474, %v1850
        %v2496 = vsel %vm2484, %v2475, %v2427
        %v2497 = vsel %vm2484, %v2476, %v2428
        %v2498 = vsel %vm2484, %v2477, %v2429
        %v2499 = vsel %vm2484, %v2478, %v2430
        %v2500 = vsel %vm2484, %v2479, %v2431
        %v2517 = vrot.slane %v2485, 2
        %v2518 = vrot.slane %v2486, 1
        %v2519 = vsel %vm1145, %v2518, %v2517
        %v2520 = vsel %vm1148, %v2487, %v2519
        %v2521 = vrot.slane %v2488, 7
        %v2522 = vsel %vm1151, %v2521, %v2520
        %v2523 = vrot.slane %v2489, 6
        %v2524 = vsel %vm1154, %v2523, %v2522
        %v2525 = vrot.slane %v2490, 5
        %v2526 = vsel %vm1157, %v2525, %v2524
        %v2527 = vrot.slane %v2491, 4
        %v2528 = vsel %vm1160, %v2527, %v2526
        %v2529 = vrot.slane %v2492, 3
        %v2530 = vsel %vm1163, %v2529, %v2528
        %v2531 = vrot.slane %v2493, 2
        %v2532 = vrot.slane %v2494, 1
        %v2533 = vsel %vm1145, %v2532, %v2531
        %v2534 = vsel %vm1148, %v2495, %v2533
        %v2535 = vrot.slane %v2496, 7
        %v2536 = vsel %vm1151, %v2535, %v2534
        %v2537 = vrot.slane %v2497, 6
        %v2538 = vsel %vm1154, %v2537, %v2536
        %v2539 = vrot.slane %v2498, 5
        %v2540 = vsel %vm1157, %v2539, %v2538
        %v2541 = vrot.slane %v2499, 4
        %v2542 = vsel %vm1160, %v2541, %v2540
        %v2543 = vrot.slane %v2500, 3
        %v2544 = vsel %vm1163, %v2543, %v2542
        %2547 = vmatprep.subr.mxu0 %v385
        %2548 = vmatpush1.msra.mxu0 %v384
        %2549 = vmatprep.subr.mxu0 %v388
        %2550 = vmatpush1.msra.mxu0 %v387
        %2551 = vmatprep.subr.mxu0 %v391
        %2552 = vmatpush1.msra.mxu0 %v390
        %2553 = vmatprep.subr.mxu0 %v394
        %2554 = vmatpush1.msra.mxu0 %v393
        %2555 = vmatprep.subr.mxu0 %v397
        %2556 = vmatpush1.msra.mxu0 %v396
        %2557 = vmatprep.subr.mxu0 %v400
        %2558 = vmatpush1.msra.mxu0 %v399
        %2559 = vmatprep.subr.mxu0 %v403
        %2560 = vmatpush1.msra.mxu0 %v402
        %2561 = vmatprep.subr.mxu0 %v406
        %2562 = vmatpush1.msra.mxu0 %v405
        %2563 = vmatprep.subr.mxu0 %v409
        %2564 = vmatpush1.msra.mxu0 %v408
        %2565 = vmatprep.subr.mxu0 %v412
        %2566 = vmatpush1.msra.mxu0 %v411
        %2567 = vmatprep.subr.mxu0 %v415
        %2568 = vmatpush1.msra.mxu0 %v414
        %2569 = vmatprep.subr.mxu0 %v418
        %2570 = vmatpush1.msra.mxu0 %v417
        %2571 = vmatprep.subr.mxu0 %v421
        %2572 = vmatpush1.msra.mxu0 %v420
        %2573 = vmatprep.subr.mxu0 %v424
        %2574 = vmatpush1.msra.mxu0 %v423
        %2575 = vmatprep.subr.mxu0 %v427
        %2576 = vmatpush1.msra.mxu0 %v426
        %2577 = vmatprep.subr.mxu0 %v430
        %2578 = vmatpush1.msra.mxu0 %v429
        %2579 = vmatprep.subr.mxu0 0.0
        %2580 = vmatpush1.msra.mxu0 0.0
        %2581 = vmatprep.subr.mxu0 0.0
        %2582 = vmatpush1.msra.mxu0 0.0
        %2583 = vmatprep.subr.mxu0 0.0
        %2584 = vmatpush1.msra.mxu0 0.0
        %2585 = vmatprep.subr.mxu0 0.0
        %2586 = vmatpush1.msra.mxu0 0.0
        %2587 = vmatprep.subr.mxu0 0.0
        %2588 = vmatpush1.msra.mxu0 0.0
        %2589 = vmatprep.subr.mxu0 0.0
        %2590 = vmatpush1.msra.mxu0 0.0
        %2591 = vmatprep.subr.mxu0 0.0
        %2592 = vmatpush1.msra.mxu0 0.0
        %2593 = vmatprep.subr.mxu0 0.0
        %2594 = vmatpush1.msra.mxu0 0.0
        %2595 = vmatprep.subr.mxu0 0.0
        %2596 = vmatpush1.msra.mxu0 0.0
        %2597 = vmatprep.subr.mxu0 0.0
        %2598 = vmatpush1.msra.mxu0 0.0
        %2599 = vmatprep.subr.mxu0 0.0
        %2600 = vmatpush1.msra.mxu0 0.0
        %2601 = vmatprep.subr.mxu0 0.0
        %2602 = vmatpush1.msra.mxu0 0.0
        %2603 = vmatprep.subr.mxu0 0.0
        %2604 = vmatpush1.msra.mxu0 0.0
        %2605 = vmatprep.subr.mxu0 0.0
        %2606 = vmatpush1.msra.mxu0 0.0
        %2607 = vmatprep.subr.mxu0 0.0
        %2608 = vmatpush1.msra.mxu0 0.0
        %2609 = vmatprep.subr.mxu0 0.0
        %2610 = vmatpush1.msra.mxu0 0.0
        %2611 = vmatprep.mubr.f32.mxu0 0.0
        %2612 = vmatmul.mubr.f32.gmra.mrb[0].mxu0 %v2530
        %v2613 = vpop.f32.mrb[0].mxu0
        %v2614 = vadd.f32 0.0, %v2613
        %v2615 = vpop.f32.mrb[0].mxu0
        %v2616 = vadd.f32 0.0, %v2615
        %2617 = vmatprep.mubr.f32.mxu0 0.0
        %2618 = vmatmul.mubr.f32.gmra.mrb[0].mxu0 %v2544
        %v2619 = vpop.f32.mrb[0].mxu0
        %v2620 = vadd.f32 0.0, %v2619
        %v2621 = vpop.f32.mrb[0].mxu0
        %v2622 = vadd.f32 0.0, %v2621
        %2623 = vdwg.mxu0
        %2624 = vmatprep.subr.mxu0 0.0
        %2625 = vmatpush1.msra.mxu0 %v386
        %2626 = vmatprep.subr.mxu0 0.0
        %2627 = vmatpush1.msra.mxu0 %v389
        %2628 = vmatprep.subr.mxu0 0.0
        %2629 = vmatpush1.msra.mxu0 %v392
        %2630 = vmatprep.subr.mxu0 0.0
        %2631 = vmatpush1.msra.mxu0 %v395
        %2632 = vmatprep.subr.mxu0 0.0
        %2633 = vmatpush1.msra.mxu0 %v398
        %2634 = vmatprep.subr.mxu0 0.0
        %2635 = vmatpush1.msra.mxu0 %v401
        %2636 = vmatprep.subr.mxu0 0.0
        %2637 = vmatpush1.msra.mxu0 %v404
        %2638 = vmatprep.subr.mxu0 0.0
        %2639 = vmatpush1.msra.mxu0 %v407
        %2640 = vmatprep.subr.mxu0 0.0
        %2641 = vmatpush1.msra.mxu0 %v410
        %2642 = vmatprep.subr.mxu0 0.0
        %2643 = vmatpush1.msra.mxu0 %v413
        %2644 = vmatprep.subr.mxu0 0.0
        %2645 = vmatpush1.msra.mxu0 %v416
        %2646 = vmatprep.subr.mxu0 0.0
        %2647 = vmatpush1.msra.mxu0 %v419
        %2648 = vmatprep.subr.mxu0 0.0
        %2649 = vmatpush1.msra.mxu0 %v422
        %2650 = vmatprep.subr.mxu0 0.0
        %2651 = vmatpush1.msra.mxu0 %v425
        %2652 = vmatprep.subr.mxu0 0.0
        %2653 = vmatpush1.msra.mxu0 %v428
        %2654 = vmatprep.subr.mxu0 0.0
        %2655 = vmatpush1.msra.mxu0 %v431
        %2656 = vmatprep.subr.mxu0 0.0
        %2657 = vmatpush1.msra.mxu0 0.0
        %2658 = vmatprep.subr.mxu0 0.0
        %2659 = vmatpush1.msra.mxu0 0.0
        %2660 = vmatprep.subr.mxu0 0.0
        %2661 = vmatpush1.msra.mxu0 0.0
        %2662 = vmatprep.subr.mxu0 0.0
        %2663 = vmatpush1.msra.mxu0 0.0
        %2664 = vmatprep.subr.mxu0 0.0
        %2665 = vmatpush1.msra.mxu0 0.0
        %2666 = vmatprep.subr.mxu0 0.0
        %2667 = vmatpush1.msra.mxu0 0.0
        %2668 = vmatprep.subr.mxu0 0.0
        %2669 = vmatpush1.msra.mxu0 0.0
        %2670 = vmatprep.subr.mxu0 0.0
        %2671 = vmatpush1.msra.mxu0 0.0
        %2672 = vmatprep.subr.mxu0 0.0
        %2673 = vmatpush1.msra.mxu0 0.0
        %2674 = vmatprep.subr.mxu0 0.0
        %2675 = vmatpush1.msra.mxu0 0.0
        %2676 = vmatprep.subr.mxu0 0.0
        %2677 = vmatpush1.msra.mxu0 0.0
        %2678 = vmatprep.subr.mxu0 0.0
        %2679 = vmatpush1.msra.mxu0 0.0
        %2680 = vmatprep.subr.mxu0 0.0
        %2681 = vmatpush1.msra.mxu0 0.0
        %2682 = vmatprep.subr.mxu0 0.0
        %2683 = vmatpush1.msra.mxu0 0.0
        %2684 = vmatprep.subr.mxu0 0.0
        %2685 = vmatpush1.msra.mxu0 0.0
        %2686 = vmatprep.subr.mxu0 0.0
        %2687 = vmatpush1.msra.mxu0 0.0
        %2688 = vmatprep.mubr.f32.mxu0 0.0
        %2689 = vmatmul.mubr.f32.gmra.mrb[0].mxu0 %v2530
        %v2690 = vpop.f32.mrb[0].mxu0
        %v2691 = vadd.f32 0.0, %v2690
        %v2692 = vpop.f32.mrb[0].mxu0
        %2693 = vmatprep.mubr.f32.mxu0 0.0
        %2694 = vmatmul.mubr.f32.gmra.mrb[0].mxu0 %v2544
        %v2695 = vpop.f32.mrb[0].mxu0
        %v2696 = vadd.f32 0.0, %v2695
        %v2697 = vpop.f32.mrb[0].mxu0
        %2698 = vdwg.mxu0
        %v2701 = vrot.slane %v2614, 5
        %v2702 = vrot.slane %v2614, 6
        %v2703 = vrot.slane %v2614, 7
        %v2704 = vrot.slane %v2614, 1
        %v2705 = vrot.slane %v2614, 2
        %v2706 = vrot.slane %v2614, 3
        %v2707 = vrot.slane %v2614, 4
        %v2708 = vrot.slane %v2620, 5
        %v2709 = vrot.slane %v2620, 6
        %v2710 = vrot.slane %v2620, 7
        %v2711 = vrot.slane %v2620, 1
        %v2712 = vrot.slane %v2620, 2
        %v2713 = vrot.slane %v2620, 3
        %v2714 = vrot.slane %v2620, 4
        %v2731 = vadd.f32 %v433, %v2701
        %v2732 = vadd.f32 %v436, %v2702
        %v2733 = vadd.f32 %v439, %v2703
        %v2734 = vadd.f32 %v442, %v2614
        %v2735 = vadd.f32 %v445, %v2704
        %v2736 = vadd.f32 %v448, %v2705
        %v2737 = vadd.f32 %v451, %v2706
        %v2738 = vadd.f32 %v454, %v2707
        %v2739 = vadd.f32 %v457, %v2708
        %v2740 = vadd.f32 %v460, %v2709
        %v2741 = vadd.f32 %v463, %v2710
        %v2742 = vadd.f32 %v466, %v2620
        %v2743 = vadd.f32 %v469, %v2711
        %v2744 = vadd.f32 %v472, %v2712
        %v2745 = vadd.f32 %v475, %v2713
        %v2746 = vadd.f32 %v478, %v2714
        %v2747 = vxor.u32 %v2731, 2147483648
        %v2748 = vxor.u32 %v2732, 2147483648
        %v2749 = vxor.u32 %v2733, 2147483648
        %v2750 = vxor.u32 %v2734, 2147483648
        %v2751 = vxor.u32 %v2735, 2147483648
        %v2752 = vxor.u32 %v2736, 2147483648
        %v2753 = vxor.u32 %v2737, 2147483648
        %v2754 = vxor.u32 %v2738, 2147483648
        %v2755 = vxor.u32 %v2739, 2147483648
        %v2756 = vxor.u32 %v2740, 2147483648
        %v2757 = vxor.u32 %v2741, 2147483648
        %v2758 = vxor.u32 %v2742, 2147483648
        %v2759 = vxor.u32 %v2743, 2147483648
        %v2760 = vxor.u32 %v2744, 2147483648
        %v2761 = vxor.u32 %v2745, 2147483648
        %v2762 = vxor.u32 %v2746, 2147483648
        %v2763 = vmul.f32 %v2747, 1.442695
        %v2764 = vpow.pop %v2763
        %v2765 = vmul.f32 %v2748, 1.442695
        %v2766 = vpow.pop %v2765
        %v2767 = vmul.f32 %v2749, 1.442695
        %v2768 = vpow.pop %v2767
        %v2769 = vmul.f32 %v2750, 1.442695
        %v2770 = vpow.pop %v2769
        %v2771 = vmul.f32 %v2751, 1.442695
        %v2772 = vpow.pop %v2771
        %v2773 = vmul.f32 %v2752, 1.442695
        %v2774 = vpow.pop %v2773
        %v2775 = vmul.f32 %v2753, 1.442695
        %v2776 = vpow.pop %v2775
        %v2777 = vmul.f32 %v2754, 1.442695
        %v2778 = vpow.pop %v2777
        %v2779 = vmul.f32 %v2755, 1.442695
        %v2780 = vpow.pop %v2779
        %v2781 = vmul.f32 %v2756, 1.442695
        %v2782 = vpow.pop %v2781
        %v2783 = vmul.f32 %v2757, 1.442695
        %v2784 = vpow.pop %v2783
        %v2785 = vmul.f32 %v2758, 1.442695
        %v2786 = vpow.pop %v2785
        %v2787 = vmul.f32 %v2759, 1.442695
        %v2788 = vpow.pop %v2787
        %v2789 = vmul.f32 %v2760, 1.442695
        %v2790 = vpow.pop %v2789
        %v2791 = vmul.f32 %v2761, 1.442695
        %v2792 = vpow.pop %v2791
        %v2793 = vmul.f32 %v2762, 1.442695
        %v2794 = vpow.pop %v2793
        %v2795 = vadd.f32 %v2764, 1.0
        %v2796 = vadd.f32 %v2766, 1.0
        %v2797 = vadd.f32 %v2768, 1.0
        %v2798 = vadd.f32 %v2770, 1.0
        %v2799 = vadd.f32 %v2772, 1.0
        %v2800 = vadd.f32 %v2774, 1.0
        %v2801 = vadd.f32 %v2776, 1.0
        %v2802 = vadd.f32 %v2778, 1.0
        %v2803 = vadd.f32 %v2780, 1.0
        %v2804 = vadd.f32 %v2782, 1.0
        %v2805 = vadd.f32 %v2784, 1.0
        %v2806 = vadd.f32 %v2786, 1.0
        %v2807 = vadd.f32 %v2788, 1.0
        %v2808 = vadd.f32 %v2790, 1.0
        %v2809 = vadd.f32 %v2792, 1.0
        %v2810 = vadd.f32 %v2794, 1.0
        %v2811 = vrcp.pop %v2795
        %v2812 = vmul.f32 1.0, %v2811
        %v2813 = vrcp.pop %v2796
        %v2814 = vmul.f32 1.0, %v2813
        %v2815 = vrcp.pop %v2797
        %v2816 = vmul.f32 1.0, %v2815
        %v2817 = vrcp.pop %v2798
        %v2818 = vmul.f32 1.0, %v2817
        %v2819 = vrcp.pop %v2799
        %v2820 = vmul.f32 1.0, %v2819
        %v2821 = vrcp.pop %v2800
        %v2822 = vmul.f32 1.0, %v2821
        %v2823 = vrcp.pop %v2801
        %v2824 = vmul.f32 1.0, %v2823
        %v2825 = vrcp.pop %v2802
        %v2826 = vmul.f32 1.0, %v2825
        %v2827 = vrcp.pop %v2803
        %v2828 = vmul.f32 1.0, %v2827
        %v2829 = vrcp.pop %v2804
        %v2830 = vmul.f32 1.0, %v2829
        %v2831 = vrcp.pop %v2805
        %v2832 = vmul.f32 1.0, %v2831
        %v2833 = vrcp.pop %v2806
        %v2834 = vmul.f32 1.0, %v2833
        %v2835 = vrcp.pop %v2807
        %v2836 = vmul.f32 1.0, %v2835
        %v2837 = vrcp.pop %v2808
        %v2838 = vmul.f32 1.0, %v2837
        %v2839 = vrcp.pop %v2809
        %v2840 = vmul.f32 1.0, %v2839
        %v2841 = vrcp.pop %v2810
        %v2842 = vmul.f32 1.0, %v2841
        %v2845 = vrot.slane %v2616, 5
        %v2846 = vrot.slane %v2616, 6
        %v2847 = vrot.slane %v2616, 7
        %v2848 = vrot.slane %v2616, 1
        %v2849 = vrot.slane %v2616, 2
        %v2850 = vrot.slane %v2616, 3
        %v2851 = vrot.slane %v2616, 4
        %v2852 = vrot.slane %v2622, 5
        %v2853 = vrot.slane %v2622, 6
        %v2854 = vrot.slane %v2622, 7
        %v2855 = vrot.slane %v2622, 1
        %v2856 = vrot.slane %v2622, 2
        %v2857 = vrot.slane %v2622, 3
        %v2858 = vrot.slane %v2622, 4
        %v2875 = vadd.f32 %v434, %v2845
        %v2876 = vadd.f32 %v437, %v2846
        %v2877 = vadd.f32 %v440, %v2847
        %v2878 = vadd.f32 %v443, %v2616
        %v2879 = vadd.f32 %v446, %v2848
        %v2880 = vadd.f32 %v449, %v2849
        %v2881 = vadd.f32 %v452, %v2850
        %v2882 = vadd.f32 %v455, %v2851
        %v2883 = vadd.f32 %v458, %v2852
        %v2884 = vadd.f32 %v461, %v2853
        %v2885 = vadd.f32 %v464, %v2854
        %v2886 = vadd.f32 %v467, %v2622
        %v2887 = vadd.f32 %v470, %v2855
        %v2888 = vadd.f32 %v473, %v2856
        %v2889 = vadd.f32 %v476, %v2857
        %v2890 = vadd.f32 %v479, %v2858
        %v2891 = vxor.u32 %v2875, 2147483648
        %v2892 = vxor.u32 %v2876, 2147483648
        %v2893 = vxor.u32 %v2877, 2147483648
        %v2894 = vxor.u32 %v2878, 2147483648
        %v2895 = vxor.u32 %v2879, 2147483648
        %v2896 = vxor.u32 %v2880, 2147483648
        %v2897 = vxor.u32 %v2881, 2147483648
        %v2898 = vxor.u32 %v2882, 2147483648
        %v2899 = vxor.u32 %v2883, 2147483648
        %v2900 = vxor.u32 %v2884, 2147483648
        %v2901 = vxor.u32 %v2885, 2147483648
        %v2902 = vxor.u32 %v2886, 2147483648
        %v2903 = vxor.u32 %v2887, 2147483648
        %v2904 = vxor.u32 %v2888, 2147483648
        %v2905 = vxor.u32 %v2889, 2147483648
        %v2906 = vxor.u32 %v2890, 2147483648
        %v2907 = vmul.f32 %v2891, 1.442695
        %v2908 = vpow.pop %v2907
        %v2909 = vmul.f32 %v2892, 1.442695
        %v2910 = vpow.pop %v2909
        %v2911 = vmul.f32 %v2893, 1.442695
        %v2912 = vpow.pop %v2911
        %v2913 = vmul.f32 %v2894, 1.442695
        %v2914 = vpow.pop %v2913
        %v2915 = vmul.f32 %v2895, 1.442695
        %v2916 = vpow.pop %v2915
        %v2917 = vmul.f32 %v2896, 1.442695
        %v2918 = vpow.pop %v2917
        %v2919 = vmul.f32 %v2897, 1.442695
        %v2920 = vpow.pop %v2919
        %v2921 = vmul.f32 %v2898, 1.442695
        %v2922 = vpow.pop %v2921
        %v2923 = vmul.f32 %v2899, 1.442695
        %v2924 = vpow.pop %v2923
        %v2925 = vmul.f32 %v2900, 1.442695
        %v2926 = vpow.pop %v2925
        %v2927 = vmul.f32 %v2901, 1.442695
        %v2928 = vpow.pop %v2927
        %v2929 = vmul.f32 %v2902, 1.442695
        %v2930 = vpow.pop %v2929
        %v2931 = vmul.f32 %v2903, 1.442695
        %v2932 = vpow.pop %v2931
        %v2933 = vmul.f32 %v2904, 1.442695
        %v2934 = vpow.pop %v2933
        %v2935 = vmul.f32 %v2905, 1.442695
        %v2936 = vpow.pop %v2935
        %v2937 = vmul.f32 %v2906, 1.442695
        %v2938 = vpow.pop %v2937
        %v2939 = vadd.f32 %v2908, 1.0
        %v2940 = vadd.f32 %v2910, 1.0
        %v2941 = vadd.f32 %v2912, 1.0
        %v2942 = vadd.f32 %v2914, 1.0
        %v2943 = vadd.f32 %v2916, 1.0
        %v2944 = vadd.f32 %v2918, 1.0
        %v2945 = vadd.f32 %v2920, 1.0
        %v2946 = vadd.f32 %v2922, 1.0
        %v2947 = vadd.f32 %v2924, 1.0
        %v2948 = vadd.f32 %v2926, 1.0
        %v2949 = vadd.f32 %v2928, 1.0
        %v2950 = vadd.f32 %v2930, 1.0
        %v2951 = vadd.f32 %v2932, 1.0
        %v2952 = vadd.f32 %v2934, 1.0
        %v2953 = vadd.f32 %v2936, 1.0
        %v2954 = vadd.f32 %v2938, 1.0
        %v2955 = vrcp.pop %v2939
        %v2956 = vmul.f32 1.0, %v2955
        %v2957 = vrcp.pop %v2940
        %v2958 = vmul.f32 1.0, %v2957
        %v2959 = vrcp.pop %v2941
        %v2960 = vmul.f32 1.0, %v2959
        %v2961 = vrcp.pop %v2942
        %v2962 = vmul.f32 1.0, %v2961
        %v2963 = vrcp.pop %v2943
        %v2964 = vmul.f32 1.0, %v2963
        %v2965 = vrcp.pop %v2944
        %v2966 = vmul.f32 1.0, %v2965
        %v2967 = vrcp.pop %v2945
        %v2968 = vmul.f32 1.0, %v2967
        %v2969 = vrcp.pop %v2946
        %v2970 = vmul.f32 1.0, %v2969
        %v2971 = vrcp.pop %v2947
        %v2972 = vmul.f32 1.0, %v2971
        %v2973 = vrcp.pop %v2948
        %v2974 = vmul.f32 1.0, %v2973
        %v2975 = vrcp.pop %v2949
        %v2976 = vmul.f32 1.0, %v2975
        %v2977 = vrcp.pop %v2950
        %v2978 = vmul.f32 1.0, %v2977
        %v2979 = vrcp.pop %v2951
        %v2980 = vmul.f32 1.0, %v2979
        %v2981 = vrcp.pop %v2952
        %v2982 = vmul.f32 1.0, %v2981
        %v2983 = vrcp.pop %v2953
        %v2984 = vmul.f32 1.0, %v2983
        %v2985 = vrcp.pop %v2954
        %v2986 = vmul.f32 1.0, %v2985
        %v2987 = vadd.f32 %v2691, %v927
        %v2988 = vadd.f32 %v2696, %v927
        %v2991 = vrot.slane %v2987, 5
        %v2992 = vrot.slane %v2987, 6
        %v2993 = vrot.slane %v2987, 7
        %v2994 = vrot.slane %v2987, 1
        %v2995 = vrot.slane %v2987, 2
        %v2996 = vrot.slane %v2987, 3
        %v2997 = vrot.slane %v2987, 4
        %v2998 = vrot.slane %v2988, 5
        %v2999 = vrot.slane %v2988, 6
        %v3000 = vrot.slane %v2988, 7
        %v3001 = vrot.slane %v2988, 1
        %v3002 = vrot.slane %v2988, 2
        %v3003 = vrot.slane %v2988, 3
        %v3004 = vrot.slane %v2988, 4
        %v3021 = vmul.f32 %v2812, %v2991
        %v3022 = vmul.f32 %v2814, %v2992
        %v3023 = vmul.f32 %v2816, %v2993
        %v3024 = vmul.f32 %v2818, %v2987
        %v3025 = vmul.f32 %v2820, %v2994
        %v3026 = vmul.f32 %v2822, %v2995
        %v3027 = vmul.f32 %v2824, %v2996
        %v3028 = vmul.f32 %v2826, %v2997
        %v3029 = vmul.f32 %v2828, %v2998
        %v3030 = vmul.f32 %v2830, %v2999
        %v3031 = vmul.f32 %v2832, %v3000
        %v3032 = vmul.f32 %v2834, %v2988
        %v3033 = vmul.f32 %v2836, %v3001
        %v3034 = vmul.f32 %v2838, %v3002
        %v3035 = vmul.f32 %v2840, %v3003
        %v3036 = vmul.f32 %v2842, %v3004
        %v3037 = vadd.f32 %v435, %v3021
        %v3038 = vadd.f32 %v438, %v3022
        %v3039 = vadd.f32 %v441, %v3023
        %v3040 = vadd.f32 %v444, %v3024
        %v3041 = vadd.f32 %v447, %v3025
        %v3042 = vadd.f32 %v450, %v3026
        %v3043 = vadd.f32 %v453, %v3027
        %v3044 = vadd.f32 %v456, %v3028
        %v3045 = vadd.f32 %v459, %v3029
        %v3046 = vadd.f32 %v462, %v3030
        %v3047 = vadd.f32 %v465, %v3031
        %v3048 = vadd.f32 %v468, %v3032
        %v3049 = vadd.f32 %v471, %v3033
        %v3050 = vadd.f32 %v474, %v3034
        %v3051 = vadd.f32 %v477, %v3035
        %v3052 = vadd.f32 %v480, %v3036
        %v3053 = vtanh.pop %v3037
        %v3054 = vtanh.pop %v3038
        %v3055 = vtanh.pop %v3039
        %v3056 = vtanh.pop %v3040
        %v3057 = vtanh.pop %v3041
        %v3058 = vtanh.pop %v3042
        %v3059 = vtanh.pop %v3043
        %v3060 = vtanh.pop %v3044
        %v3061 = vtanh.pop %v3045
        %v3062 = vtanh.pop %v3046
        %v3063 = vtanh.pop %v3047
        %v3064 = vtanh.pop %v3048
        %v3065 = vtanh.pop %v3049
        %v3066 = vtanh.pop %v3050
        %v3067 = vtanh.pop %v3051
        %v3068 = vtanh.pop %v3052
        %v3069 = vsub.f32 1.0, %v2956
        %v3070 = vsub.f32 1.0, %v2958
        %v3071 = vsub.f32 1.0, %v2960
        %v3072 = vsub.f32 1.0, %v2962
        %v3073 = vsub.f32 1.0, %v2964
        %v3074 = vsub.f32 1.0, %v2966
        %v3075 = vsub.f32 1.0, %v2968
        %v3076 = vsub.f32 1.0, %v2970
        %v3077 = vsub.f32 1.0, %v2972
        %v3078 = vsub.f32 1.0, %v2974
        %v3079 = vsub.f32 1.0, %v2976
        %v3080 = vsub.f32 1.0, %v2978
        %v3081 = vsub.f32 1.0, %v2980
        %v3082 = vsub.f32 1.0, %v2982
        %v3083 = vsub.f32 1.0, %v2984
        %v3084 = vsub.f32 1.0, %v2986
        %v3085 = vmul.f32 %v3069, %v3053
        %v3086 = vmul.f32 %v3070, %v3054
        %v3087 = vmul.f32 %v3071, %v3055
        %v3088 = vmul.f32 %v3072, %v3056
        %v3089 = vmul.f32 %v3073, %v3057
        %v3090 = vmul.f32 %v3074, %v3058
        %v3091 = vmul.f32 %v3075, %v3059
        %v3092 = vmul.f32 %v3076, %v3060
        %v3093 = vmul.f32 %v3077, %v3061
        %v3094 = vmul.f32 %v3078, %v3062
        %v3095 = vmul.f32 %v3079, %v3063
        %v3096 = vmul.f32 %v3080, %v3064
        %v3097 = vmul.f32 %v3081, %v3065
        %v3098 = vmul.f32 %v3082, %v3066
        %v3099 = vmul.f32 %v3083, %v3067
        %v3100 = vmul.f32 %v3084, %v3068
        %v3101 = vrot.slane %v2485, 7
        %v3102 = vrot.slane %v2486, 7
        %v3103 = vrot.slane %v2487, 7
        %v3104 = vrot.slane %v2489, 7
        %v3105 = vrot.slane %v2490, 7
        %v3106 = vrot.slane %v2491, 7
        %v3107 = vrot.slane %v2492, 7
        %v3108 = vrot.slane %v2493, 7
        %v3109 = vrot.slane %v2494, 7
        %v3110 = vrot.slane %v2495, 7
        %v3111 = vrot.slane %v2497, 7
        %v3112 = vrot.slane %v2498, 7
        %v3113 = vrot.slane %v2499, 7
        %v3114 = vrot.slane %v2500, 7
        %v3131 = vmul.f32 %v2956, %v3101
        %v3132 = vmul.f32 %v2958, %v3102
        %v3133 = vmul.f32 %v2960, %v3103
        %v3134 = vmul.f32 %v2962, %v2521
        %v3135 = vmul.f32 %v2964, %v3104
        %v3136 = vmul.f32 %v2966, %v3105
        %v3137 = vmul.f32 %v2968, %v3106
        %v3138 = vmul.f32 %v2970, %v3107
        %v3139 = vmul.f32 %v2972, %v3108
        %v3140 = vmul.f32 %v2974, %v3109
        %v3141 = vmul.f32 %v2976, %v3110
        %v3142 = vmul.f32 %v2978, %v2535
        %v3143 = vmul.f32 %v2980, %v3111
        %v3144 = vmul.f32 %v2982, %v3112
        %v3145 = vmul.f32 %v2984, %v3113
        %v3146 = vmul.f32 %v2986, %v3114
        %v3147 = vadd.f32 %v3085, %v3131
        %v3148 = vadd.f32 %v3086, %v3132
        %v3149 = vadd.f32 %v3087, %v3133
        %v3150 = vadd.f32 %v3088, %v3134
        %v3151 = vadd.f32 %v3089, %v3135
        %v3152 = vadd.f32 %v3090, %v3136
        %v3153 = vadd.f32 %v3091, %v3137
        %v3154 = vadd.f32 %v3092, %v3138
        %v3155 = vadd.f32 %v3093, %v3139
        %v3156 = vadd.f32 %v3094, %v3140
        %v3157 = vadd.f32 %v3095, %v3141
        %v3158 = vadd.f32 %v3096, %v3142
        %v3159 = vadd.f32 %v3097, %v3143
        %v3160 = vadd.f32 %v3098, %v3144
        %v3161 = vadd.f32 %v3099, %v3145
        %v3162 = vadd.f32 %v3100, %v3146
        %s3163 = sadd.s32 %s1107, 3
        %p3164 = scmp.lt.s32.totalorder %s3163, 12
        %s3165 = scalar_select %p3164, 1, 0
        %v3166 = vstv %s3165
        %vm3167 = vcmp.eq.s32.totalorder %v3166, 1
        %v3168 = vsel %vm3167, %v3147, %v3101
        %v3169 = vsel %vm3167, %v3148, %v3102
        %v3170 = vsel %vm3167, %v3149, %v3103
        %v3171 = vsel %vm3167, %v3150, %v2521
        %v3172 = vsel %vm3167, %v3151, %v3104
        %v3173 = vsel %vm3167, %v3152, %v3105
        %v3174 = vsel %vm3167, %v3153, %v3106
        %v3175 = vsel %vm3167, %v3154, %v3107
        %v3176 = vsel %vm3167, %v3155, %v3108
        %v3177 = vsel %vm3167, %v3156, %v3109
        %v3178 = vsel %vm3167, %v3157, %v3110
        %v3179 = vsel %vm3167, %v3158, %v2535
        %v3180 = vsel %vm3167, %v3159, %v3111
        %v3181 = vsel %vm3167, %v3160, %v3112
        %v3182 = vsel %vm3167, %v3161, %v3113
        %v3183 = vsel %vm3167, %v3162, %v3114
        %v3200 = vrot.slane %v3168, 3
        %v3201 = vrot.slane %v3169, 2
        %v3202 = vsel %vm1145, %v3201, %v3200
        %v3203 = vrot.slane %v3170, 1
        %v3204 = vsel %vm1148, %v3203, %v3202
        %v3205 = vsel %vm1151, %v3171, %v3204
        %v3206 = vrot.slane %v3172, 7
        %v3207 = vsel %vm1154, %v3206, %v3205
        %v3208 = vrot.slane %v3173, 6
        %v3209 = vsel %vm1157, %v3208, %v3207
        %v3210 = vrot.slane %v3174, 5
        %v3211 = vsel %vm1160, %v3210, %v3209
        %v3212 = vrot.slane %v3175, 4
        %v3213 = vsel %vm1163, %v3212, %v3211
        %v3214 = vrot.slane %v3176, 3
        %v3215 = vrot.slane %v3177, 2
        %v3216 = vsel %vm1145, %v3215, %v3214
        %v3217 = vrot.slane %v3178, 1
        %v3218 = vsel %vm1148, %v3217, %v3216
        %v3219 = vsel %vm1151, %v3179, %v3218
        %v3220 = vrot.slane %v3180, 7
        %v3221 = vsel %vm1154, %v3220, %v3219
        %v3222 = vrot.slane %v3181, 6
        %v3223 = vsel %vm1157, %v3222, %v3221
        %v3224 = vrot.slane %v3182, 5
        %v3225 = vsel %vm1160, %v3224, %v3223
        %v3226 = vrot.slane %v3183, 4
        %v3227 = vsel %vm1163, %v3226, %v3225
        %3230 = vmatprep.subr.mxu0 %v385
        %3231 = vmatpush1.msra.mxu0 %v384
        %3232 = vmatprep.subr.mxu0 %v388
        %3233 = vmatpush1.msra.mxu0 %v387
        %3234 = vmatprep.subr.mxu0 %v391
        %3235 = vmatpush1.msra.mxu0 %v390
        %3236 = vmatprep.subr.mxu0 %v394
        %3237 = vmatpush1.msra.mxu0 %v393
        %3238 = vmatprep.subr.mxu0 %v397
        %3239 = vmatpush1.msra.mxu0 %v396
        %3240 = vmatprep.subr.mxu0 %v400
        %3241 = vmatpush1.msra.mxu0 %v399
        %3242 = vmatprep.subr.mxu0 %v403
        %3243 = vmatpush1.msra.mxu0 %v402
        %3244 = vmatprep.subr.mxu0 %v406
        %3245 = vmatpush1.msra.mxu0 %v405
        %3246 = vmatprep.subr.mxu0 %v409
        %3247 = vmatpush1.msra.mxu0 %v408
        %3248 = vmatprep.subr.mxu0 %v412
        %3249 = vmatpush1.msra.mxu0 %v411
        %3250 = vmatprep.subr.mxu0 %v415
        %3251 = vmatpush1.msra.mxu0 %v414
        %3252 = vmatprep.subr.mxu0 %v418
        %3253 = vmatpush1.msra.mxu0 %v417
        %3254 = vmatprep.subr.mxu0 %v421
        %3255 = vmatpush1.msra.mxu0 %v420
        %3256 = vmatprep.subr.mxu0 %v424
        %3257 = vmatpush1.msra.mxu0 %v423
        %3258 = vmatprep.subr.mxu0 %v427
        %3259 = vmatpush1.msra.mxu0 %v426
        %3260 = vmatprep.subr.mxu0 %v430
        %3261 = vmatpush1.msra.mxu0 %v429
        %3262 = vmatprep.subr.mxu0 0.0
        %3263 = vmatpush1.msra.mxu0 0.0
        %3264 = vmatprep.subr.mxu0 0.0
        %3265 = vmatpush1.msra.mxu0 0.0
        %3266 = vmatprep.subr.mxu0 0.0
        %3267 = vmatpush1.msra.mxu0 0.0
        %3268 = vmatprep.subr.mxu0 0.0
        %3269 = vmatpush1.msra.mxu0 0.0
        %3270 = vmatprep.subr.mxu0 0.0
        %3271 = vmatpush1.msra.mxu0 0.0
        %3272 = vmatprep.subr.mxu0 0.0
        %3273 = vmatpush1.msra.mxu0 0.0
        %3274 = vmatprep.subr.mxu0 0.0
        %3275 = vmatpush1.msra.mxu0 0.0
        %3276 = vmatprep.subr.mxu0 0.0
        %3277 = vmatpush1.msra.mxu0 0.0
        %3278 = vmatprep.subr.mxu0 0.0
        %3279 = vmatpush1.msra.mxu0 0.0
        %3280 = vmatprep.subr.mxu0 0.0
        %3281 = vmatpush1.msra.mxu0 0.0
        %3282 = vmatprep.subr.mxu0 0.0
        %3283 = vmatpush1.msra.mxu0 0.0
        %3284 = vmatprep.subr.mxu0 0.0
        %3285 = vmatpush1.msra.mxu0 0.0
        %3286 = vmatprep.subr.mxu0 0.0
        %3287 = vmatpush1.msra.mxu0 0.0
        %3288 = vmatprep.subr.mxu0 0.0
        %3289 = vmatpush1.msra.mxu0 0.0
        %3290 = vmatprep.subr.mxu0 0.0
        %3291 = vmatpush1.msra.mxu0 0.0
        %3292 = vmatprep.subr.mxu0 0.0
        %3293 = vmatpush1.msra.mxu0 0.0
        %3294 = vmatprep.mubr.f32.mxu0 0.0
        %3295 = vmatmul.mubr.f32.gmra.mrb[0].mxu0 %v3213
        %v3296 = vpop.f32.mrb[0].mxu0
        %v3297 = vadd.f32 0.0, %v3296
        %v3298 = vpop.f32.mrb[0].mxu0
        %v3299 = vadd.f32 0.0, %v3298
        %3300 = vmatprep.mubr.f32.mxu0 0.0
        %3301 = vmatmul.mubr.f32.gmra.mrb[0].mxu0 %v3227
        %v3302 = vpop.f32.mrb[0].mxu0
        %v3303 = vadd.f32 0.0, %v3302
        %v3304 = vpop.f32.mrb[0].mxu0
        %v3305 = vadd.f32 0.0, %v3304
        %3306 = vdwg.mxu0
        %3307 = vmatprep.subr.mxu0 0.0
        %3308 = vmatpush1.msra.mxu0 %v386
        %3309 = vmatprep.subr.mxu0 0.0
        %3310 = vmatpush1.msra.mxu0 %v389
        %3311 = vmatprep.subr.mxu0 0.0
        %3312 = vmatpush1.msra.mxu0 %v392
        %3313 = vmatprep.subr.mxu0 0.0
        %3314 = vmatpush1.msra.mxu0 %v395
        %3315 = vmatprep.subr.mxu0 0.0
        %3316 = vmatpush1.msra.mxu0 %v398
        %3317 = vmatprep.subr.mxu0 0.0
        %3318 = vmatpush1.msra.mxu0 %v401
        %3319 = vmatprep.subr.mxu0 0.0
        %3320 = vmatpush1.msra.mxu0 %v404
        %3321 = vmatprep.subr.mxu0 0.0
        %3322 = vmatpush1.msra.mxu0 %v407
        %3323 = vmatprep.subr.mxu0 0.0
        %3324 = vmatpush1.msra.mxu0 %v410
        %3325 = vmatprep.subr.mxu0 0.0
        %3326 = vmatpush1.msra.mxu0 %v413
        %3327 = vmatprep.subr.mxu0 0.0
        %3328 = vmatpush1.msra.mxu0 %v416
        %3329 = vmatprep.subr.mxu0 0.0
        %3330 = vmatpush1.msra.mxu0 %v419
        %3331 = vmatprep.subr.mxu0 0.0
        %3332 = vmatpush1.msra.mxu0 %v422
        %3333 = vmatprep.subr.mxu0 0.0
        %3334 = vmatpush1.msra.mxu0 %v425
        %3335 = vmatprep.subr.mxu0 0.0
        %3336 = vmatpush1.msra.mxu0 %v428
        %3337 = vmatprep.subr.mxu0 0.0
        %3338 = vmatpush1.msra.mxu0 %v431
        %3339 = vmatprep.subr.mxu0 0.0
        %3340 = vmatpush1.msra.mxu0 0.0
        %3341 = vmatprep.subr.mxu0 0.0
        %3342 = vmatpush1.msra.mxu0 0.0
        %3343 = vmatprep.subr.mxu0 0.0
        %3344 = vmatpush1.msra.mxu0 0.0
        %3345 = vmatprep.subr.mxu0 0.0
        %3346 = vmatpush1.msra.mxu0 0.0
        %3347 = vmatprep.subr.mxu0 0.0
        %3348 = vmatpush1.msra.mxu0 0.0
        %3349 = vmatprep.subr.mxu0 0.0
        %3350 = vmatpush1.msra.mxu0 0.0
        %3351 = vmatprep.subr.mxu0 0.0
        %3352 = vmatpush1.msra.mxu0 0.0
        %3353 = vmatprep.subr.mxu0 0.0
        %3354 = vmatpush1.msra.mxu0 0.0
        %3355 = vmatprep.subr.mxu0 0.0
        %3356 = vmatpush1.msra.mxu0 0.0
        %3357 = vmatprep.subr.mxu0 0.0
        %3358 = vmatpush1.msra.mxu0 0.0
        %3359 = vmatprep.subr.mxu0 0.0
        %3360 = vmatpush1.msra.mxu0 0.0
        %3361 = vmatprep.subr.mxu0 0.0
        %3362 = vmatpush1.msra.mxu0 0.0
        %3363 = vmatprep.subr.mxu0 0.0
        %3364 = vmatpush1.msra.mxu0 0.0
        %3365 = vmatprep.subr.mxu0 0.0
        %3366 = vmatpush1.msra.mxu0 0.0
        %3367 = vmatprep.subr.mxu0 0.0
        %3368 = vmatpush1.msra.mxu0 0.0
        %3369 = vmatprep.subr.mxu0 0.0
        %3370 = vmatpush1.msra.mxu0 0.0
        %3371 = vmatprep.mubr.f32.mxu0 0.0
        %3372 = vmatmul.mubr.f32.gmra.mrb[0].mxu0 %v3213
        %v3373 = vpop.f32.mrb[0].mxu0
        %v3374 = vadd.f32 0.0, %v3373
        %v3375 = vpop.f32.mrb[0].mxu0
        %3376 = vmatprep.mubr.f32.mxu0 0.0
        %3377 = vmatmul.mubr.f32.gmra.mrb[0].mxu0 %v3227
        %v3378 = vpop.f32.mrb[0].mxu0
        %v3379 = vadd.f32 0.0, %v3378
        %v3380 = vpop.f32.mrb[0].mxu0
        %3381 = vdwg.mxu0
        %v3384 = vrot.slane %v3297, 4
        %v3385 = vrot.slane %v3297, 5
        %v3386 = vrot.slane %v3297, 6
        %v3387 = vrot.slane %v3297, 7
        %v3388 = vrot.slane %v3297, 1
        %v3389 = vrot.slane %v3297, 2
        %v3390 = vrot.slane %v3297, 3
        %v3391 = vrot.slane %v3303, 4
        %v3392 = vrot.slane %v3303, 5
        %v3393 = vrot.slane %v3303, 6
        %v3394 = vrot.slane %v3303, 7
        %v3395 = vrot.slane %v3303, 1
        %v3396 = vrot.slane %v3303, 2
        %v3397 = vrot.slane %v3303, 3
        %v3414 = vadd.f32 %v433, %v3384
        %v3415 = vadd.f32 %v436, %v3385
        %v3416 = vadd.f32 %v439, %v3386
        %v3417 = vadd.f32 %v442, %v3387
        %v3418 = vadd.f32 %v445, %v3297
        %v3419 = vadd.f32 %v448, %v3388
        %v3420 = vadd.f32 %v451, %v3389
        %v3421 = vadd.f32 %v454, %v3390
        %v3422 = vadd.f32 %v457, %v3391
        %v3423 = vadd.f32 %v460, %v3392
        %v3424 = vadd.f32 %v463, %v3393
        %v3425 = vadd.f32 %v466, %v3394
        %v3426 = vadd.f32 %v469, %v3303
        %v3427 = vadd.f32 %v472, %v3395
        %v3428 = vadd.f32 %v475, %v3396
        %v3429 = vadd.f32 %v478, %v3397
        %v3430 = vxor.u32 %v3414, 2147483648
        %v3431 = vxor.u32 %v3415, 2147483648
        %v3432 = vxor.u32 %v3416, 2147483648
        %v3433 = vxor.u32 %v3417, 2147483648
        %v3434 = vxor.u32 %v3418, 2147483648
        %v3435 = vxor.u32 %v3419, 2147483648
        %v3436 = vxor.u32 %v3420, 2147483648
        %v3437 = vxor.u32 %v3421, 2147483648
        %v3438 = vxor.u32 %v3422, 2147483648
        %v3439 = vxor.u32 %v3423, 2147483648
        %v3440 = vxor.u32 %v3424, 2147483648
        %v3441 = vxor.u32 %v3425, 2147483648
        %v3442 = vxor.u32 %v3426, 2147483648
        %v3443 = vxor.u32 %v3427, 2147483648
        %v3444 = vxor.u32 %v3428, 2147483648
        %v3445 = vxor.u32 %v3429, 2147483648
        %v3446 = vmul.f32 %v3430, 1.442695
        %v3447 = vpow.pop %v3446
        %v3448 = vmul.f32 %v3431, 1.442695
        %v3449 = vpow.pop %v3448
        %v3450 = vmul.f32 %v3432, 1.442695
        %v3451 = vpow.pop %v3450
        %v3452 = vmul.f32 %v3433, 1.442695
        %v3453 = vpow.pop %v3452
        %v3454 = vmul.f32 %v3434, 1.442695
        %v3455 = vpow.pop %v3454
        %v3456 = vmul.f32 %v3435, 1.442695
        %v3457 = vpow.pop %v3456
        %v3458 = vmul.f32 %v3436, 1.442695
        %v3459 = vpow.pop %v3458
        %v3460 = vmul.f32 %v3437, 1.442695
        %v3461 = vpow.pop %v3460
        %v3462 = vmul.f32 %v3438, 1.442695
        %v3463 = vpow.pop %v3462
        %v3464 = vmul.f32 %v3439, 1.442695
        %v3465 = vpow.pop %v3464
        %v3466 = vmul.f32 %v3440, 1.442695
        %v3467 = vpow.pop %v3466
        %v3468 = vmul.f32 %v3441, 1.442695
        %v3469 = vpow.pop %v3468
        %v3470 = vmul.f32 %v3442, 1.442695
        %v3471 = vpow.pop %v3470
        %v3472 = vmul.f32 %v3443, 1.442695
        %v3473 = vpow.pop %v3472
        %v3474 = vmul.f32 %v3444, 1.442695
        %v3475 = vpow.pop %v3474
        %v3476 = vmul.f32 %v3445, 1.442695
        %v3477 = vpow.pop %v3476
        %v3478 = vadd.f32 %v3447, 1.0
        %v3479 = vadd.f32 %v3449, 1.0
        %v3480 = vadd.f32 %v3451, 1.0
        %v3481 = vadd.f32 %v3453, 1.0
        %v3482 = vadd.f32 %v3455, 1.0
        %v3483 = vadd.f32 %v3457, 1.0
        %v3484 = vadd.f32 %v3459, 1.0
        %v3485 = vadd.f32 %v3461, 1.0
        %v3486 = vadd.f32 %v3463, 1.0
        %v3487 = vadd.f32 %v3465, 1.0
        %v3488 = vadd.f32 %v3467, 1.0
        %v3489 = vadd.f32 %v3469, 1.0
        %v3490 = vadd.f32 %v3471, 1.0
        %v3491 = vadd.f32 %v3473, 1.0
        %v3492 = vadd.f32 %v3475, 1.0
        %v3493 = vadd.f32 %v3477, 1.0
        %v3494 = vrcp.pop %v3478
        %v3495 = vmul.f32 1.0, %v3494
        %v3496 = vrcp.pop %v3479
        %v3497 = vmul.f32 1.0, %v3496
        %v3498 = vrcp.pop %v3480
        %v3499 = vmul.f32 1.0, %v3498
        %v3500 = vrcp.pop %v3481
        %v3501 = vmul.f32 1.0, %v3500
        %v3502 = vrcp.pop %v3482
        %v3503 = vmul.f32 1.0, %v3502
        %v3504 = vrcp.pop %v3483
        %v3505 = vmul.f32 1.0, %v3504
        %v3506 = vrcp.pop %v3484
        %v3507 = vmul.f32 1.0, %v3506
        %v3508 = vrcp.pop %v3485
        %v3509 = vmul.f32 1.0, %v3508
        %v3510 = vrcp.pop %v3486
        %v3511 = vmul.f32 1.0, %v3510
        %v3512 = vrcp.pop %v3487
        %v3513 = vmul.f32 1.0, %v3512
        %v3514 = vrcp.pop %v3488
        %v3515 = vmul.f32 1.0, %v3514
        %v3516 = vrcp.pop %v3489
        %v3517 = vmul.f32 1.0, %v3516
        %v3518 = vrcp.pop %v3490
        %v3519 = vmul.f32 1.0, %v3518
        %v3520 = vrcp.pop %v3491
        %v3521 = vmul.f32 1.0, %v3520
        %v3522 = vrcp.pop %v3492
        %v3523 = vmul.f32 1.0, %v3522
        %v3524 = vrcp.pop %v3493
        %v3525 = vmul.f32 1.0, %v3524
        %v3528 = vrot.slane %v3299, 4
        %v3529 = vrot.slane %v3299, 5
        %v3530 = vrot.slane %v3299, 6
        %v3531 = vrot.slane %v3299, 7
        %v3532 = vrot.slane %v3299, 1
        %v3533 = vrot.slane %v3299, 2
        %v3534 = vrot.slane %v3299, 3
        %v3535 = vrot.slane %v3305, 4
        %v3536 = vrot.slane %v3305, 5
        %v3537 = vrot.slane %v3305, 6
        %v3538 = vrot.slane %v3305, 7
        %v3539 = vrot.slane %v3305, 1
        %v3540 = vrot.slane %v3305, 2
        %v3541 = vrot.slane %v3305, 3
        %v3558 = vadd.f32 %v434, %v3528
        %v3559 = vadd.f32 %v437, %v3529
        %v3560 = vadd.f32 %v440, %v3530
        %v3561 = vadd.f32 %v443, %v3531
        %v3562 = vadd.f32 %v446, %v3299
        %v3563 = vadd.f32 %v449, %v3532
        %v3564 = vadd.f32 %v452, %v3533
        %v3565 = vadd.f32 %v455, %v3534
        %v3566 = vadd.f32 %v458, %v3535
        %v3567 = vadd.f32 %v461, %v3536
        %v3568 = vadd.f32 %v464, %v3537
        %v3569 = vadd.f32 %v467, %v3538
        %v3570 = vadd.f32 %v470, %v3305
        %v3571 = vadd.f32 %v473, %v3539
        %v3572 = vadd.f32 %v476, %v3540
        %v3573 = vadd.f32 %v479, %v3541
        %v3574 = vxor.u32 %v3558, 2147483648
        %v3575 = vxor.u32 %v3559, 2147483648
        %v3576 = vxor.u32 %v3560, 2147483648
        %v3577 = vxor.u32 %v3561, 2147483648
        %v3578 = vxor.u32 %v3562, 2147483648
        %v3579 = vxor.u32 %v3563, 2147483648
        %v3580 = vxor.u32 %v3564, 2147483648
        %v3581 = vxor.u32 %v3565, 2147483648
        %v3582 = vxor.u32 %v3566, 2147483648
        %v3583 = vxor.u32 %v3567, 2147483648
        %v3584 = vxor.u32 %v3568, 2147483648
        %v3585 = vxor.u32 %v3569, 2147483648
        %v3586 = vxor.u32 %v3570, 2147483648
        %v3587 = vxor.u32 %v3571, 2147483648
        %v3588 = vxor.u32 %v3572, 2147483648
        %v3589 = vxor.u32 %v3573, 2147483648
        %v3590 = vmul.f32 %v3574, 1.442695
        %v3591 = vpow.pop %v3590
        %v3592 = vmul.f32 %v3575, 1.442695
        %v3593 = vpow.pop %v3592
        %v3594 = vmul.f32 %v3576, 1.442695
        %v3595 = vpow.pop %v3594
        %v3596 = vmul.f32 %v3577, 1.442695
        %v3597 = vpow.pop %v3596
        %v3598 = vmul.f32 %v3578, 1.442695
        %v3599 = vpow.pop %v3598
        %v3600 = vmul.f32 %v3579, 1.442695
        %v3601 = vpow.pop %v3600
        %v3602 = vmul.f32 %v3580, 1.442695
        %v3603 = vpow.pop %v3602
        %v3604 = vmul.f32 %v3581, 1.442695
        %v3605 = vpow.pop %v3604
        %v3606 = vmul.f32 %v3582, 1.442695
        %v3607 = vpow.pop %v3606
        %v3608 = vmul.f32 %v3583, 1.442695
        %v3609 = vpow.pop %v3608
        %v3610 = vmul.f32 %v3584, 1.442695
        %v3611 = vpow.pop %v3610
        %v3612 = vmul.f32 %v3585, 1.442695
        %v3613 = vpow.pop %v3612
        %v3614 = vmul.f32 %v3586, 1.442695
        %v3615 = vpow.pop %v3614
        %v3616 = vmul.f32 %v3587, 1.442695
        %v3617 = vpow.pop %v3616
        %v3618 = vmul.f32 %v3588, 1.442695
        %v3619 = vpow.pop %v3618
        %v3620 = vmul.f32 %v3589, 1.442695
        %v3621 = vpow.pop %v3620
        %v3622 = vadd.f32 %v3591, 1.0
        %v3623 = vadd.f32 %v3593, 1.0
        %v3624 = vadd.f32 %v3595, 1.0
        %v3625 = vadd.f32 %v3597, 1.0
        %v3626 = vadd.f32 %v3599, 1.0
        %v3627 = vadd.f32 %v3601, 1.0
        %v3628 = vadd.f32 %v3603, 1.0
        %v3629 = vadd.f32 %v3605, 1.0
        %v3630 = vadd.f32 %v3607, 1.0
        %v3631 = vadd.f32 %v3609, 1.0
        %v3632 = vadd.f32 %v3611, 1.0
        %v3633 = vadd.f32 %v3613, 1.0
        %v3634 = vadd.f32 %v3615, 1.0
        %v3635 = vadd.f32 %v3617, 1.0
        %v3636 = vadd.f32 %v3619, 1.0
        %v3637 = vadd.f32 %v3621, 1.0
        %v3638 = vrcp.pop %v3622
        %v3639 = vmul.f32 1.0, %v3638
        %v3640 = vrcp.pop %v3623
        %v3641 = vmul.f32 1.0, %v3640
        %v3642 = vrcp.pop %v3624
        %v3643 = vmul.f32 1.0, %v3642
        %v3644 = vrcp.pop %v3625
        %v3645 = vmul.f32 1.0, %v3644
        %v3646 = vrcp.pop %v3626
        %v3647 = vmul.f32 1.0, %v3646
        %v3648 = vrcp.pop %v3627
        %v3649 = vmul.f32 1.0, %v3648
        %v3650 = vrcp.pop %v3628
        %v3651 = vmul.f32 1.0, %v3650
        %v3652 = vrcp.pop %v3629
        %v3653 = vmul.f32 1.0, %v3652
        %v3654 = vrcp.pop %v3630
        %v3655 = vmul.f32 1.0, %v3654
        %v3656 = vrcp.pop %v3631
        %v3657 = vmul.f32 1.0, %v3656
        %v3658 = vrcp.pop %v3632
        %v3659 = vmul.f32 1.0, %v3658
        %v3660 = vrcp.pop %v3633
        %v3661 = vmul.f32 1.0, %v3660
        %v3662 = vrcp.pop %v3634
        %v3663 = vmul.f32 1.0, %v3662
        %v3664 = vrcp.pop %v3635
        %v3665 = vmul.f32 1.0, %v3664
        %v3666 = vrcp.pop %v3636
        %v3667 = vmul.f32 1.0, %v3666
        %v3668 = vrcp.pop %v3637
        %v3669 = vmul.f32 1.0, %v3668
        %v3670 = vadd.f32 %v3374, %v927
        %v3671 = vadd.f32 %v3379, %v927
        %v3674 = vrot.slane %v3670, 4
        %v3675 = vrot.slane %v3670, 5
        %v3676 = vrot.slane %v3670, 6
        %v3677 = vrot.slane %v3670, 7
        %v3678 = vrot.slane %v3670, 1
        %v3679 = vrot.slane %v3670, 2
        %v3680 = vrot.slane %v3670, 3
        %v3681 = vrot.slane %v3671, 4
        %v3682 = vrot.slane %v3671, 5
        %v3683 = vrot.slane %v3671, 6
        %v3684 = vrot.slane %v3671, 7
        %v3685 = vrot.slane %v3671, 1
        %v3686 = vrot.slane %v3671, 2
        %v3687 = vrot.slane %v3671, 3
        %v3704 = vmul.f32 %v3495, %v3674
        %v3705 = vmul.f32 %v3497, %v3675
        %v3706 = vmul.f32 %v3499, %v3676
        %v3707 = vmul.f32 %v3501, %v3677
        %v3708 = vmul.f32 %v3503, %v3670
        %v3709 = vmul.f32 %v3505, %v3678
        %v3710 = vmul.f32 %v3507, %v3679
        %v3711 = vmul.f32 %v3509, %v3680
        %v3712 = vmul.f32 %v3511, %v3681
        %v3713 = vmul.f32 %v3513, %v3682
        %v3714 = vmul.f32 %v3515, %v3683
        %v3715 = vmul.f32 %v3517, %v3684
        %v3716 = vmul.f32 %v3519, %v3671
        %v3717 = vmul.f32 %v3521, %v3685
        %v3718 = vmul.f32 %v3523, %v3686
        %v3719 = vmul.f32 %v3525, %v3687
        %v3720 = vadd.f32 %v435, %v3704
        %v3721 = vadd.f32 %v438, %v3705
        %v3722 = vadd.f32 %v441, %v3706
        %v3723 = vadd.f32 %v444, %v3707
        %v3724 = vadd.f32 %v447, %v3708
        %v3725 = vadd.f32 %v450, %v3709
        %v3726 = vadd.f32 %v453, %v3710
        %v3727 = vadd.f32 %v456, %v3711
        %v3728 = vadd.f32 %v459, %v3712
        %v3729 = vadd.f32 %v462, %v3713
        %v3730 = vadd.f32 %v465, %v3714
        %v3731 = vadd.f32 %v468, %v3715
        %v3732 = vadd.f32 %v471, %v3716
        %v3733 = vadd.f32 %v474, %v3717
        %v3734 = vadd.f32 %v477, %v3718
        %v3735 = vadd.f32 %v480, %v3719
        %v3736 = vtanh.pop %v3720
        %v3737 = vtanh.pop %v3721
        %v3738 = vtanh.pop %v3722
        %v3739 = vtanh.pop %v3723
        %v3740 = vtanh.pop %v3724
        %v3741 = vtanh.pop %v3725
        %v3742 = vtanh.pop %v3726
        %v3743 = vtanh.pop %v3727
        %v3744 = vtanh.pop %v3728
        %v3745 = vtanh.pop %v3729
        %v3746 = vtanh.pop %v3730
        %v3747 = vtanh.pop %v3731
        %v3748 = vtanh.pop %v3732
        %v3749 = vtanh.pop %v3733
        %v3750 = vtanh.pop %v3734
        %v3751 = vtanh.pop %v3735
        %v3752 = vsub.f32 1.0, %v3639
        %v3753 = vsub.f32 1.0, %v3641
        %v3754 = vsub.f32 1.0, %v3643
        %v3755 = vsub.f32 1.0, %v3645
        %v3756 = vsub.f32 1.0, %v3647
        %v3757 = vsub.f32 1.0, %v3649
        %v3758 = vsub.f32 1.0, %v3651
        %v3759 = vsub.f32 1.0, %v3653
        %v3760 = vsub.f32 1.0, %v3655
        %v3761 = vsub.f32 1.0, %v3657
        %v3762 = vsub.f32 1.0, %v3659
        %v3763 = vsub.f32 1.0, %v3661
        %v3764 = vsub.f32 1.0, %v3663
        %v3765 = vsub.f32 1.0, %v3665
        %v3766 = vsub.f32 1.0, %v3667
        %v3767 = vsub.f32 1.0, %v3669
        %v3768 = vmul.f32 %v3752, %v3736
        %v3769 = vmul.f32 %v3753, %v3737
        %v3770 = vmul.f32 %v3754, %v3738
        %v3771 = vmul.f32 %v3755, %v3739
        %v3772 = vmul.f32 %v3756, %v3740
        %v3773 = vmul.f32 %v3757, %v3741
        %v3774 = vmul.f32 %v3758, %v3742
        %v3775 = vmul.f32 %v3759, %v3743
        %v3776 = vmul.f32 %v3760, %v3744
        %v3777 = vmul.f32 %v3761, %v3745
        %v3778 = vmul.f32 %v3762, %v3746
        %v3779 = vmul.f32 %v3763, %v3747
        %v3780 = vmul.f32 %v3764, %v3748
        %v3781 = vmul.f32 %v3765, %v3749
        %v3782 = vmul.f32 %v3766, %v3750
        %v3783 = vmul.f32 %v3767, %v3751
        %v3784 = vrot.slane %v3168, 7
        %v3785 = vrot.slane %v3169, 7
        %v3786 = vrot.slane %v3170, 7
        %v3787 = vrot.slane %v3171, 7
        %v3788 = vrot.slane %v3173, 7
        %v3789 = vrot.slane %v3174, 7
        %v3790 = vrot.slane %v3175, 7
        %v3791 = vrot.slane %v3176, 7
        %v3792 = vrot.slane %v3177, 7
        %v3793 = vrot.slane %v3178, 7
        %v3794 = vrot.slane %v3179, 7
        %v3795 = vrot.slane %v3181, 7
        %v3796 = vrot.slane %v3182, 7
        %v3797 = vrot.slane %v3183, 7
        %v3814 = vmul.f32 %v3639, %v3784
        %v3815 = vmul.f32 %v3641, %v3785
        %v3816 = vmul.f32 %v3643, %v3786
        %v3817 = vmul.f32 %v3645, %v3787
        %v3818 = vmul.f32 %v3647, %v3206
        %v3819 = vmul.f32 %v3649, %v3788
        %v3820 = vmul.f32 %v3651, %v3789
        %v3821 = vmul.f32 %v3653, %v3790
        %v3822 = vmul.f32 %v3655, %v3791
        %v3823 = vmul.f32 %v3657, %v3792
        %v3824 = vmul.f32 %v3659, %v3793
        %v3825 = vmul.f32 %v3661, %v3794
        %v3826 = vmul.f32 %v3663, %v3220
        %v3827 = vmul.f32 %v3665, %v3795
        %v3828 = vmul.f32 %v3667, %v3796
        %v3829 = vmul.f32 %v3669, %v3797
        %v3830 = vadd.f32 %v3768, %v3814
        %v3831 = vadd.f32 %v3769, %v3815
        %v3832 = vadd.f32 %v3770, %v3816
        %v3833 = vadd.f32 %v3771, %v3817
        %v3834 = vadd.f32 %v3772, %v3818
        %v3835 = vadd.f32 %v3773, %v3819
        %v3836 = vadd.f32 %v3774, %v3820
        %v3837 = vadd.f32 %v3775, %v3821
        %v3838 = vadd.f32 %v3776, %v3822
        %v3839 = vadd.f32 %v3777, %v3823
        %v3840 = vadd.f32 %v3778, %v3824
        %v3841 = vadd.f32 %v3779, %v3825
        %v3842 = vadd.f32 %v3780, %v3826
        %v3843 = vadd.f32 %v3781, %v3827
        %v3844 = vadd.f32 %v3782, %v3828
        %v3845 = vadd.f32 %v3783, %v3829
        %s3846 = sadd.s32 %s1107, 4
        %p3847 = scmp.lt.s32.totalorder %s3846, 12
        %s3848 = scalar_select %p3847, 1, 0
        %v3849 = vstv %s3848
        %vm3850 = vcmp.eq.s32.totalorder %v3849, 1
        %v3851 = vsel %vm3850, %v3830, %v3784
        %v3852 = vsel %vm3850, %v3831, %v3785
        %v3853 = vsel %vm3850, %v3832, %v3786
        %v3854 = vsel %vm3850, %v3833, %v3787
        %v3855 = vsel %vm3850, %v3834, %v3206
        %v3856 = vsel %vm3850, %v3835, %v3788
        %v3857 = vsel %vm3850, %v3836, %v3789
        %v3858 = vsel %vm3850, %v3837, %v3790
        %v3859 = vsel %vm3850, %v3838, %v3791
        %v3860 = vsel %vm3850, %v3839, %v3792
        %v3861 = vsel %vm3850, %v3840, %v3793
        %v3862 = vsel %vm3850, %v3841, %v3794
        %v3863 = vsel %vm3850, %v3842, %v3220
        %v3864 = vsel %vm3850, %v3843, %v3795
        %v3865 = vsel %vm3850, %v3844, %v3796
        %v3866 = vsel %vm3850, %v3845, %v3797
        %v3883 = vrot.slane %v3851, 4
        %v3884 = vrot.slane %v3852, 3
        %v3885 = vsel %vm1145, %v3884, %v3883
        %v3886 = vrot.slane %v3853, 2
        %v3887 = vsel %vm1148, %v3886, %v3885
        %v3888 = vrot.slane %v3854, 1
        %v3889 = vsel %vm1151, %v3888, %v3887
        %v3890 = vsel %vm1154, %v3855, %v3889
        %v3891 = vrot.slane %v3856, 7
        %v3892 = vsel %vm1157, %v3891, %v3890
        %v3893 = vrot.slane %v3857, 6
        %v3894 = vsel %vm1160, %v3893, %v3892
        %v3895 = vrot.slane %v3858, 5
        %v3896 = vsel %vm1163, %v3895, %v3894
        %v3897 = vrot.slane %v3859, 4
        %v3898 = vrot.slane %v3860, 3
        %v3899 = vsel %vm1145, %v3898, %v3897
        %v3900 = vrot.slane %v3861, 2
        %v3901 = vsel %vm1148, %v3900, %v3899
        %v3902 = vrot.slane %v3862, 1
        %v3903 = vsel %vm1151, %v3902, %v3901
        %v3904 = vsel %vm1154, %v3863, %v3903
        %v3905 = vrot.slane %v3864, 7
        %v3906 = vsel %vm1157, %v3905, %v3904
        %v3907 = vrot.slane %v3865, 6
        %v3908 = vsel %vm1160, %v3907, %v3906
        %v3909 = vrot.slane %v3866, 5
        %v3910 = vsel %vm1163, %v3909, %v3908
        %3913 = vmatprep.subr.mxu0 %v385
        %3914 = vmatpush1.msra.mxu0 %v384
        %3915 = vmatprep.subr.mxu0 %v388
        %3916 = vmatpush1.msra.mxu0 %v387
        %3917 = vmatprep.subr.mxu0 %v391
        %3918 = vmatpush1.msra.mxu0 %v390
        %3919 = vmatprep.subr.mxu0 %v394
        %3920 = vmatpush1.msra.mxu0 %v393
        %3921 = vmatprep.subr.mxu0 %v397
        %3922 = vmatpush1.msra.mxu0 %v396
        %3923 = vmatprep.subr.mxu0 %v400
        %3924 = vmatpush1.msra.mxu0 %v399
        %3925 = vmatprep.subr.mxu0 %v403
        %3926 = vmatpush1.msra.mxu0 %v402
        %3927 = vmatprep.subr.mxu0 %v406
        %3928 = vmatpush1.msra.mxu0 %v405
        %3929 = vmatprep.subr.mxu0 %v409
        %3930 = vmatpush1.msra.mxu0 %v408
        %3931 = vmatprep.subr.mxu0 %v412
        %3932 = vmatpush1.msra.mxu0 %v411
        %3933 = vmatprep.subr.mxu0 %v415
        %3934 = vmatpush1.msra.mxu0 %v414
        %3935 = vmatprep.subr.mxu0 %v418
        %3936 = vmatpush1.msra.mxu0 %v417
        %3937 = vmatprep.subr.mxu0 %v421
        %3938 = vmatpush1.msra.mxu0 %v420
        %3939 = vmatprep.subr.mxu0 %v424
        %3940 = vmatpush1.msra.mxu0 %v423
        %3941 = vmatprep.subr.mxu0 %v427
        %3942 = vmatpush1.msra.mxu0 %v426
        %3943 = vmatprep.subr.mxu0 %v430
        %3944 = vmatpush1.msra.mxu0 %v429
        %3945 = vmatprep.subr.mxu0 0.0
        %3946 = vmatpush1.msra.mxu0 0.0
        %3947 = vmatprep.subr.mxu0 0.0
        %3948 = vmatpush1.msra.mxu0 0.0
        %3949 = vmatprep.subr.mxu0 0.0
        %3950 = vmatpush1.msra.mxu0 0.0
        %3951 = vmatprep.subr.mxu0 0.0
        %3952 = vmatpush1.msra.mxu0 0.0
        %3953 = vmatprep.subr.mxu0 0.0
        %3954 = vmatpush1.msra.mxu0 0.0
        %3955 = vmatprep.subr.mxu0 0.0
        %3956 = vmatpush1.msra.mxu0 0.0
        %3957 = vmatprep.subr.mxu0 0.0
        %3958 = vmatpush1.msra.mxu0 0.0
        %3959 = vmatprep.subr.mxu0 0.0
        %3960 = vmatpush1.msra.mxu0 0.0
        %3961 = vmatprep.subr.mxu0 0.0
        %3962 = vmatpush1.msra.mxu0 0.0
        %3963 = vmatprep.subr.mxu0 0.0
        %3964 = vmatpush1.msra.mxu0 0.0
        %3965 = vmatprep.subr.mxu0 0.0
        %3966 = vmatpush1.msra.mxu0 0.0
        %3967 = vmatprep.subr.mxu0 0.0
        %3968 = vmatpush1.msra.mxu0 0.0
        %3969 = vmatprep.subr.mxu0 0.0
        %3970 = vmatpush1.msra.mxu0 0.0
        %3971 = vmatprep.subr.mxu0 0.0
        %3972 = vmatpush1.msra.mxu0 0.0
        %3973 = vmatprep.subr.mxu0 0.0
        %3974 = vmatpush1.msra.mxu0 0.0
        %3975 = vmatprep.subr.mxu0 0.0
        %3976 = vmatpush1.msra.mxu0 0.0
        %3977 = vmatprep.mubr.f32.mxu0 0.0
        %3978 = vmatmul.mubr.f32.gmra.mrb[0].mxu0 %v3896
        %v3979 = vpop.f32.mrb[0].mxu0
        %v3980 = vadd.f32 0.0, %v3979
        %v3981 = vpop.f32.mrb[0].mxu0
        %v3982 = vadd.f32 0.0, %v3981
        %3983 = vmatprep.mubr.f32.mxu0 0.0
        %3984 = vmatmul.mubr.f32.gmra.mrb[0].mxu0 %v3910
        %v3985 = vpop.f32.mrb[0].mxu0
        %v3986 = vadd.f32 0.0, %v3985
        %v3987 = vpop.f32.mrb[0].mxu0
        %v3988 = vadd.f32 0.0, %v3987
        %3989 = vdwg.mxu0
        %3990 = vmatprep.subr.mxu0 0.0
        %3991 = vmatpush1.msra.mxu0 %v386
        %3992 = vmatprep.subr.mxu0 0.0
        %3993 = vmatpush1.msra.mxu0 %v389
        %3994 = vmatprep.subr.mxu0 0.0
        %3995 = vmatpush1.msra.mxu0 %v392
        %3996 = vmatprep.subr.mxu0 0.0
        %3997 = vmatpush1.msra.mxu0 %v395
        %3998 = vmatprep.subr.mxu0 0.0
        %3999 = vmatpush1.msra.mxu0 %v398
        %4000 = vmatprep.subr.mxu0 0.0
        %4001 = vmatpush1.msra.mxu0 %v401
        %4002 = vmatprep.subr.mxu0 0.0
        %4003 = vmatpush1.msra.mxu0 %v404
        %4004 = vmatprep.subr.mxu0 0.0
        %4005 = vmatpush1.msra.mxu0 %v407
        %4006 = vmatprep.subr.mxu0 0.0
        %4007 = vmatpush1.msra.mxu0 %v410
        %4008 = vmatprep.subr.mxu0 0.0
        %4009 = vmatpush1.msra.mxu0 %v413
        %4010 = vmatprep.subr.mxu0 0.0
        %4011 = vmatpush1.msra.mxu0 %v416
        %4012 = vmatprep.subr.mxu0 0.0
        %4013 = vmatpush1.msra.mxu0 %v419
        %4014 = vmatprep.subr.mxu0 0.0
        %4015 = vmatpush1.msra.mxu0 %v422
        %4016 = vmatprep.subr.mxu0 0.0
        %4017 = vmatpush1.msra.mxu0 %v425
        %4018 = vmatprep.subr.mxu0 0.0
        %4019 = vmatpush1.msra.mxu0 %v428
        %4020 = vmatprep.subr.mxu0 0.0
        %4021 = vmatpush1.msra.mxu0 %v431
        %4022 = vmatprep.subr.mxu0 0.0
        %4023 = vmatpush1.msra.mxu0 0.0
        %4024 = vmatprep.subr.mxu0 0.0
        %4025 = vmatpush1.msra.mxu0 0.0
        %4026 = vmatprep.subr.mxu0 0.0
        %4027 = vmatpush1.msra.mxu0 0.0
        %4028 = vmatprep.subr.mxu0 0.0
        %4029 = vmatpush1.msra.mxu0 0.0
        %4030 = vmatprep.subr.mxu0 0.0
        %4031 = vmatpush1.msra.mxu0 0.0
        %4032 = vmatprep.subr.mxu0 0.0
        %4033 = vmatpush1.msra.mxu0 0.0
        %4034 = vmatprep.subr.mxu0 0.0
        %4035 = vmatpush1.msra.mxu0 0.0
        %4036 = vmatprep.subr.mxu0 0.0
        %4037 = vmatpush1.msra.mxu0 0.0
        %4038 = vmatprep.subr.mxu0 0.0
        %4039 = vmatpush1.msra.mxu0 0.0
        %4040 = vmatprep.subr.mxu0 0.0
        %4041 = vmatpush1.msra.mxu0 0.0
        %4042 = vmatprep.subr.mxu0 0.0
        %4043 = vmatpush1.msra.mxu0 0.0
        %4044 = vmatprep.subr.mxu0 0.0
        %4045 = vmatpush1.msra.mxu0 0.0
        %4046 = vmatprep.subr.mxu0 0.0
        %4047 = vmatpush1.msra.mxu0 0.0
        %4048 = vmatprep.subr.mxu0 0.0
        %4049 = vmatpush1.msra.mxu0 0.0
        %4050 = vmatprep.subr.mxu0 0.0
        %4051 = vmatpush1.msra.mxu0 0.0
        %4052 = vmatprep.subr.mxu0 0.0
        %4053 = vmatpush1.msra.mxu0 0.0
        %4054 = vmatprep.mubr.f32.mxu0 0.0
        %4055 = vmatmul.mubr.f32.gmra.mrb[0].mxu0 %v3896
        %v4056 = vpop.f32.mrb[0].mxu0
        %v4057 = vadd.f32 0.0, %v4056
        %v4058 = vpop.f32.mrb[0].mxu0
        %4059 = vmatprep.mubr.f32.mxu0 0.0
        %4060 = vmatmul.mubr.f32.gmra.mrb[0].mxu0 %v3910
        %v4061 = vpop.f32.mrb[0].mxu0
        %v4062 = vadd.f32 0.0, %v4061
        %v4063 = vpop.f32.mrb[0].mxu0
        %4064 = vdwg.mxu0
        %v4067 = vrot.slane %v3980, 3
        %v4068 = vrot.slane %v3980, 4
        %v4069 = vrot.slane %v3980, 5
        %v4070 = vrot.slane %v3980, 6
        %v4071 = vrot.slane %v3980, 7
        %v4072 = vrot.slane %v3980, 1
        %v4073 = vrot.slane %v3980, 2
        %v4074 = vrot.slane %v3986, 3
        %v4075 = vrot.slane %v3986, 4
        %v4076 = vrot.slane %v3986, 5
        %v4077 = vrot.slane %v3986, 6
        %v4078 = vrot.slane %v3986, 7
        %v4079 = vrot.slane %v3986, 1
        %v4080 = vrot.slane %v3986, 2
        %v4097 = vadd.f32 %v433, %v4067
        %v4098 = vadd.f32 %v436, %v4068
        %v4099 = vadd.f32 %v439, %v4069
        %v4100 = vadd.f32 %v442, %v4070
        %v4101 = vadd.f32 %v445, %v4071
        %v4102 = vadd.f32 %v448, %v3980
        %v4103 = vadd.f32 %v451, %v4072
        %v4104 = vadd.f32 %v454, %v4073
        %v4105 = vadd.f32 %v457, %v4074
        %v4106 = vadd.f32 %v460, %v4075
        %v4107 = vadd.f32 %v463, %v4076
        %v4108 = vadd.f32 %v466, %v4077
        %v4109 = vadd.f32 %v469, %v4078
        %v4110 = vadd.f32 %v472, %v3986
        %v4111 = vadd.f32 %v475, %v4079
        %v4112 = vadd.f32 %v478, %v4080
        %v4113 = vxor.u32 %v4097, 2147483648
        %v4114 = vxor.u32 %v4098, 2147483648
        %v4115 = vxor.u32 %v4099, 2147483648
        %v4116 = vxor.u32 %v4100, 2147483648
        %v4117 = vxor.u32 %v4101, 2147483648
        %v4118 = vxor.u32 %v4102, 2147483648
        %v4119 = vxor.u32 %v4103, 2147483648
        %v4120 = vxor.u32 %v4104, 2147483648
        %v4121 = vxor.u32 %v4105, 2147483648
        %v4122 = vxor.u32 %v4106, 2147483648
        %v4123 = vxor.u32 %v4107, 2147483648
        %v4124 = vxor.u32 %v4108, 2147483648
        %v4125 = vxor.u32 %v4109, 2147483648
        %v4126 = vxor.u32 %v4110, 2147483648
        %v4127 = vxor.u32 %v4111, 2147483648
        %v4128 = vxor.u32 %v4112, 2147483648
        %v4129 = vmul.f32 %v4113, 1.442695
        %v4130 = vpow.pop %v4129
        %v4131 = vmul.f32 %v4114, 1.442695
        %v4132 = vpow.pop %v4131
        %v4133 = vmul.f32 %v4115, 1.442695
        %v4134 = vpow.pop %v4133
        %v4135 = vmul.f32 %v4116, 1.442695
        %v4136 = vpow.pop %v4135
        %v4137 = vmul.f32 %v4117, 1.442695
        %v4138 = vpow.pop %v4137
        %v4139 = vmul.f32 %v4118, 1.442695
        %v4140 = vpow.pop %v4139
        %v4141 = vmul.f32 %v4119, 1.442695
        %v4142 = vpow.pop %v4141
        %v4143 = vmul.f32 %v4120, 1.442695
        %v4144 = vpow.pop %v4143
        %v4145 = vmul.f32 %v4121, 1.442695
        %v4146 = vpow.pop %v4145
        %v4147 = vmul.f32 %v4122, 1.442695
        %v4148 = vpow.pop %v4147
        %v4149 = vmul.f32 %v4123, 1.442695
        %v4150 = vpow.pop %v4149
        %v4151 = vmul.f32 %v4124, 1.442695
        %v4152 = vpow.pop %v4151
        %v4153 = vmul.f32 %v4125, 1.442695
        %v4154 = vpow.pop %v4153
        %v4155 = vmul.f32 %v4126, 1.442695
        %v4156 = vpow.pop %v4155
        %v4157 = vmul.f32 %v4127, 1.442695
        %v4158 = vpow.pop %v4157
        %v4159 = vmul.f32 %v4128, 1.442695
        %v4160 = vpow.pop %v4159
        %v4161 = vadd.f32 %v4130, 1.0
        %v4162 = vadd.f32 %v4132, 1.0
        %v4163 = vadd.f32 %v4134, 1.0
        %v4164 = vadd.f32 %v4136, 1.0
        %v4165 = vadd.f32 %v4138, 1.0
        %v4166 = vadd.f32 %v4140, 1.0
        %v4167 = vadd.f32 %v4142, 1.0
        %v4168 = vadd.f32 %v4144, 1.0
        %v4169 = vadd.f32 %v4146, 1.0
        %v4170 = vadd.f32 %v4148, 1.0
        %v4171 = vadd.f32 %v4150, 1.0
        %v4172 = vadd.f32 %v4152, 1.0
        %v4173 = vadd.f32 %v4154, 1.0
        %v4174 = vadd.f32 %v4156, 1.0
        %v4175 = vadd.f32 %v4158, 1.0
        %v4176 = vadd.f32 %v4160, 1.0
        %v4177 = vrcp.pop %v4161
        %v4178 = vmul.f32 1.0, %v4177
        %v4179 = vrcp.pop %v4162
        %v4180 = vmul.f32 1.0, %v4179
        %v4181 = vrcp.pop %v4163
        %v4182 = vmul.f32 1.0, %v4181
        %v4183 = vrcp.pop %v4164
        %v4184 = vmul.f32 1.0, %v4183
        %v4185 = vrcp.pop %v4165
        %v4186 = vmul.f32 1.0, %v4185
        %v4187 = vrcp.pop %v4166
        %v4188 = vmul.f32 1.0, %v4187
        %v4189 = vrcp.pop %v4167
        %v4190 = vmul.f32 1.0, %v4189
        %v4191 = vrcp.pop %v4168
        %v4192 = vmul.f32 1.0, %v4191
        %v4193 = vrcp.pop %v4169
        %v4194 = vmul.f32 1.0, %v4193
        %v4195 = vrcp.pop %v4170
        %v4196 = vmul.f32 1.0, %v4195
        %v4197 = vrcp.pop %v4171
        %v4198 = vmul.f32 1.0, %v4197
        %v4199 = vrcp.pop %v4172
        %v4200 = vmul.f32 1.0, %v4199
        %v4201 = vrcp.pop %v4173
        %v4202 = vmul.f32 1.0, %v4201
        %v4203 = vrcp.pop %v4174
        %v4204 = vmul.f32 1.0, %v4203
        %v4205 = vrcp.pop %v4175
        %v4206 = vmul.f32 1.0, %v4205
        %v4207 = vrcp.pop %v4176
        %v4208 = vmul.f32 1.0, %v4207
        %v4211 = vrot.slane %v3982, 3
        %v4212 = vrot.slane %v3982, 4
        %v4213 = vrot.slane %v3982, 5
        %v4214 = vrot.slane %v3982, 6
        %v4215 = vrot.slane %v3982, 7
        %v4216 = vrot.slane %v3982, 1
        %v4217 = vrot.slane %v3982, 2
        %v4218 = vrot.slane %v3988, 3
        %v4219 = vrot.slane %v3988, 4
        %v4220 = vrot.slane %v3988, 5
        %v4221 = vrot.slane %v3988, 6
        %v4222 = vrot.slane %v3988, 7
        %v4223 = vrot.slane %v3988, 1
        %v4224 = vrot.slane %v3988, 2
        %v4241 = vadd.f32 %v434, %v4211
        %v4242 = vadd.f32 %v437, %v4212
        %v4243 = vadd.f32 %v440, %v4213
        %v4244 = vadd.f32 %v443, %v4214
        %v4245 = vadd.f32 %v446, %v4215
        %v4246 = vadd.f32 %v449, %v3982
        %v4247 = vadd.f32 %v452, %v4216
        %v4248 = vadd.f32 %v455, %v4217
        %v4249 = vadd.f32 %v458, %v4218
        %v4250 = vadd.f32 %v461, %v4219
        %v4251 = vadd.f32 %v464, %v4220
        %v4252 = vadd.f32 %v467, %v4221
        %v4253 = vadd.f32 %v470, %v4222
        %v4254 = vadd.f32 %v473, %v3988
        %v4255 = vadd.f32 %v476, %v4223
        %v4256 = vadd.f32 %v479, %v4224
        %v4257 = vxor.u32 %v4241, 2147483648
        %v4258 = vxor.u32 %v4242, 2147483648
        %v4259 = vxor.u32 %v4243, 2147483648
        %v4260 = vxor.u32 %v4244, 2147483648
        %v4261 = vxor.u32 %v4245, 2147483648
        %v4262 = vxor.u32 %v4246, 2147483648
        %v4263 = vxor.u32 %v4247, 2147483648
        %v4264 = vxor.u32 %v4248, 2147483648
        %v4265 = vxor.u32 %v4249, 2147483648
        %v4266 = vxor.u32 %v4250, 2147483648
        %v4267 = vxor.u32 %v4251, 2147483648
        %v4268 = vxor.u32 %v4252, 2147483648
        %v4269 = vxor.u32 %v4253, 2147483648
        %v4270 = vxor.u32 %v4254, 2147483648
        %v4271 = vxor.u32 %v4255, 2147483648
        %v4272 = vxor.u32 %v4256, 2147483648
        %v4273 = vmul.f32 %v4257, 1.442695
        %v4274 = vpow.pop %v4273
        %v4275 = vmul.f32 %v4258, 1.442695
        %v4276 = vpow.pop %v4275
        %v4277 = vmul.f32 %v4259, 1.442695
        %v4278 = vpow.pop %v4277
        %v4279 = vmul.f32 %v4260, 1.442695
        %v4280 = vpow.pop %v4279
        %v4281 = vmul.f32 %v4261, 1.442695
        %v4282 = vpow.pop %v4281
        %v4283 = vmul.f32 %v4262, 1.442695
        %v4284 = vpow.pop %v4283
        %v4285 = vmul.f32 %v4263, 1.442695
        %v4286 = vpow.pop %v4285
        %v4287 = vmul.f32 %v4264, 1.442695
        %v4288 = vpow.pop %v4287
        %v4289 = vmul.f32 %v4265, 1.442695
        %v4290 = vpow.pop %v4289
        %v4291 = vmul.f32 %v4266, 1.442695
        %v4292 = vpow.pop %v4291
        %v4293 = vmul.f32 %v4267, 1.442695
        %v4294 = vpow.pop %v4293
        %v4295 = vmul.f32 %v4268, 1.442695
        %v4296 = vpow.pop %v4295
        %v4297 = vmul.f32 %v4269, 1.442695
        %v4298 = vpow.pop %v4297
        %v4299 = vmul.f32 %v4270, 1.442695
        %v4300 = vpow.pop %v4299
        %v4301 = vmul.f32 %v4271, 1.442695
        %v4302 = vpow.pop %v4301
        %v4303 = vmul.f32 %v4272, 1.442695
        %v4304 = vpow.pop %v4303
        %v4305 = vadd.f32 %v4274, 1.0
        %v4306 = vadd.f32 %v4276, 1.0
        %v4307 = vadd.f32 %v4278, 1.0
        %v4308 = vadd.f32 %v4280, 1.0
        %v4309 = vadd.f32 %v4282, 1.0
        %v4310 = vadd.f32 %v4284, 1.0
        %v4311 = vadd.f32 %v4286, 1.0
        %v4312 = vadd.f32 %v4288, 1.0
        %v4313 = vadd.f32 %v4290, 1.0
        %v4314 = vadd.f32 %v4292, 1.0
        %v4315 = vadd.f32 %v4294, 1.0
        %v4316 = vadd.f32 %v4296, 1.0
        %v4317 = vadd.f32 %v4298, 1.0
        %v4318 = vadd.f32 %v4300, 1.0
        %v4319 = vadd.f32 %v4302, 1.0
        %v4320 = vadd.f32 %v4304, 1.0
        %v4321 = vrcp.pop %v4305
        %v4322 = vmul.f32 1.0, %v4321
        %v4323 = vrcp.pop %v4306
        %v4324 = vmul.f32 1.0, %v4323
        %v4325 = vrcp.pop %v4307
        %v4326 = vmul.f32 1.0, %v4325
        %v4327 = vrcp.pop %v4308
        %v4328 = vmul.f32 1.0, %v4327
        %v4329 = vrcp.pop %v4309
        %v4330 = vmul.f32 1.0, %v4329
        %v4331 = vrcp.pop %v4310
        %v4332 = vmul.f32 1.0, %v4331
        %v4333 = vrcp.pop %v4311
        %v4334 = vmul.f32 1.0, %v4333
        %v4335 = vrcp.pop %v4312
        %v4336 = vmul.f32 1.0, %v4335
        %v4337 = vrcp.pop %v4313
        %v4338 = vmul.f32 1.0, %v4337
        %v4339 = vrcp.pop %v4314
        %v4340 = vmul.f32 1.0, %v4339
        %v4341 = vrcp.pop %v4315
        %v4342 = vmul.f32 1.0, %v4341
        %v4343 = vrcp.pop %v4316
        %v4344 = vmul.f32 1.0, %v4343
        %v4345 = vrcp.pop %v4317
        %v4346 = vmul.f32 1.0, %v4345
        %v4347 = vrcp.pop %v4318
        %v4348 = vmul.f32 1.0, %v4347
        %v4349 = vrcp.pop %v4319
        %v4350 = vmul.f32 1.0, %v4349
        %v4351 = vrcp.pop %v4320
        %v4352 = vmul.f32 1.0, %v4351
        %v4353 = vadd.f32 %v4057, %v927
        %v4354 = vadd.f32 %v4062, %v927
        %v4357 = vrot.slane %v4353, 3
        %v4358 = vrot.slane %v4353, 4
        %v4359 = vrot.slane %v4353, 5
        %v4360 = vrot.slane %v4353, 6
        %v4361 = vrot.slane %v4353, 7
        %v4362 = vrot.slane %v4353, 1
        %v4363 = vrot.slane %v4353, 2
        %v4364 = vrot.slane %v4354, 3
        %v4365 = vrot.slane %v4354, 4
        %v4366 = vrot.slane %v4354, 5
        %v4367 = vrot.slane %v4354, 6
        %v4368 = vrot.slane %v4354, 7
        %v4369 = vrot.slane %v4354, 1
        %v4370 = vrot.slane %v4354, 2
        %v4387 = vmul.f32 %v4178, %v4357
        %v4388 = vmul.f32 %v4180, %v4358
        %v4389 = vmul.f32 %v4182, %v4359
        %v4390 = vmul.f32 %v4184, %v4360
        %v4391 = vmul.f32 %v4186, %v4361
        %v4392 = vmul.f32 %v4188, %v4353
        %v4393 = vmul.f32 %v4190, %v4362
        %v4394 = vmul.f32 %v4192, %v4363
        %v4395 = vmul.f32 %v4194, %v4364
        %v4396 = vmul.f32 %v4196, %v4365
        %v4397 = vmul.f32 %v4198, %v4366
        %v4398 = vmul.f32 %v4200, %v4367
        %v4399 = vmul.f32 %v4202, %v4368
        %v4400 = vmul.f32 %v4204, %v4354
        %v4401 = vmul.f32 %v4206, %v4369
        %v4402 = vmul.f32 %v4208, %v4370
        %v4403 = vadd.f32 %v435, %v4387
        %v4404 = vadd.f32 %v438, %v4388
        %v4405 = vadd.f32 %v441, %v4389
        %v4406 = vadd.f32 %v444, %v4390
        %v4407 = vadd.f32 %v447, %v4391
        %v4408 = vadd.f32 %v450, %v4392
        %v4409 = vadd.f32 %v453, %v4393
        %v4410 = vadd.f32 %v456, %v4394
        %v4411 = vadd.f32 %v459, %v4395
        %v4412 = vadd.f32 %v462, %v4396
        %v4413 = vadd.f32 %v465, %v4397
        %v4414 = vadd.f32 %v468, %v4398
        %v4415 = vadd.f32 %v471, %v4399
        %v4416 = vadd.f32 %v474, %v4400
        %v4417 = vadd.f32 %v477, %v4401
        %v4418 = vadd.f32 %v480, %v4402
        %v4419 = vtanh.pop %v4403
        %v4420 = vtanh.pop %v4404
        %v4421 = vtanh.pop %v4405
        %v4422 = vtanh.pop %v4406
        %v4423 = vtanh.pop %v4407
        %v4424 = vtanh.pop %v4408
        %v4425 = vtanh.pop %v4409
        %v4426 = vtanh.pop %v4410
        %v4427 = vtanh.pop %v4411
        %v4428 = vtanh.pop %v4412
        %v4429 = vtanh.pop %v4413
        %v4430 = vtanh.pop %v4414
        %v4431 = vtanh.pop %v4415
        %v4432 = vtanh.pop %v4416
        %v4433 = vtanh.pop %v4417
        %v4434 = vtanh.pop %v4418
        %v4435 = vsub.f32 1.0, %v4322
        %v4436 = vsub.f32 1.0, %v4324
        %v4437 = vsub.f32 1.0, %v4326
        %v4438 = vsub.f32 1.0, %v4328
        %v4439 = vsub.f32 1.0, %v4330
        %v4440 = vsub.f32 1.0, %v4332
        %v4441 = vsub.f32 1.0, %v4334
        %v4442 = vsub.f32 1.0, %v4336
        %v4443 = vsub.f32 1.0, %v4338
        %v4444 = vsub.f32 1.0, %v4340
        %v4445 = vsub.f32 1.0, %v4342
        %v4446 = vsub.f32 1.0, %v4344
        %v4447 = vsub.f32 1.0, %v4346
        %v4448 = vsub.f32 1.0, %v4348
        %v4449 = vsub.f32 1.0, %v4350
        %v4450 = vsub.f32 1.0, %v4352
        %v4451 = vmul.f32 %v4435, %v4419
        %v4452 = vmul.f32 %v4436, %v4420
        %v4453 = vmul.f32 %v4437, %v4421
        %v4454 = vmul.f32 %v4438, %v4422
        %v4455 = vmul.f32 %v4439, %v4423
        %v4456 = vmul.f32 %v4440, %v4424
        %v4457 = vmul.f32 %v4441, %v4425
        %v4458 = vmul.f32 %v4442, %v4426
        %v4459 = vmul.f32 %v4443, %v4427
        %v4460 = vmul.f32 %v4444, %v4428
        %v4461 = vmul.f32 %v4445, %v4429
        %v4462 = vmul.f32 %v4446, %v4430
        %v4463 = vmul.f32 %v4447, %v4431
        %v4464 = vmul.f32 %v4448, %v4432
        %v4465 = vmul.f32 %v4449, %v4433
        %v4466 = vmul.f32 %v4450, %v4434
        %v4467 = vrot.slane %v3851, 7
        %v4468 = vrot.slane %v3852, 7
        %v4469 = vrot.slane %v3853, 7
        %v4470 = vrot.slane %v3854, 7
        %v4471 = vrot.slane %v3855, 7
        %v4472 = vrot.slane %v3857, 7
        %v4473 = vrot.slane %v3858, 7
        %v4474 = vrot.slane %v3859, 7
        %v4475 = vrot.slane %v3860, 7
        %v4476 = vrot.slane %v3861, 7
        %v4477 = vrot.slane %v3862, 7
        %v4478 = vrot.slane %v3863, 7
        %v4479 = vrot.slane %v3865, 7
        %v4480 = vrot.slane %v3866, 7
        %v4497 = vmul.f32 %v4322, %v4467
        %v4498 = vmul.f32 %v4324, %v4468
        %v4499 = vmul.f32 %v4326, %v4469
        %v4500 = vmul.f32 %v4328, %v4470
        %v4501 = vmul.f32 %v4330, %v4471
        %v4502 = vmul.f32 %v4332, %v3891
        %v4503 = vmul.f32 %v4334, %v4472
        %v4504 = vmul.f32 %v4336, %v4473
        %v4505 = vmul.f32 %v4338, %v4474
        %v4506 = vmul.f32 %v4340, %v4475
        %v4507 = vmul.f32 %v4342, %v4476
        %v4508 = vmul.f32 %v4344, %v4477
        %v4509 = vmul.f32 %v4346, %v4478
        %v4510 = vmul.f32 %v4348, %v3905
        %v4511 = vmul.f32 %v4350, %v4479
        %v4512 = vmul.f32 %v4352, %v4480
        %v4513 = vadd.f32 %v4451, %v4497
        %v4514 = vadd.f32 %v4452, %v4498
        %v4515 = vadd.f32 %v4453, %v4499
        %v4516 = vadd.f32 %v4454, %v4500
        %v4517 = vadd.f32 %v4455, %v4501
        %v4518 = vadd.f32 %v4456, %v4502
        %v4519 = vadd.f32 %v4457, %v4503
        %v4520 = vadd.f32 %v4458, %v4504
        %v4521 = vadd.f32 %v4459, %v4505
        %v4522 = vadd.f32 %v4460, %v4506
        %v4523 = vadd.f32 %v4461, %v4507
        %v4524 = vadd.f32 %v4462, %v4508
        %v4525 = vadd.f32 %v4463, %v4509
        %v4526 = vadd.f32 %v4464, %v4510
        %v4527 = vadd.f32 %v4465, %v4511
        %v4528 = vadd.f32 %v4466, %v4512
        %s4529 = sadd.s32 %s1107, 5
        %p4530 = scmp.lt.s32.totalorder %s4529, 12
        %s4531 = scalar_select %p4530, 1, 0
        %v4532 = vstv %s4531
        %vm4533 = vcmp.eq.s32.totalorder %v4532, 1
        %v4534 = vsel %vm4533, %v4513, %v4467
        %v4535 = vsel %vm4533, %v4514, %v4468
        %v4536 = vsel %vm4533, %v4515, %v4469
        %v4537 = vsel %vm4533, %v4516, %v4470
        %v4538 = vsel %vm4533, %v4517, %v4471
        %v4539 = vsel %vm4533, %v4518, %v3891
        %v4540 = vsel %vm4533, %v4519, %v4472
        %v4541 = vsel %vm4533, %v4520, %v4473
        %v4542 = vsel %vm4533, %v4521, %v4474
        %v4543 = vsel %vm4533, %v4522, %v4475
        %v4544 = vsel %vm4533, %v4523, %v4476
        %v4545 = vsel %vm4533, %v4524, %v4477
        %v4546 = vsel %vm4533, %v4525, %v4478
        %v4547 = vsel %vm4533, %v4526, %v3905
        %v4548 = vsel %vm4533, %v4527, %v4479
        %v4549 = vsel %vm4533, %v4528, %v4480
        %v4566 = vrot.slane %v4534, 5
        %v4567 = vrot.slane %v4535, 4
        %v4568 = vsel %vm1145, %v4567, %v4566
        %v4569 = vrot.slane %v4536, 3
        %v4570 = vsel %vm1148, %v4569, %v4568
        %v4571 = vrot.slane %v4537, 2
        %v4572 = vsel %vm1151, %v4571, %v4570
        %v4573 = vrot.slane %v4538, 1
        %v4574 = vsel %vm1154, %v4573, %v4572
        %v4575 = vsel %vm1157, %v4539, %v4574
        %v4576 = vrot.slane %v4540, 7
        %v4577 = vsel %vm1160, %v4576, %v4575
        %v4578 = vrot.slane %v4541, 6
        %v4579 = vsel %vm1163, %v4578, %v4577
        %v4580 = vrot.slane %v4542, 5
        %v4581 = vrot.slane %v4543, 4
        %v4582 = vsel %vm1145, %v4581, %v4580
        %v4583 = vrot.slane %v4544, 3
        %v4584 = vsel %vm1148, %v4583, %v4582
        %v4585 = vrot.slane %v4545, 2
        %v4586 = vsel %vm1151, %v4585, %v4584
        %v4587 = vrot.slane %v4546, 1
        %v4588 = vsel %vm1154, %v4587, %v4586
        %v4589 = vsel %vm1157, %v4547, %v4588
        %v4590 = vrot.slane %v4548, 7
        %v4591 = vsel %vm1160, %v4590, %v4589
        %v4592 = vrot.slane %v4549, 6
        %v4593 = vsel %vm1163, %v4592, %v4591
        %4596 = vmatprep.subr.mxu0 %v385
        %4597 = vmatpush1.msra.mxu0 %v384
        %4598 = vmatprep.subr.mxu0 %v388
        %4599 = vmatpush1.msra.mxu0 %v387
        %4600 = vmatprep.subr.mxu0 %v391
        %4601 = vmatpush1.msra.mxu0 %v390
        %4602 = vmatprep.subr.mxu0 %v394
        %4603 = vmatpush1.msra.mxu0 %v393
        %4604 = vmatprep.subr.mxu0 %v397
        %4605 = vmatpush1.msra.mxu0 %v396
        %4606 = vmatprep.subr.mxu0 %v400
        %4607 = vmatpush1.msra.mxu0 %v399
        %4608 = vmatprep.subr.mxu0 %v403
        %4609 = vmatpush1.msra.mxu0 %v402
        %4610 = vmatprep.subr.mxu0 %v406
        %4611 = vmatpush1.msra.mxu0 %v405
        %4612 = vmatprep.subr.mxu0 %v409
        %4613 = vmatpush1.msra.mxu0 %v408
        %4614 = vmatprep.subr.mxu0 %v412
        %4615 = vmatpush1.msra.mxu0 %v411
        %4616 = vmatprep.subr.mxu0 %v415
        %4617 = vmatpush1.msra.mxu0 %v414
        %4618 = vmatprep.subr.mxu0 %v418
        %4619 = vmatpush1.msra.mxu0 %v417
        %4620 = vmatprep.subr.mxu0 %v421
        %4621 = vmatpush1.msra.mxu0 %v420
        %4622 = vmatprep.subr.mxu0 %v424
        %4623 = vmatpush1.msra.mxu0 %v423
        %4624 = vmatprep.subr.mxu0 %v427
        %4625 = vmatpush1.msra.mxu0 %v426
        %4626 = vmatprep.subr.mxu0 %v430
        %4627 = vmatpush1.msra.mxu0 %v429
        %4628 = vmatprep.subr.mxu0 0.0
        %4629 = vmatpush1.msra.mxu0 0.0
        %4630 = vmatprep.subr.mxu0 0.0
        %4631 = vmatpush1.msra.mxu0 0.0
        %4632 = vmatprep.subr.mxu0 0.0
        %4633 = vmatpush1.msra.mxu0 0.0
        %4634 = vmatprep.subr.mxu0 0.0
        %4635 = vmatpush1.msra.mxu0 0.0
        %4636 = vmatprep.subr.mxu0 0.0
        %4637 = vmatpush1.msra.mxu0 0.0
        %4638 = vmatprep.subr.mxu0 0.0
        %4639 = vmatpush1.msra.mxu0 0.0
        %4640 = vmatprep.subr.mxu0 0.0
        %4641 = vmatpush1.msra.mxu0 0.0
        %4642 = vmatprep.subr.mxu0 0.0
        %4643 = vmatpush1.msra.mxu0 0.0
        %4644 = vmatprep.subr.mxu0 0.0
        %4645 = vmatpush1.msra.mxu0 0.0
        %4646 = vmatprep.subr.mxu0 0.0
        %4647 = vmatpush1.msra.mxu0 0.0
        %4648 = vmatprep.subr.mxu0 0.0
        %4649 = vmatpush1.msra.mxu0 0.0
        %4650 = vmatprep.subr.mxu0 0.0
        %4651 = vmatpush1.msra.mxu0 0.0
        %4652 = vmatprep.subr.mxu0 0.0
        %4653 = vmatpush1.msra.mxu0 0.0
        %4654 = vmatprep.subr.mxu0 0.0
        %4655 = vmatpush1.msra.mxu0 0.0
        %4656 = vmatprep.subr.mxu0 0.0
        %4657 = vmatpush1.msra.mxu0 0.0
        %4658 = vmatprep.subr.mxu0 0.0
        %4659 = vmatpush1.msra.mxu0 0.0
        %4660 = vmatprep.mubr.f32.mxu0 0.0
        %4661 = vmatmul.mubr.f32.gmra.mrb[0].mxu0 %v4579
        %v4662 = vpop.f32.mrb[0].mxu0
        %v4663 = vadd.f32 0.0, %v4662
        %v4664 = vpop.f32.mrb[0].mxu0
        %v4665 = vadd.f32 0.0, %v4664
        %4666 = vmatprep.mubr.f32.mxu0 0.0
        %4667 = vmatmul.mubr.f32.gmra.mrb[0].mxu0 %v4593
        %v4668 = vpop.f32.mrb[0].mxu0
        %v4669 = vadd.f32 0.0, %v4668
        %v4670 = vpop.f32.mrb[0].mxu0
        %v4671 = vadd.f32 0.0, %v4670
        %4672 = vdwg.mxu0
        %4673 = vmatprep.subr.mxu0 0.0
        %4674 = vmatpush1.msra.mxu0 %v386
        %4675 = vmatprep.subr.mxu0 0.0
        %4676 = vmatpush1.msra.mxu0 %v389
        %4677 = vmatprep.subr.mxu0 0.0
        %4678 = vmatpush1.msra.mxu0 %v392
        %4679 = vmatprep.subr.mxu0 0.0
        %4680 = vmatpush1.msra.mxu0 %v395
        %4681 = vmatprep.subr.mxu0 0.0
        %4682 = vmatpush1.msra.mxu0 %v398
        %4683 = vmatprep.subr.mxu0 0.0
        %4684 = vmatpush1.msra.mxu0 %v401
        %4685 = vmatprep.subr.mxu0 0.0
        %4686 = vmatpush1.msra.mxu0 %v404
        %4687 = vmatprep.subr.mxu0 0.0
        %4688 = vmatpush1.msra.mxu0 %v407
        %4689 = vmatprep.subr.mxu0 0.0
        %4690 = vmatpush1.msra.mxu0 %v410
        %4691 = vmatprep.subr.mxu0 0.0
        %4692 = vmatpush1.msra.mxu0 %v413
        %4693 = vmatprep.subr.mxu0 0.0
        %4694 = vmatpush1.msra.mxu0 %v416
        %4695 = vmatprep.subr.mxu0 0.0
        %4696 = vmatpush1.msra.mxu0 %v419
        %4697 = vmatprep.subr.mxu0 0.0
        %4698 = vmatpush1.msra.mxu0 %v422
        %4699 = vmatprep.subr.mxu0 0.0
        %4700 = vmatpush1.msra.mxu0 %v425
        %4701 = vmatprep.subr.mxu0 0.0
        %4702 = vmatpush1.msra.mxu0 %v428
        %4703 = vmatprep.subr.mxu0 0.0
        %4704 = vmatpush1.msra.mxu0 %v431
        %4705 = vmatprep.subr.mxu0 0.0
        %4706 = vmatpush1.msra.mxu0 0.0
        %4707 = vmatprep.subr.mxu0 0.0
        %4708 = vmatpush1.msra.mxu0 0.0
        %4709 = vmatprep.subr.mxu0 0.0
        %4710 = vmatpush1.msra.mxu0 0.0
        %4711 = vmatprep.subr.mxu0 0.0
        %4712 = vmatpush1.msra.mxu0 0.0
        %4713 = vmatprep.subr.mxu0 0.0
        %4714 = vmatpush1.msra.mxu0 0.0
        %4715 = vmatprep.subr.mxu0 0.0
        %4716 = vmatpush1.msra.mxu0 0.0
        %4717 = vmatprep.subr.mxu0 0.0
        %4718 = vmatpush1.msra.mxu0 0.0
        %4719 = vmatprep.subr.mxu0 0.0
        %4720 = vmatpush1.msra.mxu0 0.0
        %4721 = vmatprep.subr.mxu0 0.0
        %4722 = vmatpush1.msra.mxu0 0.0
        %4723 = vmatprep.subr.mxu0 0.0
        %4724 = vmatpush1.msra.mxu0 0.0
        %4725 = vmatprep.subr.mxu0 0.0
        %4726 = vmatpush1.msra.mxu0 0.0
        %4727 = vmatprep.subr.mxu0 0.0
        %4728 = vmatpush1.msra.mxu0 0.0
        %4729 = vmatprep.subr.mxu0 0.0
        %4730 = vmatpush1.msra.mxu0 0.0
        %4731 = vmatprep.subr.mxu0 0.0
        %4732 = vmatpush1.msra.mxu0 0.0
        %4733 = vmatprep.subr.mxu0 0.0
        %4734 = vmatpush1.msra.mxu0 0.0
        %4735 = vmatprep.subr.mxu0 0.0
        %4736 = vmatpush1.msra.mxu0 0.0
        %4737 = vmatprep.mubr.f32.mxu0 0.0
        %4738 = vmatmul.mubr.f32.gmra.mrb[0].mxu0 %v4579
        %v4739 = vpop.f32.mrb[0].mxu0
        %v4740 = vadd.f32 0.0, %v4739
        %v4741 = vpop.f32.mrb[0].mxu0
        %4742 = vmatprep.mubr.f32.mxu0 0.0
        %4743 = vmatmul.mubr.f32.gmra.mrb[0].mxu0 %v4593
        %v4744 = vpop.f32.mrb[0].mxu0
        %v4745 = vadd.f32 0.0, %v4744
        %v4746 = vpop.f32.mrb[0].mxu0
        %4747 = vdwg.mxu0
        %v4750 = vrot.slane %v4663, 2
        %v4751 = vrot.slane %v4663, 3
        %v4752 = vrot.slane %v4663, 4
        %v4753 = vrot.slane %v4663, 5
        %v4754 = vrot.slane %v4663, 6
        %v4755 = vrot.slane %v4663, 7
        %v4756 = vrot.slane %v4663, 1
        %v4757 = vrot.slane %v4669, 2
        %v4758 = vrot.slane %v4669, 3
        %v4759 = vrot.slane %v4669, 4
        %v4760 = vrot.slane %v4669, 5
        %v4761 = vrot.slane %v4669, 6
        %v4762 = vrot.slane %v4669, 7
        %v4763 = vrot.slane %v4669, 1
        %v4780 = vadd.f32 %v433, %v4750
        %v4781 = vadd.f32 %v436, %v4751
        %v4782 = vadd.f32 %v439, %v4752
        %v4783 = vadd.f32 %v442, %v4753
        %v4784 = vadd.f32 %v445, %v4754
        %v4785 = vadd.f32 %v448, %v4755
        %v4786 = vadd.f32 %v451, %v4663
        %v4787 = vadd.f32 %v454, %v4756
        %v4788 = vadd.f32 %v457, %v4757
        %v4789 = vadd.f32 %v460, %v4758
        %v4790 = vadd.f32 %v463, %v4759
        %v4791 = vadd.f32 %v466, %v4760
        %v4792 = vadd.f32 %v469, %v4761
        %v4793 = vadd.f32 %v472, %v4762
        %v4794 = vadd.f32 %v475, %v4669
        %v4795 = vadd.f32 %v478, %v4763
        %v4796 = vxor.u32 %v4780, 2147483648
        %v4797 = vxor.u32 %v4781, 2147483648
        %v4798 = vxor.u32 %v4782, 2147483648
        %v4799 = vxor.u32 %v4783, 2147483648
        %v4800 = vxor.u32 %v4784, 2147483648
        %v4801 = vxor.u32 %v4785, 2147483648
        %v4802 = vxor.u32 %v4786, 2147483648
        %v4803 = vxor.u32 %v4787, 2147483648
        %v4804 = vxor.u32 %v4788, 2147483648
        %v4805 = vxor.u32 %v4789, 2147483648
        %v4806 = vxor.u32 %v4790, 2147483648
        %v4807 = vxor.u32 %v4791, 2147483648
        %v4808 = vxor.u32 %v4792, 2147483648
        %v4809 = vxor.u32 %v4793, 2147483648
        %v4810 = vxor.u32 %v4794, 2147483648
        %v4811 = vxor.u32 %v4795, 2147483648
        %v4812 = vmul.f32 %v4796, 1.442695
        %v4813 = vpow.pop %v4812
        %v4814 = vmul.f32 %v4797, 1.442695
        %v4815 = vpow.pop %v4814
        %v4816 = vmul.f32 %v4798, 1.442695
        %v4817 = vpow.pop %v4816
        %v4818 = vmul.f32 %v4799, 1.442695
        %v4819 = vpow.pop %v4818
        %v4820 = vmul.f32 %v4800, 1.442695
        %v4821 = vpow.pop %v4820
        %v4822 = vmul.f32 %v4801, 1.442695
        %v4823 = vpow.pop %v4822
        %v4824 = vmul.f32 %v4802, 1.442695
        %v4825 = vpow.pop %v4824
        %v4826 = vmul.f32 %v4803, 1.442695
        %v4827 = vpow.pop %v4826
        %v4828 = vmul.f32 %v4804, 1.442695
        %v4829 = vpow.pop %v4828
        %v4830 = vmul.f32 %v4805, 1.442695
        %v4831 = vpow.pop %v4830
        %v4832 = vmul.f32 %v4806, 1.442695
        %v4833 = vpow.pop %v4832
        %v4834 = vmul.f32 %v4807, 1.442695
        %v4835 = vpow.pop %v4834
        %v4836 = vmul.f32 %v4808, 1.442695
        %v4837 = vpow.pop %v4836
        %v4838 = vmul.f32 %v4809, 1.442695
        %v4839 = vpow.pop %v4838
        %v4840 = vmul.f32 %v4810, 1.442695
        %v4841 = vpow.pop %v4840
        %v4842 = vmul.f32 %v4811, 1.442695
        %v4843 = vpow.pop %v4842
        %v4844 = vadd.f32 %v4813, 1.0
        %v4845 = vadd.f32 %v4815, 1.0
        %v4846 = vadd.f32 %v4817, 1.0
        %v4847 = vadd.f32 %v4819, 1.0
        %v4848 = vadd.f32 %v4821, 1.0
        %v4849 = vadd.f32 %v4823, 1.0
        %v4850 = vadd.f32 %v4825, 1.0
        %v4851 = vadd.f32 %v4827, 1.0
        %v4852 = vadd.f32 %v4829, 1.0
        %v4853 = vadd.f32 %v4831, 1.0
        %v4854 = vadd.f32 %v4833, 1.0
        %v4855 = vadd.f32 %v4835, 1.0
        %v4856 = vadd.f32 %v4837, 1.0
        %v4857 = vadd.f32 %v4839, 1.0
        %v4858 = vadd.f32 %v4841, 1.0
        %v4859 = vadd.f32 %v4843, 1.0
        %v4860 = vrcp.pop %v4844
        %v4861 = vmul.f32 1.0, %v4860
        %v4862 = vrcp.pop %v4845
        %v4863 = vmul.f32 1.0, %v4862
        %v4864 = vrcp.pop %v4846
        %v4865 = vmul.f32 1.0, %v4864
        %v4866 = vrcp.pop %v4847
        %v4867 = vmul.f32 1.0, %v4866
        %v4868 = vrcp.pop %v4848
        %v4869 = vmul.f32 1.0, %v4868
        %v4870 = vrcp.pop %v4849
        %v4871 = vmul.f32 1.0, %v4870
        %v4872 = vrcp.pop %v4850
        %v4873 = vmul.f32 1.0, %v4872
        %v4874 = vrcp.pop %v4851
        %v4875 = vmul.f32 1.0, %v4874
        %v4876 = vrcp.pop %v4852
        %v4877 = vmul.f32 1.0, %v4876
        %v4878 = vrcp.pop %v4853
        %v4879 = vmul.f32 1.0, %v4878
        %v4880 = vrcp.pop %v4854
        %v4881 = vmul.f32 1.0, %v4880
        %v4882 = vrcp.pop %v4855
        %v4883 = vmul.f32 1.0, %v4882
        %v4884 = vrcp.pop %v4856
        %v4885 = vmul.f32 1.0, %v4884
        %v4886 = vrcp.pop %v4857
        %v4887 = vmul.f32 1.0, %v4886
        %v4888 = vrcp.pop %v4858
        %v4889 = vmul.f32 1.0, %v4888
        %v4890 = vrcp.pop %v4859
        %v4891 = vmul.f32 1.0, %v4890
        %v4894 = vrot.slane %v4665, 2
        %v4895 = vrot.slane %v4665, 3
        %v4896 = vrot.slane %v4665, 4
        %v4897 = vrot.slane %v4665, 5
        %v4898 = vrot.slane %v4665, 6
        %v4899 = vrot.slane %v4665, 7
        %v4900 = vrot.slane %v4665, 1
        %v4901 = vrot.slane %v4671, 2
        %v4902 = vrot.slane %v4671, 3
        %v4903 = vrot.slane %v4671, 4
        %v4904 = vrot.slane %v4671, 5
        %v4905 = vrot.slane %v4671, 6
        %v4906 = vrot.slane %v4671, 7
        %v4907 = vrot.slane %v4671, 1
        %v4924 = vadd.f32 %v434, %v4894
        %v4925 = vadd.f32 %v437, %v4895
        %v4926 = vadd.f32 %v440, %v4896
        %v4927 = vadd.f32 %v443, %v4897
        %v4928 = vadd.f32 %v446, %v4898
        %v4929 = vadd.f32 %v449, %v4899
        %v4930 = vadd.f32 %v452, %v4665
        %v4931 = vadd.f32 %v455, %v4900
        %v4932 = vadd.f32 %v458, %v4901
        %v4933 = vadd.f32 %v461, %v4902
        %v4934 = vadd.f32 %v464, %v4903
        %v4935 = vadd.f32 %v467, %v4904
        %v4936 = vadd.f32 %v470, %v4905
        %v4937 = vadd.f32 %v473, %v4906
        %v4938 = vadd.f32 %v476, %v4671
        %v4939 = vadd.f32 %v479, %v4907
        %v4940 = vxor.u32 %v4924, 2147483648
        %v4941 = vxor.u32 %v4925, 2147483648
        %v4942 = vxor.u32 %v4926, 2147483648
        %v4943 = vxor.u32 %v4927, 2147483648
        %v4944 = vxor.u32 %v4928, 2147483648
        %v4945 = vxor.u32 %v4929, 2147483648
        %v4946 = vxor.u32 %v4930, 2147483648
        %v4947 = vxor.u32 %v4931, 2147483648
        %v4948 = vxor.u32 %v4932, 2147483648
        %v4949 = vxor.u32 %v4933, 2147483648
        %v4950 = vxor.u32 %v4934, 2147483648
        %v4951 = vxor.u32 %v4935, 2147483648
        %v4952 = vxor.u32 %v4936, 2147483648
        %v4953 = vxor.u32 %v4937, 2147483648
        %v4954 = vxor.u32 %v4938, 2147483648
        %v4955 = vxor.u32 %v4939, 2147483648
        %v4956 = vmul.f32 %v4940, 1.442695
        %v4957 = vpow.pop %v4956
        %v4958 = vmul.f32 %v4941, 1.442695
        %v4959 = vpow.pop %v4958
        %v4960 = vmul.f32 %v4942, 1.442695
        %v4961 = vpow.pop %v4960
        %v4962 = vmul.f32 %v4943, 1.442695
        %v4963 = vpow.pop %v4962
        %v4964 = vmul.f32 %v4944, 1.442695
        %v4965 = vpow.pop %v4964
        %v4966 = vmul.f32 %v4945, 1.442695
        %v4967 = vpow.pop %v4966
        %v4968 = vmul.f32 %v4946, 1.442695
        %v4969 = vpow.pop %v4968
        %v4970 = vmul.f32 %v4947, 1.442695
        %v4971 = vpow.pop %v4970
        %v4972 = vmul.f32 %v4948, 1.442695
        %v4973 = vpow.pop %v4972
        %v4974 = vmul.f32 %v4949, 1.442695
        %v4975 = vpow.pop %v4974
        %v4976 = vmul.f32 %v4950, 1.442695
        %v4977 = vpow.pop %v4976
        %v4978 = vmul.f32 %v4951, 1.442695
        %v4979 = vpow.pop %v4978
        %v4980 = vmul.f32 %v4952, 1.442695
        %v4981 = vpow.pop %v4980
        %v4982 = vmul.f32 %v4953, 1.442695
        %v4983 = vpow.pop %v4982
        %v4984 = vmul.f32 %v4954, 1.442695
        %v4985 = vpow.pop %v4984
        %v4986 = vmul.f32 %v4955, 1.442695
        %v4987 = vpow.pop %v4986
        %v4988 = vadd.f32 %v4957, 1.0
        %v4989 = vadd.f32 %v4959, 1.0
        %v4990 = vadd.f32 %v4961, 1.0
        %v4991 = vadd.f32 %v4963, 1.0
        %v4992 = vadd.f32 %v4965, 1.0
        %v4993 = vadd.f32 %v4967, 1.0
        %v4994 = vadd.f32 %v4969, 1.0
        %v4995 = vadd.f32 %v4971, 1.0
        %v4996 = vadd.f32 %v4973, 1.0
        %v4997 = vadd.f32 %v4975, 1.0
        %v4998 = vadd.f32 %v4977, 1.0
        %v4999 = vadd.f32 %v4979, 1.0
        %v5000 = vadd.f32 %v4981, 1.0
        %v5001 = vadd.f32 %v4983, 1.0
        %v5002 = vadd.f32 %v4985, 1.0
        %v5003 = vadd.f32 %v4987, 1.0
        %v5004 = vrcp.pop %v4988
        %v5005 = vmul.f32 1.0, %v5004
        %v5006 = vrcp.pop %v4989
        %v5007 = vmul.f32 1.0, %v5006
        %v5008 = vrcp.pop %v4990
        %v5009 = vmul.f32 1.0, %v5008
        %v5010 = vrcp.pop %v4991
        %v5011 = vmul.f32 1.0, %v5010
        %v5012 = vrcp.pop %v4992
        %v5013 = vmul.f32 1.0, %v5012
        %v5014 = vrcp.pop %v4993
        %v5015 = vmul.f32 1.0, %v5014
        %v5016 = vrcp.pop %v4994
        %v5017 = vmul.f32 1.0, %v5016
        %v5018 = vrcp.pop %v4995
        %v5019 = vmul.f32 1.0, %v5018
        %v5020 = vrcp.pop %v4996
        %v5021 = vmul.f32 1.0, %v5020
        %v5022 = vrcp.pop %v4997
        %v5023 = vmul.f32 1.0, %v5022
        %v5024 = vrcp.pop %v4998
        %v5025 = vmul.f32 1.0, %v5024
        %v5026 = vrcp.pop %v4999
        %v5027 = vmul.f32 1.0, %v5026
        %v5028 = vrcp.pop %v5000
        %v5029 = vmul.f32 1.0, %v5028
        %v5030 = vrcp.pop %v5001
        %v5031 = vmul.f32 1.0, %v5030
        %v5032 = vrcp.pop %v5002
        %v5033 = vmul.f32 1.0, %v5032
        %v5034 = vrcp.pop %v5003
        %v5035 = vmul.f32 1.0, %v5034
        %v5036 = vadd.f32 %v4740, %v927
        %v5037 = vadd.f32 %v4745, %v927
        %v5040 = vrot.slane %v5036, 2
        %v5041 = vrot.slane %v5036, 3
        %v5042 = vrot.slane %v5036, 4
        %v5043 = vrot.slane %v5036, 5
        %v5044 = vrot.slane %v5036, 6
        %v5045 = vrot.slane %v5036, 7
        %v5046 = vrot.slane %v5036, 1
        %v5047 = vrot.slane %v5037, 2
        %v5048 = vrot.slane %v5037, 3
        %v5049 = vrot.slane %v5037, 4
        %v5050 = vrot.slane %v5037, 5
        %v5051 = vrot.slane %v5037, 6
        %v5052 = vrot.slane %v5037, 7
        %v5053 = vrot.slane %v5037, 1
        %v5070 = vmul.f32 %v4861, %v5040
        %v5071 = vmul.f32 %v4863, %v5041
        %v5072 = vmul.f32 %v4865, %v5042
        %v5073 = vmul.f32 %v4867, %v5043
        %v5074 = vmul.f32 %v4869, %v5044
        %v5075 = vmul.f32 %v4871, %v5045
        %v5076 = vmul.f32 %v4873, %v5036
        %v5077 = vmul.f32 %v4875, %v5046
        %v5078 = vmul.f32 %v4877, %v5047
        %v5079 = vmul.f32 %v4879, %v5048
        %v5080 = vmul.f32 %v4881, %v5049
        %v5081 = vmul.f32 %v4883, %v5050
        %v5082 = vmul.f32 %v4885, %v5051
        %v5083 = vmul.f32 %v4887, %v5052
        %v5084 = vmul.f32 %v4889, %v5037
        %v5085 = vmul.f32 %v4891, %v5053
        %v5086 = vadd.f32 %v435, %v5070
        %v5087 = vadd.f32 %v438, %v5071
        %v5088 = vadd.f32 %v441, %v5072
        %v5089 = vadd.f32 %v444, %v5073
        %v5090 = vadd.f32 %v447, %v5074
        %v5091 = vadd.f32 %v450, %v5075
        %v5092 = vadd.f32 %v453, %v5076
        %v5093 = vadd.f32 %v456, %v5077
        %v5094 = vadd.f32 %v459, %v5078
        %v5095 = vadd.f32 %v462, %v5079
        %v5096 = vadd.f32 %v465, %v5080
        %v5097 = vadd.f32 %v468, %v5081
        %v5098 = vadd.f32 %v471, %v5082
        %v5099 = vadd.f32 %v474, %v5083
        %v5100 = vadd.f32 %v477, %v5084
        %v5101 = vadd.f32 %v480, %v5085
        %v5102 = vtanh.pop %v5086
        %v5103 = vtanh.pop %v5087
        %v5104 = vtanh.pop %v5088
        %v5105 = vtanh.pop %v5089
        %v5106 = vtanh.pop %v5090
        %v5107 = vtanh.pop %v5091
        %v5108 = vtanh.pop %v5092
        %v5109 = vtanh.pop %v5093
        %v5110 = vtanh.pop %v5094
        %v5111 = vtanh.pop %v5095
        %v5112 = vtanh.pop %v5096
        %v5113 = vtanh.pop %v5097
        %v5114 = vtanh.pop %v5098
        %v5115 = vtanh.pop %v5099
        %v5116 = vtanh.pop %v5100
        %v5117 = vtanh.pop %v5101
        %v5118 = vsub.f32 1.0, %v5005
        %v5119 = vsub.f32 1.0, %v5007
        %v5120 = vsub.f32 1.0, %v5009
        %v5121 = vsub.f32 1.0, %v5011
        %v5122 = vsub.f32 1.0, %v5013
        %v5123 = vsub.f32 1.0, %v5015
        %v5124 = vsub.f32 1.0, %v5017
        %v5125 = vsub.f32 1.0, %v5019
        %v5126 = vsub.f32 1.0, %v5021
        %v5127 = vsub.f32 1.0, %v5023
        %v5128 = vsub.f32 1.0, %v5025
        %v5129 = vsub.f32 1.0, %v5027
        %v5130 = vsub.f32 1.0, %v5029
        %v5131 = vsub.f32 1.0, %v5031
        %v5132 = vsub.f32 1.0, %v5033
        %v5133 = vsub.f32 1.0, %v5035
        %v5134 = vmul.f32 %v5118, %v5102
        %v5135 = vmul.f32 %v5119, %v5103
        %v5136 = vmul.f32 %v5120, %v5104
        %v5137 = vmul.f32 %v5121, %v5105
        %v5138 = vmul.f32 %v5122, %v5106
        %v5139 = vmul.f32 %v5123, %v5107
        %v5140 = vmul.f32 %v5124, %v5108
        %v5141 = vmul.f32 %v5125, %v5109
        %v5142 = vmul.f32 %v5126, %v5110
        %v5143 = vmul.f32 %v5127, %v5111
        %v5144 = vmul.f32 %v5128, %v5112
        %v5145 = vmul.f32 %v5129, %v5113
        %v5146 = vmul.f32 %v5130, %v5114
        %v5147 = vmul.f32 %v5131, %v5115
        %v5148 = vmul.f32 %v5132, %v5116
        %v5149 = vmul.f32 %v5133, %v5117
        %v5150 = vrot.slane %v4534, 7
        %v5151 = vrot.slane %v4535, 7
        %v5152 = vrot.slane %v4536, 7
        %v5153 = vrot.slane %v4537, 7
        %v5154 = vrot.slane %v4538, 7
        %v5155 = vrot.slane %v4539, 7
        %v5156 = vrot.slane %v4541, 7
        %v5157 = vrot.slane %v4542, 7
        %v5158 = vrot.slane %v4543, 7
        %v5159 = vrot.slane %v4544, 7
        %v5160 = vrot.slane %v4545, 7
        %v5161 = vrot.slane %v4546, 7
        %v5162 = vrot.slane %v4547, 7
        %v5163 = vrot.slane %v4549, 7
        %v5180 = vmul.f32 %v5005, %v5150
        %v5181 = vmul.f32 %v5007, %v5151
        %v5182 = vmul.f32 %v5009, %v5152
        %v5183 = vmul.f32 %v5011, %v5153
        %v5184 = vmul.f32 %v5013, %v5154
        %v5185 = vmul.f32 %v5015, %v5155
        %v5186 = vmul.f32 %v5017, %v4576
        %v5187 = vmul.f32 %v5019, %v5156
        %v5188 = vmul.f32 %v5021, %v5157
        %v5189 = vmul.f32 %v5023, %v5158
        %v5190 = vmul.f32 %v5025, %v5159
        %v5191 = vmul.f32 %v5027, %v5160
        %v5192 = vmul.f32 %v5029, %v5161
        %v5193 = vmul.f32 %v5031, %v5162
        %v5194 = vmul.f32 %v5033, %v4590
        %v5195 = vmul.f32 %v5035, %v5163
        %v5196 = vadd.f32 %v5134, %v5180
        %v5197 = vadd.f32 %v5135, %v5181
        %v5198 = vadd.f32 %v5136, %v5182
        %v5199 = vadd.f32 %v5137, %v5183
        %v5200 = vadd.f32 %v5138, %v5184
        %v5201 = vadd.f32 %v5139, %v5185
        %v5202 = vadd.f32 %v5140, %v5186
        %v5203 = vadd.f32 %v5141, %v5187
        %v5204 = vadd.f32 %v5142, %v5188
        %v5205 = vadd.f32 %v5143, %v5189
        %v5206 = vadd.f32 %v5144, %v5190
        %v5207 = vadd.f32 %v5145, %v5191
        %v5208 = vadd.f32 %v5146, %v5192
        %v5209 = vadd.f32 %v5147, %v5193
        %v5210 = vadd.f32 %v5148, %v5194
        %v5211 = vadd.f32 %v5149, %v5195
        %s5212 = sadd.s32 %s1107, 6
        %p5213 = scmp.lt.s32.totalorder %s5212, 12
        %s5214 = scalar_select %p5213, 1, 0
        %v5215 = vstv %s5214
        %vm5216 = vcmp.eq.s32.totalorder %v5215, 1
        %v5217 = vsel %vm5216, %v5196, %v5150
        %v5218 = vsel %vm5216, %v5197, %v5151
        %v5219 = vsel %vm5216, %v5198, %v5152
        %v5220 = vsel %vm5216, %v5199, %v5153
        %v5221 = vsel %vm5216, %v5200, %v5154
        %v5222 = vsel %vm5216, %v5201, %v5155
        %v5223 = vsel %vm5216, %v5202, %v4576
        %v5224 = vsel %vm5216, %v5203, %v5156
        %v5225 = vsel %vm5216, %v5204, %v5157
        %v5226 = vsel %vm5216, %v5205, %v5158
        %v5227 = vsel %vm5216, %v5206, %v5159
        %v5228 = vsel %vm5216, %v5207, %v5160
        %v5229 = vsel %vm5216, %v5208, %v5161
        %v5230 = vsel %vm5216, %v5209, %v5162
        %v5231 = vsel %vm5216, %v5210, %v4590
        %v5232 = vsel %vm5216, %v5211, %v5163
        %v5249 = vrot.slane %v5217, 6
        %v5250 = vrot.slane %v5218, 5
        %v5251 = vsel %vm1145, %v5250, %v5249
        %v5252 = vrot.slane %v5219, 4
        %v5253 = vsel %vm1148, %v5252, %v5251
        %v5254 = vrot.slane %v5220, 3
        %v5255 = vsel %vm1151, %v5254, %v5253
        %v5256 = vrot.slane %v5221, 2
        %v5257 = vsel %vm1154, %v5256, %v5255
        %v5258 = vrot.slane %v5222, 1
        %v5259 = vsel %vm1157, %v5258, %v5257
        %v5260 = vsel %vm1160, %v5223, %v5259
        %v5261 = vrot.slane %v5224, 7
        %v5262 = vsel %vm1163, %v5261, %v5260
        %v5263 = vrot.slane %v5225, 6
        %v5264 = vrot.slane %v5226, 5
        %v5265 = vsel %vm1145, %v5264, %v5263
        %v5266 = vrot.slane %v5227, 4
        %v5267 = vsel %vm1148, %v5266, %v5265
        %v5268 = vrot.slane %v5228, 3
        %v5269 = vsel %vm1151, %v5268, %v5267
        %v5270 = vrot.slane %v5229, 2
        %v5271 = vsel %vm1154, %v5270, %v5269
        %v5272 = vrot.slane %v5230, 1
        %v5273 = vsel %vm1157, %v5272, %v5271
        %v5274 = vsel %vm1160, %v5231, %v5273
        %v5275 = vrot.slane %v5232, 7
        %v5276 = vsel %vm1163, %v5275, %v5274
        %5279 = vmatprep.subr.mxu0 %v385
        %5280 = vmatpush1.msra.mxu0 %v384
        %5281 = vmatprep.subr.mxu0 %v388
        %5282 = vmatpush1.msra.mxu0 %v387
        %5283 = vmatprep.subr.mxu0 %v391
        %5284 = vmatpush1.msra.mxu0 %v390
        %5285 = vmatprep.subr.mxu0 %v394
        %5286 = vmatpush1.msra.mxu0 %v393
        %5287 = vmatprep.subr.mxu0 %v397
        %5288 = vmatpush1.msra.mxu0 %v396
        %5289 = vmatprep.subr.mxu0 %v400
        %5290 = vmatpush1.msra.mxu0 %v399
        %5291 = vmatprep.subr.mxu0 %v403
        %5292 = vmatpush1.msra.mxu0 %v402
        %5293 = vmatprep.subr.mxu0 %v406
        %5294 = vmatpush1.msra.mxu0 %v405
        %5295 = vmatprep.subr.mxu0 %v409
        %5296 = vmatpush1.msra.mxu0 %v408
        %5297 = vmatprep.subr.mxu0 %v412
        %5298 = vmatpush1.msra.mxu0 %v411
        %5299 = vmatprep.subr.mxu0 %v415
        %5300 = vmatpush1.msra.mxu0 %v414
        %5301 = vmatprep.subr.mxu0 %v418
        %5302 = vmatpush1.msra.mxu0 %v417
        %5303 = vmatprep.subr.mxu0 %v421
        %5304 = vmatpush1.msra.mxu0 %v420
        %5305 = vmatprep.subr.mxu0 %v424
        %5306 = vmatpush1.msra.mxu0 %v423
        %5307 = vmatprep.subr.mxu0 %v427
        %5308 = vmatpush1.msra.mxu0 %v426
        %5309 = vmatprep.subr.mxu0 %v430
        %5310 = vmatpush1.msra.mxu0 %v429
        %5311 = vmatprep.subr.mxu0 0.0
        %5312 = vmatpush1.msra.mxu0 0.0
        %5313 = vmatprep.subr.mxu0 0.0
        %5314 = vmatpush1.msra.mxu0 0.0
        %5315 = vmatprep.subr.mxu0 0.0
        %5316 = vmatpush1.msra.mxu0 0.0
        %5317 = vmatprep.subr.mxu0 0.0
        %5318 = vmatpush1.msra.mxu0 0.0
        %5319 = vmatprep.subr.mxu0 0.0
        %5320 = vmatpush1.msra.mxu0 0.0
        %5321 = vmatprep.subr.mxu0 0.0
        %5322 = vmatpush1.msra.mxu0 0.0
        %5323 = vmatprep.subr.mxu0 0.0
        %5324 = vmatpush1.msra.mxu0 0.0
        %5325 = vmatprep.subr.mxu0 0.0
        %5326 = vmatpush1.msra.mxu0 0.0
        %5327 = vmatprep.subr.mxu0 0.0
        %5328 = vmatpush1.msra.mxu0 0.0
        %5329 = vmatprep.subr.mxu0 0.0
        %5330 = vmatpush1.msra.mxu0 0.0
        %5331 = vmatprep.subr.mxu0 0.0
        %5332 = vmatpush1.msra.mxu0 0.0
        %5333 = vmatprep.subr.mxu0 0.0
        %5334 = vmatpush1.msra.mxu0 0.0
        %5335 = vmatprep.subr.mxu0 0.0
        %5336 = vmatpush1.msra.mxu0 0.0
        %5337 = vmatprep.subr.mxu0 0.0
        %5338 = vmatpush1.msra.mxu0 0.0
        %5339 = vmatprep.subr.mxu0 0.0
        %5340 = vmatpush1.msra.mxu0 0.0
        %5341 = vmatprep.subr.mxu0 0.0
        %5342 = vmatpush1.msra.mxu0 0.0
        %5343 = vmatprep.mubr.f32.mxu0 0.0
        %5344 = vmatmul.mubr.f32.gmra.mrb[0].mxu0 %v5262
        %v5345 = vpop.f32.mrb[0].mxu0
        %v5346 = vadd.f32 0.0, %v5345
        %v5347 = vpop.f32.mrb[0].mxu0
        %v5348 = vadd.f32 0.0, %v5347
        %5349 = vmatprep.mubr.f32.mxu0 0.0
        %5350 = vmatmul.mubr.f32.gmra.mrb[0].mxu0 %v5276
        %v5351 = vpop.f32.mrb[0].mxu0
        %v5352 = vadd.f32 0.0, %v5351
        %v5353 = vpop.f32.mrb[0].mxu0
        %v5354 = vadd.f32 0.0, %v5353
        %5355 = vdwg.mxu0
        %5356 = vmatprep.subr.mxu0 0.0
        %5357 = vmatpush1.msra.mxu0 %v386
        %5358 = vmatprep.subr.mxu0 0.0
        %5359 = vmatpush1.msra.mxu0 %v389
        %5360 = vmatprep.subr.mxu0 0.0
        %5361 = vmatpush1.msra.mxu0 %v392
        %5362 = vmatprep.subr.mxu0 0.0
        %5363 = vmatpush1.msra.mxu0 %v395
        %5364 = vmatprep.subr.mxu0 0.0
        %5365 = vmatpush1.msra.mxu0 %v398
        %5366 = vmatprep.subr.mxu0 0.0
        %5367 = vmatpush1.msra.mxu0 %v401
        %5368 = vmatprep.subr.mxu0 0.0
        %5369 = vmatpush1.msra.mxu0 %v404
        %5370 = vmatprep.subr.mxu0 0.0
        %5371 = vmatpush1.msra.mxu0 %v407
        %5372 = vmatprep.subr.mxu0 0.0
        %5373 = vmatpush1.msra.mxu0 %v410
        %5374 = vmatprep.subr.mxu0 0.0
        %5375 = vmatpush1.msra.mxu0 %v413
        %5376 = vmatprep.subr.mxu0 0.0
        %5377 = vmatpush1.msra.mxu0 %v416
        %5378 = vmatprep.subr.mxu0 0.0
        %5379 = vmatpush1.msra.mxu0 %v419
        %5380 = vmatprep.subr.mxu0 0.0
        %5381 = vmatpush1.msra.mxu0 %v422
        %5382 = vmatprep.subr.mxu0 0.0
        %5383 = vmatpush1.msra.mxu0 %v425
        %5384 = vmatprep.subr.mxu0 0.0
        %5385 = vmatpush1.msra.mxu0 %v428
        %5386 = vmatprep.subr.mxu0 0.0
        %5387 = vmatpush1.msra.mxu0 %v431
        %5388 = vmatprep.subr.mxu0 0.0
        %5389 = vmatpush1.msra.mxu0 0.0
        %5390 = vmatprep.subr.mxu0 0.0
        %5391 = vmatpush1.msra.mxu0 0.0
        %5392 = vmatprep.subr.mxu0 0.0
        %5393 = vmatpush1.msra.mxu0 0.0
        %5394 = vmatprep.subr.mxu0 0.0
        %5395 = vmatpush1.msra.mxu0 0.0
        %5396 = vmatprep.subr.mxu0 0.0
        %5397 = vmatpush1.msra.mxu0 0.0
        %5398 = vmatprep.subr.mxu0 0.0
        %5399 = vmatpush1.msra.mxu0 0.0
        %5400 = vmatprep.subr.mxu0 0.0
        %5401 = vmatpush1.msra.mxu0 0.0
        %5402 = vmatprep.subr.mxu0 0.0
        %5403 = vmatpush1.msra.mxu0 0.0
        %5404 = vmatprep.subr.mxu0 0.0
        %5405 = vmatpush1.msra.mxu0 0.0
        %5406 = vmatprep.subr.mxu0 0.0
        %5407 = vmatpush1.msra.mxu0 0.0
        %5408 = vmatprep.subr.mxu0 0.0
        %5409 = vmatpush1.msra.mxu0 0.0
        %5410 = vmatprep.subr.mxu0 0.0
        %5411 = vmatpush1.msra.mxu0 0.0
        %5412 = vmatprep.subr.mxu0 0.0
        %5413 = vmatpush1.msra.mxu0 0.0
        %5414 = vmatprep.subr.mxu0 0.0
        %5415 = vmatpush1.msra.mxu0 0.0
        %5416 = vmatprep.subr.mxu0 0.0
        %5417 = vmatpush1.msra.mxu0 0.0
        %5418 = vmatprep.subr.mxu0 0.0
        %5419 = vmatpush1.msra.mxu0 0.0
        %5420 = vmatprep.mubr.f32.mxu0 0.0
        %5421 = vmatmul.mubr.f32.gmra.mrb[0].mxu0 %v5262
        %v5422 = vpop.f32.mrb[0].mxu0
        %v5423 = vadd.f32 0.0, %v5422
        %v5424 = vpop.f32.mrb[0].mxu0
        %5425 = vmatprep.mubr.f32.mxu0 0.0
        %5426 = vmatmul.mubr.f32.gmra.mrb[0].mxu0 %v5276
        %v5427 = vpop.f32.mrb[0].mxu0
        %v5428 = vadd.f32 0.0, %v5427
        %v5429 = vpop.f32.mrb[0].mxu0
        %5430 = vdwg.mxu0
        %v5433 = vrot.slane %v5346, 1
        %v5434 = vrot.slane %v5346, 2
        %v5435 = vrot.slane %v5346, 3
        %v5436 = vrot.slane %v5346, 4
        %v5437 = vrot.slane %v5346, 5
        %v5438 = vrot.slane %v5346, 6
        %v5439 = vrot.slane %v5346, 7
        %v5440 = vrot.slane %v5352, 1
        %v5441 = vrot.slane %v5352, 2
        %v5442 = vrot.slane %v5352, 3
        %v5443 = vrot.slane %v5352, 4
        %v5444 = vrot.slane %v5352, 5
        %v5445 = vrot.slane %v5352, 6
        %v5446 = vrot.slane %v5352, 7
        %v5463 = vadd.f32 %v433, %v5433
        %v5464 = vadd.f32 %v436, %v5434
        %v5465 = vadd.f32 %v439, %v5435
        %v5466 = vadd.f32 %v442, %v5436
        %v5467 = vadd.f32 %v445, %v5437
        %v5468 = vadd.f32 %v448, %v5438
        %v5469 = vadd.f32 %v451, %v5439
        %v5470 = vadd.f32 %v454, %v5346
        %v5471 = vadd.f32 %v457, %v5440
        %v5472 = vadd.f32 %v460, %v5441
        %v5473 = vadd.f32 %v463, %v5442
        %v5474 = vadd.f32 %v466, %v5443
        %v5475 = vadd.f32 %v469, %v5444
        %v5476 = vadd.f32 %v472, %v5445
        %v5477 = vadd.f32 %v475, %v5446
        %v5478 = vadd.f32 %v478, %v5352
        %v5479 = vxor.u32 %v5463, 2147483648
        %v5480 = vxor.u32 %v5464, 2147483648
        %v5481 = vxor.u32 %v5465, 2147483648
        %v5482 = vxor.u32 %v5466, 2147483648
        %v5483 = vxor.u32 %v5467, 2147483648
        %v5484 = vxor.u32 %v5468, 2147483648
        %v5485 = vxor.u32 %v5469, 2147483648
        %v5486 = vxor.u32 %v5470, 2147483648
        %v5487 = vxor.u32 %v5471, 2147483648
        %v5488 = vxor.u32 %v5472, 2147483648
        %v5489 = vxor.u32 %v5473, 2147483648
        %v5490 = vxor.u32 %v5474, 2147483648
        %v5491 = vxor.u32 %v5475, 2147483648
        %v5492 = vxor.u32 %v5476, 2147483648
        %v5493 = vxor.u32 %v5477, 2147483648
        %v5494 = vxor.u32 %v5478, 2147483648
        %v5495 = vmul.f32 %v5479, 1.442695
        %v5496 = vpow.pop %v5495
        %v5497 = vmul.f32 %v5480, 1.442695
        %v5498 = vpow.pop %v5497
        %v5499 = vmul.f32 %v5481, 1.442695
        %v5500 = vpow.pop %v5499
        %v5501 = vmul.f32 %v5482, 1.442695
        %v5502 = vpow.pop %v5501
        %v5503 = vmul.f32 %v5483, 1.442695
        %v5504 = vpow.pop %v5503
        %v5505 = vmul.f32 %v5484, 1.442695
        %v5506 = vpow.pop %v5505
        %v5507 = vmul.f32 %v5485, 1.442695
        %v5508 = vpow.pop %v5507
        %v5509 = vmul.f32 %v5486, 1.442695
        %v5510 = vpow.pop %v5509
        %v5511 = vmul.f32 %v5487, 1.442695
        %v5512 = vpow.pop %v5511
        %v5513 = vmul.f32 %v5488, 1.442695
        %v5514 = vpow.pop %v5513
        %v5515 = vmul.f32 %v5489, 1.442695
        %v5516 = vpow.pop %v5515
        %v5517 = vmul.f32 %v5490, 1.442695
        %v5518 = vpow.pop %v5517
        %v5519 = vmul.f32 %v5491, 1.442695
        %v5520 = vpow.pop %v5519
        %v5521 = vmul.f32 %v5492, 1.442695
        %v5522 = vpow.pop %v5521
        %v5523 = vmul.f32 %v5493, 1.442695
        %v5524 = vpow.pop %v5523
        %v5525 = vmul.f32 %v5494, 1.442695
        %v5526 = vpow.pop %v5525
        %v5527 = vadd.f32 %v5496, 1.0
        %v5528 = vadd.f32 %v5498, 1.0
        %v5529 = vadd.f32 %v5500, 1.0
        %v5530 = vadd.f32 %v5502, 1.0
        %v5531 = vadd.f32 %v5504, 1.0
        %v5532 = vadd.f32 %v5506, 1.0
        %v5533 = vadd.f32 %v5508, 1.0
        %v5534 = vadd.f32 %v5510, 1.0
        %v5535 = vadd.f32 %v5512, 1.0
        %v5536 = vadd.f32 %v5514, 1.0
        %v5537 = vadd.f32 %v5516, 1.0
        %v5538 = vadd.f32 %v5518, 1.0
        %v5539 = vadd.f32 %v5520, 1.0
        %v5540 = vadd.f32 %v5522, 1.0
        %v5541 = vadd.f32 %v5524, 1.0
        %v5542 = vadd.f32 %v5526, 1.0
        %v5543 = vrcp.pop %v5527
        %v5544 = vmul.f32 1.0, %v5543
        %v5545 = vrcp.pop %v5528
        %v5546 = vmul.f32 1.0, %v5545
        %v5547 = vrcp.pop %v5529
        %v5548 = vmul.f32 1.0, %v5547
        %v5549 = vrcp.pop %v5530
        %v5550 = vmul.f32 1.0, %v5549
        %v5551 = vrcp.pop %v5531
        %v5552 = vmul.f32 1.0, %v5551
        %v5553 = vrcp.pop %v5532
        %v5554 = vmul.f32 1.0, %v5553
        %v5555 = vrcp.pop %v5533
        %v5556 = vmul.f32 1.0, %v5555
        %v5557 = vrcp.pop %v5534
        %v5558 = vmul.f32 1.0, %v5557
        %v5559 = vrcp.pop %v5535
        %v5560 = vmul.f32 1.0, %v5559
        %v5561 = vrcp.pop %v5536
        %v5562 = vmul.f32 1.0, %v5561
        %v5563 = vrcp.pop %v5537
        %v5564 = vmul.f32 1.0, %v5563
        %v5565 = vrcp.pop %v5538
        %v5566 = vmul.f32 1.0, %v5565
        %v5567 = vrcp.pop %v5539
        %v5568 = vmul.f32 1.0, %v5567
        %v5569 = vrcp.pop %v5540
        %v5570 = vmul.f32 1.0, %v5569
        %v5571 = vrcp.pop %v5541
        %v5572 = vmul.f32 1.0, %v5571
        %v5573 = vrcp.pop %v5542
        %v5574 = vmul.f32 1.0, %v5573
        %v5577 = vrot.slane %v5348, 1
        %v5578 = vrot.slane %v5348, 2
        %v5579 = vrot.slane %v5348, 3
        %v5580 = vrot.slane %v5348, 4
        %v5581 = vrot.slane %v5348, 5
        %v5582 = vrot.slane %v5348, 6
        %v5583 = vrot.slane %v5348, 7
        %v5584 = vrot.slane %v5354, 1
        %v5585 = vrot.slane %v5354, 2
        %v5586 = vrot.slane %v5354, 3
        %v5587 = vrot.slane %v5354, 4
        %v5588 = vrot.slane %v5354, 5
        %v5589 = vrot.slane %v5354, 6
        %v5590 = vrot.slane %v5354, 7
        %v5607 = vadd.f32 %v434, %v5577
        %v5608 = vadd.f32 %v437, %v5578
        %v5609 = vadd.f32 %v440, %v5579
        %v5610 = vadd.f32 %v443, %v5580
        %v5611 = vadd.f32 %v446, %v5581
        %v5612 = vadd.f32 %v449, %v5582
        %v5613 = vadd.f32 %v452, %v5583
        %v5614 = vadd.f32 %v455, %v5348
        %v5615 = vadd.f32 %v458, %v5584
        %v5616 = vadd.f32 %v461, %v5585
        %v5617 = vadd.f32 %v464, %v5586
        %v5618 = vadd.f32 %v467, %v5587
        %v5619 = vadd.f32 %v470, %v5588
        %v5620 = vadd.f32 %v473, %v5589
        %v5621 = vadd.f32 %v476, %v5590
        %v5622 = vadd.f32 %v479, %v5354
        %v5623 = vxor.u32 %v5607, 2147483648
        %v5624 = vxor.u32 %v5608, 2147483648
        %v5625 = vxor.u32 %v5609, 2147483648
        %v5626 = vxor.u32 %v5610, 2147483648
        %v5627 = vxor.u32 %v5611, 2147483648
        %v5628 = vxor.u32 %v5612, 2147483648
        %v5629 = vxor.u32 %v5613, 2147483648
        %v5630 = vxor.u32 %v5614, 2147483648
        %v5631 = vxor.u32 %v5615, 2147483648
        %v5632 = vxor.u32 %v5616, 2147483648
        %v5633 = vxor.u32 %v5617, 2147483648
        %v5634 = vxor.u32 %v5618, 2147483648
        %v5635 = vxor.u32 %v5619, 2147483648
        %v5636 = vxor.u32 %v5620, 2147483648
        %v5637 = vxor.u32 %v5621, 2147483648
        %v5638 = vxor.u32 %v5622, 2147483648
        %v5639 = vmul.f32 %v5623, 1.442695
        %v5640 = vpow.pop %v5639
        %v5641 = vmul.f32 %v5624, 1.442695
        %v5642 = vpow.pop %v5641
        %v5643 = vmul.f32 %v5625, 1.442695
        %v5644 = vpow.pop %v5643
        %v5645 = vmul.f32 %v5626, 1.442695
        %v5646 = vpow.pop %v5645
        %v5647 = vmul.f32 %v5627, 1.442695
        %v5648 = vpow.pop %v5647
        %v5649 = vmul.f32 %v5628, 1.442695
        %v5650 = vpow.pop %v5649
        %v5651 = vmul.f32 %v5629, 1.442695
        %v5652 = vpow.pop %v5651
        %v5653 = vmul.f32 %v5630, 1.442695
        %v5654 = vpow.pop %v5653
        %v5655 = vmul.f32 %v5631, 1.442695
        %v5656 = vpow.pop %v5655
        %v5657 = vmul.f32 %v5632, 1.442695
        %v5658 = vpow.pop %v5657
        %v5659 = vmul.f32 %v5633, 1.442695
        %v5660 = vpow.pop %v5659
        %v5661 = vmul.f32 %v5634, 1.442695
        %v5662 = vpow.pop %v5661
        %v5663 = vmul.f32 %v5635, 1.442695
        %v5664 = vpow.pop %v5663
        %v5665 = vmul.f32 %v5636, 1.442695
        %v5666 = vpow.pop %v5665
        %v5667 = vmul.f32 %v5637, 1.442695
        %v5668 = vpow.pop %v5667
        %v5669 = vmul.f32 %v5638, 1.442695
        %v5670 = vpow.pop %v5669
        %v5671 = vadd.f32 %v5640, 1.0
        %v5672 = vadd.f32 %v5642, 1.0
        %v5673 = vadd.f32 %v5644, 1.0
        %v5674 = vadd.f32 %v5646, 1.0
        %v5675 = vadd.f32 %v5648, 1.0
        %v5676 = vadd.f32 %v5650, 1.0
        %v5677 = vadd.f32 %v5652, 1.0
        %v5678 = vadd.f32 %v5654, 1.0
        %v5679 = vadd.f32 %v5656, 1.0
        %v5680 = vadd.f32 %v5658, 1.0
        %v5681 = vadd.f32 %v5660, 1.0
        %v5682 = vadd.f32 %v5662, 1.0
        %v5683 = vadd.f32 %v5664, 1.0
        %v5684 = vadd.f32 %v5666, 1.0
        %v5685 = vadd.f32 %v5668, 1.0
        %v5686 = vadd.f32 %v5670, 1.0
        %v5687 = vrcp.pop %v5671
        %v5688 = vmul.f32 1.0, %v5687
        %v5689 = vrcp.pop %v5672
        %v5690 = vmul.f32 1.0, %v5689
        %v5691 = vrcp.pop %v5673
        %v5692 = vmul.f32 1.0, %v5691
        %v5693 = vrcp.pop %v5674
        %v5694 = vmul.f32 1.0, %v5693
        %v5695 = vrcp.pop %v5675
        %v5696 = vmul.f32 1.0, %v5695
        %v5697 = vrcp.pop %v5676
        %v5698 = vmul.f32 1.0, %v5697
        %v5699 = vrcp.pop %v5677
        %v5700 = vmul.f32 1.0, %v5699
        %v5701 = vrcp.pop %v5678
        %v5702 = vmul.f32 1.0, %v5701
        %v5703 = vrcp.pop %v5679
        %v5704 = vmul.f32 1.0, %v5703
        %v5705 = vrcp.pop %v5680
        %v5706 = vmul.f32 1.0, %v5705
        %v5707 = vrcp.pop %v5681
        %v5708 = vmul.f32 1.0, %v5707
        %v5709 = vrcp.pop %v5682
        %v5710 = vmul.f32 1.0, %v5709
        %v5711 = vrcp.pop %v5683
        %v5712 = vmul.f32 1.0, %v5711
        %v5713 = vrcp.pop %v5684
        %v5714 = vmul.f32 1.0, %v5713
        %v5715 = vrcp.pop %v5685
        %v5716 = vmul.f32 1.0, %v5715
        %v5717 = vrcp.pop %v5686
        %v5718 = vmul.f32 1.0, %v5717
        %v5719 = vadd.f32 %v5423, %v927
        %v5720 = vadd.f32 %v5428, %v927
        %v5723 = vrot.slane %v5719, 1
        %v5724 = vrot.slane %v5719, 2
        %v5725 = vrot.slane %v5719, 3
        %v5726 = vrot.slane %v5719, 4
        %v5727 = vrot.slane %v5719, 5
        %v5728 = vrot.slane %v5719, 6
        %v5729 = vrot.slane %v5719, 7
        %v5730 = vrot.slane %v5720, 1
        %v5731 = vrot.slane %v5720, 2
        %v5732 = vrot.slane %v5720, 3
        %v5733 = vrot.slane %v5720, 4
        %v5734 = vrot.slane %v5720, 5
        %v5735 = vrot.slane %v5720, 6
        %v5736 = vrot.slane %v5720, 7
        %v5753 = vmul.f32 %v5544, %v5723
        %v5754 = vmul.f32 %v5546, %v5724
        %v5755 = vmul.f32 %v5548, %v5725
        %v5756 = vmul.f32 %v5550, %v5726
        %v5757 = vmul.f32 %v5552, %v5727
        %v5758 = vmul.f32 %v5554, %v5728
        %v5759 = vmul.f32 %v5556, %v5729
        %v5760 = vmul.f32 %v5558, %v5719
        %v5761 = vmul.f32 %v5560, %v5730
        %v5762 = vmul.f32 %v5562, %v5731
        %v5763 = vmul.f32 %v5564, %v5732
        %v5764 = vmul.f32 %v5566, %v5733
        %v5765 = vmul.f32 %v5568, %v5734
        %v5766 = vmul.f32 %v5570, %v5735
        %v5767 = vmul.f32 %v5572, %v5736
        %v5768 = vmul.f32 %v5574, %v5720
        %v5769 = vadd.f32 %v435, %v5753
        %v5770 = vadd.f32 %v438, %v5754
        %v5771 = vadd.f32 %v441, %v5755
        %v5772 = vadd.f32 %v444, %v5756
        %v5773 = vadd.f32 %v447, %v5757
        %v5774 = vadd.f32 %v450, %v5758
        %v5775 = vadd.f32 %v453, %v5759
        %v5776 = vadd.f32 %v456, %v5760
        %v5777 = vadd.f32 %v459, %v5761
        %v5778 = vadd.f32 %v462, %v5762
        %v5779 = vadd.f32 %v465, %v5763
        %v5780 = vadd.f32 %v468, %v5764
        %v5781 = vadd.f32 %v471, %v5765
        %v5782 = vadd.f32 %v474, %v5766
        %v5783 = vadd.f32 %v477, %v5767
        %v5784 = vadd.f32 %v480, %v5768
        %v5785 = vtanh.pop %v5769
        %v5786 = vtanh.pop %v5770
        %v5787 = vtanh.pop %v5771
        %v5788 = vtanh.pop %v5772
        %v5789 = vtanh.pop %v5773
        %v5790 = vtanh.pop %v5774
        %v5791 = vtanh.pop %v5775
        %v5792 = vtanh.pop %v5776
        %v5793 = vtanh.pop %v5777
        %v5794 = vtanh.pop %v5778
        %v5795 = vtanh.pop %v5779
        %v5796 = vtanh.pop %v5780
        %v5797 = vtanh.pop %v5781
        %v5798 = vtanh.pop %v5782
        %v5799 = vtanh.pop %v5783
        %v5800 = vtanh.pop %v5784
        %v5801 = vsub.f32 1.0, %v5688
        %v5802 = vsub.f32 1.0, %v5690
        %v5803 = vsub.f32 1.0, %v5692
        %v5804 = vsub.f32 1.0, %v5694
        %v5805 = vsub.f32 1.0, %v5696
        %v5806 = vsub.f32 1.0, %v5698
        %v5807 = vsub.f32 1.0, %v5700
        %v5808 = vsub.f32 1.0, %v5702
        %v5809 = vsub.f32 1.0, %v5704
        %v5810 = vsub.f32 1.0, %v5706
        %v5811 = vsub.f32 1.0, %v5708
        %v5812 = vsub.f32 1.0, %v5710
        %v5813 = vsub.f32 1.0, %v5712
        %v5814 = vsub.f32 1.0, %v5714
        %v5815 = vsub.f32 1.0, %v5716
        %v5816 = vsub.f32 1.0, %v5718
        %v5817 = vmul.f32 %v5801, %v5785
        %v5818 = vmul.f32 %v5802, %v5786
        %v5819 = vmul.f32 %v5803, %v5787
        %v5820 = vmul.f32 %v5804, %v5788
        %v5821 = vmul.f32 %v5805, %v5789
        %v5822 = vmul.f32 %v5806, %v5790
        %v5823 = vmul.f32 %v5807, %v5791
        %v5824 = vmul.f32 %v5808, %v5792
        %v5825 = vmul.f32 %v5809, %v5793
        %v5826 = vmul.f32 %v5810, %v5794
        %v5827 = vmul.f32 %v5811, %v5795
        %v5828 = vmul.f32 %v5812, %v5796
        %v5829 = vmul.f32 %v5813, %v5797
        %v5830 = vmul.f32 %v5814, %v5798
        %v5831 = vmul.f32 %v5815, %v5799
        %v5832 = vmul.f32 %v5816, %v5800
        %v5833 = vrot.slane %v5217, 7
        %v5834 = vrot.slane %v5218, 7
        %v5835 = vrot.slane %v5219, 7
        %v5836 = vrot.slane %v5220, 7
        %v5837 = vrot.slane %v5221, 7
        %v5838 = vrot.slane %v5222, 7
        %v5839 = vrot.slane %v5223, 7
        %v5840 = vrot.slane %v5225, 7
        %v5841 = vrot.slane %v5226, 7
        %v5842 = vrot.slane %v5227, 7
        %v5843 = vrot.slane %v5228, 7
        %v5844 = vrot.slane %v5229, 7
        %v5845 = vrot.slane %v5230, 7
        %v5846 = vrot.slane %v5231, 7
        %v5863 = vmul.f32 %v5688, %v5833
        %v5864 = vmul.f32 %v5690, %v5834
        %v5865 = vmul.f32 %v5692, %v5835
        %v5866 = vmul.f32 %v5694, %v5836
        %v5867 = vmul.f32 %v5696, %v5837
        %v5868 = vmul.f32 %v5698, %v5838
        %v5869 = vmul.f32 %v5700, %v5839
        %v5870 = vmul.f32 %v5702, %v5261
        %v5871 = vmul.f32 %v5704, %v5840
        %v5872 = vmul.f32 %v5706, %v5841
        %v5873 = vmul.f32 %v5708, %v5842
        %v5874 = vmul.f32 %v5710, %v5843
        %v5875 = vmul.f32 %v5712, %v5844
        %v5876 = vmul.f32 %v5714, %v5845
        %v5877 = vmul.f32 %v5716, %v5846
        %v5878 = vmul.f32 %v5718, %v5275
        %v5879 = vadd.f32 %v5817, %v5863
        %v5880 = vadd.f32 %v5818, %v5864
        %v5881 = vadd.f32 %v5819, %v5865
        %v5882 = vadd.f32 %v5820, %v5866
        %v5883 = vadd.f32 %v5821, %v5867
        %v5884 = vadd.f32 %v5822, %v5868
        %v5885 = vadd.f32 %v5823, %v5869
        %v5886 = vadd.f32 %v5824, %v5870
        %v5887 = vadd.f32 %v5825, %v5871
        %v5888 = vadd.f32 %v5826, %v5872
        %v5889 = vadd.f32 %v5827, %v5873
        %v5890 = vadd.f32 %v5828, %v5874
        %v5891 = vadd.f32 %v5829, %v5875
        %v5892 = vadd.f32 %v5830, %v5876
        %v5893 = vadd.f32 %v5831, %v5877
        %v5894 = vadd.f32 %v5832, %v5878
        %s5895 = sadd.s32 %s1107, 7
        %p5896 = scmp.lt.s32.totalorder %s5895, 12
        %s5897 = scalar_select %p5896, 1, 0
        %v5898 = vstv %s5897
        %vm5899 = vcmp.eq.s32.totalorder %v5898, 1
        %v5900 = vsel %vm5899, %v5879, %v5833
        %v5901 = vsel %vm5899, %v5880, %v5834
        %v5902 = vsel %vm5899, %v5881, %v5835
        %v5903 = vsel %vm5899, %v5882, %v5836
        %v5904 = vsel %vm5899, %v5883, %v5837
        %v5905 = vsel %vm5899, %v5884, %v5838
        %v5906 = vsel %vm5899, %v5885, %v5839
        %v5907 = vsel %vm5899, %v5886, %v5261
        %v5908 = vsel %vm5899, %v5887, %v5840
        %v5909 = vsel %vm5899, %v5888, %v5841
        %v5910 = vsel %vm5899, %v5889, %v5842
        %v5911 = vsel %vm5899, %v5890, %v5843
        %v5912 = vsel %vm5899, %v5891, %v5844
        %v5913 = vsel %vm5899, %v5892, %v5845
        %v5914 = vsel %vm5899, %v5893, %v5846
        %v5915 = vsel %vm5899, %v5894, %v5275
        %v5932 = vrot.slane %v5901, 7
        %v5933 = vrot.slane %v5902, 6
        %v5934 = vsel %vm1145, %v5933, %v5932
        %v5935 = vrot.slane %v5903, 5
        %v5936 = vsel %vm1148, %v5935, %v5934
        %v5937 = vrot.slane %v5904, 4
        %v5938 = vsel %vm1151, %v5937, %v5936
        %v5939 = vrot.slane %v5905, 3
        %v5940 = vsel %vm1154, %v5939, %v5938
        %v5941 = vrot.slane %v5906, 2
        %v5942 = vsel %vm1157, %v5941, %v5940
        %v5943 = vrot.slane %v5907, 1
        %v5944 = vsel %vm1160, %v5943, %v5942
        %v5945 = vsel %vm1163, %v5908, %v5944
        %v5946 = vrot.slane %v5909, 7
        %v5947 = vrot.slane %v5910, 6
        %v5948 = vsel %vm1145, %v5947, %v5946
        %v5949 = vrot.slane %v5911, 5
        %v5950 = vsel %vm1148, %v5949, %v5948
        %v5951 = vrot.slane %v5912, 4
        %v5952 = vsel %vm1151, %v5951, %v5950
        %v5953 = vrot.slane %v5913, 3
        %v5954 = vsel %vm1154, %v5953, %v5952
        %v5955 = vrot.slane %v5914, 2
        %v5956 = vsel %vm1157, %v5955, %v5954
        %v5957 = vrot.slane %v5915, 1
        %v5958 = vsel %vm1160, %v5957, %v5956
        %5962 = vst [vmem:[#allocation2 - $0x7] sm:$0x80] %v5900
        %5963 = vst [vmem:[#allocation2 + $0x1] sm:$0xff] %v5945
        %5964 = vst [vmem:[#allocation2 + $0x9] sm:$0x7f] %v5958
        %p5965 = scmp.eq.s32.totalorder %s18, 1
        // Predicated region
        $region76: #{classification_head.3} parent=66 // pred_check
          %p5966 = pneg %p5965
        $region77: #{classification_head.3} parent=66 // pred_check_branch
          %5968 = sbr.rel (%p5966) target = $region79
        $region78: #{classification_head.3} parent=66 // pred_region
          %v5969 = vld [vmem:[%s3] sm:$0xff]
          %v5970 = vld [vmem:[%s3 + $0x8] sm:$0xff]
          %v5971 = vld [vmem:[%s3 + $0x10] sm:$0xff]
          %v5972 = vld [vmem:[%s3 + $0x18] sm:$0xff]
          %v5973 = vld [vmem:[%s3 + $0x20] sm:$0xff]
          %v5974 = vld [vmem:[%s3 + $0x28] sm:$0xff]
          %v5975 = vld [vmem:[%s3 + $0x30] sm:$0xff]
          %v5976 = vld [vmem:[%s3 + $0x38] sm:$0xff]
          %v5977 = vld [vmem:[%s3 + $0x40] sm:$0xff]
          %v5978 = vld [vmem:[%s3 + $0x48] sm:$0xff]
          %v5979 = vld [vmem:[%s3 + $0x50] sm:$0xff]
          %v5980 = vld [vmem:[%s3 + $0x58] sm:$0xff]
          %v5981 = vld [vmem:[%s3 + $0x60] sm:$0xff]
          %v5982 = vld [vmem:[%s3 + $0x68] sm:$0xff]
          %v5983 = vld [vmem:[%s3 + $0x70] sm:$0xff]
          %v5984 = vld [vmem:[%s3 + $0x78] sm:$0xff]
          %v5985 = vld [vmem:[%s4] sm:$0x1]
          %v5987 = vlaneseq
          %v5988 = vshrl.u32 %v5987, 7
          %v5989 = vsub.s32 0, %v5988
          %v5990 = vrot.slane %v5985, %v5989
          %v5992 = vrot.slane %v5900, 7
          %v5993 = vrot.slane %v5901, 6
          %v5994 = vsel %vm1145, %v5993, %v5992
          %v5995 = vrot.slane %v5902, 5
          %v5996 = vsel %vm1148, %v5995, %v5994
          %v5997 = vrot.slane %v5903, 4
          %v5998 = vsel %vm1151, %v5997, %v5996
          %v5999 = vrot.slane %v5904, 3
          %v6000 = vsel %vm1154, %v5999, %v5998
          %v6001 = vrot.slane %v5905, 2
          %v6002 = vsel %vm1157, %v6001, %v6000
          %v6003 = vrot.slane %v5906, 1
          %v6004 = vsel %vm1160, %v6003, %v6002
          %v6005 = vsel %vm1163, %v5907, %v6004
          %v6006 = vrot.slane %v5908, 7
          %v6007 = vrot.slane %v5909, 6
          %v6008 = vsel %vm1145, %v6007, %v6006
          %v6009 = vrot.slane %v5910, 5
          %v6010 = vsel %vm1148, %v6009, %v6008
          %v6011 = vrot.slane %v5911, 4
          %v6012 = vsel %vm1151, %v6011, %v6010
          %v6013 = vrot.slane %v5912, 3
          %v6014 = vsel %vm1154, %v6013, %v6012
          %v6015 = vrot.slane %v5913, 2
          %v6016 = vsel %vm1157, %v6015, %v6014
          %v6017 = vrot.slane %v5914, 1
          %v6018 = vsel %vm1160, %v6017, %v6016
          %v6019 = vsel %vm1163, %v5915, %v6018
          %6022 = vmatprep.subr.mxu0 0.0
          %6023 = vmatpush1.msra.mxu0 %v5969
          %6024 = vmatprep.subr.mxu0 0.0
          %6025 = vmatpush1.msra.mxu0 %v5970
          %6026 = vmatprep.subr.mxu0 0.0
          %6027 = vmatpush1.msra.mxu0 %v5971
          %6028 = vmatprep.subr.mxu0 0.0
          %6029 = vmatpush1.msra.mxu0 %v5972
          %6030 = vmatprep.subr.mxu0 0.0
          %6031 = vmatpush1.msra.mxu0 %v5973
          %6032 = vmatprep.subr.mxu0 0.0
          %6033 = vmatpush1.msra.mxu0 %v5974
          %6034 = vmatprep.subr.mxu0 0.0
          %6035 = vmatpush1.msra.mxu0 %v5975
          %6036 = vmatprep.subr.mxu0 0.0
          %6037 = vmatpush1.msra.mxu0 %v5976
          %6038 = vmatprep.subr.mxu0 0.0
          %6039 = vmatpush1.msra.mxu0 %v5977
          %6040 = vmatprep.subr.mxu0 0.0
          %6041 = vmatpush1.msra.mxu0 %v5978
          %6042 = vmatprep.subr.mxu0 0.0
          %6043 = vmatpush1.msra.mxu0 %v5979
          %6044 = vmatprep.subr.mxu0 0.0
          %6045 = vmatpush1.msra.mxu0 %v5980
          %6046 = vmatprep.subr.mxu0 0.0
          %6047 = vmatpush1.msra.mxu0 %v5981
          %6048 = vmatprep.subr.mxu0 0.0
          %6049 = vmatpush1.msra.mxu0 %v5982
          %6050 = vmatprep.subr.mxu0 0.0
          %6051 = vmatpush1.msra.mxu0 %v5983
          %6052 = vmatprep.subr.mxu0 0.0
          %6053 = vmatpush1.msra.mxu0 %v5984
          %6054 = vmatprep.subr.mxu0 0.0
          %6055 = vmatpush1.msra.mxu0 0.0
          %6056 = vmatprep.subr.mxu0 0.0
          %6057 = vmatpush1.msra.mxu0 0.0
          %6058 = vmatprep.subr.mxu0 0.0
          %6059 = vmatpush1.msra.mxu0 0.0
          %6060 = vmatprep.subr.mxu0 0.0
          %6061 = vmatpush1.msra.mxu0 0.0
          %6062 = vmatprep.subr.mxu0 0.0
          %6063 = vmatpush1.msra.mxu0 0.0
          %6064 = vmatprep.subr.mxu0 0.0
          %6065 = vmatpush1.msra.mxu0 0.0
          %6066 = vmatprep.subr.mxu0 0.0
          %6067 = vmatpush1.msra.mxu0 0.0
          %6068 = vmatprep.subr.mxu0 0.0
          %6069 = vmatpush1.msra.mxu0 0.0
          %6070 = vmatprep.subr.mxu0 0.0
          %6071 = vmatpush1.msra.mxu0 0.0
          %6072 = vmatprep.subr.mxu0 0.0
          %6073 = vmatpush1.msra.mxu0 0.0
          %6074 = vmatprep.subr.mxu0 0.0
          %6075 = vmatpush1.msra.mxu0 0.0
          %6076 = vmatprep.subr.mxu0 0.0
          %6077 = vmatpush1.msra.mxu0 0.0
          %6078 = vmatprep.subr.mxu0 0.0
          %6079 = vmatpush1.msra.mxu0 0.0
          %6080 = vmatprep.subr.mxu0 0.0
          %6081 = vmatpush1.msra.mxu0 0.0
          %6082 = vmatprep.subr.mxu0 0.0
          %6083 = vmatpush1.msra.mxu0 0.0
          %6084 = vmatprep.subr.mxu0 0.0
          %6085 = vmatpush1.msra.mxu0 0.0
          %6086 = vmatprep.mubr.f32.mxu0 0.0
          %6087 = vmatmul.mubr.f32.gmra.mrb[0].mxu0 %v6005
          %v6088 = vpop.f32.mrb[0].mxu0
          %v6089 = vadd.f32 %v5990, %v6088
          %v6090 = vpop.f32.mrb[0].mxu0
          %6091 = vmatprep.mubr.f32.mxu0 0.0
          %6092 = vmatmul.mubr.f32.gmra.mrb[0].mxu0 %v6019
          %v6093 = vpop.f32.mrb[0].mxu0
          %v6094 = vadd.f32 %v5990, %v6093
          %v6095 = vpop.f32.mrb[0].mxu0
          %6096 = vdwg.mxu0
          %v6097 = vtanh.pop %v6089
          %v6098 = vtanh.pop %v6094
          %v6099 = vld [vmem:[%s5] sm:$0xff]
          %v6100 = vld [vmem:[%s5 + $0x8] sm:$0xff]
          %v6101 = vld [vmem:[%s5 + $0x10] sm:$0xff]
          %v6102 = vld [vmem:[%s5 + $0x18] sm:$0xff]
          %v6103 = vld [vmem:[%s5 + $0x20] sm:$0xff]
          %v6104 = vld [vmem:[%s5 + $0x28] sm:$0xff]
          %v6105 = vld [vmem:[%s5 + $0x30] sm:$0xff]
          %v6106 = vld [vmem:[%s5 + $0x38] sm:$0xff]
          %v6107 = vld [vmem:[%s5 + $0x40] sm:$0xff]
          %v6108 = vld [vmem:[%s5 + $0x48] sm:$0xff]
          %v6109 = vld [vmem:[%s5 + $0x50] sm:$0xff]
          %v6110 = vld [vmem:[%s5 + $0x58] sm:$0xff]
          %v6111 = vld [vmem:[%s5 + $0x60] sm:$0xff]
          %v6112 = vld [vmem:[%s5 + $0x68] sm:$0xff]
          %v6113 = vld [vmem:[%s5 + $0x70] sm:$0xff]
          %v6114 = vld [vmem:[%s5 + $0x78] sm:$0xff]
          %v6115 = vld [vmem:[%s6] sm:$0x1]
          %v6117 = vlaneseq
          %v6118 = vshrl.u32 %v6117, 7
          %v6119 = vsub.s32 0, %v6118
          %v6120 = vrot.slane %v6115, %v6119
          %6122 = vmatprep.subr.mxu0 0.0
          %6123 = vmatpush1.msra.mxu0 %v6099
          %6124 = vmatprep.subr.mxu0 0.0
          %6125 = vmatpush1.msra.mxu0 %v6100
          %6126 = vmatprep.subr.mxu0 0.0
          %6127 = vmatpush1.msra.mxu0 %v6101
          %6128 = vmatprep.subr.mxu0 0.0
          %6129 = vmatpush1.msra.mxu0 %v6102
          %6130 = vmatprep.subr.mxu0 0.0
          %6131 = vmatpush1.msra.mxu0 %v6103
          %6132 = vmatprep.subr.mxu0 0.0
          %6133 = vmatpush1.msra.mxu0 %v6104
          %6134 = vmatprep.subr.mxu0 0.0
          %6135 = vmatpush1.msra.mxu0 %v6105
          %6136 = vmatprep.subr.mxu0 0.0
          %6137 = vmatpush1.msra.mxu0 %v6106
          %6138 = vmatprep.subr.mxu0 0.0
          %6139 = vmatpush1.msra.mxu0 %v6107
          %6140 = vmatprep.subr.mxu0 0.0
          %6141 = vmatpush1.msra.mxu0 %v6108
          %6142 = vmatprep.subr.mxu0 0.0
          %6143 = vmatpush1.msra.mxu0 %v6109
          %6144 = vmatprep.subr.mxu0 0.0
          %6145 = vmatpush1.msra.mxu0 %v6110
          %6146 = vmatprep.subr.mxu0 0.0
          %6147 = vmatpush1.msra.mxu0 %v6111
          %6148 = vmatprep.subr.mxu0 0.0
          %6149 = vmatpush1.msra.mxu0 %v6112
          %6150 = vmatprep.subr.mxu0 0.0
          %6151 = vmatpush1.msra.mxu0 %v6113
          %6152 = vmatprep.subr.mxu0 0.0
          %6153 = vmatpush1.msra.mxu0 %v6114
          %6154 = vmatprep.subr.mxu0 0.0
          %6155 = vmatpush1.msra.mxu0 0.0
          %6156 = vmatprep.subr.mxu0 0.0
          %6157 = vmatpush1.msra.mxu0 0.0
          %6158 = vmatprep.subr.mxu0 0.0
          %6159 = vmatpush1.msra.mxu0 0.0
          %6160 = vmatprep.subr.mxu0 0.0
          %6161 = vmatpush1.msra.mxu0 0.0
          %6162 = vmatprep.subr.mxu0 0.0
          %6163 = vmatpush1.msra.mxu0 0.0
          %6164 = vmatprep.subr.mxu0 0.0
          %6165 = vmatpush1.msra.mxu0 0.0
          %6166 = vmatprep.subr.mxu0 0.0
          %6167 = vmatpush1.msra.mxu0 0.0
          %6168 = vmatprep.subr.mxu0 0.0
          %6169 = vmatpush1.msra.mxu0 0.0
          %6170 = vmatprep.subr.mxu0 0.0
          %6171 = vmatpush1.msra.mxu0 0.0
          %6172 = vmatprep.subr.mxu0 0.0
          %6173 = vmatpush1.msra.mxu0 0.0
          %6174 = vmatprep.subr.mxu0 0.0
          %6175 = vmatpush1.msra.mxu0 0.0
          %6176 = vmatprep.subr.mxu0 0.0
          %6177 = vmatpush1.msra.mxu0 0.0
          %6178 = vmatprep.subr.mxu0 0.0
          %6179 = vmatpush1.msra.mxu0 0.0
          %6180 = vmatprep.subr.mxu0 0.0
          %6181 = vmatpush1.msra.mxu0 0.0
          %6182 = vmatprep.subr.mxu0 0.0
          %6183 = vmatpush1.msra.mxu0 0.0
          %6184 = vmatprep.subr.mxu0 0.0
          %6185 = vmatpush1.msra.mxu0 0.0
          %6186 = vmatprep.mubr.f32.mxu0 0.0
          %6187 = vmatmul.mubr.f32.gmra.mrb[0].mxu0 %v6097
          %v6188 = vpop.f32.mrb[0].mxu0
          %v6189 = vadd.f32 %v6120, %v6188
          %v6190 = vpop.f32.mrb[0].mxu0
          %6191 = vmatprep.mubr.f32.mxu0 0.0
          %6192 = vmatmul.mubr.f32.gmra.mrb[0].mxu0 %v6098
          %v6193 = vpop.f32.mrb[0].mxu0
          %v6194 = vadd.f32 %v6120, %v6193
          %v6195 = vpop.f32.mrb[0].mxu0
          %6196 = vdwg.mxu0
          %vm6197 = vcmask 15360
          %6198 = vst.msk [vmem:[%s7] sm:$0xff] %vm6197, %v6189
          %6199 = vst.msk [vmem:[%s7 + $0x8] sm:$0xff] %vm6197, %v6194
        $region79: #{classification_head.3} parent=66 // pred_fallthru
          _
        // Predicated region
        $region80: #{classification_head.3} parent=66 // pred_check
          %p6200 = pneg %p183
        $region81: #{classification_head.3} parent=66 // pred_check_branch
          %6202 = sbr.rel (%p6200) target = $region83
        $region82: #{classification_head.3} parent=66 // pred_region
          _
        $region83: #{classification_head.3} parent=66 // pred_fallthru
          _
        // Predicated region
        $region84: #{classification_head.3} parent=66 // pred_check
          %p6203 = pneg %p183
        $region85: #{classification_head.3} parent=66 // pred_check_branch
          %6205 = sbr.rel (%p6203) target = $region87
        $region86: #{classification_head.3} parent=66 // pred_region
          _
        $region87: #{classification_head.3} parent=66 // pred_fallthru
          _
      $region67: #{classification_head.3} parent=5 // pred_fallthru
        _
      %p6206 = scmp.le.s32.totalorder 2, %s13
      // Predicated region
      $region88: #{classification_head.3} parent=5 // pred_check
        %p6207 = pneg %p6206
      $region89: #{classification_head.3} parent=5 // pred_check_branch
        %6209 = sbr.rel (%p6207) target = $region91
      $region90: #{classification_head.3} parent=5 // pred_region
        %s6210 = ssub.s32 %s13, 2
      $region91: #{classification_head.3} parent=5 // pred_fallthru
        _
    $region6: #{classification_head.3} parent=1 // loop_footer
      %s17 = sadd.s32 1, %s13
    $region7: #{classification_head.3} parent=1 // loop_footer_branch
      %12 = sbr.rel target = $region3
    $region8: #{classification_head.3} parent=1 // loop_exit
      _

</llo_original>
